<compile_context>
chip_gen: v6e
topology: v6e:2x2x1
jax: 0.10.0
libtpu: 0.0.40
codegen_flags: <defaults>
</compile_context>

<pallas_src>
import functools

import jax
import jax.numpy as jnp
from jax.experimental import pallas as pl
from jax.experimental.pallas import tpu as pltpu

NUM_BRANCHES = 4   # head1..head4
KMAX = 7           # largest head kernel / final conv kernel / sk mlp kernel


def _pick_row_tile(H, W):
    # Largest row tile (<= 64 rows) that divides H, is a multiple of 8, and keeps the
    # flattened per-tile output lane-dense (multiple of 128).  Whole-image fallback.
    for t in (64, 32, 16, 8):
        if t <= H and H % t == 0 and (t * W) % 128 == 0:
            return t
    return H


# ---------------------------------------------------------------------------
# Kernel 1: fused multi-scale heads  +  per-tile pooled partial sums
# ---------------------------------------------------------------------------
def _heads_kernel(xpad_ref, w_ref, b_ref, heads_ref, psum_ref, *, TR, W, K):
    # xpad_ref : (1, H+K-1, W+K-1, C)   full padded input image (this batch element)
    # w_ref    : (K, K*C, 4C)           head kernels, kernel-row (di) folded into contraction
    # b_ref    : (1, 4C)
    # heads_ref: (1, TR, W, 4C)         output row tile
    # psum_ref : (1, 1, 1, 4C)          per-(b, row-tile) partial spatial sum (no RMW)
    r = pl.program_id(1)
    KC = w_ref.shape[1]
    C4 = w_ref.shape[2]

    start = pl.multiple_of(r * TR, TR)
    strip = xpad_ref[0, pl.ds(start, TR + K - 1), :, :]                   # (TR+K-1, W+K-1, C)
    # im2col along the kernel-row axis: folded channel index = di*C + ci (matches w_ref)
    cat = jnp.concatenate([strip[di:di + TR] for di in range(K)], axis=-1)  # (TR, W+K-1, K*C)

    # two alternating accumulators -> MXU result pops overlap with the f32 adds
    accs = [jnp.zeros((TR * W, C4), jnp.float32) for _ in range(2)]
    for dj in range(K):
        tap = cat[:, dj:dj + W, :].reshape(TR * W, KC)                    # (TR*W, K*C)
        accs[dj % 2] = accs[dj % 2] + jnp.dot(
            tap, w_ref[dj], preferred_element_type=jnp.float32)
    acc = accs[0] + accs[1] + b_ref[...]                                  # (TR*W, 4C)

    heads_ref[0] = acc.reshape(TR, W, C4)
    psum_ref[0, 0] = jnp.sum(acc, axis=0, keepdims=True)                  # (1, 4C)


# ---------------------------------------------------------------------------
# Kernel 2: SK attention folded into the final 7x7 conv (5C -> 3) + tanh
# ---------------------------------------------------------------------------
def _fuse_final_kernel(hpad_ref, attn_ref, w1_ref, w2_ref, b_ref, out_ref, *, TR, W, K):
    # hpad_ref : (1, H+K-1, W+K-1, 4C)  padded heads image
    # attn_ref : (1, 1, 4C)             SK attention weights (branch-concat layout)
    # w1_ref   : (K, 3, K*4C)           conv weight, heads channels   (dj, o, di*4C + c)
    # w2_ref   : (K, 3, K*4C)           conv weight, sk channels tiled over branches
    # b_ref    : (3, 1)
    # out_ref  : (1, 3, TR*W)           lane-dense output tile
    r = pl.program_id(1)
    KC4 = w1_ref.shape[-1]

    # fold the SK channel attention into the conv weight (one small FMA, once per tile)
    a_t = jnp.concatenate([attn_ref[0]] * K, axis=-1)                     # (1, K*4C)
    w_eff = w1_ref[...] + a_t[None, :, :] * w2_ref[...]                   # (K, 3, K*4C)

    start = pl.multiple_of(r * TR, TR)
    strip = hpad_ref[0, pl.ds(start, TR + K - 1), :, :]                   # (TR+K-1, W+K-1, 4C)
    cat = jnp.concatenate([strip[di:di + TR] for di in range(K)], axis=-1)  # (TR, W+K-1, K*4C)

    accs = [jnp.zeros((3, TR * W), jnp.float32) for _ in range(2)]
    for dj in range(K):
        tap = cat[:, dj:dj + W, :].reshape(TR * W, KC4)                   # (TR*W, K*4C)
        # (3, K*4C) x (TR*W, K*4C) contracting last dims -> (3, TR*W): the 3-wide dim sits
        # on the cheap (sublane) side of the MXU and the result is lane-dense.
        accs[dj % 2] = accs[dj % 2] + jax.lax.dot_general(
            w_eff[dj], tap, (((1,), (1,)), ((), ())),
            preferred_element_type=jnp.float32)
    out_ref[0] = jnp.tanh(accs[0] + accs[1] + b_ref[...])                 # (3, TR*W)


# ---------------------------------------------------------------------------
# Forward wrapper
# ---------------------------------------------------------------------------
def mschead_forward(x_nchw, params):
    B, C, H, W = x_nchw.shape
    C4 = NUM_BRANCHES * C
    pad = KMAX // 2

    TR = _pick_row_tile(H, W)
    rt = H // TR

    # single NCHW -> NHWC conversion (+ zero pad for the 7x7 receptive field)
    x_nhwc = jnp.transpose(x_nchw, (0, 2, 3, 1))
    xpad = jnp.pad(x_nhwc, ((0, 0), (pad, pad), (pad, pad), (0, 0)))

    # ---- kernel 1: fused heads + per-tile pooled partial sums ---------------
    heads, psum = pl.pallas_call(
        functools.partial(_heads_kernel, TR=TR, W=W, K=KMAX),
        out_shape=(jax.ShapeDtypeStruct((B, H, W, C4), jnp.float32),
                   jax.ShapeDtypeStruct((B, rt, 1, C4), jnp.float32)),
        grid=(B, rt),
        in_specs=[
            pl.BlockSpec((1, H + 2 * pad, W + 2 * pad, C), lambda b, r: (b, 0, 0, 0)),
            pl.BlockSpec((KMAX, KMAX * C, C4), lambda b, r: (0, 0, 0)),
            pl.BlockSpec((1, C4), lambda b, r: (0, 0)),
        ],
        out_specs=(
            pl.BlockSpec((1, TR, W, C4), lambda b, r: (b, r, 0, 0)),
            pl.BlockSpec((1, 1, 1, C4), lambda b, r: (b, r, 0, 0)),
        ),
        compiler_params=pltpu.CompilerParams(
            dimension_semantics=("parallel", "parallel")),
    )(xpad, params["w_heads"], params["b_heads"])

    # ---- SK attention in plain JAX (tiny; a pallas_call launch is pure overhead) ----
    pooled = (jnp.sum(psum[:, :, 0, :], axis=1)
              .reshape(B, NUM_BRANCHES, C).sum(axis=1)) / float(H * W)      # (B, C)
    zp = jnp.pad(pooled, ((0, 0), (pad, pad)))
    z = jnp.stack([sum(params["mw"][h, 0, t] * zp[:, t:t + C] for t in range(KMAX))
                   + params["mb"][h] for h in range(NUM_BRANCHES)], axis=1)  # (B, 4, C)
    attn = jax.nn.softmax(z, axis=1).reshape(B, 1, C4)                       # concat layout

    # ---- kernel 2: attention-folded final conv + tanh -----------------------
    heads_pad = jnp.pad(heads, ((0, 0), (pad, pad), (pad, pad), (0, 0)))
    out_pix = pl.pallas_call(
        functools.partial(_fuse_final_kernel, TR=TR, W=W, K=KMAX),
        out_shape=jax.ShapeDtypeStruct((B, 3, H * W), jnp.float32),
        grid=(B, rt),
        in_specs=[
            pl.BlockSpec((1, H + 2 * pad, W + 2 * pad, C4), lambda b, r: (b, 0, 0, 0)),
            pl.BlockSpec((1, 1, C4), lambda b, r: (b, 0, 0)),
            pl.BlockSpec((KMAX, 3, KMAX * C4), lambda b, r: (0, 0, 0)),
            pl.BlockSpec((KMAX, 3, KMAX * C4), lambda b, r: (0, 0, 0)),
            pl.BlockSpec((3, 1), lambda b, r: (0, 0)),
        ],
        out_specs=pl.BlockSpec((1, 3, TR * W), lambda b, r: (b, 0, r)),
        compiler_params=pltpu.CompilerParams(
            dimension_semantics=("parallel", "parallel")),
    )(heads_pad, attn, params["w_fin1"], params["w_fin2"], params["b_final"])

    # output is already channel-major; splitting the flattened pixel axis is free
    return out_pix.reshape(B, 3, H, W)


# ---------------------------------------------------------------------------
# Parameters: PyTorch-layout weights + host-side prep into kernel layouts
# ---------------------------------------------------------------------------
def init_torch_params(key, C):
    ks = jax.random.split(key, 12)

    def conv_w(k, o, i, kk):
        return jax.random.normal(k, (o, i, kk, kk), jnp.float32) / float(i * kk * kk) ** 0.5

    def bias(k, n):
        return 0.1 * jax.random.normal(k, (n,), jnp.float32)

    return {
        "w1": conv_w(ks[0], C, C, 1), "b1": bias(ks[1], C),
        "w2": conv_w(ks[2], C, C, 3), "b2": bias(ks[3], C),
        "w3": conv_w(ks[4], C, C, 5), "b3": bias(ks[5], C),
        "w4": conv_w(ks[6], C, C, 7), "b4": bias(ks[7], C),
        "mw": jax.random.normal(ks[8], (NUM_BRANCHES, 1, KMAX), jnp.float32) / float(KMAX) ** 0.5,
        "mb": bias(ks[9], NUM_BRANCHES),
        "wb": conv_w(ks[10], 3, 5 * C, 7), "bb": bias(ks[11], 3),
    }


def prepare_params(pt, C):
    K = KMAX
    C4 = NUM_BRANCHES * C

    def embed(w_oihw):  # (O, I, kk, kk) -> (K, K, I, O), centered zero-embedded
        kk = w_oihw.shape[-1]
        off = (K - kk) // 2
        w_hwio = jnp.transpose(w_oihw, (2, 3, 1, 0))
        return jnp.pad(w_hwio, ((off, off), (off, off), (0, 0), (0, 0)))

    w_heads = jnp.concatenate([embed(pt["w1"]), embed(pt["w2"]),
                               embed(pt["w3"]), embed(pt["w4"])], axis=-1)      # (7,7,C,4C)
    # fold the kernel-row axis into the contraction axis: (dj, di*C + ci, o)
    w_heads_fold = jnp.transpose(w_heads, (1, 0, 2, 3)).reshape(K, K * C, C4)
    b_heads = jnp.concatenate([pt["b1"], pt["b2"], pt["b3"], pt["b4"]])[None, :]

    wb_hwio = jnp.transpose(pt["wb"], (2, 3, 1, 0))                             # (7,7,5C,3)
    w_fin_heads = wb_hwio[:, :, :C4, :]                                         # (7,7,4C,3)
    w_fin_sk = jnp.tile(wb_hwio[:, :, C4:, :], (1, 1, NUM_BRANCHES, 1))         # (7,7,4C,3)

    def fold_fin(w):  # (di, dj, c4, o) -> lane-dense (dj, o, di*4C + c4)
        return jnp.transpose(w, (1, 3, 0, 2)).reshape(K, 3, K * C4)

    return {
        "w_heads": w_heads_fold, "b_heads": b_heads,
        "w_fin1": fold_fin(w_fin_heads), "w_fin2": fold_fin(w_fin_sk),
        "b_final": pt["bb"][:, None],                                           # (3, 1)
        "mw": pt["mw"], "mb": pt["mb"],
    }


# ---------------------------------------------------------------------------
# Pure-JAX reference (same intended semantics, NCHW)
# ---------------------------------------------------------------------------
def reference_forward(x, pt):
    def conv(x_, w, b, p):
        y = jax.lax.conv_general_dilated(
            x_, w, (1, 1), [(p, p), (p, p)],
            dimension_numbers=("NCHW", "OIHW", "NCHW"),
            precision=jax.lax.Precision.HIGHEST)
        return y + b[None, :, None, None]

    C = x.shape[1]
    x1 = conv(x, pt["w1"], pt["b1"], 0)
    x2 = conv(x, pt["w2"], pt["b2"], 1)
    x3 = conv(x, pt["w3"], pt["b3"], 2)
    x4 = conv(x, pt["w4"], pt["b4"], 3)
    feats = jnp.stack([x1, x2, x3, x4], axis=1)                   # (B,4,C,H,W)
    pooled = jnp.mean(jnp.sum(feats, axis=1), axis=(2, 3))        # (B,C)
    zp = jnp.pad(pooled, ((0, 0), (KMAX // 2, KMAX // 2)))
    z = jnp.stack([sum(pt["mw"][h, 0, t] * zp[:, t:t + C] for t in range(KMAX))
                   + pt["mb"][h] for h in range(NUM_BRANCHES)], axis=1)  # (B,4,C)
    a = jax.nn.softmax(z, axis=1)
    sk = jnp.sum(feats * a[:, :, :, None, None], axis=1)
    cat = jnp.concatenate([x1, x2, x3, x4, sk], axis=1)
    return jnp.tanh(conv(cat, pt["wb"], pt["bb"], 3))


if __name__ == "__main__":
    B, C, H, W = 2, 32, 16, 16
    key = jax.random.PRNGKey(0)
    kx, kp = jax.random.split(key)
    x = jax.random.normal(kx, (B, C, H, W), jnp.float32)
    pt = init_torch_params(kp, C)
    params = prepare_params(pt, C)

    fwd = jax.jit(mschead_forward)
    y = fwd(x, params)
    jax.block_until_ready(y)

    assert y.shape == (B, 3, H, W)
    assert bool(jnp.all(jnp.isfinite(y)))
    y_ref = reference_forward(x, pt)
    err = float(jnp.max(jnp.abs(y - y_ref)))
    assert err < 5e-3, f"max abs err vs reference: {err}"
    print("KERNEL_OK")
</pallas_src>

<mosaic_0001>
module attributes {stable_mosaic.version = 11 : i64} {
  func.func @_heads_kernel(%arg0: i32, %arg1: i32, %arg2: memref<1x22x22x32xf32, #tpu.memory_space<vmem>>, %arg3: memref<7x224x128xf32, #tpu.memory_space<vmem>>, %arg4: memref<1x128xf32, #tpu.memory_space<vmem>>, %arg5: memref<1x16x16x128xf32, #tpu.memory_space<vmem>>, %arg6: memref<1x1x1x128xf32, #tpu.memory_space<vmem>>) attributes {dimension_semantics = [#tpu.dimension_semantics<parallel>, #tpu.dimension_semantics<parallel>], iteration_bounds = array<i64: 2, 1>, scalar_prefetch = 0 : i64, scratch_operands = 0 : i64, tpu.core_type = #tpu.core_type<tc>, window_params = [{transform_indices = @transform_0, window_bounds = array<i64: 1, 22, 22, 32>}, {pipeline_mode = #tpu.pipeline_mode<synchronous>, transform_indices = @transform_1, window_bounds = array<i64: 7, 224, 128>}, {pipeline_mode = #tpu.pipeline_mode<synchronous>, transform_indices = @transform_2, window_bounds = array<i64: 1, 128>}, {transform_indices = @transform_3, window_bounds = array<i64: 1, 16, 16, 128>}, {transform_indices = @transform_4, window_bounds = array<i64: 1, 1, 1, 128>}]} {
    %c16_i32 = arith.constant 16 : i32
    %0 = arith.muli %arg1, %c16_i32 : i32
    %1 = tpu.assume_multiple %0, 16 : i32
    %c0 = arith.constant 0 : index
    %2 = arith.index_cast %1 : i32 to index
    %c0_0 = arith.constant 0 : index
    %c0_1 = arith.constant 0 : index
    %3 = vector.load %arg2[%c0, %2, %c0_0, %c0_1] : memref<1x22x22x32xf32, #tpu.memory_space<vmem>>, vector<1x22x22x32xf32>
    %4 = vector.shape_cast %3 : vector<1x22x22x32xf32> to vector<22x22x32xf32>
    %5 = vector.extract_strided_slice %4 {offsets = [0, 0, 0], sizes = [16, 22, 32], strides = [1, 1, 1]} : vector<22x22x32xf32> to vector<16x22x32xf32>
    %6 = vector.extract_strided_slice %4 {offsets = [1, 0, 0], sizes = [16, 22, 32], strides = [1, 1, 1]} : vector<22x22x32xf32> to vector<16x22x32xf32>
    %7 = vector.extract_strided_slice %4 {offsets = [2, 0, 0], sizes = [16, 22, 32], strides = [1, 1, 1]} : vector<22x22x32xf32> to vector<16x22x32xf32>
    %8 = vector.extract_strided_slice %4 {offsets = [3, 0, 0], sizes = [16, 22, 32], strides = [1, 1, 1]} : vector<22x22x32xf32> to vector<16x22x32xf32>
    %9 = vector.extract_strided_slice %4 {offsets = [4, 0, 0], sizes = [16, 22, 32], strides = [1, 1, 1]} : vector<22x22x32xf32> to vector<16x22x32xf32>
    %10 = vector.extract_strided_slice %4 {offsets = [5, 0, 0], sizes = [16, 22, 32], strides = [1, 1, 1]} : vector<22x22x32xf32> to vector<16x22x32xf32>
    %11 = vector.extract_strided_slice %4 {offsets = [6, 0, 0], sizes = [16, 22, 32], strides = [1, 1, 1]} : vector<22x22x32xf32> to vector<16x22x32xf32>
    %12 = tpu.concatenate %5, %6, %7, %8, %9, %10, %11 in 2 : vector<16x22x32xf32>, vector<16x22x32xf32>, vector<16x22x32xf32>, vector<16x22x32xf32>, vector<16x22x32xf32>, vector<16x22x32xf32>, vector<16x22x32xf32> -> vector<16x22x224xf32>
    %cst = arith.constant 0.000000e+00 : f32
    %13 = vector.broadcast %cst : f32 to vector<256x128xf32>
    %cst_2 = arith.constant 0.000000e+00 : f32
    %14 = vector.broadcast %cst_2 : f32 to vector<256x128xf32>
    %15 = vector.extract_strided_slice %12 {offsets = [0, 0, 0], sizes = [16, 16, 224], strides = [1, 1, 1]} : vector<16x22x224xf32> to vector<16x16x224xf32>
    %16 = vector.shape_cast %15 : vector<16x16x224xf32> to vector<256x224xf32>
    %c0_3 = arith.constant 0 : index
    %c0_4 = arith.constant 0 : index
    %c0_5 = arith.constant 0 : index
    %17 = vector.load %arg3[%c0_3, %c0_4, %c0_5] : memref<7x224x128xf32, #tpu.memory_space<vmem>>, vector<1x224x128xf32>
    %18 = vector.shape_cast %17 : vector<1x224x128xf32> to vector<224x128xf32>
    %cst_6 = arith.constant dense<0.000000e+00> : vector<256x128xf32>
    %19 = tpu.matmul %16, %18, %cst_6 {dimension_numbers = #tpu.dot_dimension_numbers<[1], [0], [0], [1], [0, 0, 1, 1], [], []>} : vector<256x224xf32>, vector<224x128xf32>, vector<256x128xf32> -> vector<256x128xf32>
    %20 = arith.addf %13, %19 : vector<256x128xf32>
    %21 = vector.extract_strided_slice %12 {offsets = [0, 1, 0], sizes = [16, 16, 224], strides = [1, 1, 1]} : vector<16x22x224xf32> to vector<16x16x224xf32>
    %22 = vector.shape_cast %21 : vector<16x16x224xf32> to vector<256x224xf32>
    %c1 = arith.constant 1 : index
    %c0_7 = arith.constant 0 : index
    %c0_8 = arith.constant 0 : index
    %23 = vector.load %arg3[%c1, %c0_7, %c0_8] : memref<7x224x128xf32, #tpu.memory_space<vmem>>, vector<1x224x128xf32>
    %24 = vector.shape_cast %23 : vector<1x224x128xf32> to vector<224x128xf32>
    %cst_9 = arith.constant dense<0.000000e+00> : vector<256x128xf32>
    %25 = tpu.matmul %22, %24, %cst_9 {dimension_numbers = #tpu.dot_dimension_numbers<[1], [0], [0], [1], [0, 0, 1, 1], [], []>} : vector<256x224xf32>, vector<224x128xf32>, vector<256x128xf32> -> vector<256x128xf32>
    %26 = arith.addf %14, %25 : vector<256x128xf32>
    %27 = vector.extract_strided_slice %12 {offsets = [0, 2, 0], sizes = [16, 16, 224], strides = [1, 1, 1]} : vector<16x22x224xf32> to vector<16x16x224xf32>
    %28 = vector.shape_cast %27 : vector<16x16x224xf32> to vector<256x224xf32>
    %c2 = arith.constant 2 : index
    %c0_10 = arith.constant 0 : index
    %c0_11 = arith.constant 0 : index
    %29 = vector.load %arg3[%c2, %c0_10, %c0_11] : memref<7x224x128xf32, #tpu.memory_space<vmem>>, vector<1x224x128xf32>
    %30 = vector.shape_cast %29 : vector<1x224x128xf32> to vector<224x128xf32>
    %cst_12 = arith.constant dense<0.000000e+00> : vector<256x128xf32>
    %31 = tpu.matmul %28, %30, %cst_12 {dimension_numbers = #tpu.dot_dimension_numbers<[1], [0], [0], [1], [0, 0, 1, 1], [], []>} : vector<256x224xf32>, vector<224x128xf32>, vector<256x128xf32> -> vector<256x128xf32>
    %32 = arith.addf %20, %31 : vector<256x128xf32>
    %33 = vector.extract_strided_slice %12 {offsets = [0, 3, 0], sizes = [16, 16, 224], strides = [1, 1, 1]} : vector<16x22x224xf32> to vector<16x16x224xf32>
    %34 = vector.shape_cast %33 : vector<16x16x224xf32> to vector<256x224xf32>
    %c3 = arith.constant 3 : index
    %c0_13 = arith.constant 0 : index
    %c0_14 = arith.constant 0 : index
    %35 = vector.load %arg3[%c3, %c0_13, %c0_14] : memref<7x224x128xf32, #tpu.memory_space<vmem>>, vector<1x224x128xf32>
    %36 = vector.shape_cast %35 : vector<1x224x128xf32> to vector<224x128xf32>
    %cst_15 = arith.constant dense<0.000000e+00> : vector<256x128xf32>
    %37 = tpu.matmul %34, %36, %cst_15 {dimension_numbers = #tpu.dot_dimension_numbers<[1], [0], [0], [1], [0, 0, 1, 1], [], []>} : vector<256x224xf32>, vector<224x128xf32>, vector<256x128xf32> -> vector<256x128xf32>
    %38 = arith.addf %26, %37 : vector<256x128xf32>
    %39 = vector.extract_strided_slice %12 {offsets = [0, 4, 0], sizes = [16, 16, 224], strides = [1, 1, 1]} : vector<16x22x224xf32> to vector<16x16x224xf32>
    %40 = vector.shape_cast %39 : vector<16x16x224xf32> to vector<256x224xf32>
    %c4 = arith.constant 4 : index
    %c0_16 = arith.constant 0 : index
    %c0_17 = arith.constant 0 : index
    %41 = vector.load %arg3[%c4, %c0_16, %c0_17] : memref<7x224x128xf32, #tpu.memory_space<vmem>>, vector<1x224x128xf32>
    %42 = vector.shape_cast %41 : vector<1x224x128xf32> to vector<224x128xf32>
    %cst_18 = arith.constant dense<0.000000e+00> : vector<256x128xf32>
    %43 = tpu.matmul %40, %42, %cst_18 {dimension_numbers = #tpu.dot_dimension_numbers<[1], [0], [0], [1], [0, 0, 1, 1], [], []>} : vector<256x224xf32>, vector<224x128xf32>, vector<256x128xf32> -> vector<256x128xf32>
    %44 = arith.addf %32, %43 : vector<256x128xf32>
    %45 = vector.extract_strided_slice %12 {offsets = [0, 5, 0], sizes = [16, 16, 224], strides = [1, 1, 1]} : vector<16x22x224xf32> to vector<16x16x224xf32>
    %46 = vector.shape_cast %45 : vector<16x16x224xf32> to vector<256x224xf32>
    %c5 = arith.constant 5 : index
    %c0_19 = arith.constant 0 : index
    %c0_20 = arith.constant 0 : index
    %47 = vector.load %arg3[%c5, %c0_19, %c0_20] : memref<7x224x128xf32, #tpu.memory_space<vmem>>, vector<1x224x128xf32>
    %48 = vector.shape_cast %47 : vector<1x224x128xf32> to vector<224x128xf32>
    %cst_21 = arith.constant dense<0.000000e+00> : vector<256x128xf32>
    %49 = tpu.matmul %46, %48, %cst_21 {dimension_numbers = #tpu.dot_dimension_numbers<[1], [0], [0], [1], [0, 0, 1, 1], [], []>} : vector<256x224xf32>, vector<224x128xf32>, vector<256x128xf32> -> vector<256x128xf32>
    %50 = arith.addf %38, %49 : vector<256x128xf32>
    %51 = vector.extract_strided_slice %12 {offsets = [0, 6, 0], sizes = [16, 16, 224], strides = [1, 1, 1]} : vector<16x22x224xf32> to vector<16x16x224xf32>
    %52 = vector.shape_cast %51 : vector<16x16x224xf32> to vector<256x224xf32>
    %c6 = arith.constant 6 : index
    %c0_22 = arith.constant 0 : index
    %c0_23 = arith.constant 0 : index
    %53 = vector.load %arg3[%c6, %c0_22, %c0_23] : memref<7x224x128xf32, #tpu.memory_space<vmem>>, vector<1x224x128xf32>
    %54 = vector.shape_cast %53 : vector<1x224x128xf32> to vector<224x128xf32>
    %cst_24 = arith.constant dense<0.000000e+00> : vector<256x128xf32>
    %55 = tpu.matmul %52, %54, %cst_24 {dimension_numbers = #tpu.dot_dimension_numbers<[1], [0], [0], [1], [0, 0, 1, 1], [], []>} : vector<256x224xf32>, vector<224x128xf32>, vector<256x128xf32> -> vector<256x128xf32>
    %56 = arith.addf %44, %55 : vector<256x128xf32>
    %57 = arith.addf %56, %50 : vector<256x128xf32>
    %c0_25 = arith.constant 0 : index
    %c0_26 = arith.constant 0 : index
    %58 = vector.load %arg4[%c0_25, %c0_26] : memref<1x128xf32, #tpu.memory_space<vmem>>, vector<1x128xf32>
    %59 = vector.broadcast %58 : vector<1x128xf32> to vector<256x128xf32>
    %60 = arith.addf %57, %59 : vector<256x128xf32>
    %61 = vector.shape_cast %60 : vector<256x128xf32> to vector<16x16x128xf32>
    %c0_27 = arith.constant 0 : index
    %c0_28 = arith.constant 0 : index
    %c0_29 = arith.constant 0 : index
    %c0_30 = arith.constant 0 : index
    %62 = vector.load %arg5[%c0_27, %c0_28, %c0_29, %c0_30] : memref<1x16x16x128xf32, #tpu.memory_space<vmem>>, vector<1x16x16x128xf32>
    %63 = vector.shape_cast %62 : vector<1x16x16x128xf32> to vector<16x16x128xf32>
    %64 = vector.shape_cast %61 : vector<16x16x128xf32> to vector<1x16x16x128xf32>
    tpu.vector_store %arg5[%c0_27, %c0_28, %c0_29, %c0_30], %64 {strides = array<i32>} : memref<1x16x16x128xf32, #tpu.memory_space<vmem>>, vector<1x16x16x128xf32>,
    %cst_31 = arith.constant dense<0.000000e+00> : vector<128xf32>
    %65 = vector.multi_reduction <add>, %60, %cst_31 [0] : vector<256x128xf32> to vector<128xf32>
    %66 = vector.shape_cast %65 : vector<128xf32> to vector<1x128xf32>
    %c0_32 = arith.constant 0 : index
    %c0_33 = arith.constant 0 : index
    %c0_34 = arith.constant 0 : index
    %c0_35 = arith.constant 0 : index
    %67 = vector.load %arg6[%c0_32, %c0_33, %c0_34, %c0_35] : memref<1x1x1x128xf32, #tpu.memory_space<vmem>>, vector<1x1x1x128xf32>
    %68 = vector.shape_cast %67 : vector<1x1x1x128xf32> to vector<1x128xf32>
    %69 = vector.shape_cast %66 : vector<1x128xf32> to vector<1x1x1x128xf32>
    tpu.vector_store %arg6[%c0_32, %c0_33, %c0_34, %c0_35], %69 {strides = array<i32>} : memref<1x1x1x128xf32, #tpu.memory_space<vmem>>, vector<1x1x1x128xf32>,
    return
  }
  func.func @transform_0(%arg0: i32, %arg1: i32) -> (i32, i32, i32, i32) {
    %c0_i32 = arith.constant 0 : i32
    %c0_i32_0 = arith.constant 0 : i32
    %c0_i32_1 = arith.constant 0 : i32
    %c0_i32_2 = arith.constant 0 : i32
    return %arg0, %c0_i32, %c0_i32_0, %c0_i32_1 : i32, i32, i32, i32
  }
  func.func @transform_1(%arg0: i32, %arg1: i32) -> (i32, i32, i32) {
    %c0_i32 = arith.constant 0 : i32
    %c0_i32_0 = arith.constant 0 : i32
    %c0_i32_1 = arith.constant 0 : i32
    %c0_i32_2 = arith.constant 0 : i32
    return %c0_i32, %c0_i32_0, %c0_i32_1 : i32, i32, i32
  }
  func.func @transform_2(%arg0: i32, %arg1: i32) -> (i32, i32) {
    %c0_i32 = arith.constant 0 : i32
    %c0_i32_0 = arith.constant 0 : i32
    %c0_i32_1 = arith.constant 0 : i32
    return %c0_i32, %c0_i32_0 : i32, i32
  }
  func.func @transform_3(%arg0: i32, %arg1: i32) -> (i32, i32, i32, i32) {
    %c0_i32 = arith.constant 0 : i32
    %c0_i32_0 = arith.constant 0 : i32
    %c0_i32_1 = arith.constant 0 : i32
    return %arg0, %arg1, %c0_i32, %c0_i32_0 : i32, i32, i32, i32
  }
  func.func @transform_4(%arg0: i32, %arg1: i32) -> (i32, i32, i32, i32) {
    %c0_i32 = arith.constant 0 : i32
    %c0_i32_0 = arith.constant 0 : i32
    %c0_i32_1 = arith.constant 0 : i32
    return %arg0, %arg1, %c0_i32, %c0_i32_0 : i32, i32, i32, i32
  }
}

module attributes {stable_mosaic.version = 11 : i64} {
  func.func @_fuse_final_kernel(%arg0: i32, %arg1: i32, %arg2: memref<1x22x22x128xf32, #tpu.memory_space<vmem>>, %arg3: memref<1x1x128xf32, #tpu.memory_space<vmem>>, %arg4: memref<7x3x896xf32, #tpu.memory_space<vmem>>, %arg5: memref<7x3x896xf32, #tpu.memory_space<vmem>>, %arg6: memref<3x1xf32, #tpu.memory_space<vmem>>, %arg7: memref<1x3x256xf32, #tpu.memory_space<vmem>>) attributes {dimension_semantics = [#tpu.dimension_semantics<parallel>, #tpu.dimension_semantics<parallel>], iteration_bounds = array<i64: 2, 1>, scalar_prefetch = 0 : i64, scratch_operands = 0 : i64, tpu.core_type = #tpu.core_type<tc>, window_params = [{transform_indices = @transform_0, window_bounds = array<i64: 1, 22, 22, 128>}, {transform_indices = @transform_1, window_bounds = array<i64: 1, 1, 128>}, {pipeline_mode = #tpu.pipeline_mode<synchronous>, transform_indices = @transform_2, window_bounds = array<i64: 7, 3, 896>}, {pipeline_mode = #tpu.pipeline_mode<synchronous>, transform_indices = @transform_3, window_bounds = array<i64: 7, 3, 896>}, {pipeline_mode = #tpu.pipeline_mode<synchronous>, transform_indices = @transform_4, window_bounds = array<i64: 3, 1>}, {transform_indices = @transform_5, window_bounds = array<i64: 1, 3, 256>}]} {
    %c0 = arith.constant 0 : index
    %c0_0 = arith.constant 0 : index
    %c0_1 = arith.constant 0 : index
    %0 = vector.load %arg3[%c0, %c0_0, %c0_1] : memref<1x1x128xf32, #tpu.memory_space<vmem>>, vector<1x1x128xf32>
    %1 = vector.shape_cast %0 : vector<1x1x128xf32> to vector<1x128xf32>
    %2 = tpu.concatenate %1, %1, %1, %1, %1, %1, %1 in 1 : vector<1x128xf32>, vector<1x128xf32>, vector<1x128xf32>, vector<1x128xf32>, vector<1x128xf32>, vector<1x128xf32>, vector<1x128xf32> -> vector<1x896xf32>
    %c0_2 = arith.constant 0 : index
    %c0_3 = arith.constant 0 : index
    %c0_4 = arith.constant 0 : index
    %3 = vector.load %arg4[%c0_2, %c0_3, %c0_4] : memref<7x3x896xf32, #tpu.memory_space<vmem>>, vector<7x3x896xf32>
    %4 = vector.shape_cast %2 : vector<1x896xf32> to vector<1x1x896xf32>
    %c0_5 = arith.constant 0 : index
    %c0_6 = arith.constant 0 : index
    %c0_7 = arith.constant 0 : index
    %5 = vector.load %arg5[%c0_5, %c0_6, %c0_7] : memref<7x3x896xf32, #tpu.memory_space<vmem>>, vector<7x3x896xf32>
    %6 = vector.broadcast %4 : vector<1x1x896xf32> to vector<7x3x896xf32>
    %7 = arith.mulf %6, %5 : vector<7x3x896xf32>
    %8 = arith.addf %3, %7 : vector<7x3x896xf32>
    %c16_i32 = arith.constant 16 : i32
    %9 = arith.muli %arg1, %c16_i32 : i32
    %10 = tpu.assume_multiple %9, 16 : i32
    %c0_8 = arith.constant 0 : index
    %11 = arith.index_cast %10 : i32 to index
    %c0_9 = arith.constant 0 : index
    %c0_10 = arith.constant 0 : index
    %12 = vector.load %arg2[%c0_8, %11, %c0_9, %c0_10] : memref<1x22x22x128xf32, #tpu.memory_space<vmem>>, vector<1x22x22x128xf32>
    %13 = vector.shape_cast %12 : vector<1x22x22x128xf32> to vector<22x22x128xf32>
    %14 = vector.extract_strided_slice %13 {offsets = [0, 0, 0], sizes = [16, 22, 128], strides = [1, 1, 1]} : vector<22x22x128xf32> to vector<16x22x128xf32>
    %15 = vector.extract_strided_slice %13 {offsets = [1, 0, 0], sizes = [16, 22, 128], strides = [1, 1, 1]} : vector<22x22x128xf32> to vector<16x22x128xf32>
    %16 = vector.extract_strided_slice %13 {offsets = [2, 0, 0], sizes = [16, 22, 128], strides = [1, 1, 1]} : vector<22x22x128xf32> to vector<16x22x128xf32>
    %17 = vector.extract_strided_slice %13 {offsets = [3, 0, 0], sizes = [16, 22, 128], strides = [1, 1, 1]} : vector<22x22x128xf32> to vector<16x22x128xf32>
    %18 = vector.extract_strided_slice %13 {offsets = [4, 0, 0], sizes = [16, 22, 128], strides = [1, 1, 1]} : vector<22x22x128xf32> to vector<16x22x128xf32>
    %19 = vector.extract_strided_slice %13 {offsets = [5, 0, 0], sizes = [16, 22, 128], strides = [1, 1, 1]} : vector<22x22x128xf32> to vector<16x22x128xf32>
    %20 = vector.extract_strided_slice %13 {offsets = [6, 0, 0], sizes = [16, 22, 128], strides = [1, 1, 1]} : vector<22x22x128xf32> to vector<16x22x128xf32>
    %21 = tpu.concatenate %14, %15, %16, %17, %18, %19, %20 in 2 : vector<16x22x128xf32>, vector<16x22x128xf32>, vector<16x22x128xf32>, vector<16x22x128xf32>, vector<16x22x128xf32>, vector<16x22x128xf32>, vector<16x22x128xf32> -> vector<16x22x896xf32>
    %cst = arith.constant 0.000000e+00 : f32
    %22 = vector.broadcast %cst : f32 to vector<3x256xf32>
    %cst_11 = arith.constant 0.000000e+00 : f32
    %23 = vector.broadcast %cst_11 : f32 to vector<3x256xf32>
    %24 = vector.extract_strided_slice %21 {offsets = [0, 0, 0], sizes = [16, 16, 896], strides = [1, 1, 1]} : vector<16x22x896xf32> to vector<16x16x896xf32>
    %25 = vector.shape_cast %24 : vector<16x16x896xf32> to vector<256x896xf32>
    %26 = vector.extract_strided_slice %8 {offsets = [0, 0, 0], sizes = [1, 3, 896], strides = [1, 1, 1]} : vector<7x3x896xf32> to vector<1x3x896xf32>
    %27 = vector.shape_cast %26 : vector<1x3x896xf32> to vector<3x896xf32>
    %cst_12 = arith.constant dense<0.000000e+00> : vector<3x256xf32>
    %28 = tpu.matmul %27, %25, %cst_12 {dimension_numbers = #tpu.dot_dimension_numbers<[1], [1], [0], [0], [0, 0, 1, 0], [], []>} : vector<3x896xf32>, vector<256x896xf32>, vector<3x256xf32> -> vector<3x256xf32>
    %29 = arith.addf %22, %28 : vector<3x256xf32>
    %30 = vector.extract_strided_slice %21 {offsets = [0, 1, 0], sizes = [16, 16, 896], strides = [1, 1, 1]} : vector<16x22x896xf32> to vector<16x16x896xf32>
    %31 = vector.shape_cast %30 : vector<16x16x896xf32> to vector<256x896xf32>
    %32 = vector.extract_strided_slice %8 {offsets = [1, 0, 0], sizes = [1, 3, 896], strides = [1, 1, 1]} : vector<7x3x896xf32> to vector<1x3x896xf32>
    %33 = vector.shape_cast %32 : vector<1x3x896xf32> to vector<3x896xf32>
    %cst_13 = arith.constant dense<0.000000e+00> : vector<3x256xf32>
    %34 = tpu.matmul %33, %31, %cst_13 {dimension_numbers = #tpu.dot_dimension_numbers<[1], [1], [0], [0], [0, 0, 1, 0], [], []>} : vector<3x896xf32>, vector<256x896xf32>, vector<3x256xf32> -> vector<3x256xf32>
    %35 = arith.addf %23, %34 : vector<3x256xf32>
    %36 = vector.extract_strided_slice %21 {offsets = [0, 2, 0], sizes = [16, 16, 896], strides = [1, 1, 1]} : vector<16x22x896xf32> to vector<16x16x896xf32>
    %37 = vector.shape_cast %36 : vector<16x16x896xf32> to vector<256x896xf32>
    %38 = vector.extract_strided_slice %8 {offsets = [2, 0, 0], sizes = [1, 3, 896], strides = [1, 1, 1]} : vector<7x3x896xf32> to vector<1x3x896xf32>
    %39 = vector.shape_cast %38 : vector<1x3x896xf32> to vector<3x896xf32>
    %cst_14 = arith.constant dense<0.000000e+00> : vector<3x256xf32>
    %40 = tpu.matmul %39, %37, %cst_14 {dimension_numbers = #tpu.dot_dimension_numbers<[1], [1], [0], [0], [0, 0, 1, 0], [], []>} : vector<3x896xf32>, vector<256x896xf32>, vector<3x256xf32> -> vector<3x256xf32>
    %41 = arith.addf %29, %40 : vector<3x256xf32>
    %42 = vector.extract_strided_slice %21 {offsets = [0, 3, 0], sizes = [16, 16, 896], strides = [1, 1, 1]} : vector<16x22x896xf32> to vector<16x16x896xf32>
    %43 = vector.shape_cast %42 : vector<16x16x896xf32> to vector<256x896xf32>
    %44 = vector.extract_strided_slice %8 {offsets = [3, 0, 0], sizes = [1, 3, 896], strides = [1, 1, 1]} : vector<7x3x896xf32> to vector<1x3x896xf32>
    %45 = vector.shape_cast %44 : vector<1x3x896xf32> to vector<3x896xf32>
    %cst_15 = arith.constant dense<0.000000e+00> : vector<3x256xf32>
    %46 = tpu.matmul %45, %43, %cst_15 {dimension_numbers = #tpu.dot_dimension_numbers<[1], [1], [0], [0], [0, 0, 1, 0], [], []>} : vector<3x896xf32>, vector<256x896xf32>, vector<3x256xf32> -> vector<3x256xf32>
    %47 = arith.addf %35, %46 : vector<3x256xf32>
    %48 = vector.extract_strided_slice %21 {offsets = [0, 4, 0], sizes = [16, 16, 896], strides = [1, 1, 1]} : vector<16x22x896xf32> to vector<16x16x896xf32>
    %49 = vector.shape_cast %48 : vector<16x16x896xf32> to vector<256x896xf32>
    %50 = vector.extract_strided_slice %8 {offsets = [4, 0, 0], sizes = [1, 3, 896], strides = [1, 1, 1]} : vector<7x3x896xf32> to vector<1x3x896xf32>
    %51 = vector.shape_cast %50 : vector<1x3x896xf32> to vector<3x896xf32>
    %cst_16 = arith.constant dense<0.000000e+00> : vector<3x256xf32>
    %52 = tpu.matmul %51, %49, %cst_16 {dimension_numbers = #tpu.dot_dimension_numbers<[1], [1], [0], [0], [0, 0, 1, 0], [], []>} : vector<3x896xf32>, vector<256x896xf32>, vector<3x256xf32> -> vector<3x256xf32>
    %53 = arith.addf %41, %52 : vector<3x256xf32>
    %54 = vector.extract_strided_slice %21 {offsets = [0, 5, 0], sizes = [16, 16, 896], strides = [1, 1, 1]} : vector<16x22x896xf32> to vector<16x16x896xf32>
    %55 = vector.shape_cast %54 : vector<16x16x896xf32> to vector<256x896xf32>
    %56 = vector.extract_strided_slice %8 {offsets = [5, 0, 0], sizes = [1, 3, 896], strides = [1, 1, 1]} : vector<7x3x896xf32> to vector<1x3x896xf32>
    %57 = vector.shape_cast %56 : vector<1x3x896xf32> to vector<3x896xf32>
    %cst_17 = arith.constant dense<0.000000e+00> : vector<3x256xf32>
    %58 = tpu.matmul %57, %55, %cst_17 {dimension_numbers = #tpu.dot_dimension_numbers<[1], [1], [0], [0], [0, 0, 1, 0], [], []>} : vector<3x896xf32>, vector<256x896xf32>, vector<3x256xf32> -> vector<3x256xf32>
    %59 = arith.addf %47, %58 : vector<3x256xf32>
    %60 = vector.extract_strided_slice %21 {offsets = [0, 6, 0], sizes = [16, 16, 896], strides = [1, 1, 1]} : vector<16x22x896xf32> to vector<16x16x896xf32>
    %61 = vector.shape_cast %60 : vector<16x16x896xf32> to vector<256x896xf32>
    %62 = vector.extract_strided_slice %8 {offsets = [6, 0, 0], sizes = [1, 3, 896], strides = [1, 1, 1]} : vector<7x3x896xf32> to vector<1x3x896xf32>
    %63 = vector.shape_cast %62 : vector<1x3x896xf32> to vector<3x896xf32>
    %cst_18 = arith.constant dense<0.000000e+00> : vector<3x256xf32>
    %64 = tpu.matmul %63, %61, %cst_18 {dimension_numbers = #tpu.dot_dimension_numbers<[1], [1], [0], [0], [0, 0, 1, 0], [], []>} : vector<3x896xf32>, vector<256x896xf32>, vector<3x256xf32> -> vector<3x256xf32>
    %65 = arith.addf %53, %64 : vector<3x256xf32>
    %66 = arith.addf %65, %59 : vector<3x256xf32>
    %c0_19 = arith.constant 0 : index
    %c0_20 = arith.constant 0 : index
    %67 = vector.load %arg6[%c0_19, %c0_20] : memref<3x1xf32, #tpu.memory_space<vmem>>, vector<3x1xf32>
    %68 = vector.broadcast %67 : vector<3x1xf32> to vector<3x256xf32>
    %69 = arith.addf %66, %68 : vector<3x256xf32>
    %70 = math.tanh %69 : vector<3x256xf32>
    %c0_21 = arith.constant 0 : index
    %c0_22 = arith.constant 0 : index
    %c0_23 = arith.constant 0 : index
    %71 = vector.load %arg7[%c0_21, %c0_22, %c0_23] : memref<1x3x256xf32, #tpu.memory_space<vmem>>, vector<1x3x256xf32>
    %72 = vector.shape_cast %71 : vector<1x3x256xf32> to vector<3x256xf32>
    %73 = vector.shape_cast %70 : vector<3x256xf32> to vector<1x3x256xf32>
    tpu.vector_store %arg7[%c0_21, %c0_22, %c0_23], %73 {strides = array<i32>} : memref<1x3x256xf32, #tpu.memory_space<vmem>>, vector<1x3x256xf32>,
    return
  }
  func.func @transform_0(%arg0: i32, %arg1: i32) -> (i32, i32, i32, i32) {
    %c0_i32 = arith.constant 0 : i32
    %c0_i32_0 = arith.constant 0 : i32
    %c0_i32_1 = arith.constant 0 : i32
    %c0_i32_2 = arith.constant 0 : i32
    return %arg0, %c0_i32, %c0_i32_0, %c0_i32_1 : i32, i32, i32, i32
  }
  func.func @transform_1(%arg0: i32, %arg1: i32) -> (i32, i32, i32) {
    %c0_i32 = arith.constant 0 : i32
    %c0_i32_0 = arith.constant 0 : i32
    %c0_i32_1 = arith.constant 0 : i32
    return %arg0, %c0_i32, %c0_i32_0 : i32, i32, i32
  }
  func.func @transform_2(%arg0: i32, %arg1: i32) -> (i32, i32, i32) {
    %c0_i32 = arith.constant 0 : i32
    %c0_i32_0 = arith.constant 0 : i32
    %c0_i32_1 = arith.constant 0 : i32
    %c0_i32_2 = arith.constant 0 : i32
    return %c0_i32, %c0_i32_0, %c0_i32_1 : i32, i32, i32
  }
  func.func @transform_3(%arg0: i32, %arg1: i32) -> (i32, i32, i32) {
    %c0_i32 = arith.constant 0 : i32
    %c0_i32_0 = arith.constant 0 : i32
    %c0_i32_1 = arith.constant 0 : i32
    %c0_i32_2 = arith.constant 0 : i32
    return %c0_i32, %c0_i32_0, %c0_i32_1 : i32, i32, i32
  }
  func.func @transform_4(%arg0: i32, %arg1: i32) -> (i32, i32) {
    %c0_i32 = arith.constant 0 : i32
    %c0_i32_0 = arith.constant 0 : i32
    %c0_i32_1 = arith.constant 0 : i32
    return %c0_i32, %c0_i32_0 : i32, i32
  }
  func.func @transform_5(%arg0: i32, %arg1: i32) -> (i32, i32, i32) {
    %c0_i32 = arith.constant 0 : i32
    %c0_i32_0 = arith.constant 0 : i32
    return %arg0, %c0_i32, %arg1 : i32, i32, i32
  }
}

</mosaic_0001>

<llo_original>
// kernel: mschead_forward.2
$region0: #{mschead_forward.2}
  #allocation0 [shape = 'u32[]', space=smem, size = 0x4, offset = 0x4, fixed_abs, tag = 'smem constant byte address 0x4 - core index']
  #allocation1 [shape = 'u32[144,128]{1,0:T(1,128)}', space=vmem, size = 0x12000, scoped, tag = 'internal scratch']
  %s0 = inlined_call_operand.vmem [shape: f32[2,22,22,32], index: 0, kind: input, shape index: {}]
  %s1 = inlined_call_operand.vmem [shape: f32[7,224,128], index: 1, kind: input, shape index: {}]
  %s2 = inlined_call_operand.vmem [shape: f32[1,128], index: 2, kind: input, shape index: {}]
  %s3 = inlined_call_operand.vmem [shape: f32[2,16,16,128], index: 3, kind: output, shape index: {0}]
  %s4 = inlined_call_operand.vmem [shape: f32[2,1,1,128], index: 4, kind: output, shape index: {1}]
  %5 = xla_tuple %s3, %s4
  %s6 = sld [smem:[#allocation0]]
  $region53: #{mschead_forward.2} parent=0
    _
  %s8 = ssub.s32 1, %s6
  %s9 = scalar_select 0, %s8, %s6
  loop: start=0, step=1, limit=4
  $region2: #{mschead_forward.2} parent=0 // loop_pre_header
    _
  $region3: #{mschead_forward.2} parent=0 // loop_header
    %s11 = sphi 0, %s15
    %p12 = scmp.ge.s32.totalorder %s11, 4
    %s18 = sphi 0, %s30
    %s19 = sphi 0, %s26
    %s20 = sphi 0, %s18
    %s21 = sphi 0, %s19
    %s22 = sphi 0, %s20
    %s23 = sphi 0, %s21
    %s33 = sphi 0, %s35
    %s36 = sphi 0, %s33
    %s37 = sphi 0, %s36
    %s53 = sphi 0, %s37
    %s57 = sphi 0, %s57
    %s59 = sphi 0, %s57
    %s60 = sphi 0, %s59
    %s74 = sphi 0, %s60
    %s78 = sphi 0, %s78
    %s80 = sphi 0, %s78
    %s81 = sphi 0, %s80
    %s95 = sphi 0, %s81
    %s103 = sphi 0, %s105
    %s106 = sphi 0, %s103
    %s107 = sphi 0, %s106
    %s123 = sphi 0, %s107
    %s131 = sphi 0, %s133
    %s134 = sphi 0, %s131
    %s135 = sphi 0, %s134
    %s151 = sphi 0, %s135
  $region4: #{mschead_forward.2} parent=0 // loop_header_branch
    %14 = sbr.rel (%p12) target = $region8
  $region5: #{mschead_forward.2} parent=0 // loop_body
    %s16 = ssub.s32 %s11, 1
    %s17 = ssub.s32 %s11, 2
    %s24 = sadd.s32 1, %s19
    %p25 = scmp.ge.s32.totalorder %s24, 1
    %s26 = scalar_select %p25, 0, %s24
    %s27 = sadd.s32 1, %s18
    %s28 = scalar_select %p25, %s27, %s18
    %p29 = scmp.ge.s32.totalorder %s28, 2
    %s30 = scalar_select %p29, 0, %s28
    %s31 = ssub.s32 %s18, %s30
    %p32 = scmp.eq.s32.totalorder %s31, 0
    %s34 = sadd.s32 %s33, 1
    %s35 = scalar_select %p32, %s33, %s34
    %p38 = pneg %p32
    %p39 = scmp.eq.s32.totalorder %s11, 1
    %p40 = por %p38, %p39
    %p41 = scmp.ne.s32.totalorder %s33, %s36
    %p42 = scmp.eq.s32.totalorder %s11, 0
    %p43 = por %p41, %p42
    %p44 = scmp.ne.s32.totalorder %s33, %s36
    %p45 = scmp.eq.s32.totalorder %s16, 1
    %p46 = por %p44, %p45
    %p47 = scmp.ne.s32.totalorder %s36, %s37
    %p48 = scmp.eq.s32.totalorder %s16, 0
    %p49 = por %p47, %p48
    %p50 = scmp.ne.s32.totalorder %s36, %s37
    %p51 = scmp.eq.s32.totalorder %s17, 1
    %p52 = por %p50, %p51
    %p54 = scmp.ne.s32.totalorder %s37, %s53
    %p55 = scmp.eq.s32.totalorder %s17, 0
    %p56 = por %p54, %p55
    %s58 = sadd.s32 %s57, 1
    %p61 = scmp.eq.s32.totalorder %s11, 1
    %p62 = scmp.ne.s32.totalorder %s57, %s59
    %p63 = scmp.eq.s32.totalorder %s11, 0
    %p64 = por %p62, %p63
    %p65 = scmp.ne.s32.totalorder %s57, %s59
    %p66 = scmp.eq.s32.totalorder %s16, 1
    %p67 = por %p65, %p66
    %p68 = scmp.ne.s32.totalorder %s59, %s60
    %p69 = scmp.eq.s32.totalorder %s16, 0
    %p70 = por %p68, %p69
    %p71 = scmp.ne.s32.totalorder %s59, %s60
    %p72 = scmp.eq.s32.totalorder %s17, 1
    %p73 = por %p71, %p72
    %p75 = scmp.ne.s32.totalorder %s60, %s74
    %p76 = scmp.eq.s32.totalorder %s17, 0
    %p77 = por %p75, %p76
    %s79 = sadd.s32 %s78, 1
    %p82 = scmp.eq.s32.totalorder %s11, 1
    %p83 = scmp.ne.s32.totalorder %s78, %s80
    %p84 = scmp.eq.s32.totalorder %s11, 0
    %p85 = por %p83, %p84
    %p86 = scmp.ne.s32.totalorder %s78, %s80
    %p87 = scmp.eq.s32.totalorder %s16, 1
    %p88 = por %p86, %p87
    %p89 = scmp.ne.s32.totalorder %s80, %s81
    %p90 = scmp.eq.s32.totalorder %s16, 0
    %p91 = por %p89, %p90
    %p92 = scmp.ne.s32.totalorder %s80, %s81
    %p93 = scmp.eq.s32.totalorder %s17, 1
    %p94 = por %p92, %p93
    %p96 = scmp.ne.s32.totalorder %s81, %s95
    %p97 = scmp.eq.s32.totalorder %s17, 0
    %p98 = por %p96, %p97
    %s99 = ssub.s32 %s18, %s30
    %s100 = ssub.s32 %s19, %s26
    %s101 = sor.u32 %s99, %s100
    %p102 = scmp.eq.s32.totalorder %s101, 0
    %s104 = sadd.s32 %s103, 1
    %s105 = scalar_select %p102, %s103, %s104
    %p108 = pneg %p102
    %p109 = scmp.eq.s32.totalorder %s11, 1
    %p110 = por %p108, %p109
    %p111 = scmp.ne.s32.totalorder %s103, %s106
    %p112 = scmp.eq.s32.totalorder %s11, 0
    %p113 = por %p111, %p112
    %p114 = scmp.ne.s32.totalorder %s103, %s106
    %p115 = scmp.eq.s32.totalorder %s16, 1
    %p116 = por %p114, %p115
    %p117 = scmp.ne.s32.totalorder %s106, %s107
    %p118 = scmp.eq.s32.totalorder %s16, 0
    %p119 = por %p117, %p118
    %p120 = scmp.ne.s32.totalorder %s106, %s107
    %p121 = scmp.eq.s32.totalorder %s17, 1
    %p122 = por %p120, %p121
    %p124 = scmp.ne.s32.totalorder %s107, %s123
    %p125 = scmp.eq.s32.totalorder %s17, 0
    %p126 = por %p124, %p125
    %s127 = ssub.s32 %s18, %s30
    %s128 = ssub.s32 %s19, %s26
    %s129 = sor.u32 %s127, %s128
    %p130 = scmp.eq.s32.totalorder %s129, 0
    %s132 = sadd.s32 %s131, 1
    %s133 = scalar_select %p130, %s131, %s132
    %p136 = pneg %p130
    %p137 = scmp.eq.s32.totalorder %s11, 1
    %p138 = por %p136, %p137
    %p139 = scmp.ne.s32.totalorder %s131, %s134
    %p140 = scmp.eq.s32.totalorder %s11, 0
    %p141 = por %p139, %p140
    %p142 = scmp.ne.s32.totalorder %s131, %s134
    %p143 = scmp.eq.s32.totalorder %s16, 1
    %p144 = por %p142, %p143
    %p145 = scmp.ne.s32.totalorder %s134, %s135
    %p146 = scmp.eq.s32.totalorder %s16, 0
    %p147 = por %p145, %p146
    %p148 = scmp.ne.s32.totalorder %s134, %s135
    %p149 = scmp.eq.s32.totalorder %s17, 1
    %p150 = por %p148, %p149
    %p152 = scmp.ne.s32.totalorder %s135, %s151
    %p153 = scmp.eq.s32.totalorder %s17, 0
    %p154 = por %p152, %p153
    %p155 = scmp.le.s32.totalorder 1, %s11
    %p156 = scmp.lt.s32.totalorder %s11, 3
    %p157 = pnand %p155, %p156
    %p158 = pneg %p157
    // Predicated region
    $region9: #{mschead_forward.2} parent=5 // pred_check
      _
    $region10: #{mschead_forward.2} parent=5 // pred_check_branch
      %160 = sbr.rel (%p157) target = $region12
    $region11: #{mschead_forward.2} parent=5 // pred_region
      %s161 = ssub.s32 %s11, 1
      // Predicated region
      $region13: #{mschead_forward.2} parent=11 // pred_check
        %p162 = pneg %p70
      $region14: #{mschead_forward.2} parent=11 // pred_check_branch
        %164 = sbr.rel (%p162) target = $region16
      $region15: #{mschead_forward.2} parent=11 // pred_region
        _
      $region16: #{mschead_forward.2} parent=11 // pred_fallthru
        _
      // Predicated region
      $region17: #{mschead_forward.2} parent=11 // pred_check
        %p165 = pneg %p91
      $region18: #{mschead_forward.2} parent=11 // pred_check_branch
        %167 = sbr.rel (%p165) target = $region20
      $region19: #{mschead_forward.2} parent=11 // pred_region
        _
      $region20: #{mschead_forward.2} parent=11 // pred_fallthru
        _
    $region12: #{mschead_forward.2} parent=5 // pred_fallthru
      _
    %p168 = scmp.lt.s32.totalorder %s11, 2
    // Predicated region
    $region21: #{mschead_forward.2} parent=5 // pred_check
      %p169 = pneg %p168
    $region22: #{mschead_forward.2} parent=5 // pred_check_branch
      %171 = sbr.rel (%p169) target = $region24
    $region23: #{mschead_forward.2} parent=5 // pred_region
      // Predicated region
      $region25: #{mschead_forward.2} parent=23 // pred_check
        %p172 = pneg %p43
      $region26: #{mschead_forward.2} parent=23 // pred_check_branch
        %174 = sbr.rel (%p172) target = $region28
      $region27: #{mschead_forward.2} parent=23 // pred_region
        %p175 = scmp.lt.s32.totalorder %s18, 1
        %s176 = scalar_select %p175, %s18, 1
        %s177 = smul.addr %s176, 66
        %s178 = smul.addr %s177, 8
        %s179 = scalar_lea.vmem %s0, %s178
      $region28: #{mschead_forward.2} parent=23 // pred_fallthru
        _
    $region24: #{mschead_forward.2} parent=5 // pred_fallthru
      _
    %p180 = scmp.le.s32.totalorder 1, %s11
    %p181 = scmp.lt.s32.totalorder %s11, 3
    %p182 = pnand %p180, %p181
    %p183 = pneg %p182
    // Predicated region
    $region29: #{mschead_forward.2} parent=5 // pred_check
      _
    $region30: #{mschead_forward.2} parent=5 // pred_check_branch
      %185 = sbr.rel (%p182) target = $region32
    $region31: #{mschead_forward.2} parent=5 // pred_region
      %s186 = ssub.s32 %s11, 1
      %p187 = scmp.lt.s32.totalorder %s20, 1
      %s188 = scalar_select %p187, %s20, 1
      %s189 = smul.addr %s188, 66
      %s190 = smul.addr %s189, 8
      %s191 = scalar_lea.vmem %s0, %s190
      %p192 = pneg %p49
      %p193 = pneg %p46
      %p194 = pneg %p70
      %p195 = pneg %p67
      %p196 = pneg %p91
      %p197 = pneg %p88
      %p198 = pneg %p119
      %p199 = pneg %p116
      %s200 = smul.u32 16, %s21
      %p201 = scmp.lt.s32.totalorder %s20, 1
      %s202 = scalar_select %p201, %s20, 1
      %p203 = scmp.lt.s32.totalorder %s200, 15
      %s204 = scalar_select %p203, %s200, 15
      %s205 = smul.addr %s204, 2
      %s206 = smul.addr %s202, 32
      %s207 = sadd.s32 %s205, %s206
      %s208 = smul.addr %s207, 8
      %s209 = scalar_lea.vmem %s3, %s208
      %p210 = pneg %p147
      %p211 = pneg %p144
      %p212 = scmp.lt.s32.totalorder %s20, 1
      %s213 = scalar_select %p212, %s20, 1
      %p214 = scmp.lt.s32.totalorder %s21, 0
      %s215 = scalar_select %p214, %s21, 0
      %s216 = sadd.s32 %s215, %s213
      %s217 = scalar_lea.vmem %s4, %s216
      %p218 = scmp.lt.s32.totalorder %s20, 1
      %s219 = scalar_select %p218, %s20, 1
      %s220 = smul.addr %s219, 66
      %s221 = smul.addr %s220, 8
      %s222 = scalar_lea.vmem %s0, %s221
      %s223 = smul.u32 16, %s21
      %p224 = scmp.lt.s32.totalorder %s20, 1
      %s225 = scalar_select %p224, %s20, 1
      %p226 = scmp.lt.s32.totalorder %s223, 15
      %s227 = scalar_select %p226, %s223, 15
      %s228 = smul.addr %s227, 2
      %s229 = smul.addr %s225, 32
      %s230 = sadd.s32 %s228, %s229
      %s231 = smul.addr %s230, 8
      %s232 = scalar_lea.vmem %s3, %s231
      %s233 = smul.u32 16, %s21
      %p234 = scmp.lt.s32.totalorder %s20, 1
      %s235 = scalar_select %p234, %s20, 1
      %p236 = scmp.lt.s32.totalorder %s21, 0
      %s237 = scalar_select %p236, %s21, 0
      %s238 = sadd.s32 %s237, %s235
      %s239 = scalar_lea.vmem %s4, %s238
      %s240 = smul.u32 %s21, 16
      %s241 = smul.u32 %s240, 24
      %s242 = scalar_lea.vmem %s222, %s241
      %v243 = vld [vmem:[%s242] sm:$0xff]
      %v244 = vld [vmem:[%s242 + $0x8] sm:$0xff]
      %v245 = vld [vmem:[%s242 + $0x10] sm:$0x3f]
      %v246 = vld [vmem:[%s242 + $0x18] sm:$0xff]
      %v247 = vld [vmem:[%s242 + $0x20] sm:$0xff]
      %v248 = vld [vmem:[%s242 + $0x28] sm:$0x3f]
      %v249 = vld [vmem:[%s242 + $0x30] sm:$0xff]
      %v250 = vld [vmem:[%s242 + $0x38] sm:$0xff]
      %v251 = vld [vmem:[%s242 + $0x40] sm:$0x3f]
      %v252 = vld [vmem:[%s242 + $0x48] sm:$0xff]
      %v253 = vld [vmem:[%s242 + $0x50] sm:$0xff]
      %v254 = vld [vmem:[%s242 + $0x58] sm:$0x3f]
      %v255 = vld [vmem:[%s242 + $0x60] sm:$0xff]
      %v256 = vld [vmem:[%s242 + $0x68] sm:$0xff]
      %v257 = vld [vmem:[%s242 + $0x70] sm:$0x3f]
      %v258 = vld [vmem:[%s242 + $0x78] sm:$0xff]
      %v259 = vld [vmem:[%s242 + $0x80] sm:$0xff]
      %v260 = vld [vmem:[%s242 + $0x88] sm:$0x3f]
      %v261 = vld [vmem:[%s242 + $0x90] sm:$0xff]
      %v262 = vld [vmem:[%s242 + $0x98] sm:$0xff]
      %v263 = vld [vmem:[%s242 + $0xa0] sm:$0x3f]
      %v264 = vld [vmem:[%s242 + $0xa8] sm:$0xff]
      %v265 = vld [vmem:[%s242 + $0xb0] sm:$0xff]
      %v266 = vld [vmem:[%s242 + $0xb8] sm:$0x3f]
      %v267 = vld [vmem:[%s242 + $0xc0] sm:$0xff]
      %v268 = vld [vmem:[%s242 + $0xc8] sm:$0xff]
      %v269 = vld [vmem:[%s242 + $0xd0] sm:$0x3f]
      %v270 = vld [vmem:[%s242 + $0xd8] sm:$0xff]
      %v271 = vld [vmem:[%s242 + $0xe0] sm:$0xff]
      %v272 = vld [vmem:[%s242 + $0xe8] sm:$0x3f]
      %v273 = vld [vmem:[%s242 + $0xf0] sm:$0xff]
      %v274 = vld [vmem:[%s242 + $0xf8] sm:$0xff]
      %v275 = vld [vmem:[%s242 + $0x100] sm:$0x3f]
      %v276 = vld [vmem:[%s242 + $0x108] sm:$0xff]
      %v277 = vld [vmem:[%s242 + $0x110] sm:$0xff]
      %v278 = vld [vmem:[%s242 + $0x118] sm:$0x3f]
      %v279 = vld [vmem:[%s242 + $0x120] sm:$0xff]
      %v280 = vld [vmem:[%s242 + $0x128] sm:$0xff]
      %v281 = vld [vmem:[%s242 + $0x130] sm:$0x3f]
      %v282 = vld [vmem:[%s242 + $0x138] sm:$0xff]
      %v283 = vld [vmem:[%s242 + $0x140] sm:$0xff]
      %v284 = vld [vmem:[%s242 + $0x148] sm:$0x3f]
      %v285 = vld [vmem:[%s242 + $0x150] sm:$0xff]
      %v286 = vld [vmem:[%s242 + $0x158] sm:$0xff]
      %v287 = vld [vmem:[%s242 + $0x160] sm:$0x3f]
      %v288 = vld [vmem:[%s242 + $0x168] sm:$0xff]
      %v289 = vld [vmem:[%s242 + $0x170] sm:$0xff]
      %v290 = vld [vmem:[%s242 + $0x178] sm:$0x3f]
      %v291 = vld [vmem:[%s242 + $0x180] sm:$0xff]
      %v292 = vld [vmem:[%s242 + $0x188] sm:$0xff]
      %v293 = vld [vmem:[%s242 + $0x190] sm:$0x3f]
      %v294 = vld [vmem:[%s242 + $0x198] sm:$0xff]
      %v295 = vld [vmem:[%s242 + $0x1a0] sm:$0xff]
      %v296 = vld [vmem:[%s242 + $0x1a8] sm:$0x3f]
      %v297 = vld [vmem:[%s242 + $0x1b0] sm:$0xff]
      %v298 = vld [vmem:[%s242 + $0x1b8] sm:$0xff]
      %v299 = vld [vmem:[%s242 + $0x1c0] sm:$0x3f]
      %v300 = vld [vmem:[%s242 + $0x1c8] sm:$0xff]
      %v301 = vld [vmem:[%s242 + $0x1d0] sm:$0xff]
      %v302 = vld [vmem:[%s242 + $0x1d8] sm:$0x3f]
      %v303 = vld [vmem:[%s242 + $0x1e0] sm:$0xff]
      %v304 = vld [vmem:[%s242 + $0x1e8] sm:$0xff]
      %v305 = vld [vmem:[%s242 + $0x1f0] sm:$0x3f]
      %v306 = vld [vmem:[%s242 + $0x1f8] sm:$0xff]
      %v307 = vld [vmem:[%s242 + $0x200] sm:$0xff]
      %v308 = vld [vmem:[%s242 + $0x208] sm:$0x3f]
      %357 = vrot.lane.b32.xlu0 %v246, 32
      %v358 = vpop.permute.xlu0 %357
      %359 = vrot.lane.b32.xlu0 %v247, 32
      %v360 = vpop.permute.xlu0 %359
      %361 = vrot.lane.b32.xlu0 %v248, 32
      %v362 = vpop.permute.xlu0 %361
      %363 = vrot.lane.b32.xlu0 %v249, 32
      %v364 = vpop.permute.xlu0 %363
      %365 = vrot.lane.b32.xlu0 %v250, 32
      %v366 = vpop.permute.xlu0 %365
      %367 = vrot.lane.b32.xlu0 %v251, 32
      %v368 = vpop.permute.xlu0 %367
      %369 = vrot.lane.b32.xlu0 %v252, 32
      %v370 = vpop.permute.xlu0 %369
      %371 = vrot.lane.b32.xlu0 %v253, 32
      %v372 = vpop.permute.xlu0 %371
      %373 = vrot.lane.b32.xlu0 %v254, 32
      %v374 = vpop.permute.xlu0 %373
      %375 = vrot.lane.b32.xlu0 %v255, 32
      %v376 = vpop.permute.xlu0 %375
      %377 = vrot.lane.b32.xlu0 %v256, 32
      %v378 = vpop.permute.xlu0 %377
      %379 = vrot.lane.b32.xlu0 %v257, 32
      %v380 = vpop.permute.xlu0 %379
      %381 = vrot.lane.b32.xlu0 %v258, 32
      %v382 = vpop.permute.xlu0 %381
      %383 = vrot.lane.b32.xlu0 %v259, 32
      %v384 = vpop.permute.xlu0 %383
      %385 = vrot.lane.b32.xlu0 %v260, 32
      %v386 = vpop.permute.xlu0 %385
      %387 = vrot.lane.b32.xlu0 %v261, 32
      %v388 = vpop.permute.xlu0 %387
      %389 = vrot.lane.b32.xlu0 %v262, 32
      %v390 = vpop.permute.xlu0 %389
      %391 = vrot.lane.b32.xlu0 %v263, 32
      %v392 = vpop.permute.xlu0 %391
      %393 = vrot.lane.b32.xlu0 %v264, 32
      %v394 = vpop.permute.xlu0 %393
      %395 = vrot.lane.b32.xlu0 %v265, 32
      %v396 = vpop.permute.xlu0 %395
      %397 = vrot.lane.b32.xlu0 %v266, 32
      %v398 = vpop.permute.xlu0 %397
      %399 = vrot.lane.b32.xlu0 %v267, 32
      %v400 = vpop.permute.xlu0 %399
      %401 = vrot.lane.b32.xlu0 %v268, 32
      %v402 = vpop.permute.xlu0 %401
      %403 = vrot.lane.b32.xlu0 %v269, 32
      %v404 = vpop.permute.xlu0 %403
      %405 = vrot.lane.b32.xlu0 %v270, 32
      %v406 = vpop.permute.xlu0 %405
      %407 = vrot.lane.b32.xlu0 %v271, 32
      %v408 = vpop.permute.xlu0 %407
      %409 = vrot.lane.b32.xlu0 %v272, 32
      %v410 = vpop.permute.xlu0 %409
      %411 = vrot.lane.b32.xlu0 %v273, 32
      %v412 = vpop.permute.xlu0 %411
      %413 = vrot.lane.b32.xlu0 %v274, 32
      %v414 = vpop.permute.xlu0 %413
      %415 = vrot.lane.b32.xlu0 %v275, 32
      %v416 = vpop.permute.xlu0 %415
      %417 = vrot.lane.b32.xlu0 %v276, 32
      %v418 = vpop.permute.xlu0 %417
      %419 = vrot.lane.b32.xlu0 %v277, 32
      %v420 = vpop.permute.xlu0 %419
      %421 = vrot.lane.b32.xlu0 %v278, 32
      %v422 = vpop.permute.xlu0 %421
      %423 = vrot.lane.b32.xlu0 %v279, 32
      %v424 = vpop.permute.xlu0 %423
      %425 = vrot.lane.b32.xlu0 %v280, 32
      %v426 = vpop.permute.xlu0 %425
      %427 = vrot.lane.b32.xlu0 %v281, 32
      %v428 = vpop.permute.xlu0 %427
      %429 = vrot.lane.b32.xlu0 %v282, 32
      %v430 = vpop.permute.xlu0 %429
      %431 = vrot.lane.b32.xlu0 %v283, 32
      %v432 = vpop.permute.xlu0 %431
      %433 = vrot.lane.b32.xlu0 %v284, 32
      %v434 = vpop.permute.xlu0 %433
      %435 = vrot.lane.b32.xlu0 %v285, 32
      %v436 = vpop.permute.xlu0 %435
      %437 = vrot.lane.b32.xlu0 %v286, 32
      %v438 = vpop.permute.xlu0 %437
      %439 = vrot.lane.b32.xlu0 %v287, 32
      %v440 = vpop.permute.xlu0 %439
      %441 = vrot.lane.b32.xlu0 %v288, 32
      %v442 = vpop.permute.xlu0 %441
      %443 = vrot.lane.b32.xlu0 %v289, 32
      %v444 = vpop.permute.xlu0 %443
      %445 = vrot.lane.b32.xlu0 %v290, 32
      %v446 = vpop.permute.xlu0 %445
      %447 = vrot.lane.b32.xlu0 %v291, 32
      %v448 = vpop.permute.xlu0 %447
      %449 = vrot.lane.b32.xlu0 %v292, 32
      %v450 = vpop.permute.xlu0 %449
      %451 = vrot.lane.b32.xlu0 %v293, 32
      %v452 = vpop.permute.xlu0 %451
      %504 = vrot.lane.b32.xlu0 %v249, 64
      %v505 = vpop.permute.xlu0 %504
      %506 = vrot.lane.b32.xlu0 %v250, 64
      %v507 = vpop.permute.xlu0 %506
      %508 = vrot.lane.b32.xlu0 %v251, 64
      %v509 = vpop.permute.xlu0 %508
      %510 = vrot.lane.b32.xlu0 %v252, 64
      %v511 = vpop.permute.xlu0 %510
      %512 = vrot.lane.b32.xlu0 %v253, 64
      %v513 = vpop.permute.xlu0 %512
      %514 = vrot.lane.b32.xlu0 %v254, 64
      %v515 = vpop.permute.xlu0 %514
      %516 = vrot.lane.b32.xlu0 %v255, 64
      %v517 = vpop.permute.xlu0 %516
      %518 = vrot.lane.b32.xlu0 %v256, 64
      %v519 = vpop.permute.xlu0 %518
      %520 = vrot.lane.b32.xlu0 %v257, 64
      %v521 = vpop.permute.xlu0 %520
      %522 = vrot.lane.b32.xlu0 %v258, 64
      %v523 = vpop.permute.xlu0 %522
      %524 = vrot.lane.b32.xlu0 %v259, 64
      %v525 = vpop.permute.xlu0 %524
      %526 = vrot.lane.b32.xlu0 %v260, 64
      %v527 = vpop.permute.xlu0 %526
      %528 = vrot.lane.b32.xlu0 %v261, 64
      %v529 = vpop.permute.xlu0 %528
      %530 = vrot.lane.b32.xlu0 %v262, 64
      %v531 = vpop.permute.xlu0 %530
      %532 = vrot.lane.b32.xlu0 %v263, 64
      %v533 = vpop.permute.xlu0 %532
      %534 = vrot.lane.b32.xlu0 %v264, 64
      %v535 = vpop.permute.xlu0 %534
      %536 = vrot.lane.b32.xlu0 %v265, 64
      %v537 = vpop.permute.xlu0 %536
      %538 = vrot.lane.b32.xlu0 %v266, 64
      %v539 = vpop.permute.xlu0 %538
      %540 = vrot.lane.b32.xlu0 %v267, 64
      %v541 = vpop.permute.xlu0 %540
      %542 = vrot.lane.b32.xlu0 %v268, 64
      %v543 = vpop.permute.xlu0 %542
      %544 = vrot.lane.b32.xlu0 %v269, 64
      %v545 = vpop.permute.xlu0 %544
      %546 = vrot.lane.b32.xlu0 %v270, 64
      %v547 = vpop.permute.xlu0 %546
      %548 = vrot.lane.b32.xlu0 %v271, 64
      %v549 = vpop.permute.xlu0 %548
      %550 = vrot.lane.b32.xlu0 %v272, 64
      %v551 = vpop.permute.xlu0 %550
      %552 = vrot.lane.b32.xlu0 %v273, 64
      %v553 = vpop.permute.xlu0 %552
      %554 = vrot.lane.b32.xlu0 %v274, 64
      %v555 = vpop.permute.xlu0 %554
      %556 = vrot.lane.b32.xlu0 %v275, 64
      %v557 = vpop.permute.xlu0 %556
      %558 = vrot.lane.b32.xlu0 %v276, 64
      %v559 = vpop.permute.xlu0 %558
      %560 = vrot.lane.b32.xlu0 %v277, 64
      %v561 = vpop.permute.xlu0 %560
      %562 = vrot.lane.b32.xlu0 %v278, 64
      %v563 = vpop.permute.xlu0 %562
      %564 = vrot.lane.b32.xlu0 %v279, 64
      %v565 = vpop.permute.xlu0 %564
      %566 = vrot.lane.b32.xlu0 %v280, 64
      %v567 = vpop.permute.xlu0 %566
      %568 = vrot.lane.b32.xlu0 %v281, 64
      %v569 = vpop.permute.xlu0 %568
      %570 = vrot.lane.b32.xlu0 %v282, 64
      %v571 = vpop.permute.xlu0 %570
      %572 = vrot.lane.b32.xlu0 %v283, 64
      %v573 = vpop.permute.xlu0 %572
      %574 = vrot.lane.b32.xlu0 %v284, 64
      %v575 = vpop.permute.xlu0 %574
      %576 = vrot.lane.b32.xlu0 %v285, 64
      %v577 = vpop.permute.xlu0 %576
      %578 = vrot.lane.b32.xlu0 %v286, 64
      %v579 = vpop.permute.xlu0 %578
      %580 = vrot.lane.b32.xlu0 %v287, 64
      %v581 = vpop.permute.xlu0 %580
      %582 = vrot.lane.b32.xlu0 %v288, 64
      %v583 = vpop.permute.xlu0 %582
      %584 = vrot.lane.b32.xlu0 %v289, 64
      %v585 = vpop.permute.xlu0 %584
      %586 = vrot.lane.b32.xlu0 %v290, 64
      %v587 = vpop.permute.xlu0 %586
      %588 = vrot.lane.b32.xlu0 %v291, 64
      %v589 = vpop.permute.xlu0 %588
      %590 = vrot.lane.b32.xlu0 %v292, 64
      %v591 = vpop.permute.xlu0 %590
      %592 = vrot.lane.b32.xlu0 %v293, 64
      %v593 = vpop.permute.xlu0 %592
      %594 = vrot.lane.b32.xlu0 %v294, 64
      %v595 = vpop.permute.xlu0 %594
      %596 = vrot.lane.b32.xlu0 %v295, 64
      %v597 = vpop.permute.xlu0 %596
      %598 = vrot.lane.b32.xlu0 %v296, 64
      %v599 = vpop.permute.xlu0 %598
      %651 = vrot.lane.b32.xlu0 %v252, 96
      %v652 = vpop.permute.xlu0 %651
      %653 = vrot.lane.b32.xlu0 %v253, 96
      %v654 = vpop.permute.xlu0 %653
      %655 = vrot.lane.b32.xlu0 %v254, 96
      %v656 = vpop.permute.xlu0 %655
      %657 = vrot.lane.b32.xlu0 %v255, 96
      %v658 = vpop.permute.xlu0 %657
      %659 = vrot.lane.b32.xlu0 %v256, 96
      %v660 = vpop.permute.xlu0 %659
      %661 = vrot.lane.b32.xlu0 %v257, 96
      %v662 = vpop.permute.xlu0 %661
      %663 = vrot.lane.b32.xlu0 %v258, 96
      %v664 = vpop.permute.xlu0 %663
      %665 = vrot.lane.b32.xlu0 %v259, 96
      %v666 = vpop.permute.xlu0 %665
      %667 = vrot.lane.b32.xlu0 %v260, 96
      %v668 = vpop.permute.xlu0 %667
      %669 = vrot.lane.b32.xlu0 %v261, 96
      %v670 = vpop.permute.xlu0 %669
      %671 = vrot.lane.b32.xlu0 %v262, 96
      %v672 = vpop.permute.xlu0 %671
      %673 = vrot.lane.b32.xlu0 %v263, 96
      %v674 = vpop.permute.xlu0 %673
      %675 = vrot.lane.b32.xlu0 %v264, 96
      %v676 = vpop.permute.xlu0 %675
      %677 = vrot.lane.b32.xlu0 %v265, 96
      %v678 = vpop.permute.xlu0 %677
      %679 = vrot.lane.b32.xlu0 %v266, 96
      %v680 = vpop.permute.xlu0 %679
      %681 = vrot.lane.b32.xlu0 %v267, 96
      %v682 = vpop.permute.xlu0 %681
      %683 = vrot.lane.b32.xlu0 %v268, 96
      %v684 = vpop.permute.xlu0 %683
      %685 = vrot.lane.b32.xlu0 %v269, 96
      %v686 = vpop.permute.xlu0 %685
      %687 = vrot.lane.b32.xlu0 %v270, 96
      %v688 = vpop.permute.xlu0 %687
      %689 = vrot.lane.b32.xlu0 %v271, 96
      %v690 = vpop.permute.xlu0 %689
      %691 = vrot.lane.b32.xlu0 %v272, 96
      %v692 = vpop.permute.xlu0 %691
      %693 = vrot.lane.b32.xlu0 %v273, 96
      %v694 = vpop.permute.xlu0 %693
      %695 = vrot.lane.b32.xlu0 %v274, 96
      %v696 = vpop.permute.xlu0 %695
      %697 = vrot.lane.b32.xlu0 %v275, 96
      %v698 = vpop.permute.xlu0 %697
      %699 = vrot.lane.b32.xlu0 %v276, 96
      %v700 = vpop.permute.xlu0 %699
      %701 = vrot.lane.b32.xlu0 %v277, 96
      %v702 = vpop.permute.xlu0 %701
      %703 = vrot.lane.b32.xlu0 %v278, 96
      %v704 = vpop.permute.xlu0 %703
      %705 = vrot.lane.b32.xlu0 %v279, 96
      %v706 = vpop.permute.xlu0 %705
      %707 = vrot.lane.b32.xlu0 %v280, 96
      %v708 = vpop.permute.xlu0 %707
      %709 = vrot.lane.b32.xlu0 %v281, 96
      %v710 = vpop.permute.xlu0 %709
      %711 = vrot.lane.b32.xlu0 %v282, 96
      %v712 = vpop.permute.xlu0 %711
      %713 = vrot.lane.b32.xlu0 %v283, 96
      %v714 = vpop.permute.xlu0 %713
      %715 = vrot.lane.b32.xlu0 %v284, 96
      %v716 = vpop.permute.xlu0 %715
      %717 = vrot.lane.b32.xlu0 %v285, 96
      %v718 = vpop.permute.xlu0 %717
      %719 = vrot.lane.b32.xlu0 %v286, 96
      %v720 = vpop.permute.xlu0 %719
      %721 = vrot.lane.b32.xlu0 %v287, 96
      %v722 = vpop.permute.xlu0 %721
      %723 = vrot.lane.b32.xlu0 %v288, 96
      %v724 = vpop.permute.xlu0 %723
      %725 = vrot.lane.b32.xlu0 %v289, 96
      %v726 = vpop.permute.xlu0 %725
      %727 = vrot.lane.b32.xlu0 %v290, 96
      %v728 = vpop.permute.xlu0 %727
      %729 = vrot.lane.b32.xlu0 %v291, 96
      %v730 = vpop.permute.xlu0 %729
      %731 = vrot.lane.b32.xlu0 %v292, 96
      %v732 = vpop.permute.xlu0 %731
      %733 = vrot.lane.b32.xlu0 %v293, 96
      %v734 = vpop.permute.xlu0 %733
      %735 = vrot.lane.b32.xlu0 %v294, 96
      %v736 = vpop.permute.xlu0 %735
      %737 = vrot.lane.b32.xlu0 %v295, 96
      %v738 = vpop.permute.xlu0 %737
      %739 = vrot.lane.b32.xlu0 %v296, 96
      %v740 = vpop.permute.xlu0 %739
      %741 = vrot.lane.b32.xlu0 %v297, 96
      %v742 = vpop.permute.xlu0 %741
      %743 = vrot.lane.b32.xlu0 %v298, 96
      %v744 = vpop.permute.xlu0 %743
      %745 = vrot.lane.b32.xlu0 %v299, 96
      %v746 = vpop.permute.xlu0 %745
      %801 = vrot.lane.b32.xlu0 %v294, 32
      %v802 = vpop.permute.xlu0 %801
      %803 = vrot.lane.b32.xlu0 %v295, 32
      %v804 = vpop.permute.xlu0 %803
      %805 = vrot.lane.b32.xlu0 %v296, 32
      %v806 = vpop.permute.xlu0 %805
      %807 = vrot.lane.b32.xlu0 %v297, 32
      %v808 = vpop.permute.xlu0 %807
      %809 = vrot.lane.b32.xlu0 %v298, 32
      %v810 = vpop.permute.xlu0 %809
      %811 = vrot.lane.b32.xlu0 %v299, 32
      %v812 = vpop.permute.xlu0 %811
      %813 = vrot.lane.b32.xlu0 %v300, 32
      %v814 = vpop.permute.xlu0 %813
      %815 = vrot.lane.b32.xlu0 %v301, 32
      %v816 = vpop.permute.xlu0 %815
      %817 = vrot.lane.b32.xlu0 %v302, 32
      %v818 = vpop.permute.xlu0 %817
      %819 = vrot.lane.b32.xlu0 %v303, 32
      %v820 = vpop.permute.xlu0 %819
      %821 = vrot.lane.b32.xlu0 %v304, 32
      %v822 = vpop.permute.xlu0 %821
      %823 = vrot.lane.b32.xlu0 %v305, 32
      %v824 = vpop.permute.xlu0 %823
      %840 = vrot.lane.b32.xlu0 %v297, 64
      %v841 = vpop.permute.xlu0 %840
      %842 = vrot.lane.b32.xlu0 %v298, 64
      %v843 = vpop.permute.xlu0 %842
      %844 = vrot.lane.b32.xlu0 %v299, 64
      %v845 = vpop.permute.xlu0 %844
      %846 = vrot.lane.b32.xlu0 %v300, 64
      %v847 = vpop.permute.xlu0 %846
      %848 = vrot.lane.b32.xlu0 %v301, 64
      %v849 = vpop.permute.xlu0 %848
      %850 = vrot.lane.b32.xlu0 %v302, 64
      %v851 = vpop.permute.xlu0 %850
      %852 = vrot.lane.b32.xlu0 %v303, 64
      %v853 = vpop.permute.xlu0 %852
      %854 = vrot.lane.b32.xlu0 %v304, 64
      %v855 = vpop.permute.xlu0 %854
      %856 = vrot.lane.b32.xlu0 %v305, 64
      %v857 = vpop.permute.xlu0 %856
      %858 = vrot.lane.b32.xlu0 %v306, 64
      %v859 = vpop.permute.xlu0 %858
      %860 = vrot.lane.b32.xlu0 %v307, 64
      %v861 = vpop.permute.xlu0 %860
      %862 = vrot.lane.b32.xlu0 %v308, 64
      %v863 = vpop.permute.xlu0 %862
      %vm876 = vcmask 261120
      %v877 = vsel %vm876, %v243, %v358
      %v878 = vsel %vm876, %v244, %v360
      %v879 = vsel %vm876, %v245, %v362
      %v880 = vsel %vm876, %v246, %v364
      %v881 = vsel %vm876, %v247, %v366
      %v882 = vsel %vm876, %v248, %v368
      %v883 = vsel %vm876, %v249, %v370
      %v884 = vsel %vm876, %v250, %v372
      %v885 = vsel %vm876, %v251, %v374
      %v886 = vsel %vm876, %v252, %v376
      %v887 = vsel %vm876, %v253, %v378
      %v888 = vsel %vm876, %v254, %v380
      %v889 = vsel %vm876, %v255, %v382
      %v890 = vsel %vm876, %v256, %v384
      %v891 = vsel %vm876, %v257, %v386
      %v892 = vsel %vm876, %v258, %v388
      %v893 = vsel %vm876, %v259, %v390
      %v894 = vsel %vm876, %v260, %v392
      %v895 = vsel %vm876, %v261, %v394
      %v896 = vsel %vm876, %v262, %v396
      %v897 = vsel %vm876, %v263, %v398
      %v898 = vsel %vm876, %v264, %v400
      %v899 = vsel %vm876, %v265, %v402
      %v900 = vsel %vm876, %v266, %v404
      %v901 = vsel %vm876, %v267, %v406
      %v902 = vsel %vm876, %v268, %v408
      %v903 = vsel %vm876, %v269, %v410
      %v904 = vsel %vm876, %v270, %v412
      %v905 = vsel %vm876, %v271, %v414
      %v906 = vsel %vm876, %v272, %v416
      %v907 = vsel %vm876, %v273, %v418
      %v908 = vsel %vm876, %v274, %v420
      %v909 = vsel %vm876, %v275, %v422
      %v910 = vsel %vm876, %v276, %v424
      %v911 = vsel %vm876, %v277, %v426
      %v912 = vsel %vm876, %v278, %v428
      %v913 = vsel %vm876, %v279, %v430
      %v914 = vsel %vm876, %v280, %v432
      %v915 = vsel %vm876, %v281, %v434
      %v916 = vsel %vm876, %v282, %v436
      %v917 = vsel %vm876, %v283, %v438
      %v918 = vsel %vm876, %v284, %v440
      %v919 = vsel %vm876, %v285, %v442
      %v920 = vsel %vm876, %v286, %v444
      %v921 = vsel %vm876, %v287, %v446
      %v922 = vsel %vm876, %v288, %v448
      %v923 = vsel %vm876, %v289, %v450
      %v924 = vsel %vm876, %v290, %v452
      %vm925 = vcmask 523264
      %v926 = vsel %vm925, %v877, %v505
      %v927 = vsel %vm925, %v878, %v507
      %v928 = vsel %vm925, %v879, %v509
      %v929 = vsel %vm925, %v880, %v511
      %v930 = vsel %vm925, %v881, %v513
      %v931 = vsel %vm925, %v882, %v515
      %v932 = vsel %vm925, %v883, %v517
      %v933 = vsel %vm925, %v884, %v519
      %v934 = vsel %vm925, %v885, %v521
      %v935 = vsel %vm925, %v886, %v523
      %v936 = vsel %vm925, %v887, %v525
      %v937 = vsel %vm925, %v888, %v527
      %v938 = vsel %vm925, %v889, %v529
      %v939 = vsel %vm925, %v890, %v531
      %v940 = vsel %vm925, %v891, %v533
      %v941 = vsel %vm925, %v892, %v535
      %v942 = vsel %vm925, %v893, %v537
      %v943 = vsel %vm925, %v894, %v539
      %v944 = vsel %vm925, %v895, %v541
      %v945 = vsel %vm925, %v896, %v543
      %v946 = vsel %vm925, %v897, %v545
      %v947 = vsel %vm925, %v898, %v547
      %v948 = vsel %vm925, %v899, %v549
      %v949 = vsel %vm925, %v900, %v551
      %v950 = vsel %vm925, %v901, %v553
      %v951 = vsel %vm925, %v902, %v555
      %v952 = vsel %vm925, %v903, %v557
      %v953 = vsel %vm925, %v904, %v559
      %v954 = vsel %vm925, %v905, %v561
      %v955 = vsel %vm925, %v906, %v563
      %v956 = vsel %vm925, %v907, %v565
      %v957 = vsel %vm925, %v908, %v567
      %v958 = vsel %vm925, %v909, %v569
      %v959 = vsel %vm925, %v910, %v571
      %v960 = vsel %vm925, %v911, %v573
      %v961 = vsel %vm925, %v912, %v575
      %v962 = vsel %vm925, %v913, %v577
      %v963 = vsel %vm925, %v914, %v579
      %v964 = vsel %vm925, %v915, %v581
      %v965 = vsel %vm925, %v916, %v583
      %v966 = vsel %vm925, %v917, %v585
      %v967 = vsel %vm925, %v918, %v587
      %v968 = vsel %vm925, %v919, %v589
      %v969 = vsel %vm925, %v920, %v591
      %v970 = vsel %vm925, %v921, %v593
      %v971 = vsel %vm925, %v922, %v595
      %v972 = vsel %vm925, %v923, %v597
      %v973 = vsel %vm925, %v924, %v599
      %vm974 = vcmask 785408
      %v975 = vsel %vm974, %v926, %v652
      %v976 = vsel %vm974, %v927, %v654
      %v977 = vsel %vm974, %v928, %v656
      %v978 = vsel %vm974, %v929, %v658
      %v979 = vsel %vm974, %v930, %v660
      %v980 = vsel %vm974, %v931, %v662
      %v981 = vsel %vm974, %v932, %v664
      %v982 = vsel %vm974, %v933, %v666
      %v983 = vsel %vm974, %v934, %v668
      %v984 = vsel %vm974, %v935, %v670
      %v985 = vsel %vm974, %v936, %v672
      %v986 = vsel %vm974, %v937, %v674
      %v987 = vsel %vm974, %v938, %v676
      %v988 = vsel %vm974, %v939, %v678
      %v989 = vsel %vm974, %v940, %v680
      %v990 = vsel %vm974, %v941, %v682
      %v991 = vsel %vm974, %v942, %v684
      %v992 = vsel %vm974, %v943, %v686
      %v993 = vsel %vm974, %v944, %v688
      %v994 = vsel %vm974, %v945, %v690
      %v995 = vsel %vm974, %v946, %v692
      %v996 = vsel %vm974, %v947, %v694
      %v997 = vsel %vm974, %v948, %v696
      %v998 = vsel %vm974, %v949, %v698
      %v999 = vsel %vm974, %v950, %v700
      %v1000 = vsel %vm974, %v951, %v702
      %v1001 = vsel %vm974, %v952, %v704
      %v1002 = vsel %vm974, %v953, %v706
      %v1003 = vsel %vm974, %v954, %v708
      %v1004 = vsel %vm974, %v955, %v710
      %v1005 = vsel %vm974, %v956, %v712
      %v1006 = vsel %vm974, %v957, %v714
      %v1007 = vsel %vm974, %v958, %v716
      %v1008 = vsel %vm974, %v959, %v718
      %v1009 = vsel %vm974, %v960, %v720
      %v1010 = vsel %vm974, %v961, %v722
      %v1011 = vsel %vm974, %v962, %v724
      %v1012 = vsel %vm974, %v963, %v726
      %v1013 = vsel %vm974, %v964, %v728
      %v1014 = vsel %vm974, %v965, %v730
      %v1015 = vsel %vm974, %v966, %v732
      %v1016 = vsel %vm974, %v967, %v734
      %v1017 = vsel %vm974, %v968, %v736
      %v1018 = vsel %vm974, %v969, %v738
      %v1019 = vsel %vm974, %v970, %v740
      %v1020 = vsel %vm974, %v971, %v742
      %v1021 = vsel %vm974, %v972, %v744
      %v1022 = vsel %vm974, %v973, %v746
      %v1023 = vsel %vm876, %v291, %v802
      %v1024 = vsel %vm876, %v292, %v804
      %v1025 = vsel %vm876, %v293, %v806
      %v1026 = vsel %vm876, %v294, %v808
      %v1027 = vsel %vm876, %v295, %v810
      %v1028 = vsel %vm876, %v296, %v812
      %v1029 = vsel %vm876, %v297, %v814
      %v1030 = vsel %vm876, %v298, %v816
      %v1031 = vsel %vm876, %v299, %v818
      %v1032 = vsel %vm876, %v300, %v820
      %v1033 = vsel %vm876, %v301, %v822
      %v1034 = vsel %vm876, %v302, %v824
      %v1035 = vsel %vm925, %v1023, %v841
      %v1036 = vsel %vm925, %v1024, %v843
      %v1037 = vsel %vm925, %v1025, %v845
      %v1038 = vsel %vm925, %v1026, %v847
      %v1039 = vsel %vm925, %v1027, %v849
      %v1040 = vsel %vm925, %v1028, %v851
      %v1041 = vsel %vm925, %v1029, %v853
      %v1042 = vsel %vm925, %v1030, %v855
      %v1043 = vsel %vm925, %v1031, %v857
      %v1044 = vsel %vm925, %v1032, %v859
      %v1045 = vsel %vm925, %v1033, %v861
      %v1046 = vsel %vm925, %v1034, %v863
      %v1047 = vld [vmem:[%s1] sm:$0xff]
      %v1048 = vld [vmem:[%s1 + $0x8] sm:$0xff]
      %v1049 = vld [vmem:[%s1 + $0x10] sm:$0xff]
      %v1050 = vld [vmem:[%s1 + $0x18] sm:$0xff]
      %v1051 = vld [vmem:[%s1 + $0x20] sm:$0xff]
      %v1052 = vld [vmem:[%s1 + $0x28] sm:$0xff]
      %v1053 = vld [vmem:[%s1 + $0x30] sm:$0xff]
      %v1054 = vld [vmem:[%s1 + $0x38] sm:$0xff]
      %v1055 = vld [vmem:[%s1 + $0x40] sm:$0xff]
      %v1056 = vld [vmem:[%s1 + $0x48] sm:$0xff]
      %v1057 = vld [vmem:[%s1 + $0x50] sm:$0xff]
      %v1058 = vld [vmem:[%s1 + $0x58] sm:$0xff]
      %v1059 = vld [vmem:[%s1 + $0x60] sm:$0xff]
      %v1060 = vld [vmem:[%s1 + $0x68] sm:$0xff]
      %v1061 = vld [vmem:[%s1 + $0x70] sm:$0xff]
      %v1062 = vld [vmem:[%s1 + $0x78] sm:$0xff]
      %v1063 = vld [vmem:[%s1 + $0x80] sm:$0xff]
      %v1064 = vld [vmem:[%s1 + $0x88] sm:$0xff]
      %v1065 = vld [vmem:[%s1 + $0x90] sm:$0xff]
      %v1066 = vld [vmem:[%s1 + $0x98] sm:$0xff]
      %v1067 = vld [vmem:[%s1 + $0xa0] sm:$0xff]
      %v1068 = vld [vmem:[%s1 + $0xa8] sm:$0xff]
      %v1069 = vld [vmem:[%s1 + $0xb0] sm:$0xff]
      %v1070 = vld [vmem:[%s1 + $0xb8] sm:$0xff]
      %v1071 = vld [vmem:[%s1 + $0xc0] sm:$0xff]
      %v1072 = vld [vmem:[%s1 + $0xc8] sm:$0xff]
      %v1073 = vld [vmem:[%s1 + $0xd0] sm:$0xff]
      %v1074 = vld [vmem:[%s1 + $0xd8] sm:$0xff]
      %vm1171 = vcmask 1046528
      %v1172 = vrot.slane %v975, 1
      %v1173 = vrot.slane %v976, 1
      %v1174 = vsel %vm1171, %v1172, %v1173
      %v1175 = vrot.slane %v938, 1
      %v1176 = vrot.slane %v939, 1
      %v1177 = vsel %vm1171, %v1175, %v1176
      %v1178 = vrot.slane %v977, 1
      %v1179 = vsel %vm1171, %v1173, %v1178
      %v1180 = vrot.slane %v940, 1
      %v1181 = vsel %vm1171, %v1176, %v1180
      %v1182 = vrot.slane %v978, 1
      %v1183 = vrot.slane %v979, 1
      %v1184 = vsel %vm1171, %v1182, %v1183
      %v1185 = vrot.slane %v941, 1
      %v1186 = vrot.slane %v942, 1
      %v1187 = vsel %vm1171, %v1185, %v1186
      %v1188 = vrot.slane %v980, 1
      %v1189 = vsel %vm1171, %v1183, %v1188
      %v1190 = vrot.slane %v943, 1
      %v1191 = vsel %vm1171, %v1186, %v1190
      %v1192 = vrot.slane %v981, 1
      %v1193 = vrot.slane %v982, 1
      %v1194 = vsel %vm1171, %v1192, %v1193
      %v1195 = vrot.slane %v944, 1
      %v1196 = vrot.slane %v945, 1
      %v1197 = vsel %vm1171, %v1195, %v1196
      %v1198 = vrot.slane %v983, 1
      %v1199 = vsel %vm1171, %v1193, %v1198
      %v1200 = vrot.slane %v946, 1
      %v1201 = vsel %vm1171, %v1196, %v1200
      %v1202 = vrot.slane %v984, 1
      %v1203 = vrot.slane %v985, 1
      %v1204 = vsel %vm1171, %v1202, %v1203
      %v1205 = vrot.slane %v947, 1
      %v1206 = vrot.slane %v948, 1
      %v1207 = vsel %vm1171, %v1205, %v1206
      %v1208 = vrot.slane %v986, 1
      %v1209 = vsel %vm1171, %v1203, %v1208
      %v1210 = vrot.slane %v949, 1
      %v1211 = vsel %vm1171, %v1206, %v1210
      %v1212 = vrot.slane %v987, 1
      %v1213 = vrot.slane %v988, 1
      %v1214 = vsel %vm1171, %v1212, %v1213
      %v1215 = vrot.slane %v950, 1
      %v1216 = vrot.slane %v951, 1
      %v1217 = vsel %vm1171, %v1215, %v1216
      %v1218 = vrot.slane %v989, 1
      %v1219 = vsel %vm1171, %v1213, %v1218
      %v1220 = vrot.slane %v952, 1
      %v1221 = vsel %vm1171, %v1216, %v1220
      %v1222 = vrot.slane %v990, 1
      %v1223 = vrot.slane %v991, 1
      %v1224 = vsel %vm1171, %v1222, %v1223
      %v1225 = vrot.slane %v953, 1
      %v1226 = vrot.slane %v954, 1
      %v1227 = vsel %vm1171, %v1225, %v1226
      %v1228 = vrot.slane %v992, 1
      %v1229 = vsel %vm1171, %v1223, %v1228
      %v1230 = vrot.slane %v955, 1
      %v1231 = vsel %vm1171, %v1226, %v1230
      %v1232 = vrot.slane %v993, 1
      %v1233 = vrot.slane %v994, 1
      %v1234 = vsel %vm1171, %v1232, %v1233
      %v1235 = vrot.slane %v956, 1
      %v1236 = vrot.slane %v957, 1
      %v1237 = vsel %vm1171, %v1235, %v1236
      %v1238 = vrot.slane %v995, 1
      %v1239 = vsel %vm1171, %v1233, %v1238
      %v1240 = vrot.slane %v958, 1
      %v1241 = vsel %vm1171, %v1236, %v1240
      %v1242 = vrot.slane %v996, 1
      %v1243 = vrot.slane %v997, 1
      %v1244 = vsel %vm1171, %v1242, %v1243
      %v1245 = vrot.slane %v959, 1
      %v1246 = vrot.slane %v960, 1
      %v1247 = vsel %vm1171, %v1245, %v1246
      %v1248 = vrot.slane %v998, 1
      %v1249 = vsel %vm1171, %v1243, %v1248
      %v1250 = vrot.slane %v961, 1
      %v1251 = vsel %vm1171, %v1246, %v1250
      %v1252 = vrot.slane %v999, 1
      %v1253 = vrot.slane %v1000, 1
      %v1254 = vsel %vm1171, %v1252, %v1253
      %v1255 = vrot.slane %v962, 1
      %v1256 = vrot.slane %v963, 1
      %v1257 = vsel %vm1171, %v1255, %v1256
      %v1258 = vrot.slane %v1001, 1
      %v1259 = vsel %vm1171, %v1253, %v1258
      %v1260 = vrot.slane %v964, 1
      %v1261 = vsel %vm1171, %v1256, %v1260
      %v1262 = vrot.slane %v1002, 1
      %v1263 = vrot.slane %v1003, 1
      %v1264 = vsel %vm1171, %v1262, %v1263
      %v1265 = vrot.slane %v965, 1
      %v1266 = vrot.slane %v966, 1
      %v1267 = vsel %vm1171, %v1265, %v1266
      %v1268 = vrot.slane %v1004, 1
      %v1269 = vsel %vm1171, %v1263, %v1268
      %v1270 = vrot.slane %v967, 1
      %v1271 = vsel %vm1171, %v1266, %v1270
      %v1272 = vrot.slane %v1005, 1
      %v1273 = vrot.slane %v1006, 1
      %v1274 = vsel %vm1171, %v1272, %v1273
      %v1275 = vrot.slane %v968, 1
      %v1276 = vrot.slane %v969, 1
      %v1277 = vsel %vm1171, %v1275, %v1276
      %v1278 = vrot.slane %v1007, 1
      %v1279 = vsel %vm1171, %v1273, %v1278
      %v1280 = vrot.slane %v970, 1
      %v1281 = vsel %vm1171, %v1276, %v1280
      %v1282 = vrot.slane %v1008, 1
      %v1283 = vrot.slane %v1009, 1
      %v1284 = vsel %vm1171, %v1282, %v1283
      %v1285 = vrot.slane %v971, 1
      %v1286 = vrot.slane %v972, 1
      %v1287 = vsel %vm1171, %v1285, %v1286
      %v1288 = vrot.slane %v1010, 1
      %v1289 = vsel %vm1171, %v1283, %v1288
      %v1290 = vrot.slane %v973, 1
      %v1291 = vsel %vm1171, %v1286, %v1290
      %v1292 = vrot.slane %v1011, 1
      %v1293 = vrot.slane %v1012, 1
      %v1294 = vsel %vm1171, %v1292, %v1293
      %v1295 = vrot.slane %v1035, 1
      %v1296 = vrot.slane %v1036, 1
      %v1297 = vsel %vm1171, %v1295, %v1296
      %v1298 = vrot.slane %v1013, 1
      %v1299 = vsel %vm1171, %v1293, %v1298
      %v1300 = vrot.slane %v1037, 1
      %v1301 = vsel %vm1171, %v1296, %v1300
      %v1302 = vrot.slane %v1014, 1
      %v1303 = vrot.slane %v1015, 1
      %v1304 = vsel %vm1171, %v1302, %v1303
      %v1305 = vrot.slane %v1038, 1
      %v1306 = vrot.slane %v1039, 1
      %v1307 = vsel %vm1171, %v1305, %v1306
      %v1308 = vrot.slane %v1016, 1
      %v1309 = vsel %vm1171, %v1303, %v1308
      %v1310 = vrot.slane %v1040, 1
      %v1311 = vsel %vm1171, %v1306, %v1310
      %v1312 = vrot.slane %v1017, 1
      %v1313 = vrot.slane %v1018, 1
      %v1314 = vsel %vm1171, %v1312, %v1313
      %v1315 = vrot.slane %v1041, 1
      %v1316 = vrot.slane %v1042, 1
      %v1317 = vsel %vm1171, %v1315, %v1316
      %v1318 = vrot.slane %v1019, 1
      %v1319 = vsel %vm1171, %v1313, %v1318
      %v1320 = vrot.slane %v1043, 1
      %v1321 = vsel %vm1171, %v1316, %v1320
      %v1322 = vrot.slane %v1020, 1
      %v1323 = vrot.slane %v1021, 1
      %v1324 = vsel %vm1171, %v1322, %v1323
      %v1325 = vrot.slane %v1044, 1
      %v1326 = vrot.slane %v1045, 1
      %v1327 = vsel %vm1171, %v1325, %v1326
      %v1328 = vrot.slane %v1022, 1
      %v1329 = vsel %vm1171, %v1323, %v1328
      %v1330 = vrot.slane %v1046, 1
      %v1331 = vsel %vm1171, %v1326, %v1330
      %s1364 = scalar_lea.vmem %s1, 224
      %v1365 = vld [vmem:[%s1364] sm:$0xff]
      %v1366 = vld [vmem:[%s1364 + $0x8] sm:$0xff]
      %v1367 = vld [vmem:[%s1364 + $0x10] sm:$0xff]
      %v1368 = vld [vmem:[%s1364 + $0x18] sm:$0xff]
      %v1369 = vld [vmem:[%s1364 + $0x20] sm:$0xff]
      %v1370 = vld [vmem:[%s1364 + $0x28] sm:$0xff]
      %v1371 = vld [vmem:[%s1364 + $0x30] sm:$0xff]
      %v1372 = vld [vmem:[%s1364 + $0x38] sm:$0xff]
      %v1373 = vld [vmem:[%s1364 + $0x40] sm:$0xff]
      %v1374 = vld [vmem:[%s1364 + $0x48] sm:$0xff]
      %v1375 = vld [vmem:[%s1364 + $0x50] sm:$0xff]
      %v1376 = vld [vmem:[%s1364 + $0x58] sm:$0xff]
      %v1377 = vld [vmem:[%s1364 + $0x60] sm:$0xff]
      %v1378 = vld [vmem:[%s1364 + $0x68] sm:$0xff]
      %v1379 = vld [vmem:[%s1364 + $0x70] sm:$0xff]
      %v1380 = vld [vmem:[%s1364 + $0x78] sm:$0xff]
      %v1381 = vld [vmem:[%s1364 + $0x80] sm:$0xff]
      %v1382 = vld [vmem:[%s1364 + $0x88] sm:$0xff]
      %v1383 = vld [vmem:[%s1364 + $0x90] sm:$0xff]
      %v1384 = vld [vmem:[%s1364 + $0x98] sm:$0xff]
      %v1385 = vld [vmem:[%s1364 + $0xa0] sm:$0xff]
      %v1386 = vld [vmem:[%s1364 + $0xa8] sm:$0xff]
      %v1387 = vld [vmem:[%s1364 + $0xb0] sm:$0xff]
      %v1388 = vld [vmem:[%s1364 + $0xb8] sm:$0xff]
      %v1389 = vld [vmem:[%s1364 + $0xc0] sm:$0xff]
      %v1390 = vld [vmem:[%s1364 + $0xc8] sm:$0xff]
      %v1391 = vld [vmem:[%s1364 + $0xd0] sm:$0xff]
      %v1392 = vld [vmem:[%s1364 + $0xd8] sm:$0xff]
      %vm1393 = vcmask 1045504
      %v1394 = vrot.slane %v975, 2
      %v1395 = vrot.slane %v976, 2
      %v1396 = vsel %vm1393, %v1394, %v1395
      %v1397 = vrot.slane %v938, 2
      %v1398 = vrot.slane %v939, 2
      %v1399 = vsel %vm1393, %v1397, %v1398
      %v1400 = vrot.slane %v977, 2
      %v1401 = vsel %vm1393, %v1395, %v1400
      %v1402 = vrot.slane %v940, 2
      %v1403 = vsel %vm1393, %v1398, %v1402
      %v1404 = vrot.slane %v978, 2
      %v1405 = vrot.slane %v979, 2
      %v1406 = vsel %vm1393, %v1404, %v1405
      %v1407 = vrot.slane %v941, 2
      %v1408 = vrot.slane %v942, 2
      %v1409 = vsel %vm1393, %v1407, %v1408
      %v1410 = vrot.slane %v980, 2
      %v1411 = vsel %vm1393, %v1405, %v1410
      %v1412 = vrot.slane %v943, 2
      %v1413 = vsel %vm1393, %v1408, %v1412
      %v1414 = vrot.slane %v981, 2
      %v1415 = vrot.slane %v982, 2
      %v1416 = vsel %vm1393, %v1414, %v1415
      %v1417 = vrot.slane %v944, 2
      %v1418 = vrot.slane %v945, 2
      %v1419 = vsel %vm1393, %v1417, %v1418
      %v1420 = vrot.slane %v983, 2
      %v1421 = vsel %vm1393, %v1415, %v1420
      %v1422 = vrot.slane %v946, 2
      %v1423 = vsel %vm1393, %v1418, %v1422
      %v1424 = vrot.slane %v984, 2
      %v1425 = vrot.slane %v985, 2
      %v1426 = vsel %vm1393, %v1424, %v1425
      %v1427 = vrot.slane %v947, 2
      %v1428 = vrot.slane %v948, 2
      %v1429 = vsel %vm1393, %v1427, %v1428
      %v1430 = vrot.slane %v986, 2
      %v1431 = vsel %vm1393, %v1425, %v1430
      %v1432 = vrot.slane %v949, 2
      %v1433 = vsel %vm1393, %v1428, %v1432
      %v1434 = vrot.slane %v987, 2
      %v1435 = vrot.slane %v988, 2
      %v1436 = vsel %vm1393, %v1434, %v1435
      %v1437 = vrot.slane %v950, 2
      %v1438 = vrot.slane %v951, 2
      %v1439 = vsel %vm1393, %v1437, %v1438
      %v1440 = vrot.slane %v989, 2
      %v1441 = vsel %vm1393, %v1435, %v1440
      %v1442 = vrot.slane %v952, 2
      %v1443 = vsel %vm1393, %v1438, %v1442
      %v1444 = vrot.slane %v990, 2
      %v1445 = vrot.slane %v991, 2
      %v1446 = vsel %vm1393, %v1444, %v1445
      %v1447 = vrot.slane %v953, 2
      %v1448 = vrot.slane %v954, 2
      %v1449 = vsel %vm1393, %v1447, %v1448
      %v1450 = vrot.slane %v992, 2
      %v1451 = vsel %vm1393, %v1445, %v1450
      %v1452 = vrot.slane %v955, 2
      %v1453 = vsel %vm1393, %v1448, %v1452
      %v1454 = vrot.slane %v993, 2
      %v1455 = vrot.slane %v994, 2
      %v1456 = vsel %vm1393, %v1454, %v1455
      %v1457 = vrot.slane %v956, 2
      %v1458 = vrot.slane %v957, 2
      %v1459 = vsel %vm1393, %v1457, %v1458
      %v1460 = vrot.slane %v995, 2
      %v1461 = vsel %vm1393, %v1455, %v1460
      %v1462 = vrot.slane %v958, 2
      %v1463 = vsel %vm1393, %v1458, %v1462
      %v1464 = vrot.slane %v996, 2
      %v1465 = vrot.slane %v997, 2
      %v1466 = vsel %vm1393, %v1464, %v1465
      %v1467 = vrot.slane %v959, 2
      %v1468 = vrot.slane %v960, 2
      %v1469 = vsel %vm1393, %v1467, %v1468
      %v1470 = vrot.slane %v998, 2
      %v1471 = vsel %vm1393, %v1465, %v1470
      %v1472 = vrot.slane %v961, 2
      %v1473 = vsel %vm1393, %v1468, %v1472
      %v1474 = vrot.slane %v999, 2
      %v1475 = vrot.slane %v1000, 2
      %v1476 = vsel %vm1393, %v1474, %v1475
      %v1477 = vrot.slane %v962, 2
      %v1478 = vrot.slane %v963, 2
      %v1479 = vsel %vm1393, %v1477, %v1478
      %v1480 = vrot.slane %v1001, 2
      %v1481 = vsel %vm1393, %v1475, %v1480
      %v1482 = vrot.slane %v964, 2
      %v1483 = vsel %vm1393, %v1478, %v1482
      %v1484 = vrot.slane %v1002, 2
      %v1485 = vrot.slane %v1003, 2
      %v1486 = vsel %vm1393, %v1484, %v1485
      %v1487 = vrot.slane %v965, 2
      %v1488 = vrot.slane %v966, 2
      %v1489 = vsel %vm1393, %v1487, %v1488
      %v1490 = vrot.slane %v1004, 2
      %v1491 = vsel %vm1393, %v1485, %v1490
      %v1492 = vrot.slane %v967, 2
      %v1493 = vsel %vm1393, %v1488, %v1492
      %v1494 = vrot.slane %v1005, 2
      %v1495 = vrot.slane %v1006, 2
      %v1496 = vsel %vm1393, %v1494, %v1495
      %v1497 = vrot.slane %v968, 2
      %v1498 = vrot.slane %v969, 2
      %v1499 = vsel %vm1393, %v1497, %v1498
      %v1500 = vrot.slane %v1007, 2
      %v1501 = vsel %vm1393, %v1495, %v1500
      %v1502 = vrot.slane %v970, 2
      %v1503 = vsel %vm1393, %v1498, %v1502
      %v1504 = vrot.slane %v1008, 2
      %v1505 = vrot.slane %v1009, 2
      %v1506 = vsel %vm1393, %v1504, %v1505
      %v1507 = vrot.slane %v971, 2
      %v1508 = vrot.slane %v972, 2
      %v1509 = vsel %vm1393, %v1507, %v1508
      %v1510 = vrot.slane %v1010, 2
      %v1511 = vsel %vm1393, %v1505, %v1510
      %v1512 = vrot.slane %v973, 2
      %v1513 = vsel %vm1393, %v1508, %v1512
      %v1514 = vrot.slane %v1011, 2
      %v1515 = vrot.slane %v1012, 2
      %v1516 = vsel %vm1393, %v1514, %v1515
      %v1517 = vrot.slane %v1035, 2
      %v1518 = vrot.slane %v1036, 2
      %v1519 = vsel %vm1393, %v1517, %v1518
      %v1520 = vrot.slane %v1013, 2
      %v1521 = vsel %vm1393, %v1515, %v1520
      %v1522 = vrot.slane %v1037, 2
      %v1523 = vsel %vm1393, %v1518, %v1522
      %v1524 = vrot.slane %v1014, 2
      %v1525 = vrot.slane %v1015, 2
      %v1526 = vsel %vm1393, %v1524, %v1525
      %v1527 = vrot.slane %v1038, 2
      %v1528 = vrot.slane %v1039, 2
      %v1529 = vsel %vm1393, %v1527, %v1528
      %v1530 = vrot.slane %v1016, 2
      %v1531 = vsel %vm1393, %v1525, %v1530
      %v1532 = vrot.slane %v1040, 2
      %v1533 = vsel %vm1393, %v1528, %v1532
      %v1534 = vrot.slane %v1017, 2
      %v1535 = vrot.slane %v1018, 2
      %v1536 = vsel %vm1393, %v1534, %v1535
      %v1537 = vrot.slane %v1041, 2
      %v1538 = vrot.slane %v1042, 2
      %v1539 = vsel %vm1393, %v1537, %v1538
      %v1540 = vrot.slane %v1019, 2
      %v1541 = vsel %vm1393, %v1535, %v1540
      %v1542 = vrot.slane %v1043, 2
      %v1543 = vsel %vm1393, %v1538, %v1542
      %v1544 = vrot.slane %v1020, 2
      %v1545 = vrot.slane %v1021, 2
      %v1546 = vsel %vm1393, %v1544, %v1545
      %v1547 = vrot.slane %v1044, 2
      %v1548 = vrot.slane %v1045, 2
      %v1549 = vsel %vm1393, %v1547, %v1548
      %v1550 = vrot.slane %v1022, 2
      %v1551 = vsel %vm1393, %v1545, %v1550
      %v1552 = vrot.slane %v1046, 2
      %v1553 = vsel %vm1393, %v1548, %v1552
      %s1586 = scalar_lea.vmem %s1, 448
      %v1587 = vld [vmem:[%s1586] sm:$0xff]
      %v1588 = vld [vmem:[%s1586 + $0x8] sm:$0xff]
      %v1589 = vld [vmem:[%s1586 + $0x10] sm:$0xff]
      %v1590 = vld [vmem:[%s1586 + $0x18] sm:$0xff]
      %v1591 = vld [vmem:[%s1586 + $0x20] sm:$0xff]
      %v1592 = vld [vmem:[%s1586 + $0x28] sm:$0xff]
      %v1593 = vld [vmem:[%s1586 + $0x30] sm:$0xff]
      %v1594 = vld [vmem:[%s1586 + $0x38] sm:$0xff]
      %v1595 = vld [vmem:[%s1586 + $0x40] sm:$0xff]
      %v1596 = vld [vmem:[%s1586 + $0x48] sm:$0xff]
      %v1597 = vld [vmem:[%s1586 + $0x50] sm:$0xff]
      %v1598 = vld [vmem:[%s1586 + $0x58] sm:$0xff]
      %v1599 = vld [vmem:[%s1586 + $0x60] sm:$0xff]
      %v1600 = vld [vmem:[%s1586 + $0x68] sm:$0xff]
      %v1601 = vld [vmem:[%s1586 + $0x70] sm:$0xff]
      %v1602 = vld [vmem:[%s1586 + $0x78] sm:$0xff]
      %v1603 = vld [vmem:[%s1586 + $0x80] sm:$0xff]
      %v1604 = vld [vmem:[%s1586 + $0x88] sm:$0xff]
      %v1605 = vld [vmem:[%s1586 + $0x90] sm:$0xff]
      %v1606 = vld [vmem:[%s1586 + $0x98] sm:$0xff]
      %v1607 = vld [vmem:[%s1586 + $0xa0] sm:$0xff]
      %v1608 = vld [vmem:[%s1586 + $0xa8] sm:$0xff]
      %v1609 = vld [vmem:[%s1586 + $0xb0] sm:$0xff]
      %v1610 = vld [vmem:[%s1586 + $0xb8] sm:$0xff]
      %v1611 = vld [vmem:[%s1586 + $0xc0] sm:$0xff]
      %v1612 = vld [vmem:[%s1586 + $0xc8] sm:$0xff]
      %v1613 = vld [vmem:[%s1586 + $0xd0] sm:$0xff]
      %v1614 = vld [vmem:[%s1586 + $0xd8] sm:$0xff]
      %v1615 = vsel %vm974, %v1399, 0
      %v1617 = vsel %vm974, %v1403, 0
      %v1619 = vsel %vm974, %v1409, 0
      %v1621 = vsel %vm974, %v1413, 0
      %v1623 = vsel %vm974, %v1419, 0
      %v1625 = vsel %vm974, %v1423, 0
      %v1627 = vsel %vm974, %v1429, 0
      %v1629 = vsel %vm974, %v1433, 0
      %v1631 = vsel %vm974, %v1439, 0
      %v1633 = vsel %vm974, %v1443, 0
      %v1635 = vsel %vm974, %v1449, 0
      %v1637 = vsel %vm974, %v1453, 0
      %v1639 = vsel %vm974, %v1459, 0
      %v1641 = vsel %vm974, %v1463, 0
      %v1643 = vsel %vm974, %v1469, 0
      %v1645 = vsel %vm974, %v1473, 0
      %v1647 = vsel %vm974, %v1479, 0
      %v1649 = vsel %vm974, %v1483, 0
      %v1651 = vsel %vm974, %v1489, 0
      %v1653 = vsel %vm974, %v1493, 0
      %v1655 = vsel %vm974, %v1499, 0
      %v1657 = vsel %vm974, %v1503, 0
      %v1659 = vsel %vm974, %v1509, 0
      %v1661 = vsel %vm974, %v1513, 0
      %v1663 = vsel %vm974, %v1519, 0
      %v1665 = vsel %vm974, %v1523, 0
      %v1667 = vsel %vm974, %v1529, 0
      %v1669 = vsel %vm974, %v1533, 0
      %v1671 = vsel %vm974, %v1539, 0
      %v1673 = vsel %vm974, %v1543, 0
      %v1675 = vsel %vm974, %v1549, 0
      %v1677 = vsel %vm974, %v1553, 0
      %1679 = vmatprep.subr.mxu0 0.0
      %1680 = vmatpush1.msra.mxu0 %v1602
      %1681 = vmatprep.subr.mxu0 0.0
      %1682 = vmatpush1.msra.mxu0 %v1601
      %1683 = vmatprep.subr.mxu0 0.0
      %1684 = vmatpush1.msra.mxu0 %v1600
      %1685 = vmatprep.subr.mxu0 0.0
      %1686 = vmatpush1.msra.mxu0 %v1599
      %1687 = vmatprep.subr.mxu0 0.0
      %1688 = vmatpush1.msra.mxu0 %v1598
      %1689 = vmatprep.subr.mxu0 0.0
      %1690 = vmatpush1.msra.mxu0 %v1597
      %1691 = vmatprep.subr.mxu0 0.0
      %1692 = vmatpush1.msra.mxu0 %v1596
      %1693 = vmatprep.subr.mxu0 0.0
      %1694 = vmatpush1.msra.mxu0 %v1595
      %1695 = vmatprep.subr.mxu0 0.0
      %1696 = vmatpush1.msra.mxu0 %v1594
      %1697 = vmatprep.subr.mxu0 0.0
      %1698 = vmatpush1.msra.mxu0 %v1593
      %1699 = vmatprep.subr.mxu0 0.0
      %1700 = vmatpush1.msra.mxu0 %v1592
      %1701 = vmatprep.subr.mxu0 0.0
      %1702 = vmatpush1.msra.mxu0 %v1591
      %1703 = vmatprep.subr.mxu0 0.0
      %1704 = vmatpush1.msra.mxu0 %v1590
      %1705 = vmatprep.subr.mxu0 0.0
      %1706 = vmatpush1.msra.mxu0 %v1589
      %1707 = vmatprep.subr.mxu0 0.0
      %1708 = vmatpush1.msra.mxu0 %v1588
      %1709 = vmatprep.subr.mxu0 0.0
      %1710 = vmatpush1.msra.mxu0 %v1587
      %1711 = vmatprep.subr.mxu0 0.0
      %1712 = vmatpush2.msra.mxu0 0.0
      %1713 = vmatprep.subr.mxu0 0.0
      %1714 = vmatpush2.msra.mxu0 0.0
      %1715 = vmatprep.subr.mxu0 0.0
      %1716 = vmatpush2.msra.mxu0 0.0
      %1717 = vmatprep.subr.mxu0 0.0
      %1718 = vmatpush2.msra.mxu0 0.0
      %1719 = vmatprep.subr.mxu0 0.0
      %1720 = vmatpush2.msra.mxu0 %v1614
      %1721 = vmatprep.subr.mxu0 0.0
      %1722 = vmatpush2.msra.mxu0 %v1613
      %1723 = vmatprep.subr.mxu0 0.0
      %1724 = vmatpush2.msra.mxu0 %v1612
      %1725 = vmatprep.subr.mxu0 0.0
      %1726 = vmatpush2.msra.mxu0 %v1611
      %1727 = vmatprep.subr.mxu0 0.0
      %1728 = vmatpush2.msra.mxu0 %v1610
      %1729 = vmatprep.subr.mxu0 0.0
      %1730 = vmatpush2.msra.mxu0 %v1609
      %1731 = vmatprep.subr.mxu0 0.0
      %1732 = vmatpush2.msra.mxu0 %v1608
      %1733 = vmatprep.subr.mxu0 0.0
      %1734 = vmatpush2.msra.mxu0 %v1607
      %1735 = vmatprep.subr.mxu0 0.0
      %1736 = vmatpush2.msra.mxu0 %v1606
      %1737 = vmatprep.subr.mxu0 0.0
      %1738 = vmatpush2.msra.mxu0 %v1605
      %1739 = vmatprep.subr.mxu0 0.0
      %1740 = vmatpush2.msra.mxu0 %v1604
      %1741 = vmatprep.subr.mxu0 0.0
      %1742 = vmatpush2.msra.mxu0 %v1603
      %1743 = vmatprep.mubr.f32.mxu0 %v1615
      %1744 = vmatmul.mubr.f32.gmra.mxu0 %v1396
      %v1745 = vpop.f32.mrf.mxu0
      %v1746 = vadd.f32 0.0, %v1745
      %v1747 = vpop.f32.mrf.mxu0
      %1748 = vmatprep.mubr.f32.mxu0 %v1617
      %1749 = vmatmul.mubr.f32.gmra.mxu0 %v1401
      %v1750 = vpop.f32.mrf.mxu0
      %v1751 = vadd.f32 0.0, %v1750
      %v1752 = vpop.f32.mrf.mxu0
      %1753 = vmatprep.mubr.f32.mxu0 %v1619
      %1754 = vmatmul.mubr.f32.gmra.mxu0 %v1406
      %v1755 = vpop.f32.mrf.mxu0
      %v1756 = vadd.f32 0.0, %v1755
      %v1757 = vpop.f32.mrf.mxu0
      %1758 = vmatprep.mubr.f32.mxu0 %v1621
      %1759 = vmatmul.mubr.f32.gmra.mxu0 %v1411
      %v1760 = vpop.f32.mrf.mxu0
      %v1761 = vadd.f32 0.0, %v1760
      %v1762 = vpop.f32.mrf.mxu0
      %1763 = vmatprep.mubr.f32.mxu0 %v1623
      %1764 = vmatmul.mubr.f32.gmra.mxu0 %v1416
      %v1765 = vpop.f32.mrf.mxu0
      %v1766 = vadd.f32 0.0, %v1765
      %v1767 = vpop.f32.mrf.mxu0
      %1768 = vmatprep.mubr.f32.mxu0 %v1625
      %1769 = vmatmul.mubr.f32.gmra.mxu0 %v1421
      %v1770 = vpop.f32.mrf.mxu0
      %v1771 = vadd.f32 0.0, %v1770
      %v1772 = vpop.f32.mrf.mxu0
      %1773 = vmatprep.mubr.f32.mxu0 %v1627
      %1774 = vmatmul.mubr.f32.gmra.mxu0 %v1426
      %v1775 = vpop.f32.mrf.mxu0
      %v1776 = vadd.f32 0.0, %v1775
      %v1777 = vpop.f32.mrf.mxu0
      %1778 = vmatprep.mubr.f32.mxu0 %v1629
      %1779 = vmatmul.mubr.f32.gmra.mxu0 %v1431
      %v1780 = vpop.f32.mrf.mxu0
      %v1781 = vadd.f32 0.0, %v1780
      %v1782 = vpop.f32.mrf.mxu0
      %1783 = vmatprep.mubr.f32.mxu0 %v1631
      %1784 = vmatmul.mubr.f32.gmra.mxu0 %v1436
      %v1785 = vpop.f32.mrf.mxu0
      %v1786 = vadd.f32 0.0, %v1785
      %v1787 = vpop.f32.mrf.mxu0
      %1788 = vmatprep.mubr.f32.mxu0 %v1633
      %1789 = vmatmul.mubr.f32.gmra.mxu0 %v1441
      %v1790 = vpop.f32.mrf.mxu0
      %v1791 = vadd.f32 0.0, %v1790
      %v1792 = vpop.f32.mrf.mxu0
      %1793 = vmatprep.mubr.f32.mxu0 %v1635
      %1794 = vmatmul.mubr.f32.gmra.mxu0 %v1446
      %v1795 = vpop.f32.mrf.mxu0
      %v1796 = vadd.f32 0.0, %v1795
      %v1797 = vpop.f32.mrf.mxu0
      %1798 = vmatprep.mubr.f32.mxu0 %v1637
      %1799 = vmatmul.mubr.f32.gmra.mxu0 %v1451
      %v1800 = vpop.f32.mrf.mxu0
      %v1801 = vadd.f32 0.0, %v1800
      %v1802 = vpop.f32.mrf.mxu0
      %1803 = vmatprep.mubr.f32.mxu0 %v1639
      %1804 = vmatmul.mubr.f32.gmra.mxu0 %v1456
      %v1805 = vpop.f32.mrf.mxu0
      %v1806 = vadd.f32 0.0, %v1805
      %v1807 = vpop.f32.mrf.mxu0
      %1808 = vmatprep.mubr.f32.mxu0 %v1641
      %1809 = vmatmul.mubr.f32.gmra.mxu0 %v1461
      %v1810 = vpop.f32.mrf.mxu0
      %v1811 = vadd.f32 0.0, %v1810
      %v1812 = vpop.f32.mrf.mxu0
      %1813 = vmatprep.mubr.f32.mxu0 %v1643
      %1814 = vmatmul.mubr.f32.gmra.mxu0 %v1466
      %v1815 = vpop.f32.mrf.mxu0
      %v1816 = vadd.f32 0.0, %v1815
      %v1817 = vpop.f32.mrf.mxu0
      %1818 = vmatprep.mubr.f32.mxu0 %v1645
      %1819 = vmatmul.mubr.f32.gmra.mxu0 %v1471
      %v1820 = vpop.f32.mrf.mxu0
      %v1821 = vadd.f32 0.0, %v1820
      %v1822 = vpop.f32.mrf.mxu0
      %1823 = vmatprep.mubr.f32.mxu0 %v1647
      %1824 = vmatmul.mubr.f32.gmra.mxu0 %v1476
      %v1825 = vpop.f32.mrf.mxu0
      %v1826 = vadd.f32 0.0, %v1825
      %v1827 = vpop.f32.mrf.mxu0
      %1828 = vmatprep.mubr.f32.mxu0 %v1649
      %1829 = vmatmul.mubr.f32.gmra.mxu0 %v1481
      %v1830 = vpop.f32.mrf.mxu0
      %v1831 = vadd.f32 0.0, %v1830
      %v1832 = vpop.f32.mrf.mxu0
      %1833 = vmatprep.mubr.f32.mxu0 %v1651
      %1834 = vmatmul.mubr.f32.gmra.mxu0 %v1486
      %v1835 = vpop.f32.mrf.mxu0
      %v1836 = vadd.f32 0.0, %v1835
      %v1837 = vpop.f32.mrf.mxu0
      %1838 = vmatprep.mubr.f32.mxu0 %v1653
      %1839 = vmatmul.mubr.f32.gmra.mxu0 %v1491
      %v1840 = vpop.f32.mrf.mxu0
      %v1841 = vadd.f32 0.0, %v1840
      %v1842 = vpop.f32.mrf.mxu0
      %1843 = vmatprep.mubr.f32.mxu0 %v1655
      %1844 = vmatmul.mubr.f32.gmra.mxu0 %v1496
      %v1845 = vpop.f32.mrf.mxu0
      %v1846 = vadd.f32 0.0, %v1845
      %v1847 = vpop.f32.mrf.mxu0
      %1848 = vmatprep.mubr.f32.mxu0 %v1657
      %1849 = vmatmul.mubr.f32.gmra.mxu0 %v1501
      %v1850 = vpop.f32.mrf.mxu0
      %v1851 = vadd.f32 0.0, %v1850
      %v1852 = vpop.f32.mrf.mxu0
      %1853 = vmatprep.mubr.f32.mxu0 %v1659
      %1854 = vmatmul.mubr.f32.gmra.mxu0 %v1506
      %v1855 = vpop.f32.mrf.mxu0
      %v1856 = vadd.f32 0.0, %v1855
      %v1857 = vpop.f32.mrf.mxu0
      %1858 = vmatprep.mubr.f32.mxu0 %v1661
      %1859 = vmatmul.mubr.f32.gmra.mxu0 %v1511
      %v1860 = vpop.f32.mrf.mxu0
      %v1861 = vadd.f32 0.0, %v1860
      %v1862 = vpop.f32.mrf.mxu0
      %1863 = vmatprep.mubr.f32.mxu0 %v1663
      %1864 = vmatmul.mubr.f32.gmra.mxu0 %v1516
      %v1865 = vpop.f32.mrf.mxu0
      %v1866 = vadd.f32 0.0, %v1865
      %v1867 = vpop.f32.mrf.mxu0
      %1868 = vmatprep.mubr.f32.mxu0 %v1665
      %1869 = vmatmul.mubr.f32.gmra.mxu0 %v1521
      %v1870 = vpop.f32.mrf.mxu0
      %v1871 = vadd.f32 0.0, %v1870
      %v1872 = vpop.f32.mrf.mxu0
      %1873 = vmatprep.mubr.f32.mxu0 %v1667
      %1874 = vmatmul.mubr.f32.gmra.mxu0 %v1526
      %v1875 = vpop.f32.mrf.mxu0
      %v1876 = vadd.f32 0.0, %v1875
      %v1877 = vpop.f32.mrf.mxu0
      %1878 = vmatprep.mubr.f32.mxu0 %v1669
      %1879 = vmatmul.mubr.f32.gmra.mxu0 %v1531
      %v1880 = vpop.f32.mrf.mxu0
      %v1881 = vadd.f32 0.0, %v1880
      %v1882 = vpop.f32.mrf.mxu0
      %1883 = vmatprep.mubr.f32.mxu0 %v1671
      %1884 = vmatmul.mubr.f32.gmra.mxu0 %v1536
      %v1885 = vpop.f32.mrf.mxu0
      %v1886 = vadd.f32 0.0, %v1885
      %v1887 = vpop.f32.mrf.mxu0
      %1888 = vmatprep.mubr.f32.mxu0 %v1673
      %1889 = vmatmul.mubr.f32.gmra.mxu0 %v1541
      %v1890 = vpop.f32.mrf.mxu0
      %v1891 = vadd.f32 0.0, %v1890
      %v1892 = vpop.f32.mrf.mxu0
      %1893 = vmatprep.mubr.f32.mxu0 %v1675
      %1894 = vmatmul.mubr.f32.gmra.mxu0 %v1546
      %v1895 = vpop.f32.mrf.mxu0
      %v1896 = vadd.f32 0.0, %v1895
      %v1897 = vpop.f32.mrf.mxu0
      %1898 = vmatprep.mubr.f32.mxu0 %v1677
      %1899 = vmatmul.mubr.f32.gmra.mxu0 %v1551
      %v1900 = vpop.f32.mrf.mxu0
      %v1901 = vadd.f32 0.0, %v1900
      %v1902 = vpop.f32.mrf.mxu0
      %1903 = vdwg.mxu0
      %v1904 = vsel %vm974, %v938, 0
      %v1906 = vsel %vm974, %v939, 0
      %v1908 = vsel %vm974, %v941, 0
      %v1910 = vsel %vm974, %v942, 0
      %v1912 = vsel %vm974, %v944, 0
      %v1914 = vsel %vm974, %v945, 0
      %v1916 = vsel %vm974, %v947, 0
      %v1918 = vsel %vm974, %v948, 0
      %v1920 = vsel %vm974, %v950, 0
      %v1922 = vsel %vm974, %v951, 0
      %v1924 = vsel %vm974, %v953, 0
      %v1926 = vsel %vm974, %v954, 0
      %v1928 = vsel %vm974, %v956, 0
      %v1930 = vsel %vm974, %v957, 0
      %v1932 = vsel %vm974, %v959, 0
      %v1934 = vsel %vm974, %v960, 0
      %v1936 = vsel %vm974, %v962, 0
      %v1938 = vsel %vm974, %v963, 0
      %v1940 = vsel %vm974, %v965, 0
      %v1942 = vsel %vm974, %v966, 0
      %v1944 = vsel %vm974, %v968, 0
      %v1946 = vsel %vm974, %v969, 0
      %v1948 = vsel %vm974, %v971, 0
      %v1950 = vsel %vm974, %v972, 0
      %v1952 = vsel %vm974, %v1035, 0
      %v1954 = vsel %vm974, %v1036, 0
      %v1956 = vsel %vm974, %v1038, 0
      %v1958 = vsel %vm974, %v1039, 0
      %v1960 = vsel %vm974, %v1041, 0
      %v1962 = vsel %vm974, %v1042, 0
      %v1964 = vsel %vm974, %v1044, 0
      %v1966 = vsel %vm974, %v1045, 0
      %1968 = vmatprep.subr.mxu0 0.0
      %1969 = vmatpush1.msra.mxu0 %v1062
      %1970 = vmatprep.subr.mxu0 0.0
      %1971 = vmatpush1.msra.mxu0 %v1061
      %1972 = vmatprep.subr.mxu0 0.0
      %1973 = vmatpush1.msra.mxu0 %v1060
      %1974 = vmatprep.subr.mxu0 0.0
      %1975 = vmatpush1.msra.mxu0 %v1059
      %1976 = vmatprep.subr.mxu0 0.0
      %1977 = vmatpush1.msra.mxu0 %v1058
      %1978 = vmatprep.subr.mxu0 0.0
      %1979 = vmatpush1.msra.mxu0 %v1057
      %1980 = vmatprep.subr.mxu0 0.0
      %1981 = vmatpush1.msra.mxu0 %v1056
      %1982 = vmatprep.subr.mxu0 0.0
      %1983 = vmatpush1.msra.mxu0 %v1055
      %1984 = vmatprep.subr.mxu0 0.0
      %1985 = vmatpush1.msra.mxu0 %v1054
      %1986 = vmatprep.subr.mxu0 0.0
      %1987 = vmatpush1.msra.mxu0 %v1053
      %1988 = vmatprep.subr.mxu0 0.0
      %1989 = vmatpush1.msra.mxu0 %v1052
      %1990 = vmatprep.subr.mxu0 0.0
      %1991 = vmatpush1.msra.mxu0 %v1051
      %1992 = vmatprep.subr.mxu0 0.0
      %1993 = vmatpush1.msra.mxu0 %v1050
      %1994 = vmatprep.subr.mxu0 0.0
      %1995 = vmatpush1.msra.mxu0 %v1049
      %1996 = vmatprep.subr.mxu0 0.0
      %1997 = vmatpush1.msra.mxu0 %v1048
      %1998 = vmatprep.subr.mxu0 0.0
      %1999 = vmatpush1.msra.mxu0 %v1047
      %2000 = vmatprep.subr.mxu0 0.0
      %2001 = vmatpush2.msra.mxu0 0.0
      %2002 = vmatprep.subr.mxu0 0.0
      %2003 = vmatpush2.msra.mxu0 0.0
      %2004 = vmatprep.subr.mxu0 0.0
      %2005 = vmatpush2.msra.mxu0 0.0
      %2006 = vmatprep.subr.mxu0 0.0
      %2007 = vmatpush2.msra.mxu0 0.0
      %2008 = vmatprep.subr.mxu0 0.0
      %2009 = vmatpush2.msra.mxu0 %v1074
      %2010 = vmatprep.subr.mxu0 0.0
      %2011 = vmatpush2.msra.mxu0 %v1073
      %2012 = vmatprep.subr.mxu0 0.0
      %2013 = vmatpush2.msra.mxu0 %v1072
      %2014 = vmatprep.subr.mxu0 0.0
      %2015 = vmatpush2.msra.mxu0 %v1071
      %2016 = vmatprep.subr.mxu0 0.0
      %2017 = vmatpush2.msra.mxu0 %v1070
      %2018 = vmatprep.subr.mxu0 0.0
      %2019 = vmatpush2.msra.mxu0 %v1069
      %2020 = vmatprep.subr.mxu0 0.0
      %2021 = vmatpush2.msra.mxu0 %v1068
      %2022 = vmatprep.subr.mxu0 0.0
      %2023 = vmatpush2.msra.mxu0 %v1067
      %2024 = vmatprep.subr.mxu0 0.0
      %2025 = vmatpush2.msra.mxu0 %v1066
      %2026 = vmatprep.subr.mxu0 0.0
      %2027 = vmatpush2.msra.mxu0 %v1065
      %2028 = vmatprep.subr.mxu0 0.0
      %2029 = vmatpush2.msra.mxu0 %v1064
      %2030 = vmatprep.subr.mxu0 0.0
      %2031 = vmatpush2.msra.mxu0 %v1063
      %2032 = vmatprep.mubr.f32.mxu0 %v1904
      %2033 = vmatmul.mubr.f32.gmra.mxu0 %v975
      %v2034 = vpop.f32.mrf.mxu0
      %v2035 = vadd.f32 %v1746, %v2034
      %v2036 = vpop.f32.mrf.mxu0
      %2037 = vmatprep.mubr.f32.mxu0 %v1906
      %2038 = vmatmul.mubr.f32.gmra.mxu0 %v976
      %v2039 = vpop.f32.mrf.mxu0
      %v2040 = vadd.f32 %v1751, %v2039
      %v2041 = vpop.f32.mrf.mxu0
      %2042 = vmatprep.mubr.f32.mxu0 %v1908
      %2043 = vmatmul.mubr.f32.gmra.mxu0 %v978
      %v2044 = vpop.f32.mrf.mxu0
      %v2045 = vadd.f32 %v1756, %v2044
      %v2046 = vpop.f32.mrf.mxu0
      %2047 = vmatprep.mubr.f32.mxu0 %v1910
      %2048 = vmatmul.mubr.f32.gmra.mxu0 %v979
      %v2049 = vpop.f32.mrf.mxu0
      %v2050 = vadd.f32 %v1761, %v2049
      %v2051 = vpop.f32.mrf.mxu0
      %2052 = vmatprep.mubr.f32.mxu0 %v1912
      %2053 = vmatmul.mubr.f32.gmra.mxu0 %v981
      %v2054 = vpop.f32.mrf.mxu0
      %v2055 = vadd.f32 %v1766, %v2054
      %v2056 = vpop.f32.mrf.mxu0
      %2057 = vmatprep.mubr.f32.mxu0 %v1914
      %2058 = vmatmul.mubr.f32.gmra.mxu0 %v982
      %v2059 = vpop.f32.mrf.mxu0
      %v2060 = vadd.f32 %v1771, %v2059
      %v2061 = vpop.f32.mrf.mxu0
      %2062 = vmatprep.mubr.f32.mxu0 %v1916
      %2063 = vmatmul.mubr.f32.gmra.mxu0 %v984
      %v2064 = vpop.f32.mrf.mxu0
      %v2065 = vadd.f32 %v1776, %v2064
      %v2066 = vpop.f32.mrf.mxu0
      %2067 = vmatprep.mubr.f32.mxu0 %v1918
      %2068 = vmatmul.mubr.f32.gmra.mxu0 %v985
      %v2069 = vpop.f32.mrf.mxu0
      %v2070 = vadd.f32 %v1781, %v2069
      %v2071 = vpop.f32.mrf.mxu0
      %2072 = vmatprep.mubr.f32.mxu0 %v1920
      %2073 = vmatmul.mubr.f32.gmra.mxu0 %v987
      %v2074 = vpop.f32.mrf.mxu0
      %v2075 = vadd.f32 %v1786, %v2074
      %v2076 = vpop.f32.mrf.mxu0
      %2077 = vmatprep.mubr.f32.mxu0 %v1922
      %2078 = vmatmul.mubr.f32.gmra.mxu0 %v988
      %v2079 = vpop.f32.mrf.mxu0
      %v2080 = vadd.f32 %v1791, %v2079
      %v2081 = vpop.f32.mrf.mxu0
      %2082 = vmatprep.mubr.f32.mxu0 %v1924
      %2083 = vmatmul.mubr.f32.gmra.mxu0 %v990
      %v2084 = vpop.f32.mrf.mxu0
      %v2085 = vadd.f32 %v1796, %v2084
      %v2086 = vpop.f32.mrf.mxu0
      %2087 = vmatprep.mubr.f32.mxu0 %v1926
      %2088 = vmatmul.mubr.f32.gmra.mxu0 %v991
      %v2089 = vpop.f32.mrf.mxu0
      %v2090 = vadd.f32 %v1801, %v2089
      %v2091 = vpop.f32.mrf.mxu0
      %2092 = vmatprep.mubr.f32.mxu0 %v1928
      %2093 = vmatmul.mubr.f32.gmra.mxu0 %v993
      %v2094 = vpop.f32.mrf.mxu0
      %v2095 = vadd.f32 %v1806, %v2094
      %v2096 = vpop.f32.mrf.mxu0
      %2097 = vmatprep.mubr.f32.mxu0 %v1930
      %2098 = vmatmul.mubr.f32.gmra.mxu0 %v994
      %v2099 = vpop.f32.mrf.mxu0
      %v2100 = vadd.f32 %v1811, %v2099
      %v2101 = vpop.f32.mrf.mxu0
      %2102 = vmatprep.mubr.f32.mxu0 %v1932
      %2103 = vmatmul.mubr.f32.gmra.mxu0 %v996
      %v2104 = vpop.f32.mrf.mxu0
      %v2105 = vadd.f32 %v1816, %v2104
      %v2106 = vpop.f32.mrf.mxu0
      %2107 = vmatprep.mubr.f32.mxu0 %v1934
      %2108 = vmatmul.mubr.f32.gmra.mxu0 %v997
      %v2109 = vpop.f32.mrf.mxu0
      %v2110 = vadd.f32 %v1821, %v2109
      %v2111 = vpop.f32.mrf.mxu0
      %2112 = vmatprep.mubr.f32.mxu0 %v1936
      %2113 = vmatmul.mubr.f32.gmra.mxu0 %v999
      %v2114 = vpop.f32.mrf.mxu0
      %v2115 = vadd.f32 %v1826, %v2114
      %v2116 = vpop.f32.mrf.mxu0
      %2117 = vmatprep.mubr.f32.mxu0 %v1938
      %2118 = vmatmul.mubr.f32.gmra.mxu0 %v1000
      %v2119 = vpop.f32.mrf.mxu0
      %v2120 = vadd.f32 %v1831, %v2119
      %v2121 = vpop.f32.mrf.mxu0
      %2122 = vmatprep.mubr.f32.mxu0 %v1940
      %2123 = vmatmul.mubr.f32.gmra.mxu0 %v1002
      %v2124 = vpop.f32.mrf.mxu0
      %v2125 = vadd.f32 %v1836, %v2124
      %v2126 = vpop.f32.mrf.mxu0
      %2127 = vmatprep.mubr.f32.mxu0 %v1942
      %2128 = vmatmul.mubr.f32.gmra.mxu0 %v1003
      %v2129 = vpop.f32.mrf.mxu0
      %v2130 = vadd.f32 %v1841, %v2129
      %v2131 = vpop.f32.mrf.mxu0
      %2132 = vmatprep.mubr.f32.mxu0 %v1944
      %2133 = vmatmul.mubr.f32.gmra.mxu0 %v1005
      %v2134 = vpop.f32.mrf.mxu0
      %v2135 = vadd.f32 %v1846, %v2134
      %v2136 = vpop.f32.mrf.mxu0
      %2137 = vmatprep.mubr.f32.mxu0 %v1946
      %2138 = vmatmul.mubr.f32.gmra.mxu0 %v1006
      %v2139 = vpop.f32.mrf.mxu0
      %v2140 = vadd.f32 %v1851, %v2139
      %v2141 = vpop.f32.mrf.mxu0
      %2142 = vmatprep.mubr.f32.mxu0 %v1948
      %2143 = vmatmul.mubr.f32.gmra.mxu0 %v1008
      %v2144 = vpop.f32.mrf.mxu0
      %v2145 = vadd.f32 %v1856, %v2144
      %v2146 = vpop.f32.mrf.mxu0
      %2147 = vmatprep.mubr.f32.mxu0 %v1950
      %2148 = vmatmul.mubr.f32.gmra.mxu0 %v1009
      %v2149 = vpop.f32.mrf.mxu0
      %v2150 = vadd.f32 %v1861, %v2149
      %v2151 = vpop.f32.mrf.mxu0
      %2152 = vmatprep.mubr.f32.mxu0 %v1952
      %2153 = vmatmul.mubr.f32.gmra.mxu0 %v1011
      %v2154 = vpop.f32.mrf.mxu0
      %v2155 = vadd.f32 %v1866, %v2154
      %v2156 = vpop.f32.mrf.mxu0
      %2157 = vmatprep.mubr.f32.mxu0 %v1954
      %2158 = vmatmul.mubr.f32.gmra.mxu0 %v1012
      %v2159 = vpop.f32.mrf.mxu0
      %v2160 = vadd.f32 %v1871, %v2159
      %v2161 = vpop.f32.mrf.mxu0
      %2162 = vmatprep.mubr.f32.mxu0 %v1956
      %2163 = vmatmul.mubr.f32.gmra.mxu0 %v1014
      %v2164 = vpop.f32.mrf.mxu0
      %v2165 = vadd.f32 %v1876, %v2164
      %v2166 = vpop.f32.mrf.mxu0
      %2167 = vmatprep.mubr.f32.mxu0 %v1958
      %2168 = vmatmul.mubr.f32.gmra.mxu0 %v1015
      %v2169 = vpop.f32.mrf.mxu0
      %v2170 = vadd.f32 %v1881, %v2169
      %v2171 = vpop.f32.mrf.mxu0
      %2172 = vmatprep.mubr.f32.mxu0 %v1960
      %2173 = vmatmul.mubr.f32.gmra.mxu0 %v1017
      %v2174 = vpop.f32.mrf.mxu0
      %v2175 = vadd.f32 %v1886, %v2174
      %v2176 = vpop.f32.mrf.mxu0
      %2177 = vmatprep.mubr.f32.mxu0 %v1962
      %2178 = vmatmul.mubr.f32.gmra.mxu0 %v1018
      %v2179 = vpop.f32.mrf.mxu0
      %v2180 = vadd.f32 %v1891, %v2179
      %v2181 = vpop.f32.mrf.mxu0
      %2182 = vmatprep.mubr.f32.mxu0 %v1964
      %2183 = vmatmul.mubr.f32.gmra.mxu0 %v1020
      %v2184 = vpop.f32.mrf.mxu0
      %v2185 = vadd.f32 %v1896, %v2184
      %v2186 = vpop.f32.mrf.mxu0
      %2187 = vmatprep.mubr.f32.mxu0 %v1966
      %2188 = vmatmul.mubr.f32.gmra.mxu0 %v1021
      %v2189 = vpop.f32.mrf.mxu0
      %v2190 = vadd.f32 %v1901, %v2189
      %v2191 = vpop.f32.mrf.mxu0
      %2192 = vdwg.mxu0
      %vm2193 = vcmask 1044480
      %v2194 = vrot.slane %v975, 3
      %v2195 = vrot.slane %v976, 3
      %v2196 = vsel %vm2193, %v2194, %v2195
      %v2197 = vrot.slane %v938, 3
      %v2198 = vrot.slane %v939, 3
      %v2199 = vsel %vm2193, %v2197, %v2198
      %v2200 = vrot.slane %v977, 3
      %v2201 = vsel %vm2193, %v2195, %v2200
      %v2202 = vrot.slane %v940, 3
      %v2203 = vsel %vm2193, %v2198, %v2202
      %v2204 = vrot.slane %v978, 3
      %v2205 = vrot.slane %v979, 3
      %v2206 = vsel %vm2193, %v2204, %v2205
      %v2207 = vrot.slane %v941, 3
      %v2208 = vrot.slane %v942, 3
      %v2209 = vsel %vm2193, %v2207, %v2208
      %v2210 = vrot.slane %v980, 3
      %v2211 = vsel %vm2193, %v2205, %v2210
      %v2212 = vrot.slane %v943, 3
      %v2213 = vsel %vm2193, %v2208, %v2212
      %v2214 = vrot.slane %v981, 3
      %v2215 = vrot.slane %v982, 3
      %v2216 = vsel %vm2193, %v2214, %v2215
      %v2217 = vrot.slane %v944, 3
      %v2218 = vrot.slane %v945, 3
      %v2219 = vsel %vm2193, %v2217, %v2218
      %v2220 = vrot.slane %v983, 3
      %v2221 = vsel %vm2193, %v2215, %v2220
      %v2222 = vrot.slane %v946, 3
      %v2223 = vsel %vm2193, %v2218, %v2222
      %v2224 = vrot.slane %v984, 3
      %v2225 = vrot.slane %v985, 3
      %v2226 = vsel %vm2193, %v2224, %v2225
      %v2227 = vrot.slane %v947, 3
      %v2228 = vrot.slane %v948, 3
      %v2229 = vsel %vm2193, %v2227, %v2228
      %v2230 = vrot.slane %v986, 3
      %v2231 = vsel %vm2193, %v2225, %v2230
      %v2232 = vrot.slane %v949, 3
      %v2233 = vsel %vm2193, %v2228, %v2232
      %v2234 = vrot.slane %v987, 3
      %v2235 = vrot.slane %v988, 3
      %v2236 = vsel %vm2193, %v2234, %v2235
      %v2237 = vrot.slane %v950, 3
      %v2238 = vrot.slane %v951, 3
      %v2239 = vsel %vm2193, %v2237, %v2238
      %v2240 = vrot.slane %v989, 3
      %v2241 = vsel %vm2193, %v2235, %v2240
      %v2242 = vrot.slane %v952, 3
      %v2243 = vsel %vm2193, %v2238, %v2242
      %v2244 = vrot.slane %v990, 3
      %v2245 = vrot.slane %v991, 3
      %v2246 = vsel %vm2193, %v2244, %v2245
      %v2247 = vrot.slane %v953, 3
      %v2248 = vrot.slane %v954, 3
      %v2249 = vsel %vm2193, %v2247, %v2248
      %v2250 = vrot.slane %v992, 3
      %v2251 = vsel %vm2193, %v2245, %v2250
      %v2252 = vrot.slane %v955, 3
      %v2253 = vsel %vm2193, %v2248, %v2252
      %v2254 = vrot.slane %v993, 3
      %v2255 = vrot.slane %v994, 3
      %v2256 = vsel %vm2193, %v2254, %v2255
      %v2257 = vrot.slane %v956, 3
      %v2258 = vrot.slane %v957, 3
      %v2259 = vsel %vm2193, %v2257, %v2258
      %v2260 = vrot.slane %v995, 3
      %v2261 = vsel %vm2193, %v2255, %v2260
      %v2262 = vrot.slane %v958, 3
      %v2263 = vsel %vm2193, %v2258, %v2262
      %v2264 = vrot.slane %v996, 3
      %v2265 = vrot.slane %v997, 3
      %v2266 = vsel %vm2193, %v2264, %v2265
      %v2267 = vrot.slane %v959, 3
      %v2268 = vrot.slane %v960, 3
      %v2269 = vsel %vm2193, %v2267, %v2268
      %v2270 = vrot.slane %v998, 3
      %v2271 = vsel %vm2193, %v2265, %v2270
      %v2272 = vrot.slane %v961, 3
      %v2273 = vsel %vm2193, %v2268, %v2272
      %v2274 = vrot.slane %v999, 3
      %v2275 = vrot.slane %v1000, 3
      %v2276 = vsel %vm2193, %v2274, %v2275
      %v2277 = vrot.slane %v962, 3
      %v2278 = vrot.slane %v963, 3
      %v2279 = vsel %vm2193, %v2277, %v2278
      %v2280 = vrot.slane %v1001, 3
      %v2281 = vsel %vm2193, %v2275, %v2280
      %v2282 = vrot.slane %v964, 3
      %v2283 = vsel %vm2193, %v2278, %v2282
      %v2284 = vrot.slane %v1002, 3
      %v2285 = vrot.slane %v1003, 3
      %v2286 = vsel %vm2193, %v2284, %v2285
      %v2287 = vrot.slane %v965, 3
      %v2288 = vrot.slane %v966, 3
      %v2289 = vsel %vm2193, %v2287, %v2288
      %v2290 = vrot.slane %v1004, 3
      %v2291 = vsel %vm2193, %v2285, %v2290
      %v2292 = vrot.slane %v967, 3
      %v2293 = vsel %vm2193, %v2288, %v2292
      %v2294 = vrot.slane %v1005, 3
      %v2295 = vrot.slane %v1006, 3
      %v2296 = vsel %vm2193, %v2294, %v2295
      %v2297 = vrot.slane %v968, 3
      %v2298 = vrot.slane %v969, 3
      %v2299 = vsel %vm2193, %v2297, %v2298
      %v2300 = vrot.slane %v1007, 3
      %v2301 = vsel %vm2193, %v2295, %v2300
      %v2302 = vrot.slane %v970, 3
      %v2303 = vsel %vm2193, %v2298, %v2302
      %v2304 = vrot.slane %v1008, 3
      %v2305 = vrot.slane %v1009, 3
      %v2306 = vsel %vm2193, %v2304, %v2305
      %v2307 = vrot.slane %v971, 3
      %v2308 = vrot.slane %v972, 3
      %v2309 = vsel %vm2193, %v2307, %v2308
      %v2310 = vrot.slane %v1010, 3
      %v2311 = vsel %vm2193, %v2305, %v2310
      %v2312 = vrot.slane %v973, 3
      %v2313 = vsel %vm2193, %v2308, %v2312
      %v2314 = vrot.slane %v1011, 3
      %v2315 = vrot.slane %v1012, 3
      %v2316 = vsel %vm2193, %v2314, %v2315
      %v2317 = vrot.slane %v1035, 3
      %v2318 = vrot.slane %v1036, 3
      %v2319 = vsel %vm2193, %v2317, %v2318
      %v2320 = vrot.slane %v1013, 3
      %v2321 = vsel %vm2193, %v2315, %v2320
      %v2322 = vrot.slane %v1037, 3
      %v2323 = vsel %vm2193, %v2318, %v2322
      %v2324 = vrot.slane %v1014, 3
      %v2325 = vrot.slane %v1015, 3
      %v2326 = vsel %vm2193, %v2324, %v2325
      %v2327 = vrot.slane %v1038, 3
      %v2328 = vrot.slane %v1039, 3
      %v2329 = vsel %vm2193, %v2327, %v2328
      %v2330 = vrot.slane %v1016, 3
      %v2331 = vsel %vm2193, %v2325, %v2330
      %v2332 = vrot.slane %v1040, 3
      %v2333 = vsel %vm2193, %v2328, %v2332
      %v2334 = vrot.slane %v1017, 3
      %v2335 = vrot.slane %v1018, 3
      %v2336 = vsel %vm2193, %v2334, %v2335
      %v2337 = vrot.slane %v1041, 3
      %v2338 = vrot.slane %v1042, 3
      %v2339 = vsel %vm2193, %v2337, %v2338
      %v2340 = vrot.slane %v1019, 3
      %v2341 = vsel %vm2193, %v2335, %v2340
      %v2342 = vrot.slane %v1043, 3
      %v2343 = vsel %vm2193, %v2338, %v2342
      %v2344 = vrot.slane %v1020, 3
      %v2345 = vrot.slane %v1021, 3
      %v2346 = vsel %vm2193, %v2344, %v2345
      %v2347 = vrot.slane %v1044, 3
      %v2348 = vrot.slane %v1045, 3
      %v2349 = vsel %vm2193, %v2347, %v2348
      %v2350 = vrot.slane %v1022, 3
      %v2351 = vsel %vm2193, %v2345, %v2350
      %v2352 = vrot.slane %v1046, 3
      %v2353 = vsel %vm2193, %v2348, %v2352
      %s2386 = scalar_lea.vmem %s1, 672
      %v2387 = vld [vmem:[%s2386] sm:$0xff]
      %v2388 = vld [vmem:[%s2386 + $0x8] sm:$0xff]
      %v2389 = vld [vmem:[%s2386 + $0x10] sm:$0xff]
      %v2390 = vld [vmem:[%s2386 + $0x18] sm:$0xff]
      %v2391 = vld [vmem:[%s2386 + $0x20] sm:$0xff]
      %v2392 = vld [vmem:[%s2386 + $0x28] sm:$0xff]
      %v2393 = vld [vmem:[%s2386 + $0x30] sm:$0xff]
      %v2394 = vld [vmem:[%s2386 + $0x38] sm:$0xff]
      %v2395 = vld [vmem:[%s2386 + $0x40] sm:$0xff]
      %v2396 = vld [vmem:[%s2386 + $0x48] sm:$0xff]
      %v2397 = vld [vmem:[%s2386 + $0x50] sm:$0xff]
      %v2398 = vld [vmem:[%s2386 + $0x58] sm:$0xff]
      %v2399 = vld [vmem:[%s2386 + $0x60] sm:$0xff]
      %v2400 = vld [vmem:[%s2386 + $0x68] sm:$0xff]
      %v2401 = vld [vmem:[%s2386 + $0x70] sm:$0xff]
      %v2402 = vld [vmem:[%s2386 + $0x78] sm:$0xff]
      %v2403 = vld [vmem:[%s2386 + $0x80] sm:$0xff]
      %v2404 = vld [vmem:[%s2386 + $0x88] sm:$0xff]
      %v2405 = vld [vmem:[%s2386 + $0x90] sm:$0xff]
      %v2406 = vld [vmem:[%s2386 + $0x98] sm:$0xff]
      %v2407 = vld [vmem:[%s2386 + $0xa0] sm:$0xff]
      %v2408 = vld [vmem:[%s2386 + $0xa8] sm:$0xff]
      %v2409 = vld [vmem:[%s2386 + $0xb0] sm:$0xff]
      %v2410 = vld [vmem:[%s2386 + $0xb8] sm:$0xff]
      %v2411 = vld [vmem:[%s2386 + $0xc0] sm:$0xff]
      %v2412 = vld [vmem:[%s2386 + $0xc8] sm:$0xff]
      %v2413 = vld [vmem:[%s2386 + $0xd0] sm:$0xff]
      %v2414 = vld [vmem:[%s2386 + $0xd8] sm:$0xff]
      %v2415 = vsel %vm974, %v2199, 0
      %v2417 = vsel %vm974, %v2203, 0
      %v2419 = vsel %vm974, %v2209, 0
      %v2421 = vsel %vm974, %v2213, 0
      %v2423 = vsel %vm974, %v2219, 0
      %v2425 = vsel %vm974, %v2223, 0
      %v2427 = vsel %vm974, %v2229, 0
      %v2429 = vsel %vm974, %v2233, 0
      %v2431 = vsel %vm974, %v2239, 0
      %v2433 = vsel %vm974, %v2243, 0
      %v2435 = vsel %vm974, %v2249, 0
      %v2437 = vsel %vm974, %v2253, 0
      %v2439 = vsel %vm974, %v2259, 0
      %v2441 = vsel %vm974, %v2263, 0
      %v2443 = vsel %vm974, %v2269, 0
      %v2445 = vsel %vm974, %v2273, 0
      %v2447 = vsel %vm974, %v2279, 0
      %v2449 = vsel %vm974, %v2283, 0
      %v2451 = vsel %vm974, %v2289, 0
      %v2453 = vsel %vm974, %v2293, 0
      %v2455 = vsel %vm974, %v2299, 0
      %v2457 = vsel %vm974, %v2303, 0
      %v2459 = vsel %vm974, %v2309, 0
      %v2461 = vsel %vm974, %v2313, 0
      %v2463 = vsel %vm974, %v2319, 0
      %v2465 = vsel %vm974, %v2323, 0
      %v2467 = vsel %vm974, %v2329, 0
      %v2469 = vsel %vm974, %v2333, 0
      %v2471 = vsel %vm974, %v2339, 0
      %v2473 = vsel %vm974, %v2343, 0
      %v2475 = vsel %vm974, %v2349, 0
      %v2477 = vsel %vm974, %v2353, 0
      %2479 = vmatprep.subr.mxu0 0.0
      %2480 = vmatpush1.msra.mxu0 %v2402
      %2481 = vmatprep.subr.mxu0 0.0
      %2482 = vmatpush1.msra.mxu0 %v2401
      %2483 = vmatprep.subr.mxu0 0.0
      %2484 = vmatpush1.msra.mxu0 %v2400
      %2485 = vmatprep.subr.mxu0 0.0
      %2486 = vmatpush1.msra.mxu0 %v2399
      %2487 = vmatprep.subr.mxu0 0.0
      %2488 = vmatpush1.msra.mxu0 %v2398
      %2489 = vmatprep.subr.mxu0 0.0
      %2490 = vmatpush1.msra.mxu0 %v2397
      %2491 = vmatprep.subr.mxu0 0.0
      %2492 = vmatpush1.msra.mxu0 %v2396
      %2493 = vmatprep.subr.mxu0 0.0
      %2494 = vmatpush1.msra.mxu0 %v2395
      %2495 = vmatprep.subr.mxu0 0.0
      %2496 = vmatpush1.msra.mxu0 %v2394
      %2497 = vmatprep.subr.mxu0 0.0
      %2498 = vmatpush1.msra.mxu0 %v2393
      %2499 = vmatprep.subr.mxu0 0.0
      %2500 = vmatpush1.msra.mxu0 %v2392
      %2501 = vmatprep.subr.mxu0 0.0
      %2502 = vmatpush1.msra.mxu0 %v2391
      %2503 = vmatprep.subr.mxu0 0.0
      %2504 = vmatpush1.msra.mxu0 %v2390
      %2505 = vmatprep.subr.mxu0 0.0
      %2506 = vmatpush1.msra.mxu0 %v2389
      %2507 = vmatprep.subr.mxu0 0.0
      %2508 = vmatpush1.msra.mxu0 %v2388
      %2509 = vmatprep.subr.mxu0 0.0
      %2510 = vmatpush1.msra.mxu0 %v2387
      %2511 = vmatprep.subr.mxu0 0.0
      %2512 = vmatpush2.msra.mxu0 0.0
      %2513 = vmatprep.subr.mxu0 0.0
      %2514 = vmatpush2.msra.mxu0 0.0
      %2515 = vmatprep.subr.mxu0 0.0
      %2516 = vmatpush2.msra.mxu0 0.0
      %2517 = vmatprep.subr.mxu0 0.0
      %2518 = vmatpush2.msra.mxu0 0.0
      %2519 = vmatprep.subr.mxu0 0.0
      %2520 = vmatpush2.msra.mxu0 %v2414
      %2521 = vmatprep.subr.mxu0 0.0
      %2522 = vmatpush2.msra.mxu0 %v2413
      %2523 = vmatprep.subr.mxu0 0.0
      %2524 = vmatpush2.msra.mxu0 %v2412
      %2525 = vmatprep.subr.mxu0 0.0
      %2526 = vmatpush2.msra.mxu0 %v2411
      %2527 = vmatprep.subr.mxu0 0.0
      %2528 = vmatpush2.msra.mxu0 %v2410
      %2529 = vmatprep.subr.mxu0 0.0
      %2530 = vmatpush2.msra.mxu0 %v2409
      %2531 = vmatprep.subr.mxu0 0.0
      %2532 = vmatpush2.msra.mxu0 %v2408
      %2533 = vmatprep.subr.mxu0 0.0
      %2534 = vmatpush2.msra.mxu0 %v2407
      %2535 = vmatprep.subr.mxu0 0.0
      %2536 = vmatpush2.msra.mxu0 %v2406
      %2537 = vmatprep.subr.mxu0 0.0
      %2538 = vmatpush2.msra.mxu0 %v2405
      %2539 = vmatprep.subr.mxu0 0.0
      %2540 = vmatpush2.msra.mxu0 %v2404
      %2541 = vmatprep.subr.mxu0 0.0
      %2542 = vmatpush2.msra.mxu0 %v2403
      %2543 = vmatprep.mubr.f32.mxu0 %v2415
      %2544 = vmatmul.mubr.f32.gmra.mxu0 %v2196
      %v2545 = vpop.f32.mrf.mxu0
      %v2546 = vadd.f32 0.0, %v2545
      %v2547 = vpop.f32.mrf.mxu0
      %2548 = vmatprep.mubr.f32.mxu0 %v2417
      %2549 = vmatmul.mubr.f32.gmra.mxu0 %v2201
      %v2550 = vpop.f32.mrf.mxu0
      %v2551 = vadd.f32 0.0, %v2550
      %v2552 = vpop.f32.mrf.mxu0
      %2553 = vmatprep.mubr.f32.mxu0 %v2419
      %2554 = vmatmul.mubr.f32.gmra.mxu0 %v2206
      %v2555 = vpop.f32.mrf.mxu0
      %v2556 = vadd.f32 0.0, %v2555
      %v2557 = vpop.f32.mrf.mxu0
      %2558 = vmatprep.mubr.f32.mxu0 %v2421
      %2559 = vmatmul.mubr.f32.gmra.mxu0 %v2211
      %v2560 = vpop.f32.mrf.mxu0
      %v2561 = vadd.f32 0.0, %v2560
      %v2562 = vpop.f32.mrf.mxu0
      %2563 = vmatprep.mubr.f32.mxu0 %v2423
      %2564 = vmatmul.mubr.f32.gmra.mxu0 %v2216
      %v2565 = vpop.f32.mrf.mxu0
      %v2566 = vadd.f32 0.0, %v2565
      %v2567 = vpop.f32.mrf.mxu0
      %2568 = vmatprep.mubr.f32.mxu0 %v2425
      %2569 = vmatmul.mubr.f32.gmra.mxu0 %v2221
      %v2570 = vpop.f32.mrf.mxu0
      %v2571 = vadd.f32 0.0, %v2570
      %v2572 = vpop.f32.mrf.mxu0
      %2573 = vmatprep.mubr.f32.mxu0 %v2427
      %2574 = vmatmul.mubr.f32.gmra.mxu0 %v2226
      %v2575 = vpop.f32.mrf.mxu0
      %v2576 = vadd.f32 0.0, %v2575
      %v2577 = vpop.f32.mrf.mxu0
      %2578 = vmatprep.mubr.f32.mxu0 %v2429
      %2579 = vmatmul.mubr.f32.gmra.mxu0 %v2231
      %v2580 = vpop.f32.mrf.mxu0
      %v2581 = vadd.f32 0.0, %v2580
      %v2582 = vpop.f32.mrf.mxu0
      %2583 = vmatprep.mubr.f32.mxu0 %v2431
      %2584 = vmatmul.mubr.f32.gmra.mxu0 %v2236
      %v2585 = vpop.f32.mrf.mxu0
      %v2586 = vadd.f32 0.0, %v2585
      %v2587 = vpop.f32.mrf.mxu0
      %2588 = vmatprep.mubr.f32.mxu0 %v2433
      %2589 = vmatmul.mubr.f32.gmra.mxu0 %v2241
      %v2590 = vpop.f32.mrf.mxu0
      %v2591 = vadd.f32 0.0, %v2590
      %v2592 = vpop.f32.mrf.mxu0
      %2593 = vmatprep.mubr.f32.mxu0 %v2435
      %2594 = vmatmul.mubr.f32.gmra.mxu0 %v2246
      %v2595 = vpop.f32.mrf.mxu0
      %v2596 = vadd.f32 0.0, %v2595
      %v2597 = vpop.f32.mrf.mxu0
      %2598 = vmatprep.mubr.f32.mxu0 %v2437
      %2599 = vmatmul.mubr.f32.gmra.mxu0 %v2251
      %v2600 = vpop.f32.mrf.mxu0
      %v2601 = vadd.f32 0.0, %v2600
      %v2602 = vpop.f32.mrf.mxu0
      %2603 = vmatprep.mubr.f32.mxu0 %v2439
      %2604 = vmatmul.mubr.f32.gmra.mxu0 %v2256
      %v2605 = vpop.f32.mrf.mxu0
      %v2606 = vadd.f32 0.0, %v2605
      %v2607 = vpop.f32.mrf.mxu0
      %2608 = vmatprep.mubr.f32.mxu0 %v2441
      %2609 = vmatmul.mubr.f32.gmra.mxu0 %v2261
      %v2610 = vpop.f32.mrf.mxu0
      %v2611 = vadd.f32 0.0, %v2610
      %v2612 = vpop.f32.mrf.mxu0
      %2613 = vmatprep.mubr.f32.mxu0 %v2443
      %2614 = vmatmul.mubr.f32.gmra.mxu0 %v2266
      %v2615 = vpop.f32.mrf.mxu0
      %v2616 = vadd.f32 0.0, %v2615
      %v2617 = vpop.f32.mrf.mxu0
      %2618 = vmatprep.mubr.f32.mxu0 %v2445
      %2619 = vmatmul.mubr.f32.gmra.mxu0 %v2271
      %v2620 = vpop.f32.mrf.mxu0
      %v2621 = vadd.f32 0.0, %v2620
      %v2622 = vpop.f32.mrf.mxu0
      %2623 = vmatprep.mubr.f32.mxu0 %v2447
      %2624 = vmatmul.mubr.f32.gmra.mxu0 %v2276
      %v2625 = vpop.f32.mrf.mxu0
      %v2626 = vadd.f32 0.0, %v2625
      %v2627 = vpop.f32.mrf.mxu0
      %2628 = vmatprep.mubr.f32.mxu0 %v2449
      %2629 = vmatmul.mubr.f32.gmra.mxu0 %v2281
      %v2630 = vpop.f32.mrf.mxu0
      %v2631 = vadd.f32 0.0, %v2630
      %v2632 = vpop.f32.mrf.mxu0
      %2633 = vmatprep.mubr.f32.mxu0 %v2451
      %2634 = vmatmul.mubr.f32.gmra.mxu0 %v2286
      %v2635 = vpop.f32.mrf.mxu0
      %v2636 = vadd.f32 0.0, %v2635
      %v2637 = vpop.f32.mrf.mxu0
      %2638 = vmatprep.mubr.f32.mxu0 %v2453
      %2639 = vmatmul.mubr.f32.gmra.mxu0 %v2291
      %v2640 = vpop.f32.mrf.mxu0
      %v2641 = vadd.f32 0.0, %v2640
      %v2642 = vpop.f32.mrf.mxu0
      %2643 = vmatprep.mubr.f32.mxu0 %v2455
      %2644 = vmatmul.mubr.f32.gmra.mxu0 %v2296
      %v2645 = vpop.f32.mrf.mxu0
      %v2646 = vadd.f32 0.0, %v2645
      %v2647 = vpop.f32.mrf.mxu0
      %2648 = vmatprep.mubr.f32.mxu0 %v2457
      %2649 = vmatmul.mubr.f32.gmra.mxu0 %v2301
      %v2650 = vpop.f32.mrf.mxu0
      %v2651 = vadd.f32 0.0, %v2650
      %v2652 = vpop.f32.mrf.mxu0
      %2653 = vmatprep.mubr.f32.mxu0 %v2459
      %2654 = vmatmul.mubr.f32.gmra.mxu0 %v2306
      %v2655 = vpop.f32.mrf.mxu0
      %v2656 = vadd.f32 0.0, %v2655
      %v2657 = vpop.f32.mrf.mxu0
      %2658 = vmatprep.mubr.f32.mxu0 %v2461
      %2659 = vmatmul.mubr.f32.gmra.mxu0 %v2311
      %v2660 = vpop.f32.mrf.mxu0
      %v2661 = vadd.f32 0.0, %v2660
      %v2662 = vpop.f32.mrf.mxu0
      %2663 = vmatprep.mubr.f32.mxu0 %v2463
      %2664 = vmatmul.mubr.f32.gmra.mxu0 %v2316
      %v2665 = vpop.f32.mrf.mxu0
      %v2666 = vadd.f32 0.0, %v2665
      %v2667 = vpop.f32.mrf.mxu0
      %2668 = vmatprep.mubr.f32.mxu0 %v2465
      %2669 = vmatmul.mubr.f32.gmra.mxu0 %v2321
      %v2670 = vpop.f32.mrf.mxu0
      %v2671 = vadd.f32 0.0, %v2670
      %v2672 = vpop.f32.mrf.mxu0
      %2673 = vmatprep.mubr.f32.mxu0 %v2467
      %2674 = vmatmul.mubr.f32.gmra.mxu0 %v2326
      %v2675 = vpop.f32.mrf.mxu0
      %v2676 = vadd.f32 0.0, %v2675
      %v2677 = vpop.f32.mrf.mxu0
      %2678 = vmatprep.mubr.f32.mxu0 %v2469
      %2679 = vmatmul.mubr.f32.gmra.mxu0 %v2331
      %v2680 = vpop.f32.mrf.mxu0
      %v2681 = vadd.f32 0.0, %v2680
      %v2682 = vpop.f32.mrf.mxu0
      %2683 = vmatprep.mubr.f32.mxu0 %v2471
      %2684 = vmatmul.mubr.f32.gmra.mxu0 %v2336
      %v2685 = vpop.f32.mrf.mxu0
      %v2686 = vadd.f32 0.0, %v2685
      %v2687 = vpop.f32.mrf.mxu0
      %2688 = vmatprep.mubr.f32.mxu0 %v2473
      %2689 = vmatmul.mubr.f32.gmra.mxu0 %v2341
      %v2690 = vpop.f32.mrf.mxu0
      %v2691 = vadd.f32 0.0, %v2690
      %v2692 = vpop.f32.mrf.mxu0
      %2693 = vmatprep.mubr.f32.mxu0 %v2475
      %2694 = vmatmul.mubr.f32.gmra.mxu0 %v2346
      %v2695 = vpop.f32.mrf.mxu0
      %v2696 = vadd.f32 0.0, %v2695
      %v2697 = vpop.f32.mrf.mxu0
      %2698 = vmatprep.mubr.f32.mxu0 %v2477
      %2699 = vmatmul.mubr.f32.gmra.mxu0 %v2351
      %v2700 = vpop.f32.mrf.mxu0
      %v2701 = vadd.f32 0.0, %v2700
      %v2702 = vpop.f32.mrf.mxu0
      %2703 = vdwg.mxu0
      %v2704 = vsel %vm974, %v1177, 0
      %v2706 = vsel %vm974, %v1181, 0
      %v2708 = vsel %vm974, %v1187, 0
      %v2710 = vsel %vm974, %v1191, 0
      %v2712 = vsel %vm974, %v1197, 0
      %v2714 = vsel %vm974, %v1201, 0
      %v2716 = vsel %vm974, %v1207, 0
      %v2718 = vsel %vm974, %v1211, 0
      %v2720 = vsel %vm974, %v1217, 0
      %v2722 = vsel %vm974, %v1221, 0
      %v2724 = vsel %vm974, %v1227, 0
      %v2726 = vsel %vm974, %v1231, 0
      %v2728 = vsel %vm974, %v1237, 0
      %v2730 = vsel %vm974, %v1241, 0
      %v2732 = vsel %vm974, %v1247, 0
      %v2734 = vsel %vm974, %v1251, 0
      %v2736 = vsel %vm974, %v1257, 0
      %v2738 = vsel %vm974, %v1261, 0
      %v2740 = vsel %vm974, %v1267, 0
      %v2742 = vsel %vm974, %v1271, 0
      %v2744 = vsel %vm974, %v1277, 0
      %v2746 = vsel %vm974, %v1281, 0
      %v2748 = vsel %vm974, %v1287, 0
      %v2750 = vsel %vm974, %v1291, 0
      %v2752 = vsel %vm974, %v1297, 0
      %v2754 = vsel %vm974, %v1301, 0
      %v2756 = vsel %vm974, %v1307, 0
      %v2758 = vsel %vm974, %v1311, 0
      %v2760 = vsel %vm974, %v1317, 0
      %v2762 = vsel %vm974, %v1321, 0
      %v2764 = vsel %vm974, %v1327, 0
      %v2766 = vsel %vm974, %v1331, 0
      %2768 = vmatprep.subr.mxu0 0.0
      %2769 = vmatpush1.msra.mxu0 %v1380
      %2770 = vmatprep.subr.mxu0 0.0
      %2771 = vmatpush1.msra.mxu0 %v1379
      %2772 = vmatprep.subr.mxu0 0.0
      %2773 = vmatpush1.msra.mxu0 %v1378
      %2774 = vmatprep.subr.mxu0 0.0
      %2775 = vmatpush1.msra.mxu0 %v1377
      %2776 = vmatprep.subr.mxu0 0.0
      %2777 = vmatpush1.msra.mxu0 %v1376
      %2778 = vmatprep.subr.mxu0 0.0
      %2779 = vmatpush1.msra.mxu0 %v1375
      %2780 = vmatprep.subr.mxu0 0.0
      %2781 = vmatpush1.msra.mxu0 %v1374
      %2782 = vmatprep.subr.mxu0 0.0
      %2783 = vmatpush1.msra.mxu0 %v1373
      %2784 = vmatprep.subr.mxu0 0.0
      %2785 = vmatpush1.msra.mxu0 %v1372
      %2786 = vmatprep.subr.mxu0 0.0
      %2787 = vmatpush1.msra.mxu0 %v1371
      %2788 = vmatprep.subr.mxu0 0.0
      %2789 = vmatpush1.msra.mxu0 %v1370
      %2790 = vmatprep.subr.mxu0 0.0
      %2791 = vmatpush1.msra.mxu0 %v1369
      %2792 = vmatprep.subr.mxu0 0.0
      %2793 = vmatpush1.msra.mxu0 %v1368
      %2794 = vmatprep.subr.mxu0 0.0
      %2795 = vmatpush1.msra.mxu0 %v1367
      %2796 = vmatprep.subr.mxu0 0.0
      %2797 = vmatpush1.msra.mxu0 %v1366
      %2798 = vmatprep.subr.mxu0 0.0
      %2799 = vmatpush1.msra.mxu0 %v1365
      %2800 = vmatprep.subr.mxu0 0.0
      %2801 = vmatpush2.msra.mxu0 0.0
      %2802 = vmatprep.subr.mxu0 0.0
      %2803 = vmatpush2.msra.mxu0 0.0
      %2804 = vmatprep.subr.mxu0 0.0
      %2805 = vmatpush2.msra.mxu0 0.0
      %2806 = vmatprep.subr.mxu0 0.0
      %2807 = vmatpush2.msra.mxu0 0.0
      %2808 = vmatprep.subr.mxu0 0.0
      %2809 = vmatpush2.msra.mxu0 %v1392
      %2810 = vmatprep.subr.mxu0 0.0
      %2811 = vmatpush2.msra.mxu0 %v1391
      %2812 = vmatprep.subr.mxu0 0.0
      %2813 = vmatpush2.msra.mxu0 %v1390
      %2814 = vmatprep.subr.mxu0 0.0
      %2815 = vmatpush2.msra.mxu0 %v1389
      %2816 = vmatprep.subr.mxu0 0.0
      %2817 = vmatpush2.msra.mxu0 %v1388
      %2818 = vmatprep.subr.mxu0 0.0
      %2819 = vmatpush2.msra.mxu0 %v1387
      %2820 = vmatprep.subr.mxu0 0.0
      %2821 = vmatpush2.msra.mxu0 %v1386
      %2822 = vmatprep.subr.mxu0 0.0
      %2823 = vmatpush2.msra.mxu0 %v1385
      %2824 = vmatprep.subr.mxu0 0.0
      %2825 = vmatpush2.msra.mxu0 %v1384
      %2826 = vmatprep.subr.mxu0 0.0
      %2827 = vmatpush2.msra.mxu0 %v1383
      %2828 = vmatprep.subr.mxu0 0.0
      %2829 = vmatpush2.msra.mxu0 %v1382
      %2830 = vmatprep.subr.mxu0 0.0
      %2831 = vmatpush2.msra.mxu0 %v1381
      %2832 = vmatprep.mubr.f32.mxu0 %v2704
      %2833 = vmatmul.mubr.f32.gmra.mxu0 %v1174
      %v2834 = vpop.f32.mrf.mxu0
      %v2835 = vadd.f32 %v2546, %v2834
      %v2836 = vpop.f32.mrf.mxu0
      %2837 = vmatprep.mubr.f32.mxu0 %v2706
      %2838 = vmatmul.mubr.f32.gmra.mxu0 %v1179
      %v2839 = vpop.f32.mrf.mxu0
      %v2840 = vadd.f32 %v2551, %v2839
      %v2841 = vpop.f32.mrf.mxu0
      %2842 = vmatprep.mubr.f32.mxu0 %v2708
      %2843 = vmatmul.mubr.f32.gmra.mxu0 %v1184
      %v2844 = vpop.f32.mrf.mxu0
      %v2845 = vadd.f32 %v2556, %v2844
      %v2846 = vpop.f32.mrf.mxu0
      %2847 = vmatprep.mubr.f32.mxu0 %v2710
      %2848 = vmatmul.mubr.f32.gmra.mxu0 %v1189
      %v2849 = vpop.f32.mrf.mxu0
      %v2850 = vadd.f32 %v2561, %v2849
      %v2851 = vpop.f32.mrf.mxu0
      %2852 = vmatprep.mubr.f32.mxu0 %v2712
      %2853 = vmatmul.mubr.f32.gmra.mxu0 %v1194
      %v2854 = vpop.f32.mrf.mxu0
      %v2855 = vadd.f32 %v2566, %v2854
      %v2856 = vpop.f32.mrf.mxu0
      %2857 = vmatprep.mubr.f32.mxu0 %v2714
      %2858 = vmatmul.mubr.f32.gmra.mxu0 %v1199
      %v2859 = vpop.f32.mrf.mxu0
      %v2860 = vadd.f32 %v2571, %v2859
      %v2861 = vpop.f32.mrf.mxu0
      %2862 = vmatprep.mubr.f32.mxu0 %v2716
      %2863 = vmatmul.mubr.f32.gmra.mxu0 %v1204
      %v2864 = vpop.f32.mrf.mxu0
      %v2865 = vadd.f32 %v2576, %v2864
      %v2866 = vpop.f32.mrf.mxu0
      %2867 = vmatprep.mubr.f32.mxu0 %v2718
      %2868 = vmatmul.mubr.f32.gmra.mxu0 %v1209
      %v2869 = vpop.f32.mrf.mxu0
      %v2870 = vadd.f32 %v2581, %v2869
      %v2871 = vpop.f32.mrf.mxu0
      %2872 = vmatprep.mubr.f32.mxu0 %v2720
      %2873 = vmatmul.mubr.f32.gmra.mxu0 %v1214
      %v2874 = vpop.f32.mrf.mxu0
      %v2875 = vadd.f32 %v2586, %v2874
      %v2876 = vpop.f32.mrf.mxu0
      %2877 = vmatprep.mubr.f32.mxu0 %v2722
      %2878 = vmatmul.mubr.f32.gmra.mxu0 %v1219
      %v2879 = vpop.f32.mrf.mxu0
      %v2880 = vadd.f32 %v2591, %v2879
      %v2881 = vpop.f32.mrf.mxu0
      %2882 = vmatprep.mubr.f32.mxu0 %v2724
      %2883 = vmatmul.mubr.f32.gmra.mxu0 %v1224
      %v2884 = vpop.f32.mrf.mxu0
      %v2885 = vadd.f32 %v2596, %v2884
      %v2886 = vpop.f32.mrf.mxu0
      %2887 = vmatprep.mubr.f32.mxu0 %v2726
      %2888 = vmatmul.mubr.f32.gmra.mxu0 %v1229
      %v2889 = vpop.f32.mrf.mxu0
      %v2890 = vadd.f32 %v2601, %v2889
      %v2891 = vpop.f32.mrf.mxu0
      %2892 = vmatprep.mubr.f32.mxu0 %v2728
      %2893 = vmatmul.mubr.f32.gmra.mxu0 %v1234
      %v2894 = vpop.f32.mrf.mxu0
      %v2895 = vadd.f32 %v2606, %v2894
      %v2896 = vpop.f32.mrf.mxu0
      %2897 = vmatprep.mubr.f32.mxu0 %v2730
      %2898 = vmatmul.mubr.f32.gmra.mxu0 %v1239
      %v2899 = vpop.f32.mrf.mxu0
      %v2900 = vadd.f32 %v2611, %v2899
      %v2901 = vpop.f32.mrf.mxu0
      %2902 = vmatprep.mubr.f32.mxu0 %v2732
      %2903 = vmatmul.mubr.f32.gmra.mxu0 %v1244
      %v2904 = vpop.f32.mrf.mxu0
      %v2905 = vadd.f32 %v2616, %v2904
      %v2906 = vpop.f32.mrf.mxu0
      %2907 = vmatprep.mubr.f32.mxu0 %v2734
      %2908 = vmatmul.mubr.f32.gmra.mxu0 %v1249
      %v2909 = vpop.f32.mrf.mxu0
      %v2910 = vadd.f32 %v2621, %v2909
      %v2911 = vpop.f32.mrf.mxu0
      %2912 = vmatprep.mubr.f32.mxu0 %v2736
      %2913 = vmatmul.mubr.f32.gmra.mxu0 %v1254
      %v2914 = vpop.f32.mrf.mxu0
      %v2915 = vadd.f32 %v2626, %v2914
      %v2916 = vpop.f32.mrf.mxu0
      %2917 = vmatprep.mubr.f32.mxu0 %v2738
      %2918 = vmatmul.mubr.f32.gmra.mxu0 %v1259
      %v2919 = vpop.f32.mrf.mxu0
      %v2920 = vadd.f32 %v2631, %v2919
      %v2921 = vpop.f32.mrf.mxu0
      %2922 = vmatprep.mubr.f32.mxu0 %v2740
      %2923 = vmatmul.mubr.f32.gmra.mxu0 %v1264
      %v2924 = vpop.f32.mrf.mxu0
      %v2925 = vadd.f32 %v2636, %v2924
      %v2926 = vpop.f32.mrf.mxu0
      %2927 = vmatprep.mubr.f32.mxu0 %v2742
      %2928 = vmatmul.mubr.f32.gmra.mxu0 %v1269
      %v2929 = vpop.f32.mrf.mxu0
      %v2930 = vadd.f32 %v2641, %v2929
      %v2931 = vpop.f32.mrf.mxu0
      %2932 = vmatprep.mubr.f32.mxu0 %v2744
      %2933 = vmatmul.mubr.f32.gmra.mxu0 %v1274
      %v2934 = vpop.f32.mrf.mxu0
      %v2935 = vadd.f32 %v2646, %v2934
      %v2936 = vpop.f32.mrf.mxu0
      %2937 = vmatprep.mubr.f32.mxu0 %v2746
      %2938 = vmatmul.mubr.f32.gmra.mxu0 %v1279
      %v2939 = vpop.f32.mrf.mxu0
      %v2940 = vadd.f32 %v2651, %v2939
      %v2941 = vpop.f32.mrf.mxu0
      %2942 = vmatprep.mubr.f32.mxu0 %v2748
      %2943 = vmatmul.mubr.f32.gmra.mxu0 %v1284
      %v2944 = vpop.f32.mrf.mxu0
      %v2945 = vadd.f32 %v2656, %v2944
      %v2946 = vpop.f32.mrf.mxu0
      %2947 = vmatprep.mubr.f32.mxu0 %v2750
      %2948 = vmatmul.mubr.f32.gmra.mxu0 %v1289
      %v2949 = vpop.f32.mrf.mxu0
      %v2950 = vadd.f32 %v2661, %v2949
      %v2951 = vpop.f32.mrf.mxu0
      %2952 = vmatprep.mubr.f32.mxu0 %v2752
      %2953 = vmatmul.mubr.f32.gmra.mxu0 %v1294
      %v2954 = vpop.f32.mrf.mxu0
      %v2955 = vadd.f32 %v2666, %v2954
      %v2956 = vpop.f32.mrf.mxu0
      %2957 = vmatprep.mubr.f32.mxu0 %v2754
      %2958 = vmatmul.mubr.f32.gmra.mxu0 %v1299
      %v2959 = vpop.f32.mrf.mxu0
      %v2960 = vadd.f32 %v2671, %v2959
      %v2961 = vpop.f32.mrf.mxu0
      %2962 = vmatprep.mubr.f32.mxu0 %v2756
      %2963 = vmatmul.mubr.f32.gmra.mxu0 %v1304
      %v2964 = vpop.f32.mrf.mxu0
      %v2965 = vadd.f32 %v2676, %v2964
      %v2966 = vpop.f32.mrf.mxu0
      %2967 = vmatprep.mubr.f32.mxu0 %v2758
      %2968 = vmatmul.mubr.f32.gmra.mxu0 %v1309
      %v2969 = vpop.f32.mrf.mxu0
      %v2970 = vadd.f32 %v2681, %v2969
      %v2971 = vpop.f32.mrf.mxu0
      %2972 = vmatprep.mubr.f32.mxu0 %v2760
      %2973 = vmatmul.mubr.f32.gmra.mxu0 %v1314
      %v2974 = vpop.f32.mrf.mxu0
      %v2975 = vadd.f32 %v2686, %v2974
      %v2976 = vpop.f32.mrf.mxu0
      %2977 = vmatprep.mubr.f32.mxu0 %v2762
      %2978 = vmatmul.mubr.f32.gmra.mxu0 %v1319
      %v2979 = vpop.f32.mrf.mxu0
      %v2980 = vadd.f32 %v2691, %v2979
      %v2981 = vpop.f32.mrf.mxu0
      %2982 = vmatprep.mubr.f32.mxu0 %v2764
      %2983 = vmatmul.mubr.f32.gmra.mxu0 %v1324
      %v2984 = vpop.f32.mrf.mxu0
      %v2985 = vadd.f32 %v2696, %v2984
      %v2986 = vpop.f32.mrf.mxu0
      %2987 = vmatprep.mubr.f32.mxu0 %v2766
      %2988 = vmatmul.mubr.f32.gmra.mxu0 %v1329
      %v2989 = vpop.f32.mrf.mxu0
      %v2990 = vadd.f32 %v2701, %v2989
      %v2991 = vpop.f32.mrf.mxu0
      %2992 = vdwg.mxu0
      %vm2993 = vcmask 1043456
      %v2994 = vrot.slane %v975, 4
      %v2995 = vrot.slane %v976, 4
      %v2996 = vsel %vm2993, %v2994, %v2995
      %v2997 = vrot.slane %v938, 4
      %v2998 = vrot.slane %v939, 4
      %v2999 = vsel %vm2993, %v2997, %v2998
      %v3000 = vrot.slane %v977, 4
      %v3001 = vsel %vm2993, %v2995, %v3000
      %v3002 = vrot.slane %v940, 4
      %v3003 = vsel %vm2993, %v2998, %v3002
      %v3004 = vrot.slane %v978, 4
      %v3005 = vrot.slane %v979, 4
      %v3006 = vsel %vm2993, %v3004, %v3005
      %v3007 = vrot.slane %v941, 4
      %v3008 = vrot.slane %v942, 4
      %v3009 = vsel %vm2993, %v3007, %v3008
      %v3010 = vrot.slane %v980, 4
      %v3011 = vsel %vm2993, %v3005, %v3010
      %v3012 = vrot.slane %v943, 4
      %v3013 = vsel %vm2993, %v3008, %v3012
      %v3014 = vrot.slane %v981, 4
      %v3015 = vrot.slane %v982, 4
      %v3016 = vsel %vm2993, %v3014, %v3015
      %v3017 = vrot.slane %v944, 4
      %v3018 = vrot.slane %v945, 4
      %v3019 = vsel %vm2993, %v3017, %v3018
      %v3020 = vrot.slane %v983, 4
      %v3021 = vsel %vm2993, %v3015, %v3020
      %v3022 = vrot.slane %v946, 4
      %v3023 = vsel %vm2993, %v3018, %v3022
      %v3024 = vrot.slane %v984, 4
      %v3025 = vrot.slane %v985, 4
      %v3026 = vsel %vm2993, %v3024, %v3025
      %v3027 = vrot.slane %v947, 4
      %v3028 = vrot.slane %v948, 4
      %v3029 = vsel %vm2993, %v3027, %v3028
      %v3030 = vrot.slane %v986, 4
      %v3031 = vsel %vm2993, %v3025, %v3030
      %v3032 = vrot.slane %v949, 4
      %v3033 = vsel %vm2993, %v3028, %v3032
      %v3034 = vrot.slane %v987, 4
      %v3035 = vrot.slane %v988, 4
      %v3036 = vsel %vm2993, %v3034, %v3035
      %v3037 = vrot.slane %v950, 4
      %v3038 = vrot.slane %v951, 4
      %v3039 = vsel %vm2993, %v3037, %v3038
      %v3040 = vrot.slane %v989, 4
      %v3041 = vsel %vm2993, %v3035, %v3040
      %v3042 = vrot.slane %v952, 4
      %v3043 = vsel %vm2993, %v3038, %v3042
      %v3044 = vrot.slane %v990, 4
      %v3045 = vrot.slane %v991, 4
      %v3046 = vsel %vm2993, %v3044, %v3045
      %v3047 = vrot.slane %v953, 4
      %v3048 = vrot.slane %v954, 4
      %v3049 = vsel %vm2993, %v3047, %v3048
      %v3050 = vrot.slane %v992, 4
      %v3051 = vsel %vm2993, %v3045, %v3050
      %v3052 = vrot.slane %v955, 4
      %v3053 = vsel %vm2993, %v3048, %v3052
      %v3054 = vrot.slane %v993, 4
      %v3055 = vrot.slane %v994, 4
      %v3056 = vsel %vm2993, %v3054, %v3055
      %v3057 = vrot.slane %v956, 4
      %v3058 = vrot.slane %v957, 4
      %v3059 = vsel %vm2993, %v3057, %v3058
      %v3060 = vrot.slane %v995, 4
      %v3061 = vsel %vm2993, %v3055, %v3060
      %v3062 = vrot.slane %v958, 4
      %v3063 = vsel %vm2993, %v3058, %v3062
      %v3064 = vrot.slane %v996, 4
      %v3065 = vrot.slane %v997, 4
      %v3066 = vsel %vm2993, %v3064, %v3065
      %v3067 = vrot.slane %v959, 4
      %v3068 = vrot.slane %v960, 4
      %v3069 = vsel %vm2993, %v3067, %v3068
      %v3070 = vrot.slane %v998, 4
      %v3071 = vsel %vm2993, %v3065, %v3070
      %v3072 = vrot.slane %v961, 4
      %v3073 = vsel %vm2993, %v3068, %v3072
      %v3074 = vrot.slane %v999, 4
      %v3075 = vrot.slane %v1000, 4
      %v3076 = vsel %vm2993, %v3074, %v3075
      %v3077 = vrot.slane %v962, 4
      %v3078 = vrot.slane %v963, 4
      %v3079 = vsel %vm2993, %v3077, %v3078
      %v3080 = vrot.slane %v1001, 4
      %v3081 = vsel %vm2993, %v3075, %v3080
      %v3082 = vrot.slane %v964, 4
      %v3083 = vsel %vm2993, %v3078, %v3082
      %v3084 = vrot.slane %v1002, 4
      %v3085 = vrot.slane %v1003, 4
      %v3086 = vsel %vm2993, %v3084, %v3085
      %v3087 = vrot.slane %v965, 4
      %v3088 = vrot.slane %v966, 4
      %v3089 = vsel %vm2993, %v3087, %v3088
      %v3090 = vrot.slane %v1004, 4
      %v3091 = vsel %vm2993, %v3085, %v3090
      %v3092 = vrot.slane %v967, 4
      %v3093 = vsel %vm2993, %v3088, %v3092
      %v3094 = vrot.slane %v1005, 4
      %v3095 = vrot.slane %v1006, 4
      %v3096 = vsel %vm2993, %v3094, %v3095
      %v3097 = vrot.slane %v968, 4
      %v3098 = vrot.slane %v969, 4
      %v3099 = vsel %vm2993, %v3097, %v3098
      %v3100 = vrot.slane %v1007, 4
      %v3101 = vsel %vm2993, %v3095, %v3100
      %v3102 = vrot.slane %v970, 4
      %v3103 = vsel %vm2993, %v3098, %v3102
      %v3104 = vrot.slane %v1008, 4
      %v3105 = vrot.slane %v1009, 4
      %v3106 = vsel %vm2993, %v3104, %v3105
      %v3107 = vrot.slane %v971, 4
      %v3108 = vrot.slane %v972, 4
      %v3109 = vsel %vm2993, %v3107, %v3108
      %v3110 = vrot.slane %v1010, 4
      %v3111 = vsel %vm2993, %v3105, %v3110
      %v3112 = vrot.slane %v973, 4
      %v3113 = vsel %vm2993, %v3108, %v3112
      %v3114 = vrot.slane %v1011, 4
      %v3115 = vrot.slane %v1012, 4
      %v3116 = vsel %vm2993, %v3114, %v3115
      %v3117 = vrot.slane %v1035, 4
      %v3118 = vrot.slane %v1036, 4
      %v3119 = vsel %vm2993, %v3117, %v3118
      %v3120 = vrot.slane %v1013, 4
      %v3121 = vsel %vm2993, %v3115, %v3120
      %v3122 = vrot.slane %v1037, 4
      %v3123 = vsel %vm2993, %v3118, %v3122
      %v3124 = vrot.slane %v1014, 4
      %v3125 = vrot.slane %v1015, 4
      %v3126 = vsel %vm2993, %v3124, %v3125
      %v3127 = vrot.slane %v1038, 4
      %v3128 = vrot.slane %v1039, 4
      %v3129 = vsel %vm2993, %v3127, %v3128
      %v3130 = vrot.slane %v1016, 4
      %v3131 = vsel %vm2993, %v3125, %v3130
      %v3132 = vrot.slane %v1040, 4
      %v3133 = vsel %vm2993, %v3128, %v3132
      %v3134 = vrot.slane %v1017, 4
      %v3135 = vrot.slane %v1018, 4
      %v3136 = vsel %vm2993, %v3134, %v3135
      %v3137 = vrot.slane %v1041, 4
      %v3138 = vrot.slane %v1042, 4
      %v3139 = vsel %vm2993, %v3137, %v3138
      %v3140 = vrot.slane %v1019, 4
      %v3141 = vsel %vm2993, %v3135, %v3140
      %v3142 = vrot.slane %v1043, 4
      %v3143 = vsel %vm2993, %v3138, %v3142
      %v3144 = vrot.slane %v1020, 4
      %v3145 = vrot.slane %v1021, 4
      %v3146 = vsel %vm2993, %v3144, %v3145
      %v3147 = vrot.slane %v1044, 4
      %v3148 = vrot.slane %v1045, 4
      %v3149 = vsel %vm2993, %v3147, %v3148
      %v3150 = vrot.slane %v1022, 4
      %v3151 = vsel %vm2993, %v3145, %v3150
      %v3152 = vrot.slane %v1046, 4
      %v3153 = vsel %vm2993, %v3148, %v3152
      %s3186 = scalar_lea.vmem %s1, 896
      %v3187 = vld [vmem:[%s3186] sm:$0xff]
      %v3188 = vld [vmem:[%s3186 + $0x8] sm:$0xff]
      %v3189 = vld [vmem:[%s3186 + $0x10] sm:$0xff]
      %v3190 = vld [vmem:[%s3186 + $0x18] sm:$0xff]
      %v3191 = vld [vmem:[%s3186 + $0x20] sm:$0xff]
      %v3192 = vld [vmem:[%s3186 + $0x28] sm:$0xff]
      %v3193 = vld [vmem:[%s3186 + $0x30] sm:$0xff]
      %v3194 = vld [vmem:[%s3186 + $0x38] sm:$0xff]
      %v3195 = vld [vmem:[%s3186 + $0x40] sm:$0xff]
      %v3196 = vld [vmem:[%s3186 + $0x48] sm:$0xff]
      %v3197 = vld [vmem:[%s3186 + $0x50] sm:$0xff]
      %v3198 = vld [vmem:[%s3186 + $0x58] sm:$0xff]
      %v3199 = vld [vmem:[%s3186 + $0x60] sm:$0xff]
      %v3200 = vld [vmem:[%s3186 + $0x68] sm:$0xff]
      %v3201 = vld [vmem:[%s3186 + $0x70] sm:$0xff]
      %v3202 = vld [vmem:[%s3186 + $0x78] sm:$0xff]
      %v3203 = vld [vmem:[%s3186 + $0x80] sm:$0xff]
      %v3204 = vld [vmem:[%s3186 + $0x88] sm:$0xff]
      %v3205 = vld [vmem:[%s3186 + $0x90] sm:$0xff]
      %v3206 = vld [vmem:[%s3186 + $0x98] sm:$0xff]
      %v3207 = vld [vmem:[%s3186 + $0xa0] sm:$0xff]
      %v3208 = vld [vmem:[%s3186 + $0xa8] sm:$0xff]
      %v3209 = vld [vmem:[%s3186 + $0xb0] sm:$0xff]
      %v3210 = vld [vmem:[%s3186 + $0xb8] sm:$0xff]
      %v3211 = vld [vmem:[%s3186 + $0xc0] sm:$0xff]
      %v3212 = vld [vmem:[%s3186 + $0xc8] sm:$0xff]
      %v3213 = vld [vmem:[%s3186 + $0xd0] sm:$0xff]
      %v3214 = vld [vmem:[%s3186 + $0xd8] sm:$0xff]
      %v3215 = vsel %vm974, %v2999, 0
      %v3217 = vsel %vm974, %v3003, 0
      %v3219 = vsel %vm974, %v3009, 0
      %v3221 = vsel %vm974, %v3013, 0
      %v3223 = vsel %vm974, %v3019, 0
      %v3225 = vsel %vm974, %v3023, 0
      %v3227 = vsel %vm974, %v3029, 0
      %v3229 = vsel %vm974, %v3033, 0
      %v3231 = vsel %vm974, %v3039, 0
      %v3233 = vsel %vm974, %v3043, 0
      %v3235 = vsel %vm974, %v3049, 0
      %v3237 = vsel %vm974, %v3053, 0
      %v3239 = vsel %vm974, %v3059, 0
      %v3241 = vsel %vm974, %v3063, 0
      %v3243 = vsel %vm974, %v3069, 0
      %v3245 = vsel %vm974, %v3073, 0
      %v3247 = vsel %vm974, %v3079, 0
      %v3249 = vsel %vm974, %v3083, 0
      %v3251 = vsel %vm974, %v3089, 0
      %v3253 = vsel %vm974, %v3093, 0
      %v3255 = vsel %vm974, %v3099, 0
      %v3257 = vsel %vm974, %v3103, 0
      %v3259 = vsel %vm974, %v3109, 0
      %v3261 = vsel %vm974, %v3113, 0
      %v3263 = vsel %vm974, %v3119, 0
      %v3265 = vsel %vm974, %v3123, 0
      %v3267 = vsel %vm974, %v3129, 0
      %v3269 = vsel %vm974, %v3133, 0
      %v3271 = vsel %vm974, %v3139, 0
      %v3273 = vsel %vm974, %v3143, 0
      %v3275 = vsel %vm974, %v3149, 0
      %v3277 = vsel %vm974, %v3153, 0
      %3279 = vmatprep.subr.mxu0 0.0
      %3280 = vmatpush1.msra.mxu0 %v3202
      %3281 = vmatprep.subr.mxu0 0.0
      %3282 = vmatpush1.msra.mxu0 %v3201
      %3283 = vmatprep.subr.mxu0 0.0
      %3284 = vmatpush1.msra.mxu0 %v3200
      %3285 = vmatprep.subr.mxu0 0.0
      %3286 = vmatpush1.msra.mxu0 %v3199
      %3287 = vmatprep.subr.mxu0 0.0
      %3288 = vmatpush1.msra.mxu0 %v3198
      %3289 = vmatprep.subr.mxu0 0.0
      %3290 = vmatpush1.msra.mxu0 %v3197
      %3291 = vmatprep.subr.mxu0 0.0
      %3292 = vmatpush1.msra.mxu0 %v3196
      %3293 = vmatprep.subr.mxu0 0.0
      %3294 = vmatpush1.msra.mxu0 %v3195
      %3295 = vmatprep.subr.mxu0 0.0
      %3296 = vmatpush1.msra.mxu0 %v3194
      %3297 = vmatprep.subr.mxu0 0.0
      %3298 = vmatpush1.msra.mxu0 %v3193
      %3299 = vmatprep.subr.mxu0 0.0
      %3300 = vmatpush1.msra.mxu0 %v3192
      %3301 = vmatprep.subr.mxu0 0.0
      %3302 = vmatpush1.msra.mxu0 %v3191
      %3303 = vmatprep.subr.mxu0 0.0
      %3304 = vmatpush1.msra.mxu0 %v3190
      %3305 = vmatprep.subr.mxu0 0.0
      %3306 = vmatpush1.msra.mxu0 %v3189
      %3307 = vmatprep.subr.mxu0 0.0
      %3308 = vmatpush1.msra.mxu0 %v3188
      %3309 = vmatprep.subr.mxu0 0.0
      %3310 = vmatpush1.msra.mxu0 %v3187
      %3311 = vmatprep.subr.mxu0 0.0
      %3312 = vmatpush2.msra.mxu0 0.0
      %3313 = vmatprep.subr.mxu0 0.0
      %3314 = vmatpush2.msra.mxu0 0.0
      %3315 = vmatprep.subr.mxu0 0.0
      %3316 = vmatpush2.msra.mxu0 0.0
      %3317 = vmatprep.subr.mxu0 0.0
      %3318 = vmatpush2.msra.mxu0 0.0
      %3319 = vmatprep.subr.mxu0 0.0
      %3320 = vmatpush2.msra.mxu0 %v3214
      %3321 = vmatprep.subr.mxu0 0.0
      %3322 = vmatpush2.msra.mxu0 %v3213
      %3323 = vmatprep.subr.mxu0 0.0
      %3324 = vmatpush2.msra.mxu0 %v3212
      %3325 = vmatprep.subr.mxu0 0.0
      %3326 = vmatpush2.msra.mxu0 %v3211
      %3327 = vmatprep.subr.mxu0 0.0
      %3328 = vmatpush2.msra.mxu0 %v3210
      %3329 = vmatprep.subr.mxu0 0.0
      %3330 = vmatpush2.msra.mxu0 %v3209
      %3331 = vmatprep.subr.mxu0 0.0
      %3332 = vmatpush2.msra.mxu0 %v3208
      %3333 = vmatprep.subr.mxu0 0.0
      %3334 = vmatpush2.msra.mxu0 %v3207
      %3335 = vmatprep.subr.mxu0 0.0
      %3336 = vmatpush2.msra.mxu0 %v3206
      %3337 = vmatprep.subr.mxu0 0.0
      %3338 = vmatpush2.msra.mxu0 %v3205
      %3339 = vmatprep.subr.mxu0 0.0
      %3340 = vmatpush2.msra.mxu0 %v3204
      %3341 = vmatprep.subr.mxu0 0.0
      %3342 = vmatpush2.msra.mxu0 %v3203
      %3343 = vmatprep.mubr.f32.mxu0 %v3215
      %3344 = vmatmul.mubr.f32.gmra.mxu0 %v2996
      %v3345 = vpop.f32.mrf.mxu0
      %v3346 = vadd.f32 0.0, %v3345
      %v3347 = vpop.f32.mrf.mxu0
      %3348 = vmatprep.mubr.f32.mxu0 %v3217
      %3349 = vmatmul.mubr.f32.gmra.mxu0 %v3001
      %v3350 = vpop.f32.mrf.mxu0
      %v3351 = vadd.f32 0.0, %v3350
      %v3352 = vpop.f32.mrf.mxu0
      %3353 = vmatprep.mubr.f32.mxu0 %v3219
      %3354 = vmatmul.mubr.f32.gmra.mxu0 %v3006
      %v3355 = vpop.f32.mrf.mxu0
      %v3356 = vadd.f32 0.0, %v3355
      %v3357 = vpop.f32.mrf.mxu0
      %3358 = vmatprep.mubr.f32.mxu0 %v3221
      %3359 = vmatmul.mubr.f32.gmra.mxu0 %v3011
      %v3360 = vpop.f32.mrf.mxu0
      %v3361 = vadd.f32 0.0, %v3360
      %v3362 = vpop.f32.mrf.mxu0
      %3363 = vmatprep.mubr.f32.mxu0 %v3223
      %3364 = vmatmul.mubr.f32.gmra.mxu0 %v3016
      %v3365 = vpop.f32.mrf.mxu0
      %v3366 = vadd.f32 0.0, %v3365
      %v3367 = vpop.f32.mrf.mxu0
      %3368 = vmatprep.mubr.f32.mxu0 %v3225
      %3369 = vmatmul.mubr.f32.gmra.mxu0 %v3021
      %v3370 = vpop.f32.mrf.mxu0
      %v3371 = vadd.f32 0.0, %v3370
      %v3372 = vpop.f32.mrf.mxu0
      %3373 = vmatprep.mubr.f32.mxu0 %v3227
      %3374 = vmatmul.mubr.f32.gmra.mxu0 %v3026
      %v3375 = vpop.f32.mrf.mxu0
      %v3376 = vadd.f32 0.0, %v3375
      %v3377 = vpop.f32.mrf.mxu0
      %3378 = vmatprep.mubr.f32.mxu0 %v3229
      %3379 = vmatmul.mubr.f32.gmra.mxu0 %v3031
      %v3380 = vpop.f32.mrf.mxu0
      %v3381 = vadd.f32 0.0, %v3380
      %v3382 = vpop.f32.mrf.mxu0
      %3383 = vmatprep.mubr.f32.mxu0 %v3231
      %3384 = vmatmul.mubr.f32.gmra.mxu0 %v3036
      %v3385 = vpop.f32.mrf.mxu0
      %v3386 = vadd.f32 0.0, %v3385
      %v3387 = vpop.f32.mrf.mxu0
      %3388 = vmatprep.mubr.f32.mxu0 %v3233
      %3389 = vmatmul.mubr.f32.gmra.mxu0 %v3041
      %v3390 = vpop.f32.mrf.mxu0
      %v3391 = vadd.f32 0.0, %v3390
      %v3392 = vpop.f32.mrf.mxu0
      %3393 = vmatprep.mubr.f32.mxu0 %v3235
      %3394 = vmatmul.mubr.f32.gmra.mxu0 %v3046
      %v3395 = vpop.f32.mrf.mxu0
      %v3396 = vadd.f32 0.0, %v3395
      %v3397 = vpop.f32.mrf.mxu0
      %3398 = vmatprep.mubr.f32.mxu0 %v3237
      %3399 = vmatmul.mubr.f32.gmra.mxu0 %v3051
      %v3400 = vpop.f32.mrf.mxu0
      %v3401 = vadd.f32 0.0, %v3400
      %v3402 = vpop.f32.mrf.mxu0
      %3403 = vmatprep.mubr.f32.mxu0 %v3239
      %3404 = vmatmul.mubr.f32.gmra.mxu0 %v3056
      %v3405 = vpop.f32.mrf.mxu0
      %v3406 = vadd.f32 0.0, %v3405
      %v3407 = vpop.f32.mrf.mxu0
      %3408 = vmatprep.mubr.f32.mxu0 %v3241
      %3409 = vmatmul.mubr.f32.gmra.mxu0 %v3061
      %v3410 = vpop.f32.mrf.mxu0
      %v3411 = vadd.f32 0.0, %v3410
      %v3412 = vpop.f32.mrf.mxu0
      %3413 = vmatprep.mubr.f32.mxu0 %v3243
      %3414 = vmatmul.mubr.f32.gmra.mxu0 %v3066
      %v3415 = vpop.f32.mrf.mxu0
      %v3416 = vadd.f32 0.0, %v3415
      %v3417 = vpop.f32.mrf.mxu0
      %3418 = vmatprep.mubr.f32.mxu0 %v3245
      %3419 = vmatmul.mubr.f32.gmra.mxu0 %v3071
      %v3420 = vpop.f32.mrf.mxu0
      %v3421 = vadd.f32 0.0, %v3420
      %v3422 = vpop.f32.mrf.mxu0
      %3423 = vmatprep.mubr.f32.mxu0 %v3247
      %3424 = vmatmul.mubr.f32.gmra.mxu0 %v3076
      %v3425 = vpop.f32.mrf.mxu0
      %v3426 = vadd.f32 0.0, %v3425
      %v3427 = vpop.f32.mrf.mxu0
      %3428 = vmatprep.mubr.f32.mxu0 %v3249
      %3429 = vmatmul.mubr.f32.gmra.mxu0 %v3081
      %v3430 = vpop.f32.mrf.mxu0
      %v3431 = vadd.f32 0.0, %v3430
      %v3432 = vpop.f32.mrf.mxu0
      %3433 = vmatprep.mubr.f32.mxu0 %v3251
      %3434 = vmatmul.mubr.f32.gmra.mxu0 %v3086
      %v3435 = vpop.f32.mrf.mxu0
      %v3436 = vadd.f32 0.0, %v3435
      %v3437 = vpop.f32.mrf.mxu0
      %3438 = vmatprep.mubr.f32.mxu0 %v3253
      %3439 = vmatmul.mubr.f32.gmra.mxu0 %v3091
      %v3440 = vpop.f32.mrf.mxu0
      %v3441 = vadd.f32 0.0, %v3440
      %v3442 = vpop.f32.mrf.mxu0
      %3443 = vmatprep.mubr.f32.mxu0 %v3255
      %3444 = vmatmul.mubr.f32.gmra.mxu0 %v3096
      %v3445 = vpop.f32.mrf.mxu0
      %v3446 = vadd.f32 0.0, %v3445
      %v3447 = vpop.f32.mrf.mxu0
      %3448 = vmatprep.mubr.f32.mxu0 %v3257
      %3449 = vmatmul.mubr.f32.gmra.mxu0 %v3101
      %v3450 = vpop.f32.mrf.mxu0
      %v3451 = vadd.f32 0.0, %v3450
      %v3452 = vpop.f32.mrf.mxu0
      %3453 = vmatprep.mubr.f32.mxu0 %v3259
      %3454 = vmatmul.mubr.f32.gmra.mxu0 %v3106
      %v3455 = vpop.f32.mrf.mxu0
      %v3456 = vadd.f32 0.0, %v3455
      %v3457 = vpop.f32.mrf.mxu0
      %3458 = vmatprep.mubr.f32.mxu0 %v3261
      %3459 = vmatmul.mubr.f32.gmra.mxu0 %v3111
      %v3460 = vpop.f32.mrf.mxu0
      %v3461 = vadd.f32 0.0, %v3460
      %v3462 = vpop.f32.mrf.mxu0
      %3463 = vmatprep.mubr.f32.mxu0 %v3263
      %3464 = vmatmul.mubr.f32.gmra.mxu0 %v3116
      %v3465 = vpop.f32.mrf.mxu0
      %v3466 = vadd.f32 0.0, %v3465
      %v3467 = vpop.f32.mrf.mxu0
      %3468 = vmatprep.mubr.f32.mxu0 %v3265
      %3469 = vmatmul.mubr.f32.gmra.mxu0 %v3121
      %v3470 = vpop.f32.mrf.mxu0
      %v3471 = vadd.f32 0.0, %v3470
      %v3472 = vpop.f32.mrf.mxu0
      %3473 = vmatprep.mubr.f32.mxu0 %v3267
      %3474 = vmatmul.mubr.f32.gmra.mxu0 %v3126
      %v3475 = vpop.f32.mrf.mxu0
      %v3476 = vadd.f32 0.0, %v3475
      %v3477 = vpop.f32.mrf.mxu0
      %3478 = vmatprep.mubr.f32.mxu0 %v3269
      %3479 = vmatmul.mubr.f32.gmra.mxu0 %v3131
      %v3480 = vpop.f32.mrf.mxu0
      %v3481 = vadd.f32 0.0, %v3480
      %v3482 = vpop.f32.mrf.mxu0
      %3483 = vmatprep.mubr.f32.mxu0 %v3271
      %3484 = vmatmul.mubr.f32.gmra.mxu0 %v3136
      %v3485 = vpop.f32.mrf.mxu0
      %v3486 = vadd.f32 0.0, %v3485
      %v3487 = vpop.f32.mrf.mxu0
      %3488 = vmatprep.mubr.f32.mxu0 %v3273
      %3489 = vmatmul.mubr.f32.gmra.mxu0 %v3141
      %v3490 = vpop.f32.mrf.mxu0
      %v3491 = vadd.f32 0.0, %v3490
      %v3492 = vpop.f32.mrf.mxu0
      %3493 = vmatprep.mubr.f32.mxu0 %v3275
      %3494 = vmatmul.mubr.f32.gmra.mxu0 %v3146
      %v3495 = vpop.f32.mrf.mxu0
      %v3496 = vadd.f32 0.0, %v3495
      %v3497 = vpop.f32.mrf.mxu0
      %3498 = vmatprep.mubr.f32.mxu0 %v3277
      %3499 = vmatmul.mubr.f32.gmra.mxu0 %v3151
      %v3500 = vpop.f32.mrf.mxu0
      %v3501 = vadd.f32 0.0, %v3500
      %v3502 = vpop.f32.mrf.mxu0
      %3503 = vdwg.mxu0
      %v3504 = vadd.f32 %v2035, %v3346
      %v3505 = vadd.f32 %v2040, %v3351
      %v3506 = vadd.f32 %v2045, %v3356
      %v3507 = vadd.f32 %v2050, %v3361
      %v3508 = vadd.f32 %v2055, %v3366
      %v3509 = vadd.f32 %v2060, %v3371
      %v3510 = vadd.f32 %v2065, %v3376
      %v3511 = vadd.f32 %v2070, %v3381
      %v3512 = vadd.f32 %v2075, %v3386
      %v3513 = vadd.f32 %v2080, %v3391
      %v3514 = vadd.f32 %v2085, %v3396
      %v3515 = vadd.f32 %v2090, %v3401
      %v3516 = vadd.f32 %v2095, %v3406
      %v3517 = vadd.f32 %v2100, %v3411
      %v3518 = vadd.f32 %v2105, %v3416
      %v3519 = vadd.f32 %v2110, %v3421
      %v3520 = vadd.f32 %v2115, %v3426
      %v3521 = vadd.f32 %v2120, %v3431
      %v3522 = vadd.f32 %v2125, %v3436
      %v3523 = vadd.f32 %v2130, %v3441
      %v3524 = vadd.f32 %v2135, %v3446
      %v3525 = vadd.f32 %v2140, %v3451
      %v3526 = vadd.f32 %v2145, %v3456
      %v3527 = vadd.f32 %v2150, %v3461
      %v3528 = vadd.f32 %v2155, %v3466
      %v3529 = vadd.f32 %v2160, %v3471
      %v3530 = vadd.f32 %v2165, %v3476
      %v3531 = vadd.f32 %v2170, %v3481
      %v3532 = vadd.f32 %v2175, %v3486
      %v3533 = vadd.f32 %v2180, %v3491
      %v3534 = vadd.f32 %v2185, %v3496
      %v3535 = vadd.f32 %v2190, %v3501
      %vm3536 = vcmask 1042432
      %v3537 = vrot.slane %v975, 5
      %v3538 = vrot.slane %v976, 5
      %v3539 = vsel %vm3536, %v3537, %v3538
      %v3540 = vrot.slane %v938, 5
      %v3541 = vrot.slane %v939, 5
      %v3542 = vsel %vm3536, %v3540, %v3541
      %v3543 = vrot.slane %v977, 5
      %v3544 = vsel %vm3536, %v3538, %v3543
      %v3545 = vrot.slane %v940, 5
      %v3546 = vsel %vm3536, %v3541, %v3545
      %v3547 = vrot.slane %v978, 5
      %v3548 = vrot.slane %v979, 5
      %v3549 = vsel %vm3536, %v3547, %v3548
      %v3550 = vrot.slane %v941, 5
      %v3551 = vrot.slane %v942, 5
      %v3552 = vsel %vm3536, %v3550, %v3551
      %v3553 = vrot.slane %v980, 5
      %v3554 = vsel %vm3536, %v3548, %v3553
      %v3555 = vrot.slane %v943, 5
      %v3556 = vsel %vm3536, %v3551, %v3555
      %v3557 = vrot.slane %v981, 5
      %v3558 = vrot.slane %v982, 5
      %v3559 = vsel %vm3536, %v3557, %v3558
      %v3560 = vrot.slane %v944, 5
      %v3561 = vrot.slane %v945, 5
      %v3562 = vsel %vm3536, %v3560, %v3561
      %v3563 = vrot.slane %v983, 5
      %v3564 = vsel %vm3536, %v3558, %v3563
      %v3565 = vrot.slane %v946, 5
      %v3566 = vsel %vm3536, %v3561, %v3565
      %v3567 = vrot.slane %v984, 5
      %v3568 = vrot.slane %v985, 5
      %v3569 = vsel %vm3536, %v3567, %v3568
      %v3570 = vrot.slane %v947, 5
      %v3571 = vrot.slane %v948, 5
      %v3572 = vsel %vm3536, %v3570, %v3571
      %v3573 = vrot.slane %v986, 5
      %v3574 = vsel %vm3536, %v3568, %v3573
      %v3575 = vrot.slane %v949, 5
      %v3576 = vsel %vm3536, %v3571, %v3575
      %v3577 = vrot.slane %v987, 5
      %v3578 = vrot.slane %v988, 5
      %v3579 = vsel %vm3536, %v3577, %v3578
      %v3580 = vrot.slane %v950, 5
      %v3581 = vrot.slane %v951, 5
      %v3582 = vsel %vm3536, %v3580, %v3581
      %v3583 = vrot.slane %v989, 5
      %v3584 = vsel %vm3536, %v3578, %v3583
      %v3585 = vrot.slane %v952, 5
      %v3586 = vsel %vm3536, %v3581, %v3585
      %v3587 = vrot.slane %v990, 5
      %v3588 = vrot.slane %v991, 5
      %v3589 = vsel %vm3536, %v3587, %v3588
      %v3590 = vrot.slane %v953, 5
      %v3591 = vrot.slane %v954, 5
      %v3592 = vsel %vm3536, %v3590, %v3591
      %v3593 = vrot.slane %v992, 5
      %v3594 = vsel %vm3536, %v3588, %v3593
      %v3595 = vrot.slane %v955, 5
      %v3596 = vsel %vm3536, %v3591, %v3595
      %v3597 = vrot.slane %v993, 5
      %v3598 = vrot.slane %v994, 5
      %v3599 = vsel %vm3536, %v3597, %v3598
      %v3600 = vrot.slane %v956, 5
      %v3601 = vrot.slane %v957, 5
      %v3602 = vsel %vm3536, %v3600, %v3601
      %v3603 = vrot.slane %v995, 5
      %v3604 = vsel %vm3536, %v3598, %v3603
      %v3605 = vrot.slane %v958, 5
      %v3606 = vsel %vm3536, %v3601, %v3605
      %v3607 = vrot.slane %v996, 5
      %v3608 = vrot.slane %v997, 5
      %v3609 = vsel %vm3536, %v3607, %v3608
      %v3610 = vrot.slane %v959, 5
      %v3611 = vrot.slane %v960, 5
      %v3612 = vsel %vm3536, %v3610, %v3611
      %v3613 = vrot.slane %v998, 5
      %v3614 = vsel %vm3536, %v3608, %v3613
      %v3615 = vrot.slane %v961, 5
      %v3616 = vsel %vm3536, %v3611, %v3615
      %v3617 = vrot.slane %v999, 5
      %v3618 = vrot.slane %v1000, 5
      %v3619 = vsel %vm3536, %v3617, %v3618
      %v3620 = vrot.slane %v962, 5
      %v3621 = vrot.slane %v963, 5
      %v3622 = vsel %vm3536, %v3620, %v3621
      %v3623 = vrot.slane %v1001, 5
      %v3624 = vsel %vm3536, %v3618, %v3623
      %v3625 = vrot.slane %v964, 5
      %v3626 = vsel %vm3536, %v3621, %v3625
      %v3627 = vrot.slane %v1002, 5
      %v3628 = vrot.slane %v1003, 5
      %v3629 = vsel %vm3536, %v3627, %v3628
      %v3630 = vrot.slane %v965, 5
      %v3631 = vrot.slane %v966, 5
      %v3632 = vsel %vm3536, %v3630, %v3631
      %v3633 = vrot.slane %v1004, 5
      %v3634 = vsel %vm3536, %v3628, %v3633
      %v3635 = vrot.slane %v967, 5
      %v3636 = vsel %vm3536, %v3631, %v3635
      %v3637 = vrot.slane %v1005, 5
      %v3638 = vrot.slane %v1006, 5
      %v3639 = vsel %vm3536, %v3637, %v3638
      %v3640 = vrot.slane %v968, 5
      %v3641 = vrot.slane %v969, 5
      %v3642 = vsel %vm3536, %v3640, %v3641
      %v3643 = vrot.slane %v1007, 5
      %v3644 = vsel %vm3536, %v3638, %v3643
      %v3645 = vrot.slane %v970, 5
      %v3646 = vsel %vm3536, %v3641, %v3645
      %v3647 = vrot.slane %v1008, 5
      %v3648 = vrot.slane %v1009, 5
      %v3649 = vsel %vm3536, %v3647, %v3648
      %v3650 = vrot.slane %v971, 5
      %v3651 = vrot.slane %v972, 5
      %v3652 = vsel %vm3536, %v3650, %v3651
      %v3653 = vrot.slane %v1010, 5
      %v3654 = vsel %vm3536, %v3648, %v3653
      %v3655 = vrot.slane %v973, 5
      %v3656 = vsel %vm3536, %v3651, %v3655
      %v3657 = vrot.slane %v1011, 5
      %v3658 = vrot.slane %v1012, 5
      %v3659 = vsel %vm3536, %v3657, %v3658
      %v3660 = vrot.slane %v1035, 5
      %v3661 = vrot.slane %v1036, 5
      %v3662 = vsel %vm3536, %v3660, %v3661
      %v3663 = vrot.slane %v1013, 5
      %v3664 = vsel %vm3536, %v3658, %v3663
      %v3665 = vrot.slane %v1037, 5
      %v3666 = vsel %vm3536, %v3661, %v3665
      %v3667 = vrot.slane %v1014, 5
      %v3668 = vrot.slane %v1015, 5
      %v3669 = vsel %vm3536, %v3667, %v3668
      %v3670 = vrot.slane %v1038, 5
      %v3671 = vrot.slane %v1039, 5
      %v3672 = vsel %vm3536, %v3670, %v3671
      %v3673 = vrot.slane %v1016, 5
      %v3674 = vsel %vm3536, %v3668, %v3673
      %v3675 = vrot.slane %v1040, 5
      %v3676 = vsel %vm3536, %v3671, %v3675
      %v3677 = vrot.slane %v1017, 5
      %v3678 = vrot.slane %v1018, 5
      %v3679 = vsel %vm3536, %v3677, %v3678
      %v3680 = vrot.slane %v1041, 5
      %v3681 = vrot.slane %v1042, 5
      %v3682 = vsel %vm3536, %v3680, %v3681
      %v3683 = vrot.slane %v1019, 5
      %v3684 = vsel %vm3536, %v3678, %v3683
      %v3685 = vrot.slane %v1043, 5
      %v3686 = vsel %vm3536, %v3681, %v3685
      %v3687 = vrot.slane %v1020, 5
      %v3688 = vrot.slane %v1021, 5
      %v3689 = vsel %vm3536, %v3687, %v3688
      %v3690 = vrot.slane %v1044, 5
      %v3691 = vrot.slane %v1045, 5
      %v3692 = vsel %vm3536, %v3690, %v3691
      %v3693 = vrot.slane %v1022, 5
      %v3694 = vsel %vm3536, %v3688, %v3693
      %v3695 = vrot.slane %v1046, 5
      %v3696 = vsel %vm3536, %v3691, %v3695
      %s3729 = scalar_lea.vmem %s1, 1120
      %v3730 = vld [vmem:[%s3729] sm:$0xff]
      %v3731 = vld [vmem:[%s3729 + $0x8] sm:$0xff]
      %v3732 = vld [vmem:[%s3729 + $0x10] sm:$0xff]
      %v3733 = vld [vmem:[%s3729 + $0x18] sm:$0xff]
      %v3734 = vld [vmem:[%s3729 + $0x20] sm:$0xff]
      %v3735 = vld [vmem:[%s3729 + $0x28] sm:$0xff]
      %v3736 = vld [vmem:[%s3729 + $0x30] sm:$0xff]
      %v3737 = vld [vmem:[%s3729 + $0x38] sm:$0xff]
      %v3738 = vld [vmem:[%s3729 + $0x40] sm:$0xff]
      %v3739 = vld [vmem:[%s3729 + $0x48] sm:$0xff]
      %v3740 = vld [vmem:[%s3729 + $0x50] sm:$0xff]
      %v3741 = vld [vmem:[%s3729 + $0x58] sm:$0xff]
      %v3742 = vld [vmem:[%s3729 + $0x60] sm:$0xff]
      %v3743 = vld [vmem:[%s3729 + $0x68] sm:$0xff]
      %v3744 = vld [vmem:[%s3729 + $0x70] sm:$0xff]
      %v3745 = vld [vmem:[%s3729 + $0x78] sm:$0xff]
      %v3746 = vld [vmem:[%s3729 + $0x80] sm:$0xff]
      %v3747 = vld [vmem:[%s3729 + $0x88] sm:$0xff]
      %v3748 = vld [vmem:[%s3729 + $0x90] sm:$0xff]
      %v3749 = vld [vmem:[%s3729 + $0x98] sm:$0xff]
      %v3750 = vld [vmem:[%s3729 + $0xa0] sm:$0xff]
      %v3751 = vld [vmem:[%s3729 + $0xa8] sm:$0xff]
      %v3752 = vld [vmem:[%s3729 + $0xb0] sm:$0xff]
      %v3753 = vld [vmem:[%s3729 + $0xb8] sm:$0xff]
      %v3754 = vld [vmem:[%s3729 + $0xc0] sm:$0xff]
      %v3755 = vld [vmem:[%s3729 + $0xc8] sm:$0xff]
      %v3756 = vld [vmem:[%s3729 + $0xd0] sm:$0xff]
      %v3757 = vld [vmem:[%s3729 + $0xd8] sm:$0xff]
      %v3758 = vsel %vm974, %v3542, 0
      %v3760 = vsel %vm974, %v3546, 0
      %v3762 = vsel %vm974, %v3552, 0
      %v3764 = vsel %vm974, %v3556, 0
      %v3766 = vsel %vm974, %v3562, 0
      %v3768 = vsel %vm974, %v3566, 0
      %v3770 = vsel %vm974, %v3572, 0
      %v3772 = vsel %vm974, %v3576, 0
      %v3774 = vsel %vm974, %v3582, 0
      %v3776 = vsel %vm974, %v3586, 0
      %v3778 = vsel %vm974, %v3592, 0
      %v3780 = vsel %vm974, %v3596, 0
      %v3782 = vsel %vm974, %v3602, 0
      %v3784 = vsel %vm974, %v3606, 0
      %v3786 = vsel %vm974, %v3612, 0
      %v3788 = vsel %vm974, %v3616, 0
      %v3790 = vsel %vm974, %v3622, 0
      %v3792 = vsel %vm974, %v3626, 0
      %v3794 = vsel %vm974, %v3632, 0
      %v3796 = vsel %vm974, %v3636, 0
      %v3798 = vsel %vm974, %v3642, 0
      %v3800 = vsel %vm974, %v3646, 0
      %v3802 = vsel %vm974, %v3652, 0
      %v3804 = vsel %vm974, %v3656, 0
      %v3806 = vsel %vm974, %v3662, 0
      %v3808 = vsel %vm974, %v3666, 0
      %v3810 = vsel %vm974, %v3672, 0
      %v3812 = vsel %vm974, %v3676, 0
      %v3814 = vsel %vm974, %v3682, 0
      %v3816 = vsel %vm974, %v3686, 0
      %v3818 = vsel %vm974, %v3692, 0
      %v3820 = vsel %vm974, %v3696, 0
      %3822 = vmatprep.subr.mxu0 0.0
      %3823 = vmatpush1.msra.mxu0 %v3745
      %3824 = vmatprep.subr.mxu0 0.0
      %3825 = vmatpush1.msra.mxu0 %v3744
      %3826 = vmatprep.subr.mxu0 0.0
      %3827 = vmatpush1.msra.mxu0 %v3743
      %3828 = vmatprep.subr.mxu0 0.0
      %3829 = vmatpush1.msra.mxu0 %v3742
      %3830 = vmatprep.subr.mxu0 0.0
      %3831 = vmatpush1.msra.mxu0 %v3741
      %3832 = vmatprep.subr.mxu0 0.0
      %3833 = vmatpush1.msra.mxu0 %v3740
      %3834 = vmatprep.subr.mxu0 0.0
      %3835 = vmatpush1.msra.mxu0 %v3739
      %3836 = vmatprep.subr.mxu0 0.0
      %3837 = vmatpush1.msra.mxu0 %v3738
      %3838 = vmatprep.subr.mxu0 0.0
      %3839 = vmatpush1.msra.mxu0 %v3737
      %3840 = vmatprep.subr.mxu0 0.0
      %3841 = vmatpush1.msra.mxu0 %v3736
      %3842 = vmatprep.subr.mxu0 0.0
      %3843 = vmatpush1.msra.mxu0 %v3735
      %3844 = vmatprep.subr.mxu0 0.0
      %3845 = vmatpush1.msra.mxu0 %v3734
      %3846 = vmatprep.subr.mxu0 0.0
      %3847 = vmatpush1.msra.mxu0 %v3733
      %3848 = vmatprep.subr.mxu0 0.0
      %3849 = vmatpush1.msra.mxu0 %v3732
      %3850 = vmatprep.subr.mxu0 0.0
      %3851 = vmatpush1.msra.mxu0 %v3731
      %3852 = vmatprep.subr.mxu0 0.0
      %3853 = vmatpush1.msra.mxu0 %v3730
      %3854 = vmatprep.subr.mxu0 0.0
      %3855 = vmatpush2.msra.mxu0 0.0
      %3856 = vmatprep.subr.mxu0 0.0
      %3857 = vmatpush2.msra.mxu0 0.0
      %3858 = vmatprep.subr.mxu0 0.0
      %3859 = vmatpush2.msra.mxu0 0.0
      %3860 = vmatprep.subr.mxu0 0.0
      %3861 = vmatpush2.msra.mxu0 0.0
      %3862 = vmatprep.subr.mxu0 0.0
      %3863 = vmatpush2.msra.mxu0 %v3757
      %3864 = vmatprep.subr.mxu0 0.0
      %3865 = vmatpush2.msra.mxu0 %v3756
      %3866 = vmatprep.subr.mxu0 0.0
      %3867 = vmatpush2.msra.mxu0 %v3755
      %3868 = vmatprep.subr.mxu0 0.0
      %3869 = vmatpush2.msra.mxu0 %v3754
      %3870 = vmatprep.subr.mxu0 0.0
      %3871 = vmatpush2.msra.mxu0 %v3753
      %3872 = vmatprep.subr.mxu0 0.0
      %3873 = vmatpush2.msra.mxu0 %v3752
      %3874 = vmatprep.subr.mxu0 0.0
      %3875 = vmatpush2.msra.mxu0 %v3751
      %3876 = vmatprep.subr.mxu0 0.0
      %3877 = vmatpush2.msra.mxu0 %v3750
      %3878 = vmatprep.subr.mxu0 0.0
      %3879 = vmatpush2.msra.mxu0 %v3749
      %3880 = vmatprep.subr.mxu0 0.0
      %3881 = vmatpush2.msra.mxu0 %v3748
      %3882 = vmatprep.subr.mxu0 0.0
      %3883 = vmatpush2.msra.mxu0 %v3747
      %3884 = vmatprep.subr.mxu0 0.0
      %3885 = vmatpush2.msra.mxu0 %v3746
      %3886 = vmatprep.mubr.f32.mxu0 %v3758
      %3887 = vmatmul.mubr.f32.gmra.mxu0 %v3539
      %v3888 = vpop.f32.mrf.mxu0
      %v3889 = vadd.f32 0.0, %v3888
      %v3890 = vpop.f32.mrf.mxu0
      %3891 = vmatprep.mubr.f32.mxu0 %v3760
      %3892 = vmatmul.mubr.f32.gmra.mxu0 %v3544
      %v3893 = vpop.f32.mrf.mxu0
      %v3894 = vadd.f32 0.0, %v3893
      %v3895 = vpop.f32.mrf.mxu0
      %3896 = vmatprep.mubr.f32.mxu0 %v3762
      %3897 = vmatmul.mubr.f32.gmra.mxu0 %v3549
      %v3898 = vpop.f32.mrf.mxu0
      %v3899 = vadd.f32 0.0, %v3898
      %v3900 = vpop.f32.mrf.mxu0
      %3901 = vmatprep.mubr.f32.mxu0 %v3764
      %3902 = vmatmul.mubr.f32.gmra.mxu0 %v3554
      %v3903 = vpop.f32.mrf.mxu0
      %v3904 = vadd.f32 0.0, %v3903
      %v3905 = vpop.f32.mrf.mxu0
      %3906 = vmatprep.mubr.f32.mxu0 %v3766
      %3907 = vmatmul.mubr.f32.gmra.mxu0 %v3559
      %v3908 = vpop.f32.mrf.mxu0
      %v3909 = vadd.f32 0.0, %v3908
      %v3910 = vpop.f32.mrf.mxu0
      %3911 = vmatprep.mubr.f32.mxu0 %v3768
      %3912 = vmatmul.mubr.f32.gmra.mxu0 %v3564
      %v3913 = vpop.f32.mrf.mxu0
      %v3914 = vadd.f32 0.0, %v3913
      %v3915 = vpop.f32.mrf.mxu0
      %3916 = vmatprep.mubr.f32.mxu0 %v3770
      %3917 = vmatmul.mubr.f32.gmra.mxu0 %v3569
      %v3918 = vpop.f32.mrf.mxu0
      %v3919 = vadd.f32 0.0, %v3918
      %v3920 = vpop.f32.mrf.mxu0
      %3921 = vmatprep.mubr.f32.mxu0 %v3772
      %3922 = vmatmul.mubr.f32.gmra.mxu0 %v3574
      %v3923 = vpop.f32.mrf.mxu0
      %v3924 = vadd.f32 0.0, %v3923
      %v3925 = vpop.f32.mrf.mxu0
      %3926 = vmatprep.mubr.f32.mxu0 %v3774
      %3927 = vmatmul.mubr.f32.gmra.mxu0 %v3579
      %v3928 = vpop.f32.mrf.mxu0
      %v3929 = vadd.f32 0.0, %v3928
      %v3930 = vpop.f32.mrf.mxu0
      %3931 = vmatprep.mubr.f32.mxu0 %v3776
      %3932 = vmatmul.mubr.f32.gmra.mxu0 %v3584
      %v3933 = vpop.f32.mrf.mxu0
      %v3934 = vadd.f32 0.0, %v3933
      %v3935 = vpop.f32.mrf.mxu0
      %3936 = vmatprep.mubr.f32.mxu0 %v3778
      %3937 = vmatmul.mubr.f32.gmra.mxu0 %v3589
      %v3938 = vpop.f32.mrf.mxu0
      %v3939 = vadd.f32 0.0, %v3938
      %v3940 = vpop.f32.mrf.mxu0
      %3941 = vmatprep.mubr.f32.mxu0 %v3780
      %3942 = vmatmul.mubr.f32.gmra.mxu0 %v3594
      %v3943 = vpop.f32.mrf.mxu0
      %v3944 = vadd.f32 0.0, %v3943
      %v3945 = vpop.f32.mrf.mxu0
      %3946 = vmatprep.mubr.f32.mxu0 %v3782
      %3947 = vmatmul.mubr.f32.gmra.mxu0 %v3599
      %v3948 = vpop.f32.mrf.mxu0
      %v3949 = vadd.f32 0.0, %v3948
      %v3950 = vpop.f32.mrf.mxu0
      %3951 = vmatprep.mubr.f32.mxu0 %v3784
      %3952 = vmatmul.mubr.f32.gmra.mxu0 %v3604
      %v3953 = vpop.f32.mrf.mxu0
      %v3954 = vadd.f32 0.0, %v3953
      %v3955 = vpop.f32.mrf.mxu0
      %3956 = vmatprep.mubr.f32.mxu0 %v3786
      %3957 = vmatmul.mubr.f32.gmra.mxu0 %v3609
      %v3958 = vpop.f32.mrf.mxu0
      %v3959 = vadd.f32 0.0, %v3958
      %v3960 = vpop.f32.mrf.mxu0
      %3961 = vmatprep.mubr.f32.mxu0 %v3788
      %3962 = vmatmul.mubr.f32.gmra.mxu0 %v3614
      %v3963 = vpop.f32.mrf.mxu0
      %v3964 = vadd.f32 0.0, %v3963
      %v3965 = vpop.f32.mrf.mxu0
      %3966 = vmatprep.mubr.f32.mxu0 %v3790
      %3967 = vmatmul.mubr.f32.gmra.mxu0 %v3619
      %v3968 = vpop.f32.mrf.mxu0
      %v3969 = vadd.f32 0.0, %v3968
      %v3970 = vpop.f32.mrf.mxu0
      %3971 = vmatprep.mubr.f32.mxu0 %v3792
      %3972 = vmatmul.mubr.f32.gmra.mxu0 %v3624
      %v3973 = vpop.f32.mrf.mxu0
      %v3974 = vadd.f32 0.0, %v3973
      %v3975 = vpop.f32.mrf.mxu0
      %3976 = vmatprep.mubr.f32.mxu0 %v3794
      %3977 = vmatmul.mubr.f32.gmra.mxu0 %v3629
      %v3978 = vpop.f32.mrf.mxu0
      %v3979 = vadd.f32 0.0, %v3978
      %v3980 = vpop.f32.mrf.mxu0
      %3981 = vmatprep.mubr.f32.mxu0 %v3796
      %3982 = vmatmul.mubr.f32.gmra.mxu0 %v3634
      %v3983 = vpop.f32.mrf.mxu0
      %v3984 = vadd.f32 0.0, %v3983
      %v3985 = vpop.f32.mrf.mxu0
      %3986 = vmatprep.mubr.f32.mxu0 %v3798
      %3987 = vmatmul.mubr.f32.gmra.mxu0 %v3639
      %v3988 = vpop.f32.mrf.mxu0
      %v3989 = vadd.f32 0.0, %v3988
      %v3990 = vpop.f32.mrf.mxu0
      %3991 = vmatprep.mubr.f32.mxu0 %v3800
      %3992 = vmatmul.mubr.f32.gmra.mxu0 %v3644
      %v3993 = vpop.f32.mrf.mxu0
      %v3994 = vadd.f32 0.0, %v3993
      %v3995 = vpop.f32.mrf.mxu0
      %3996 = vmatprep.mubr.f32.mxu0 %v3802
      %3997 = vmatmul.mubr.f32.gmra.mxu0 %v3649
      %v3998 = vpop.f32.mrf.mxu0
      %v3999 = vadd.f32 0.0, %v3998
      %v4000 = vpop.f32.mrf.mxu0
      %4001 = vmatprep.mubr.f32.mxu0 %v3804
      %4002 = vmatmul.mubr.f32.gmra.mxu0 %v3654
      %v4003 = vpop.f32.mrf.mxu0
      %v4004 = vadd.f32 0.0, %v4003
      %v4005 = vpop.f32.mrf.mxu0
      %4006 = vmatprep.mubr.f32.mxu0 %v3806
      %4007 = vmatmul.mubr.f32.gmra.mxu0 %v3659
      %v4008 = vpop.f32.mrf.mxu0
      %v4009 = vadd.f32 0.0, %v4008
      %v4010 = vpop.f32.mrf.mxu0
      %4011 = vmatprep.mubr.f32.mxu0 %v3808
      %4012 = vmatmul.mubr.f32.gmra.mxu0 %v3664
      %v4013 = vpop.f32.mrf.mxu0
      %v4014 = vadd.f32 0.0, %v4013
      %v4015 = vpop.f32.mrf.mxu0
      %4016 = vmatprep.mubr.f32.mxu0 %v3810
      %4017 = vmatmul.mubr.f32.gmra.mxu0 %v3669
      %v4018 = vpop.f32.mrf.mxu0
      %v4019 = vadd.f32 0.0, %v4018
      %v4020 = vpop.f32.mrf.mxu0
      %4021 = vmatprep.mubr.f32.mxu0 %v3812
      %4022 = vmatmul.mubr.f32.gmra.mxu0 %v3674
      %v4023 = vpop.f32.mrf.mxu0
      %v4024 = vadd.f32 0.0, %v4023
      %v4025 = vpop.f32.mrf.mxu0
      %4026 = vmatprep.mubr.f32.mxu0 %v3814
      %4027 = vmatmul.mubr.f32.gmra.mxu0 %v3679
      %v4028 = vpop.f32.mrf.mxu0
      %v4029 = vadd.f32 0.0, %v4028
      %v4030 = vpop.f32.mrf.mxu0
      %4031 = vmatprep.mubr.f32.mxu0 %v3816
      %4032 = vmatmul.mubr.f32.gmra.mxu0 %v3684
      %v4033 = vpop.f32.mrf.mxu0
      %v4034 = vadd.f32 0.0, %v4033
      %v4035 = vpop.f32.mrf.mxu0
      %4036 = vmatprep.mubr.f32.mxu0 %v3818
      %4037 = vmatmul.mubr.f32.gmra.mxu0 %v3689
      %v4038 = vpop.f32.mrf.mxu0
      %v4039 = vadd.f32 0.0, %v4038
      %v4040 = vpop.f32.mrf.mxu0
      %4041 = vmatprep.mubr.f32.mxu0 %v3820
      %4042 = vmatmul.mubr.f32.gmra.mxu0 %v3694
      %v4043 = vpop.f32.mrf.mxu0
      %v4044 = vadd.f32 0.0, %v4043
      %v4045 = vpop.f32.mrf.mxu0
      %4046 = vdwg.mxu0
      %v4047 = vadd.f32 %v2835, %v3889
      %v4048 = vadd.f32 %v2840, %v3894
      %v4049 = vadd.f32 %v2845, %v3899
      %v4050 = vadd.f32 %v2850, %v3904
      %v4051 = vadd.f32 %v2855, %v3909
      %v4052 = vadd.f32 %v2860, %v3914
      %v4053 = vadd.f32 %v2865, %v3919
      %v4054 = vadd.f32 %v2870, %v3924
      %v4055 = vadd.f32 %v2875, %v3929
      %v4056 = vadd.f32 %v2880, %v3934
      %v4057 = vadd.f32 %v2885, %v3939
      %v4058 = vadd.f32 %v2890, %v3944
      %v4059 = vadd.f32 %v2895, %v3949
      %v4060 = vadd.f32 %v2900, %v3954
      %v4061 = vadd.f32 %v2905, %v3959
      %v4062 = vadd.f32 %v2910, %v3964
      %v4063 = vadd.f32 %v2915, %v3969
      %v4064 = vadd.f32 %v2920, %v3974
      %v4065 = vadd.f32 %v2925, %v3979
      %v4066 = vadd.f32 %v2930, %v3984
      %v4067 = vadd.f32 %v2935, %v3989
      %v4068 = vadd.f32 %v2940, %v3994
      %v4069 = vadd.f32 %v2945, %v3999
      %v4070 = vadd.f32 %v2950, %v4004
      %v4071 = vadd.f32 %v2955, %v4009
      %v4072 = vadd.f32 %v2960, %v4014
      %v4073 = vadd.f32 %v2965, %v4019
      %v4074 = vadd.f32 %v2970, %v4024
      %v4075 = vadd.f32 %v2975, %v4029
      %v4076 = vadd.f32 %v2980, %v4034
      %v4077 = vadd.f32 %v2985, %v4039
      %v4078 = vadd.f32 %v2990, %v4044
      %vm4079 = vcmask 1041408
      %v4080 = vrot.slane %v975, 6
      %v4081 = vrot.slane %v976, 6
      %v4082 = vsel %vm4079, %v4080, %v4081
      %v4083 = vrot.slane %v938, 6
      %v4084 = vrot.slane %v939, 6
      %v4085 = vsel %vm4079, %v4083, %v4084
      %v4086 = vrot.slane %v977, 6
      %v4087 = vsel %vm4079, %v4081, %v4086
      %v4088 = vrot.slane %v940, 6
      %v4089 = vsel %vm4079, %v4084, %v4088
      %v4090 = vrot.slane %v978, 6
      %v4091 = vrot.slane %v979, 6
      %v4092 = vsel %vm4079, %v4090, %v4091
      %v4093 = vrot.slane %v941, 6
      %v4094 = vrot.slane %v942, 6
      %v4095 = vsel %vm4079, %v4093, %v4094
      %v4096 = vrot.slane %v980, 6
      %v4097 = vsel %vm4079, %v4091, %v4096
      %v4098 = vrot.slane %v943, 6
      %v4099 = vsel %vm4079, %v4094, %v4098
      %v4100 = vrot.slane %v981, 6
      %v4101 = vrot.slane %v982, 6
      %v4102 = vsel %vm4079, %v4100, %v4101
      %v4103 = vrot.slane %v944, 6
      %v4104 = vrot.slane %v945, 6
      %v4105 = vsel %vm4079, %v4103, %v4104
      %v4106 = vrot.slane %v983, 6
      %v4107 = vsel %vm4079, %v4101, %v4106
      %v4108 = vrot.slane %v946, 6
      %v4109 = vsel %vm4079, %v4104, %v4108
      %v4110 = vrot.slane %v984, 6
      %v4111 = vrot.slane %v985, 6
      %v4112 = vsel %vm4079, %v4110, %v4111
      %v4113 = vrot.slane %v947, 6
      %v4114 = vrot.slane %v948, 6
      %v4115 = vsel %vm4079, %v4113, %v4114
      %v4116 = vrot.slane %v986, 6
      %v4117 = vsel %vm4079, %v4111, %v4116
      %v4118 = vrot.slane %v949, 6
      %v4119 = vsel %vm4079, %v4114, %v4118
      %v4120 = vrot.slane %v987, 6
      %v4121 = vrot.slane %v988, 6
      %v4122 = vsel %vm4079, %v4120, %v4121
      %v4123 = vrot.slane %v950, 6
      %v4124 = vrot.slane %v951, 6
      %v4125 = vsel %vm4079, %v4123, %v4124
      %v4126 = vrot.slane %v989, 6
      %v4127 = vsel %vm4079, %v4121, %v4126
      %v4128 = vrot.slane %v952, 6
      %v4129 = vsel %vm4079, %v4124, %v4128
      %v4130 = vrot.slane %v990, 6
      %v4131 = vrot.slane %v991, 6
      %v4132 = vsel %vm4079, %v4130, %v4131
      %v4133 = vrot.slane %v953, 6
      %v4134 = vrot.slane %v954, 6
      %v4135 = vsel %vm4079, %v4133, %v4134
      %v4136 = vrot.slane %v992, 6
      %v4137 = vsel %vm4079, %v4131, %v4136
      %v4138 = vrot.slane %v955, 6
      %v4139 = vsel %vm4079, %v4134, %v4138
      %v4140 = vrot.slane %v993, 6
      %v4141 = vrot.slane %v994, 6
      %v4142 = vsel %vm4079, %v4140, %v4141
      %v4143 = vrot.slane %v956, 6
      %v4144 = vrot.slane %v957, 6
      %v4145 = vsel %vm4079, %v4143, %v4144
      %v4146 = vrot.slane %v995, 6
      %v4147 = vsel %vm4079, %v4141, %v4146
      %v4148 = vrot.slane %v958, 6
      %v4149 = vsel %vm4079, %v4144, %v4148
      %v4150 = vrot.slane %v996, 6
      %v4151 = vrot.slane %v997, 6
      %v4152 = vsel %vm4079, %v4150, %v4151
      %v4153 = vrot.slane %v959, 6
      %v4154 = vrot.slane %v960, 6
      %v4155 = vsel %vm4079, %v4153, %v4154
      %v4156 = vrot.slane %v998, 6
      %v4157 = vsel %vm4079, %v4151, %v4156
      %v4158 = vrot.slane %v961, 6
      %v4159 = vsel %vm4079, %v4154, %v4158
      %v4160 = vrot.slane %v999, 6
      %v4161 = vrot.slane %v1000, 6
      %v4162 = vsel %vm4079, %v4160, %v4161
      %v4163 = vrot.slane %v962, 6
      %v4164 = vrot.slane %v963, 6
      %v4165 = vsel %vm4079, %v4163, %v4164
      %v4166 = vrot.slane %v1001, 6
      %v4167 = vsel %vm4079, %v4161, %v4166
      %v4168 = vrot.slane %v964, 6
      %v4169 = vsel %vm4079, %v4164, %v4168
      %v4170 = vrot.slane %v1002, 6
      %v4171 = vrot.slane %v1003, 6
      %v4172 = vsel %vm4079, %v4170, %v4171
      %v4173 = vrot.slane %v965, 6
      %v4174 = vrot.slane %v966, 6
      %v4175 = vsel %vm4079, %v4173, %v4174
      %v4176 = vrot.slane %v1004, 6
      %v4177 = vsel %vm4079, %v4171, %v4176
      %v4178 = vrot.slane %v967, 6
      %v4179 = vsel %vm4079, %v4174, %v4178
      %v4180 = vrot.slane %v1005, 6
      %v4181 = vrot.slane %v1006, 6
      %v4182 = vsel %vm4079, %v4180, %v4181
      %v4183 = vrot.slane %v968, 6
      %v4184 = vrot.slane %v969, 6
      %v4185 = vsel %vm4079, %v4183, %v4184
      %v4186 = vrot.slane %v1007, 6
      %v4187 = vsel %vm4079, %v4181, %v4186
      %v4188 = vrot.slane %v970, 6
      %v4189 = vsel %vm4079, %v4184, %v4188
      %v4190 = vrot.slane %v1008, 6
      %v4191 = vrot.slane %v1009, 6
      %v4192 = vsel %vm4079, %v4190, %v4191
      %v4193 = vrot.slane %v971, 6
      %v4194 = vrot.slane %v972, 6
      %v4195 = vsel %vm4079, %v4193, %v4194
      %v4196 = vrot.slane %v1010, 6
      %v4197 = vsel %vm4079, %v4191, %v4196
      %v4198 = vrot.slane %v973, 6
      %v4199 = vsel %vm4079, %v4194, %v4198
      %v4200 = vrot.slane %v1011, 6
      %v4201 = vrot.slane %v1012, 6
      %v4202 = vsel %vm4079, %v4200, %v4201
      %v4203 = vrot.slane %v1035, 6
      %v4204 = vrot.slane %v1036, 6
      %v4205 = vsel %vm4079, %v4203, %v4204
      %v4206 = vrot.slane %v1013, 6
      %v4207 = vsel %vm4079, %v4201, %v4206
      %v4208 = vrot.slane %v1037, 6
      %v4209 = vsel %vm4079, %v4204, %v4208
      %v4210 = vrot.slane %v1014, 6
      %v4211 = vrot.slane %v1015, 6
      %v4212 = vsel %vm4079, %v4210, %v4211
      %v4213 = vrot.slane %v1038, 6
      %v4214 = vrot.slane %v1039, 6
      %v4215 = vsel %vm4079, %v4213, %v4214
      %v4216 = vrot.slane %v1016, 6
      %v4217 = vsel %vm4079, %v4211, %v4216
      %v4218 = vrot.slane %v1040, 6
      %v4219 = vsel %vm4079, %v4214, %v4218
      %v4220 = vrot.slane %v1017, 6
      %v4221 = vrot.slane %v1018, 6
      %v4222 = vsel %vm4079, %v4220, %v4221
      %v4223 = vrot.slane %v1041, 6
      %v4224 = vrot.slane %v1042, 6
      %v4225 = vsel %vm4079, %v4223, %v4224
      %v4226 = vrot.slane %v1019, 6
      %v4227 = vsel %vm4079, %v4221, %v4226
      %v4228 = vrot.slane %v1043, 6
      %v4229 = vsel %vm4079, %v4224, %v4228
      %v4230 = vrot.slane %v1020, 6
      %v4231 = vrot.slane %v1021, 6
      %v4232 = vsel %vm4079, %v4230, %v4231
      %v4233 = vrot.slane %v1044, 6
      %v4234 = vrot.slane %v1045, 6
      %v4235 = vsel %vm4079, %v4233, %v4234
      %v4236 = vrot.slane %v1022, 6
      %v4237 = vsel %vm4079, %v4231, %v4236
      %v4238 = vrot.slane %v1046, 6
      %v4239 = vsel %vm4079, %v4234, %v4238
      %s4272 = scalar_lea.vmem %s1, 1344
      %v4273 = vld [vmem:[%s4272] sm:$0xff]
      %v4274 = vld [vmem:[%s4272 + $0x8] sm:$0xff]
      %v4275 = vld [vmem:[%s4272 + $0x10] sm:$0xff]
      %v4276 = vld [vmem:[%s4272 + $0x18] sm:$0xff]
      %v4277 = vld [vmem:[%s4272 + $0x20] sm:$0xff]
      %v4278 = vld [vmem:[%s4272 + $0x28] sm:$0xff]
      %v4279 = vld [vmem:[%s4272 + $0x30] sm:$0xff]
      %v4280 = vld [vmem:[%s4272 + $0x38] sm:$0xff]
      %v4281 = vld [vmem:[%s4272 + $0x40] sm:$0xff]
      %v4282 = vld [vmem:[%s4272 + $0x48] sm:$0xff]
      %v4283 = vld [vmem:[%s4272 + $0x50] sm:$0xff]
      %v4284 = vld [vmem:[%s4272 + $0x58] sm:$0xff]
      %v4285 = vld [vmem:[%s4272 + $0x60] sm:$0xff]
      %v4286 = vld [vmem:[%s4272 + $0x68] sm:$0xff]
      %v4287 = vld [vmem:[%s4272 + $0x70] sm:$0xff]
      %v4288 = vld [vmem:[%s4272 + $0x78] sm:$0xff]
      %v4289 = vld [vmem:[%s4272 + $0x80] sm:$0xff]
      %v4290 = vld [vmem:[%s4272 + $0x88] sm:$0xff]
      %v4291 = vld [vmem:[%s4272 + $0x90] sm:$0xff]
      %v4292 = vld [vmem:[%s4272 + $0x98] sm:$0xff]
      %v4293 = vld [vmem:[%s4272 + $0xa0] sm:$0xff]
      %v4294 = vld [vmem:[%s4272 + $0xa8] sm:$0xff]
      %v4295 = vld [vmem:[%s4272 + $0xb0] sm:$0xff]
      %v4296 = vld [vmem:[%s4272 + $0xb8] sm:$0xff]
      %v4297 = vld [vmem:[%s4272 + $0xc0] sm:$0xff]
      %v4298 = vld [vmem:[%s4272 + $0xc8] sm:$0xff]
      %v4299 = vld [vmem:[%s4272 + $0xd0] sm:$0xff]
      %v4300 = vld [vmem:[%s4272 + $0xd8] sm:$0xff]
      %v4301 = vsel %vm974, %v4085, 0
      %v4303 = vsel %vm974, %v4089, 0
      %v4305 = vsel %vm974, %v4095, 0
      %v4307 = vsel %vm974, %v4099, 0
      %v4309 = vsel %vm974, %v4105, 0
      %v4311 = vsel %vm974, %v4109, 0
      %v4313 = vsel %vm974, %v4115, 0
      %v4315 = vsel %vm974, %v4119, 0
      %v4317 = vsel %vm974, %v4125, 0
      %v4319 = vsel %vm974, %v4129, 0
      %v4321 = vsel %vm974, %v4135, 0
      %v4323 = vsel %vm974, %v4139, 0
      %v4325 = vsel %vm974, %v4145, 0
      %v4327 = vsel %vm974, %v4149, 0
      %v4329 = vsel %vm974, %v4155, 0
      %v4331 = vsel %vm974, %v4159, 0
      %v4333 = vsel %vm974, %v4165, 0
      %v4335 = vsel %vm974, %v4169, 0
      %v4337 = vsel %vm974, %v4175, 0
      %v4339 = vsel %vm974, %v4179, 0
      %v4341 = vsel %vm974, %v4185, 0
      %v4343 = vsel %vm974, %v4189, 0
      %v4345 = vsel %vm974, %v4195, 0
      %v4347 = vsel %vm974, %v4199, 0
      %v4349 = vsel %vm974, %v4205, 0
      %v4351 = vsel %vm974, %v4209, 0
      %v4353 = vsel %vm974, %v4215, 0
      %v4355 = vsel %vm974, %v4219, 0
      %v4357 = vsel %vm974, %v4225, 0
      %v4359 = vsel %vm974, %v4229, 0
      %v4361 = vsel %vm974, %v4235, 0
      %v4363 = vsel %vm974, %v4239, 0
      %4365 = vmatprep.subr.mxu0 0.0
      %4366 = vmatpush1.msra.mxu0 %v4288
      %4367 = vmatprep.subr.mxu0 0.0
      %4368 = vmatpush1.msra.mxu0 %v4287
      %4369 = vmatprep.subr.mxu0 0.0
      %4370 = vmatpush1.msra.mxu0 %v4286
      %4371 = vmatprep.subr.mxu0 0.0
      %4372 = vmatpush1.msra.mxu0 %v4285
      %4373 = vmatprep.subr.mxu0 0.0
      %4374 = vmatpush1.msra.mxu0 %v4284
      %4375 = vmatprep.subr.mxu0 0.0
      %4376 = vmatpush1.msra.mxu0 %v4283
      %4377 = vmatprep.subr.mxu0 0.0
      %4378 = vmatpush1.msra.mxu0 %v4282
      %4379 = vmatprep.subr.mxu0 0.0
      %4380 = vmatpush1.msra.mxu0 %v4281
      %4381 = vmatprep.subr.mxu0 0.0
      %4382 = vmatpush1.msra.mxu0 %v4280
      %4383 = vmatprep.subr.mxu0 0.0
      %4384 = vmatpush1.msra.mxu0 %v4279
      %4385 = vmatprep.subr.mxu0 0.0
      %4386 = vmatpush1.msra.mxu0 %v4278
      %4387 = vmatprep.subr.mxu0 0.0
      %4388 = vmatpush1.msra.mxu0 %v4277
      %4389 = vmatprep.subr.mxu0 0.0
      %4390 = vmatpush1.msra.mxu0 %v4276
      %4391 = vmatprep.subr.mxu0 0.0
      %4392 = vmatpush1.msra.mxu0 %v4275
      %4393 = vmatprep.subr.mxu0 0.0
      %4394 = vmatpush1.msra.mxu0 %v4274
      %4395 = vmatprep.subr.mxu0 0.0
      %4396 = vmatpush1.msra.mxu0 %v4273
      %4397 = vmatprep.subr.mxu0 0.0
      %4398 = vmatpush2.msra.mxu0 0.0
      %4399 = vmatprep.subr.mxu0 0.0
      %4400 = vmatpush2.msra.mxu0 0.0
      %4401 = vmatprep.subr.mxu0 0.0
      %4402 = vmatpush2.msra.mxu0 0.0
      %4403 = vmatprep.subr.mxu0 0.0
      %4404 = vmatpush2.msra.mxu0 0.0
      %4405 = vmatprep.subr.mxu0 0.0
      %4406 = vmatpush2.msra.mxu0 %v4300
      %4407 = vmatprep.subr.mxu0 0.0
      %4408 = vmatpush2.msra.mxu0 %v4299
      %4409 = vmatprep.subr.mxu0 0.0
      %4410 = vmatpush2.msra.mxu0 %v4298
      %4411 = vmatprep.subr.mxu0 0.0
      %4412 = vmatpush2.msra.mxu0 %v4297
      %4413 = vmatprep.subr.mxu0 0.0
      %4414 = vmatpush2.msra.mxu0 %v4296
      %4415 = vmatprep.subr.mxu0 0.0
      %4416 = vmatpush2.msra.mxu0 %v4295
      %4417 = vmatprep.subr.mxu0 0.0
      %4418 = vmatpush2.msra.mxu0 %v4294
      %4419 = vmatprep.subr.mxu0 0.0
      %4420 = vmatpush2.msra.mxu0 %v4293
      %4421 = vmatprep.subr.mxu0 0.0
      %4422 = vmatpush2.msra.mxu0 %v4292
      %4423 = vmatprep.subr.mxu0 0.0
      %4424 = vmatpush2.msra.mxu0 %v4291
      %4425 = vmatprep.subr.mxu0 0.0
      %4426 = vmatpush2.msra.mxu0 %v4290
      %4427 = vmatprep.subr.mxu0 0.0
      %4428 = vmatpush2.msra.mxu0 %v4289
      %4429 = vmatprep.mubr.f32.mxu0 %v4301
      %4430 = vmatmul.mubr.f32.gmra.mxu0 %v4082
      %v4431 = vpop.f32.mrf.mxu0
      %v4432 = vadd.f32 0.0, %v4431
      %v4433 = vpop.f32.mrf.mxu0
      %4434 = vmatprep.mubr.f32.mxu0 %v4303
      %4435 = vmatmul.mubr.f32.gmra.mxu0 %v4087
      %v4436 = vpop.f32.mrf.mxu0
      %v4437 = vadd.f32 0.0, %v4436
      %v4438 = vpop.f32.mrf.mxu0
      %4439 = vmatprep.mubr.f32.mxu0 %v4305
      %4440 = vmatmul.mubr.f32.gmra.mxu0 %v4092
      %v4441 = vpop.f32.mrf.mxu0
      %v4442 = vadd.f32 0.0, %v4441
      %v4443 = vpop.f32.mrf.mxu0
      %4444 = vmatprep.mubr.f32.mxu0 %v4307
      %4445 = vmatmul.mubr.f32.gmra.mxu0 %v4097
      %v4446 = vpop.f32.mrf.mxu0
      %v4447 = vadd.f32 0.0, %v4446
      %v4448 = vpop.f32.mrf.mxu0
      %4449 = vmatprep.mubr.f32.mxu0 %v4309
      %4450 = vmatmul.mubr.f32.gmra.mxu0 %v4102
      %v4451 = vpop.f32.mrf.mxu0
      %v4452 = vadd.f32 0.0, %v4451
      %v4453 = vpop.f32.mrf.mxu0
      %4454 = vmatprep.mubr.f32.mxu0 %v4311
      %4455 = vmatmul.mubr.f32.gmra.mxu0 %v4107
      %v4456 = vpop.f32.mrf.mxu0
      %v4457 = vadd.f32 0.0, %v4456
      %v4458 = vpop.f32.mrf.mxu0
      %4459 = vmatprep.mubr.f32.mxu0 %v4313
      %4460 = vmatmul.mubr.f32.gmra.mxu0 %v4112
      %v4461 = vpop.f32.mrf.mxu0
      %v4462 = vadd.f32 0.0, %v4461
      %v4463 = vpop.f32.mrf.mxu0
      %4464 = vmatprep.mubr.f32.mxu0 %v4315
      %4465 = vmatmul.mubr.f32.gmra.mxu0 %v4117
      %v4466 = vpop.f32.mrf.mxu0
      %v4467 = vadd.f32 0.0, %v4466
      %v4468 = vpop.f32.mrf.mxu0
      %4469 = vmatprep.mubr.f32.mxu0 %v4317
      %4470 = vmatmul.mubr.f32.gmra.mxu0 %v4122
      %v4471 = vpop.f32.mrf.mxu0
      %v4472 = vadd.f32 0.0, %v4471
      %v4473 = vpop.f32.mrf.mxu0
      %4474 = vmatprep.mubr.f32.mxu0 %v4319
      %4475 = vmatmul.mubr.f32.gmra.mxu0 %v4127
      %v4476 = vpop.f32.mrf.mxu0
      %v4477 = vadd.f32 0.0, %v4476
      %v4478 = vpop.f32.mrf.mxu0
      %4479 = vmatprep.mubr.f32.mxu0 %v4321
      %4480 = vmatmul.mubr.f32.gmra.mxu0 %v4132
      %v4481 = vpop.f32.mrf.mxu0
      %v4482 = vadd.f32 0.0, %v4481
      %v4483 = vpop.f32.mrf.mxu0
      %4484 = vmatprep.mubr.f32.mxu0 %v4323
      %4485 = vmatmul.mubr.f32.gmra.mxu0 %v4137
      %v4486 = vpop.f32.mrf.mxu0
      %v4487 = vadd.f32 0.0, %v4486
      %v4488 = vpop.f32.mrf.mxu0
      %4489 = vmatprep.mubr.f32.mxu0 %v4325
      %4490 = vmatmul.mubr.f32.gmra.mxu0 %v4142
      %v4491 = vpop.f32.mrf.mxu0
      %v4492 = vadd.f32 0.0, %v4491
      %v4493 = vpop.f32.mrf.mxu0
      %4494 = vmatprep.mubr.f32.mxu0 %v4327
      %4495 = vmatmul.mubr.f32.gmra.mxu0 %v4147
      %v4496 = vpop.f32.mrf.mxu0
      %v4497 = vadd.f32 0.0, %v4496
      %v4498 = vpop.f32.mrf.mxu0
      %4499 = vmatprep.mubr.f32.mxu0 %v4329
      %4500 = vmatmul.mubr.f32.gmra.mxu0 %v4152
      %v4501 = vpop.f32.mrf.mxu0
      %v4502 = vadd.f32 0.0, %v4501
      %v4503 = vpop.f32.mrf.mxu0
      %4504 = vmatprep.mubr.f32.mxu0 %v4331
      %4505 = vmatmul.mubr.f32.gmra.mxu0 %v4157
      %v4506 = vpop.f32.mrf.mxu0
      %v4507 = vadd.f32 0.0, %v4506
      %v4508 = vpop.f32.mrf.mxu0
      %4509 = vmatprep.mubr.f32.mxu0 %v4333
      %4510 = vmatmul.mubr.f32.gmra.mxu0 %v4162
      %v4511 = vpop.f32.mrf.mxu0
      %v4512 = vadd.f32 0.0, %v4511
      %v4513 = vpop.f32.mrf.mxu0
      %4514 = vmatprep.mubr.f32.mxu0 %v4335
      %4515 = vmatmul.mubr.f32.gmra.mxu0 %v4167
      %v4516 = vpop.f32.mrf.mxu0
      %v4517 = vadd.f32 0.0, %v4516
      %v4518 = vpop.f32.mrf.mxu0
      %4519 = vmatprep.mubr.f32.mxu0 %v4337
      %4520 = vmatmul.mubr.f32.gmra.mxu0 %v4172
      %v4521 = vpop.f32.mrf.mxu0
      %v4522 = vadd.f32 0.0, %v4521
      %v4523 = vpop.f32.mrf.mxu0
      %4524 = vmatprep.mubr.f32.mxu0 %v4339
      %4525 = vmatmul.mubr.f32.gmra.mxu0 %v4177
      %v4526 = vpop.f32.mrf.mxu0
      %v4527 = vadd.f32 0.0, %v4526
      %v4528 = vpop.f32.mrf.mxu0
      %4529 = vmatprep.mubr.f32.mxu0 %v4341
      %4530 = vmatmul.mubr.f32.gmra.mxu0 %v4182
      %v4531 = vpop.f32.mrf.mxu0
      %v4532 = vadd.f32 0.0, %v4531
      %v4533 = vpop.f32.mrf.mxu0
      %4534 = vmatprep.mubr.f32.mxu0 %v4343
      %4535 = vmatmul.mubr.f32.gmra.mxu0 %v4187
      %v4536 = vpop.f32.mrf.mxu0
      %v4537 = vadd.f32 0.0, %v4536
      %v4538 = vpop.f32.mrf.mxu0
      %4539 = vmatprep.mubr.f32.mxu0 %v4345
      %4540 = vmatmul.mubr.f32.gmra.mxu0 %v4192
      %v4541 = vpop.f32.mrf.mxu0
      %v4542 = vadd.f32 0.0, %v4541
      %v4543 = vpop.f32.mrf.mxu0
      %4544 = vmatprep.mubr.f32.mxu0 %v4347
      %4545 = vmatmul.mubr.f32.gmra.mxu0 %v4197
      %v4546 = vpop.f32.mrf.mxu0
      %v4547 = vadd.f32 0.0, %v4546
      %v4548 = vpop.f32.mrf.mxu0
      %4549 = vmatprep.mubr.f32.mxu0 %v4349
      %4550 = vmatmul.mubr.f32.gmra.mxu0 %v4202
      %v4551 = vpop.f32.mrf.mxu0
      %v4552 = vadd.f32 0.0, %v4551
      %v4553 = vpop.f32.mrf.mxu0
      %4554 = vmatprep.mubr.f32.mxu0 %v4351
      %4555 = vmatmul.mubr.f32.gmra.mxu0 %v4207
      %v4556 = vpop.f32.mrf.mxu0
      %v4557 = vadd.f32 0.0, %v4556
      %v4558 = vpop.f32.mrf.mxu0
      %4559 = vmatprep.mubr.f32.mxu0 %v4353
      %4560 = vmatmul.mubr.f32.gmra.mxu0 %v4212
      %v4561 = vpop.f32.mrf.mxu0
      %v4562 = vadd.f32 0.0, %v4561
      %v4563 = vpop.f32.mrf.mxu0
      %4564 = vmatprep.mubr.f32.mxu0 %v4355
      %4565 = vmatmul.mubr.f32.gmra.mxu0 %v4217
      %v4566 = vpop.f32.mrf.mxu0
      %v4567 = vadd.f32 0.0, %v4566
      %v4568 = vpop.f32.mrf.mxu0
      %4569 = vmatprep.mubr.f32.mxu0 %v4357
      %4570 = vmatmul.mubr.f32.gmra.mxu0 %v4222
      %v4571 = vpop.f32.mrf.mxu0
      %v4572 = vadd.f32 0.0, %v4571
      %v4573 = vpop.f32.mrf.mxu0
      %4574 = vmatprep.mubr.f32.mxu0 %v4359
      %4575 = vmatmul.mubr.f32.gmra.mxu0 %v4227
      %v4576 = vpop.f32.mrf.mxu0
      %v4577 = vadd.f32 0.0, %v4576
      %v4578 = vpop.f32.mrf.mxu0
      %4579 = vmatprep.mubr.f32.mxu0 %v4361
      %4580 = vmatmul.mubr.f32.gmra.mxu0 %v4232
      %v4581 = vpop.f32.mrf.mxu0
      %v4582 = vadd.f32 0.0, %v4581
      %v4583 = vpop.f32.mrf.mxu0
      %4584 = vmatprep.mubr.f32.mxu0 %v4363
      %4585 = vmatmul.mubr.f32.gmra.mxu0 %v4237
      %v4586 = vpop.f32.mrf.mxu0
      %v4587 = vadd.f32 0.0, %v4586
      %v4588 = vpop.f32.mrf.mxu0
      %4589 = vdwg.mxu0
      %v4590 = vadd.f32 %v3504, %v4432
      %v4591 = vadd.f32 %v3505, %v4437
      %v4592 = vadd.f32 %v3506, %v4442
      %v4593 = vadd.f32 %v3507, %v4447
      %v4594 = vadd.f32 %v3508, %v4452
      %v4595 = vadd.f32 %v3509, %v4457
      %v4596 = vadd.f32 %v3510, %v4462
      %v4597 = vadd.f32 %v3511, %v4467
      %v4598 = vadd.f32 %v3512, %v4472
      %v4599 = vadd.f32 %v3513, %v4477
      %v4600 = vadd.f32 %v3514, %v4482
      %v4601 = vadd.f32 %v3515, %v4487
      %v4602 = vadd.f32 %v3516, %v4492
      %v4603 = vadd.f32 %v3517, %v4497
      %v4604 = vadd.f32 %v3518, %v4502
      %v4605 = vadd.f32 %v3519, %v4507
      %v4606 = vadd.f32 %v3520, %v4512
      %v4607 = vadd.f32 %v3521, %v4517
      %v4608 = vadd.f32 %v3522, %v4522
      %v4609 = vadd.f32 %v3523, %v4527
      %v4610 = vadd.f32 %v3524, %v4532
      %v4611 = vadd.f32 %v3525, %v4537
      %v4612 = vadd.f32 %v3526, %v4542
      %v4613 = vadd.f32 %v3527, %v4547
      %v4614 = vadd.f32 %v3528, %v4552
      %v4615 = vadd.f32 %v3529, %v4557
      %v4616 = vadd.f32 %v3530, %v4562
      %v4617 = vadd.f32 %v3531, %v4567
      %v4618 = vadd.f32 %v3532, %v4572
      %v4619 = vadd.f32 %v3533, %v4577
      %v4620 = vadd.f32 %v3534, %v4582
      %v4621 = vadd.f32 %v3535, %v4587
      %v4622 = vadd.f32 %v4590, %v4047
      %v4623 = vadd.f32 %v4591, %v4048
      %v4624 = vadd.f32 %v4592, %v4049
      %v4625 = vadd.f32 %v4593, %v4050
      %v4626 = vadd.f32 %v4594, %v4051
      %v4627 = vadd.f32 %v4595, %v4052
      %v4628 = vadd.f32 %v4596, %v4053
      %v4629 = vadd.f32 %v4597, %v4054
      %v4630 = vadd.f32 %v4598, %v4055
      %v4631 = vadd.f32 %v4599, %v4056
      %v4632 = vadd.f32 %v4600, %v4057
      %v4633 = vadd.f32 %v4601, %v4058
      %v4634 = vadd.f32 %v4602, %v4059
      %v4635 = vadd.f32 %v4603, %v4060
      %v4636 = vadd.f32 %v4604, %v4061
      %v4637 = vadd.f32 %v4605, %v4062
      %v4638 = vadd.f32 %v4606, %v4063
      %v4639 = vadd.f32 %v4607, %v4064
      %v4640 = vadd.f32 %v4608, %v4065
      %v4641 = vadd.f32 %v4609, %v4066
      %v4642 = vadd.f32 %v4610, %v4067
      %v4643 = vadd.f32 %v4611, %v4068
      %v4644 = vadd.f32 %v4612, %v4069
      %v4645 = vadd.f32 %v4613, %v4070
      %v4646 = vadd.f32 %v4614, %v4071
      %v4647 = vadd.f32 %v4615, %v4072
      %v4648 = vadd.f32 %v4616, %v4073
      %v4649 = vadd.f32 %v4617, %v4074
      %v4650 = vadd.f32 %v4618, %v4075
      %v4651 = vadd.f32 %v4619, %v4076
      %v4652 = vadd.f32 %v4620, %v4077
      %v4653 = vadd.f32 %v4621, %v4078
      %v4654 = vld [vmem:[%s2] sm:$0x1]
      %v4656 = vlaneseq
      %v4657 = vshrl.u32 %v4656, 7
      %v4658 = vsub.s32 0, %v4657
      %v4659 = vrot.slane %v4654, %v4658
      %v4661 = vadd.f32 %v4622, %v4659
      %v4662 = vadd.f32 %v4623, %v4659
      %v4663 = vadd.f32 %v4624, %v4659
      %v4664 = vadd.f32 %v4625, %v4659
      %v4665 = vadd.f32 %v4626, %v4659
      %v4666 = vadd.f32 %v4627, %v4659
      %v4667 = vadd.f32 %v4628, %v4659
      %v4668 = vadd.f32 %v4629, %v4659
      %v4669 = vadd.f32 %v4630, %v4659
      %v4670 = vadd.f32 %v4631, %v4659
      %v4671 = vadd.f32 %v4632, %v4659
      %v4672 = vadd.f32 %v4633, %v4659
      %v4673 = vadd.f32 %v4634, %v4659
      %v4674 = vadd.f32 %v4635, %v4659
      %v4675 = vadd.f32 %v4636, %v4659
      %v4676 = vadd.f32 %v4637, %v4659
      %v4677 = vadd.f32 %v4638, %v4659
      %v4678 = vadd.f32 %v4639, %v4659
      %v4679 = vadd.f32 %v4640, %v4659
      %v4680 = vadd.f32 %v4641, %v4659
      %v4681 = vadd.f32 %v4642, %v4659
      %v4682 = vadd.f32 %v4643, %v4659
      %v4683 = vadd.f32 %v4644, %v4659
      %v4684 = vadd.f32 %v4645, %v4659
      %v4685 = vadd.f32 %v4646, %v4659
      %v4686 = vadd.f32 %v4647, %v4659
      %v4687 = vadd.f32 %v4648, %v4659
      %v4688 = vadd.f32 %v4649, %v4659
      %v4689 = vadd.f32 %v4650, %v4659
      %v4690 = vadd.f32 %v4651, %v4659
      %v4691 = vadd.f32 %v4652, %v4659
      %v4692 = vadd.f32 %v4653, %v4659
      %4693 = vst [vmem:[%s232] sm:$0xff] %v4661
      %4694 = vst [vmem:[%s232 + $0x8] sm:$0xff] %v4662
      %4695 = vst [vmem:[%s232 + $0x10] sm:$0xff] %v4663
      %4696 = vst [vmem:[%s232 + $0x18] sm:$0xff] %v4664
      %4697 = vst [vmem:[%s232 + $0x20] sm:$0xff] %v4665
      %4698 = vst [vmem:[%s232 + $0x28] sm:$0xff] %v4666
      %4699 = vst [vmem:[%s232 + $0x30] sm:$0xff] %v4667
      %4700 = vst [vmem:[%s232 + $0x38] sm:$0xff] %v4668
      %4701 = vst [vmem:[%s232 + $0x40] sm:$0xff] %v4669
      %4702 = vst [vmem:[%s232 + $0x48] sm:$0xff] %v4670
      %4703 = vst [vmem:[%s232 + $0x50] sm:$0xff] %v4671
      %4704 = vst [vmem:[%s232 + $0x58] sm:$0xff] %v4672
      %4705 = vst [vmem:[%s232 + $0x60] sm:$0xff] %v4673
      %4706 = vst [vmem:[%s232 + $0x68] sm:$0xff] %v4674
      %4707 = vst [vmem:[%s232 + $0x70] sm:$0xff] %v4675
      %4708 = vst [vmem:[%s232 + $0x78] sm:$0xff] %v4676
      %4709 = vst [vmem:[%s232 + $0x80] sm:$0xff] %v4677
      %4710 = vst [vmem:[%s232 + $0x88] sm:$0xff] %v4678
      %4711 = vst [vmem:[%s232 + $0x90] sm:$0xff] %v4679
      %4712 = vst [vmem:[%s232 + $0x98] sm:$0xff] %v4680
      %4713 = vst [vmem:[%s232 + $0xa0] sm:$0xff] %v4681
      %4714 = vst [vmem:[%s232 + $0xa8] sm:$0xff] %v4682
      %4715 = vst [vmem:[%s232 + $0xb0] sm:$0xff] %v4683
      %4716 = vst [vmem:[%s232 + $0xb8] sm:$0xff] %v4684
      %4717 = vst [vmem:[%s232 + $0xc0] sm:$0xff] %v4685
      %4718 = vst [vmem:[%s232 + $0xc8] sm:$0xff] %v4686
      %4719 = vst [vmem:[%s232 + $0xd0] sm:$0xff] %v4687
      %4720 = vst [vmem:[%s232 + $0xd8] sm:$0xff] %v4688
      %4721 = vst [vmem:[%s232 + $0xe0] sm:$0xff] %v4689
      %4722 = vst [vmem:[%s232 + $0xe8] sm:$0xff] %v4690
      %4723 = vst [vmem:[%s232 + $0xf0] sm:$0xff] %v4691
      %4724 = vst [vmem:[%s232 + $0xf8] sm:$0xff] %v4692
      %v4725 = vadd.f32 %v4661, %v4662
      %v4726 = vadd.f32 %v4725, %v4663
      %v4727 = vadd.f32 %v4726, %v4664
      %v4728 = vadd.f32 %v4727, %v4665
      %v4729 = vadd.f32 %v4728, %v4666
      %v4730 = vadd.f32 %v4729, %v4667
      %v4731 = vadd.f32 %v4730, %v4668
      %v4732 = vadd.f32 %v4731, %v4669
      %v4733 = vadd.f32 %v4732, %v4670
      %v4734 = vadd.f32 %v4733, %v4671
      %v4735 = vadd.f32 %v4734, %v4672
      %v4736 = vadd.f32 %v4735, %v4673
      %v4737 = vadd.f32 %v4736, %v4674
      %v4738 = vadd.f32 %v4737, %v4675
      %v4739 = vadd.f32 %v4738, %v4676
      %v4740 = vadd.f32 %v4739, %v4677
      %v4741 = vadd.f32 %v4740, %v4678
      %v4742 = vadd.f32 %v4741, %v4679
      %v4743 = vadd.f32 %v4742, %v4680
      %v4744 = vadd.f32 %v4743, %v4681
      %v4745 = vadd.f32 %v4744, %v4682
      %v4746 = vadd.f32 %v4745, %v4683
      %v4747 = vadd.f32 %v4746, %v4684
      %v4748 = vadd.f32 %v4747, %v4685
      %v4749 = vadd.f32 %v4748, %v4686
      %v4750 = vadd.f32 %v4749, %v4687
      %v4751 = vadd.f32 %v4750, %v4688
      %v4752 = vadd.f32 %v4751, %v4689
      %v4753 = vadd.f32 %v4752, %v4690
      %v4754 = vadd.f32 %v4753, %v4691
      %v4755 = vadd.f32 %v4754, %v4692
      %v4756 = vrot.slane %v4755, 4
      %v4757 = vadd.f32 %v4755, %v4756
      %v4758 = vrot.slane %v4757, 2
      %v4759 = vadd.f32 %v4757, %v4758
      %v4760 = vrot.slane %v4759, 1
      %v4761 = vadd.f32 %v4759, %v4760
      %4762 = vst [vmem:[%s239] sm:$0x1] %v4761
      %s4763 = smul.u32 16, %s21
      %p4764 = scmp.lt.s32.totalorder %s20, 1
      %s4765 = scalar_select %p4764, %s20, 1
      %p4766 = scmp.lt.s32.totalorder %s4763, 15
      %s4767 = scalar_select %p4766, %s4763, 15
      %s4768 = smul.addr %s4767, 2
      %s4769 = smul.addr %s4765, 32
      %s4770 = sadd.s32 %s4768, %s4769
      %s4771 = smul.addr %s4770, 8
      %s4772 = scalar_lea.vmem %s3, %s4771
      %p4773 = scmp.lt.s32.totalorder %s20, 1
      %s4774 = scalar_select %p4773, %s20, 1
      %p4775 = scmp.lt.s32.totalorder %s21, 0
      %s4776 = scalar_select %p4775, %s21, 0
      %s4777 = sadd.s32 %s4776, %s4774
      %s4778 = scalar_lea.vmem %s4, %s4777
      // Predicated region
      $region33: #{mschead_forward.2} parent=31 // pred_check
        %p4779 = pneg %p116
      $region34: #{mschead_forward.2} parent=31 // pred_check_branch
        %4781 = sbr.rel (%p4779) target = $region36
      $region35: #{mschead_forward.2} parent=31 // pred_region
        %s4782 = smul.u32 16, %s21
      $region36: #{mschead_forward.2} parent=31 // pred_fallthru
        _
      // Predicated region
      $region37: #{mschead_forward.2} parent=31 // pred_check
        %p4783 = pneg %p144
      $region38: #{mschead_forward.2} parent=31 // pred_check_branch
        %4785 = sbr.rel (%p4783) target = $region40
      $region39: #{mschead_forward.2} parent=31 // pred_region
        _
      $region40: #{mschead_forward.2} parent=31 // pred_fallthru
        _
    $region32: #{mschead_forward.2} parent=5 // pred_fallthru
      _
    %p4786 = scmp.le.s32.totalorder 2, %s11
    // Predicated region
    $region41: #{mschead_forward.2} parent=5 // pred_check
      %p4787 = pneg %p4786
    $region42: #{mschead_forward.2} parent=5 // pred_check_branch
      %4789 = sbr.rel (%p4787) target = $region44
    $region43: #{mschead_forward.2} parent=5 // pred_region
      %s4790 = ssub.s32 %s11, 2
      // Predicated region
      $region45: #{mschead_forward.2} parent=43 // pred_check
        %p4791 = pneg %p122
      $region46: #{mschead_forward.2} parent=43 // pred_check_branch
        %4793 = sbr.rel (%p4791) target = $region48
      $region47: #{mschead_forward.2} parent=43 // pred_region
        %s4794 = smul.u32 16, %s23
        %p4795 = scmp.lt.s32.totalorder %s22, 1
        %s4796 = scalar_select %p4795, %s22, 1
        %p4797 = scmp.lt.s32.totalorder %s4794, 15
        %s4798 = scalar_select %p4797, %s4794, 15
        %s4799 = smul.addr %s4798, 2
        %s4800 = smul.addr %s4796, 32
        %s4801 = sadd.s32 %s4799, %s4800
        %s4802 = smul.addr %s4801, 8
        %s4803 = scalar_lea.vmem %s3, %s4802
      $region48: #{mschead_forward.2} parent=43 // pred_fallthru
        _
      // Predicated region
      $region49: #{mschead_forward.2} parent=43 // pred_check
        %p4804 = pneg %p150
      $region50: #{mschead_forward.2} parent=43 // pred_check_branch
        %4806 = sbr.rel (%p4804) target = $region52
      $region51: #{mschead_forward.2} parent=43 // pred_region
        %p4807 = scmp.lt.s32.totalorder %s22, 1
        %s4808 = scalar_select %p4807, %s22, 1
        %p4809 = scmp.lt.s32.totalorder %s23, 0
        %s4810 = scalar_select %p4809, %s23, 0
        %s4811 = sadd.s32 %s4810, %s4808
        %s4812 = scalar_lea.vmem %s4, %s4811
      $region52: #{mschead_forward.2} parent=43 // pred_fallthru
        _
    $region44: #{mschead_forward.2} parent=5 // pred_fallthru
      _
  $region6: #{mschead_forward.2} parent=0 // loop_footer
    %s15 = sadd.s32 1, %s11
  $region7: #{mschead_forward.2} parent=0 // loop_footer_branch
    %10 = sbr.rel target = $region3
  $region8: #{mschead_forward.2} parent=0 // loop_exit
    _

// kernel: mschead_forward.3
$region0: #{mschead_forward.3}
  #allocation0 [shape = 'u32[]', space=smem, size = 0x4, offset = 0x4, fixed_abs, tag = 'smem constant byte address 0x4 - core index']
  #allocation1 [shape = 'u32[144,128]{1,0:T(1,128)}', space=vmem, size = 0x12000, scoped, tag = 'internal scratch']
  %s0 = inlined_call_operand.vmem [shape: f32[2,22,22,128], index: 0, kind: input, shape index: {}]
  %s1 = inlined_call_operand.vmem [shape: f32[2,1,128], index: 1, kind: input, shape index: {}]
  %s2 = inlined_call_operand.vmem [shape: f32[7,3,896], index: 2, kind: input, shape index: {}]
  %s3 = inlined_call_operand.vmem [shape: f32[7,3,896], index: 3, kind: input, shape index: {}]
  %s4 = inlined_call_operand.vmem [shape: f32[3,1], index: 4, kind: input, shape index: {}]
  %s5 = inlined_call_operand.vmem [shape: f32[2,3,256], index: 5, kind: output, shape index: {}]
  %s6 = sld [smem:[#allocation0]]
  $region53: #{mschead_forward.3} parent=0
    _
  %s8 = ssub.s32 1, %s6
  %s9 = scalar_select 0, %s8, %s6
  loop: start=0, step=1, limit=4
  $region2: #{mschead_forward.3} parent=0 // loop_pre_header
    _
  $region3: #{mschead_forward.3} parent=0 // loop_header
    %s11 = sphi 0, %s15
    %p12 = scmp.ge.s32.totalorder %s11, 4
    %s18 = sphi 0, %s30
    %s19 = sphi 0, %s26
    %s20 = sphi 0, %s18
    %s21 = sphi 0, %s19
    %s22 = sphi 0, %s20
    %s23 = sphi 0, %s21
    %s33 = sphi 0, %s35
    %s36 = sphi 0, %s33
    %s37 = sphi 0, %s36
    %s53 = sphi 0, %s37
    %s59 = sphi 0, %s61
    %s62 = sphi 0, %s59
    %s63 = sphi 0, %s62
    %s79 = sphi 0, %s63
    %s83 = sphi 0, %s83
    %s85 = sphi 0, %s83
    %s86 = sphi 0, %s85
    %s100 = sphi 0, %s86
    %s104 = sphi 0, %s104
    %s106 = sphi 0, %s104
    %s107 = sphi 0, %s106
    %s121 = sphi 0, %s107
    %s125 = sphi 0, %s125
    %s127 = sphi 0, %s125
    %s128 = sphi 0, %s127
    %s142 = sphi 0, %s128
    %s150 = sphi 0, %s152
    %s153 = sphi 0, %s150
    %s154 = sphi 0, %s153
    %s170 = sphi 0, %s154
  $region4: #{mschead_forward.3} parent=0 // loop_header_branch
    %14 = sbr.rel (%p12) target = $region8
  $region5: #{mschead_forward.3} parent=0 // loop_body
    %s16 = ssub.s32 %s11, 1
    %s17 = ssub.s32 %s11, 2
    %s24 = sadd.s32 1, %s19
    %p25 = scmp.ge.s32.totalorder %s24, 1
    %s26 = scalar_select %p25, 0, %s24
    %s27 = sadd.s32 1, %s18
    %s28 = scalar_select %p25, %s27, %s18
    %p29 = scmp.ge.s32.totalorder %s28, 2
    %s30 = scalar_select %p29, 0, %s28
    %s31 = ssub.s32 %s18, %s30
    %p32 = scmp.eq.s32.totalorder %s31, 0
    %s34 = sadd.s32 %s33, 1
    %s35 = scalar_select %p32, %s33, %s34
    %p38 = pneg %p32
    %p39 = scmp.eq.s32.totalorder %s11, 1
    %p40 = por %p38, %p39
    %p41 = scmp.ne.s32.totalorder %s33, %s36
    %p42 = scmp.eq.s32.totalorder %s11, 0
    %p43 = por %p41, %p42
    %p44 = scmp.ne.s32.totalorder %s33, %s36
    %p45 = scmp.eq.s32.totalorder %s16, 1
    %p46 = por %p44, %p45
    %p47 = scmp.ne.s32.totalorder %s36, %s37
    %p48 = scmp.eq.s32.totalorder %s16, 0
    %p49 = por %p47, %p48
    %p50 = scmp.ne.s32.totalorder %s36, %s37
    %p51 = scmp.eq.s32.totalorder %s17, 1
    %p52 = por %p50, %p51
    %p54 = scmp.ne.s32.totalorder %s37, %s53
    %p55 = scmp.eq.s32.totalorder %s17, 0
    %p56 = por %p54, %p55
    %s57 = ssub.s32 %s18, %s30
    %p58 = scmp.eq.s32.totalorder %s57, 0
    %s60 = sadd.s32 %s59, 1
    %s61 = scalar_select %p58, %s59, %s60
    %p64 = pneg %p58
    %p65 = scmp.eq.s32.totalorder %s11, 1
    %p66 = por %p64, %p65
    %p67 = scmp.ne.s32.totalorder %s59, %s62
    %p68 = scmp.eq.s32.totalorder %s11, 0
    %p69 = por %p67, %p68
    %p70 = scmp.ne.s32.totalorder %s59, %s62
    %p71 = scmp.eq.s32.totalorder %s16, 1
    %p72 = por %p70, %p71
    %p73 = scmp.ne.s32.totalorder %s62, %s63
    %p74 = scmp.eq.s32.totalorder %s16, 0
    %p75 = por %p73, %p74
    %p76 = scmp.ne.s32.totalorder %s62, %s63
    %p77 = scmp.eq.s32.totalorder %s17, 1
    %p78 = por %p76, %p77
    %p80 = scmp.ne.s32.totalorder %s63, %s79
    %p81 = scmp.eq.s32.totalorder %s17, 0
    %p82 = por %p80, %p81
    %s84 = sadd.s32 %s83, 1
    %p87 = scmp.eq.s32.totalorder %s11, 1
    %p88 = scmp.ne.s32.totalorder %s83, %s85
    %p89 = scmp.eq.s32.totalorder %s11, 0
    %p90 = por %p88, %p89
    %p91 = scmp.ne.s32.totalorder %s83, %s85
    %p92 = scmp.eq.s32.totalorder %s16, 1
    %p93 = por %p91, %p92
    %p94 = scmp.ne.s32.totalorder %s85, %s86
    %p95 = scmp.eq.s32.totalorder %s16, 0
    %p96 = por %p94, %p95
    %p97 = scmp.ne.s32.totalorder %s85, %s86
    %p98 = scmp.eq.s32.totalorder %s17, 1
    %p99 = por %p97, %p98
    %p101 = scmp.ne.s32.totalorder %s86, %s100
    %p102 = scmp.eq.s32.totalorder %s17, 0
    %p103 = por %p101, %p102
    %s105 = sadd.s32 %s104, 1
    %p108 = scmp.eq.s32.totalorder %s11, 1
    %p109 = scmp.ne.s32.totalorder %s104, %s106
    %p110 = scmp.eq.s32.totalorder %s11, 0
    %p111 = por %p109, %p110
    %p112 = scmp.ne.s32.totalorder %s104, %s106
    %p113 = scmp.eq.s32.totalorder %s16, 1
    %p114 = por %p112, %p113
    %p115 = scmp.ne.s32.totalorder %s106, %s107
    %p116 = scmp.eq.s32.totalorder %s16, 0
    %p117 = por %p115, %p116
    %p118 = scmp.ne.s32.totalorder %s106, %s107
    %p119 = scmp.eq.s32.totalorder %s17, 1
    %p120 = por %p118, %p119
    %p122 = scmp.ne.s32.totalorder %s107, %s121
    %p123 = scmp.eq.s32.totalorder %s17, 0
    %p124 = por %p122, %p123
    %s126 = sadd.s32 %s125, 1
    %p129 = scmp.eq.s32.totalorder %s11, 1
    %p130 = scmp.ne.s32.totalorder %s125, %s127
    %p131 = scmp.eq.s32.totalorder %s11, 0
    %p132 = por %p130, %p131
    %p133 = scmp.ne.s32.totalorder %s125, %s127
    %p134 = scmp.eq.s32.totalorder %s16, 1
    %p135 = por %p133, %p134
    %p136 = scmp.ne.s32.totalorder %s127, %s128
    %p137 = scmp.eq.s32.totalorder %s16, 0
    %p138 = por %p136, %p137
    %p139 = scmp.ne.s32.totalorder %s127, %s128
    %p140 = scmp.eq.s32.totalorder %s17, 1
    %p141 = por %p139, %p140
    %p143 = scmp.ne.s32.totalorder %s128, %s142
    %p144 = scmp.eq.s32.totalorder %s17, 0
    %p145 = por %p143, %p144
    %s146 = ssub.s32 %s18, %s30
    %s147 = ssub.s32 %s19, %s26
    %s148 = sor.u32 %s146, %s147
    %p149 = scmp.eq.s32.totalorder %s148, 0
    %s151 = sadd.s32 %s150, 1
    %s152 = scalar_select %p149, %s150, %s151
    %p155 = pneg %p149
    %p156 = scmp.eq.s32.totalorder %s11, 1
    %p157 = por %p155, %p156
    %p158 = scmp.ne.s32.totalorder %s150, %s153
    %p159 = scmp.eq.s32.totalorder %s11, 0
    %p160 = por %p158, %p159
    %p161 = scmp.ne.s32.totalorder %s150, %s153
    %p162 = scmp.eq.s32.totalorder %s16, 1
    %p163 = por %p161, %p162
    %p164 = scmp.ne.s32.totalorder %s153, %s154
    %p165 = scmp.eq.s32.totalorder %s16, 0
    %p166 = por %p164, %p165
    %p167 = scmp.ne.s32.totalorder %s153, %s154
    %p168 = scmp.eq.s32.totalorder %s17, 1
    %p169 = por %p167, %p168
    %p171 = scmp.ne.s32.totalorder %s154, %s170
    %p172 = scmp.eq.s32.totalorder %s17, 0
    %p173 = por %p171, %p172
    %p174 = scmp.le.s32.totalorder 1, %s11
    %p175 = scmp.lt.s32.totalorder %s11, 3
    %p176 = pnand %p174, %p175
    %p177 = pneg %p176
    // Predicated region
    $region9: #{mschead_forward.3} parent=5 // pred_check
      _
    $region10: #{mschead_forward.3} parent=5 // pred_check_branch
      %179 = sbr.rel (%p176) target = $region12
    $region11: #{mschead_forward.3} parent=5 // pred_region
      %s180 = ssub.s32 %s11, 1
      // Predicated region
      $region13: #{mschead_forward.3} parent=11 // pred_check
        %p181 = pneg %p96
      $region14: #{mschead_forward.3} parent=11 // pred_check_branch
        %183 = sbr.rel (%p181) target = $region16
      $region15: #{mschead_forward.3} parent=11 // pred_region
        _
      $region16: #{mschead_forward.3} parent=11 // pred_fallthru
        _
      // Predicated region
      $region17: #{mschead_forward.3} parent=11 // pred_check
        %p184 = pneg %p117
      $region18: #{mschead_forward.3} parent=11 // pred_check_branch
        %186 = sbr.rel (%p184) target = $region20
      $region19: #{mschead_forward.3} parent=11 // pred_region
        _
      $region20: #{mschead_forward.3} parent=11 // pred_fallthru
        _
      // Predicated region
      $region21: #{mschead_forward.3} parent=11 // pred_check
        %p187 = pneg %p138
      $region22: #{mschead_forward.3} parent=11 // pred_check_branch
        %189 = sbr.rel (%p187) target = $region24
      $region23: #{mschead_forward.3} parent=11 // pred_region
        _
      $region24: #{mschead_forward.3} parent=11 // pred_fallthru
        _
    $region12: #{mschead_forward.3} parent=5 // pred_fallthru
      _
    %p190 = scmp.lt.s32.totalorder %s11, 2
    // Predicated region
    $region25: #{mschead_forward.3} parent=5 // pred_check
      %p191 = pneg %p190
    $region26: #{mschead_forward.3} parent=5 // pred_check_branch
      %193 = sbr.rel (%p191) target = $region28
    $region27: #{mschead_forward.3} parent=5 // pred_region
      // Predicated region
      $region29: #{mschead_forward.3} parent=27 // pred_check
        %p194 = pneg %p43
      $region30: #{mschead_forward.3} parent=27 // pred_check_branch
        %196 = sbr.rel (%p194) target = $region32
      $region31: #{mschead_forward.3} parent=27 // pred_region
        %p197 = scmp.lt.s32.totalorder %s18, 1
        %s198 = scalar_select %p197, %s18, 1
        %s199 = smul.addr %s198, 66
        %s200 = smul.addr %s199, 8
        %s201 = scalar_lea.vmem %s0, %s200
      $region32: #{mschead_forward.3} parent=27 // pred_fallthru
        _
      // Predicated region
      $region33: #{mschead_forward.3} parent=27 // pred_check
        %p202 = pneg %p69
      $region34: #{mschead_forward.3} parent=27 // pred_check_branch
        %204 = sbr.rel (%p202) target = $region36
      $region35: #{mschead_forward.3} parent=27 // pred_region
        %p205 = scmp.lt.s32.totalorder %s18, 1
        %s206 = scalar_select %p205, %s18, 1
        %s207 = scalar_lea.vmem %s1, %s206
      $region36: #{mschead_forward.3} parent=27 // pred_fallthru
        _
    $region28: #{mschead_forward.3} parent=5 // pred_fallthru
      _
    %p208 = scmp.le.s32.totalorder 1, %s11
    %p209 = scmp.lt.s32.totalorder %s11, 3
    %p210 = pnand %p208, %p209
    %p211 = pneg %p210
    // Predicated region
    $region37: #{mschead_forward.3} parent=5 // pred_check
      _
    $region38: #{mschead_forward.3} parent=5 // pred_check_branch
      %213 = sbr.rel (%p210) target = $region40
    $region39: #{mschead_forward.3} parent=5 // pred_region
      %s214 = ssub.s32 %s11, 1
      %p215 = scmp.lt.s32.totalorder %s20, 1
      %s216 = scalar_select %p215, %s20, 1
      %s217 = smul.addr %s216, 66
      %s218 = smul.addr %s217, 8
      %s219 = scalar_lea.vmem %s0, %s218
      %p220 = pneg %p49
      %p221 = pneg %p46
      %p222 = scmp.lt.s32.totalorder %s20, 1
      %s223 = scalar_select %p222, %s20, 1
      %s224 = scalar_lea.vmem %s1, %s223
      %p225 = pneg %p75
      %p226 = pneg %p72
      %p227 = pneg %p96
      %p228 = pneg %p93
      %p229 = pneg %p117
      %p230 = pneg %p114
      %p231 = pneg %p138
      %p232 = pneg %p135
      %p233 = pneg %p166
      %p234 = pneg %p163
      %s235 = smul.u32 2, %s21
      %p236 = scmp.lt.s32.totalorder %s20, 1
      %s237 = scalar_select %p236, %s20, 1
      %p238 = scmp.lt.s32.totalorder %s235, 1
      %s239 = scalar_select %p238, %s235, 1
      %s240 = smul.addr %s237, 2
      %s241 = sadd.s32 %s239, %s240
      %s242 = smul.addr %s241, 4
      %s243 = scalar_lea.vmem %s5, %s242
      %p244 = scmp.lt.s32.totalorder %s20, 1
      %s245 = scalar_select %p244, %s20, 1
      %s246 = smul.addr %s245, 66
      %s247 = smul.addr %s246, 8
      %s248 = scalar_lea.vmem %s0, %s247
      %p249 = scmp.lt.s32.totalorder %s20, 1
      %s250 = scalar_select %p249, %s20, 1
      %s251 = scalar_lea.vmem %s1, %s250
      %s252 = smul.u32 2, %s21
      %p253 = scmp.lt.s32.totalorder %s20, 1
      %s254 = scalar_select %p253, %s20, 1
      %p255 = scmp.lt.s32.totalorder %s252, 1
      %s256 = scalar_select %p255, %s252, 1
      %s257 = smul.addr %s254, 2
      %s258 = sadd.s32 %s256, %s257
      %s259 = smul.addr %s258, 4
      %s260 = scalar_lea.vmem %s5, %s259
      %s261 = smul.u32 2, %s21
      %v262 = vld [vmem:[%s251] sm:$0x1]
      %v263 = vld [vmem:[%s2] sm:$0x77]
      %v264 = vld [vmem:[%s2 + $0x8] sm:$0x77]
      %v265 = vld [vmem:[%s2 + $0x10] sm:$0x77]
      %v266 = vld [vmem:[%s2 + $0x18] sm:$0x7]
      %v267 = vld [vmem:[%s2 + $0x1c] sm:$0x77]
      %v268 = vld [vmem:[%s2 + $0x24] sm:$0x77]
      %v269 = vld [vmem:[%s2 + $0x2c] sm:$0x77]
      %v270 = vld [vmem:[%s2 + $0x34] sm:$0x7]
      %v271 = vld [vmem:[%s2 + $0x38] sm:$0x77]
      %v272 = vld [vmem:[%s2 + $0x40] sm:$0x77]
      %v273 = vld [vmem:[%s2 + $0x48] sm:$0x77]
      %v274 = vld [vmem:[%s2 + $0x50] sm:$0x7]
      %v275 = vld [vmem:[%s2 + $0x54] sm:$0x77]
      %v276 = vld [vmem:[%s2 + $0x5c] sm:$0x77]
      %v277 = vld [vmem:[%s2 + $0x64] sm:$0x77]
      %v278 = vld [vmem:[%s2 + $0x6c] sm:$0x7]
      %v279 = vld [vmem:[%s2 + $0x70] sm:$0x77]
      %v280 = vld [vmem:[%s2 + $0x78] sm:$0x77]
      %v281 = vld [vmem:[%s2 + $0x80] sm:$0x77]
      %v282 = vld [vmem:[%s2 + $0x88] sm:$0x7]
      %v283 = vld [vmem:[%s2 + $0x8c] sm:$0x77]
      %v284 = vld [vmem:[%s2 + $0x94] sm:$0x77]
      %v285 = vld [vmem:[%s2 + $0x9c] sm:$0x77]
      %v286 = vld [vmem:[%s2 + $0xa4] sm:$0x7]
      %v287 = vld [vmem:[%s2 + $0xa8] sm:$0x77]
      %v288 = vld [vmem:[%s2 + $0xb0] sm:$0x77]
      %v289 = vld [vmem:[%s2 + $0xb8] sm:$0x77]
      %v290 = vld [vmem:[%s2 + $0xc0] sm:$0x7]
      %v291 = vld [vmem:[%s3] sm:$0x77]
      %v292 = vld [vmem:[%s3 + $0x8] sm:$0x77]
      %v293 = vld [vmem:[%s3 + $0x10] sm:$0x77]
      %v294 = vld [vmem:[%s3 + $0x18] sm:$0x7]
      %v295 = vld [vmem:[%s3 + $0x1c] sm:$0x77]
      %v296 = vld [vmem:[%s3 + $0x24] sm:$0x77]
      %v297 = vld [vmem:[%s3 + $0x2c] sm:$0x77]
      %v298 = vld [vmem:[%s3 + $0x34] sm:$0x7]
      %v299 = vld [vmem:[%s3 + $0x38] sm:$0x77]
      %v300 = vld [vmem:[%s3 + $0x40] sm:$0x77]
      %v301 = vld [vmem:[%s3 + $0x48] sm:$0x77]
      %v302 = vld [vmem:[%s3 + $0x50] sm:$0x7]
      %v303 = vld [vmem:[%s3 + $0x54] sm:$0x77]
      %v304 = vld [vmem:[%s3 + $0x5c] sm:$0x77]
      %v305 = vld [vmem:[%s3 + $0x64] sm:$0x77]
      %v306 = vld [vmem:[%s3 + $0x6c] sm:$0x7]
      %v307 = vld [vmem:[%s3 + $0x70] sm:$0x77]
      %v308 = vld [vmem:[%s3 + $0x78] sm:$0x77]
      %v309 = vld [vmem:[%s3 + $0x80] sm:$0x77]
      %v310 = vld [vmem:[%s3 + $0x88] sm:$0x7]
      %v311 = vld [vmem:[%s3 + $0x8c] sm:$0x77]
      %v312 = vld [vmem:[%s3 + $0x94] sm:$0x77]
      %v313 = vld [vmem:[%s3 + $0x9c] sm:$0x77]
      %v314 = vld [vmem:[%s3 + $0xa4] sm:$0x7]
      %v315 = vld [vmem:[%s3 + $0xa8] sm:$0x77]
      %v316 = vld [vmem:[%s3 + $0xb0] sm:$0x77]
      %v317 = vld [vmem:[%s3 + $0xb8] sm:$0x77]
      %v318 = vld [vmem:[%s3 + $0xc0] sm:$0x7]
      %v319 = vlaneseq
      %v320 = vshrl.u32 %v319, 7
      %v321 = vsub.s32 0, %v320
      %v322 = vrot.slane %v262, %v321
      %v344 = vcombine.high %v291, %v291
      %v345 = vcombine.high %v292, %v292
      %v346 = vcombine.high %v293, %v293
      %v347 = vcombine.high %v295, %v295
      %v348 = vcombine.high %v296, %v296
      %v349 = vcombine.high %v297, %v297
      %v350 = vcombine.high %v299, %v299
      %v351 = vcombine.high %v300, %v300
      %v352 = vcombine.high %v301, %v301
      %v353 = vcombine.high %v303, %v303
      %v354 = vcombine.high %v304, %v304
      %v355 = vcombine.high %v305, %v305
      %v356 = vcombine.high %v307, %v307
      %v357 = vcombine.high %v308, %v308
      %v358 = vcombine.high %v309, %v309
      %v359 = vcombine.high %v311, %v311
      %v360 = vcombine.high %v312, %v312
      %v361 = vcombine.high %v313, %v313
      %v362 = vcombine.high %v315, %v315
      %v363 = vcombine.high %v316, %v316
      %v364 = vcombine.high %v317, %v317
      %v386 = vmul.f32 %v322, %v291
      %v387 = vmul.f32 %v322, %v344
      %v388 = vmul.f32 %v322, %v292
      %v389 = vmul.f32 %v322, %v345
      %v390 = vmul.f32 %v322, %v293
      %v391 = vmul.f32 %v322, %v346
      %v392 = vmul.f32 %v322, %v294
      %v393 = vmul.f32 %v322, %v295
      %v394 = vmul.f32 %v322, %v347
      %v395 = vmul.f32 %v322, %v296
      %v396 = vmul.f32 %v322, %v348
      %v397 = vmul.f32 %v322, %v297
      %v398 = vmul.f32 %v322, %v349
      %v399 = vmul.f32 %v322, %v298
      %v400 = vmul.f32 %v322, %v299
      %v401 = vmul.f32 %v322, %v350
      %v402 = vmul.f32 %v322, %v300
      %v403 = vmul.f32 %v322, %v351
      %v404 = vmul.f32 %v322, %v301
      %v405 = vmul.f32 %v322, %v352
      %v406 = vmul.f32 %v322, %v302
      %v407 = vmul.f32 %v322, %v303
      %v408 = vmul.f32 %v322, %v353
      %v409 = vmul.f32 %v322, %v304
      %v410 = vmul.f32 %v322, %v354
      %v411 = vmul.f32 %v322, %v305
      %v412 = vmul.f32 %v322, %v355
      %v413 = vmul.f32 %v322, %v306
      %v414 = vmul.f32 %v322, %v307
      %v415 = vmul.f32 %v322, %v356
      %v416 = vmul.f32 %v322, %v308
      %v417 = vmul.f32 %v322, %v357
      %v418 = vmul.f32 %v322, %v309
      %v419 = vmul.f32 %v322, %v358
      %v420 = vmul.f32 %v322, %v310
      %v421 = vmul.f32 %v322, %v311
      %v422 = vmul.f32 %v322, %v359
      %v423 = vmul.f32 %v322, %v312
      %v424 = vmul.f32 %v322, %v360
      %v425 = vmul.f32 %v322, %v313
      %v426 = vmul.f32 %v322, %v361
      %v427 = vmul.f32 %v322, %v314
      %v428 = vmul.f32 %v322, %v315
      %v429 = vmul.f32 %v322, %v362
      %v430 = vmul.f32 %v322, %v316
      %v431 = vmul.f32 %v322, %v363
      %v432 = vmul.f32 %v322, %v317
      %v433 = vmul.f32 %v322, %v364
      %v434 = vmul.f32 %v322, %v318
      %v477 = vcombine.low %v386, %v387
      %v478 = vcombine.low %v388, %v389
      %v479 = vcombine.low %v390, %v391
      %v480 = vcombine.low %v393, %v394
      %v481 = vcombine.low %v395, %v396
      %v482 = vcombine.low %v397, %v398
      %v483 = vcombine.low %v400, %v401
      %v484 = vcombine.low %v402, %v403
      %v485 = vcombine.low %v404, %v405
      %v486 = vcombine.low %v407, %v408
      %v487 = vcombine.low %v409, %v410
      %v488 = vcombine.low %v411, %v412
      %v489 = vcombine.low %v414, %v415
      %v490 = vcombine.low %v416, %v417
      %v491 = vcombine.low %v418, %v419
      %v492 = vcombine.low %v421, %v422
      %v493 = vcombine.low %v423, %v424
      %v494 = vcombine.low %v425, %v426
      %v495 = vcombine.low %v428, %v429
      %v496 = vcombine.low %v430, %v431
      %v497 = vcombine.low %v432, %v433
      %v519 = vadd.f32 %v263, %v477
      %v520 = vadd.f32 %v264, %v478
      %v521 = vadd.f32 %v265, %v479
      %v522 = vadd.f32 %v266, %v392
      %v523 = vadd.f32 %v267, %v480
      %v524 = vadd.f32 %v268, %v481
      %v525 = vadd.f32 %v269, %v482
      %v526 = vadd.f32 %v270, %v399
      %v527 = vadd.f32 %v271, %v483
      %v528 = vadd.f32 %v272, %v484
      %v529 = vadd.f32 %v273, %v485
      %v530 = vadd.f32 %v274, %v406
      %v531 = vadd.f32 %v275, %v486
      %v532 = vadd.f32 %v276, %v487
      %v533 = vadd.f32 %v277, %v488
      %v534 = vadd.f32 %v278, %v413
      %v535 = vadd.f32 %v279, %v489
      %v536 = vadd.f32 %v280, %v490
      %v537 = vadd.f32 %v281, %v491
      %v538 = vadd.f32 %v282, %v420
      %v539 = vadd.f32 %v283, %v492
      %v540 = vadd.f32 %v284, %v493
      %v541 = vadd.f32 %v285, %v494
      %v542 = vadd.f32 %v286, %v427
      %v543 = vadd.f32 %v287, %v495
      %v544 = vadd.f32 %v288, %v496
      %v545 = vadd.f32 %v289, %v497
      %v546 = vadd.f32 %v290, %v434
      %s547 = smul.u32 %s21, 16
      %s548 = smul.u32 %s547, 24
      %s549 = scalar_lea.vmem %s248, %s548
      %v550 = vld [vmem:[%s549] sm:$0xff]
      %v551 = vld [vmem:[%s549 + $0x8] sm:$0xff]
      %v552 = vld [vmem:[%s549 + $0x10] sm:$0x3f]
      %v553 = vld [vmem:[%s549 + $0x18] sm:$0xff]
      %v554 = vld [vmem:[%s549 + $0x20] sm:$0xff]
      %v555 = vld [vmem:[%s549 + $0x28] sm:$0x3f]
      %v556 = vld [vmem:[%s549 + $0x30] sm:$0xff]
      %v557 = vld [vmem:[%s549 + $0x38] sm:$0xff]
      %v558 = vld [vmem:[%s549 + $0x40] sm:$0x3f]
      %v559 = vld [vmem:[%s549 + $0x48] sm:$0xff]
      %v560 = vld [vmem:[%s549 + $0x50] sm:$0xff]
      %v561 = vld [vmem:[%s549 + $0x58] sm:$0x3f]
      %v562 = vld [vmem:[%s549 + $0x60] sm:$0xff]
      %v563 = vld [vmem:[%s549 + $0x68] sm:$0xff]
      %v564 = vld [vmem:[%s549 + $0x70] sm:$0x3f]
      %v565 = vld [vmem:[%s549 + $0x78] sm:$0xff]
      %v566 = vld [vmem:[%s549 + $0x80] sm:$0xff]
      %v567 = vld [vmem:[%s549 + $0x88] sm:$0x3f]
      %v568 = vld [vmem:[%s549 + $0x90] sm:$0xff]
      %v569 = vld [vmem:[%s549 + $0x98] sm:$0xff]
      %v570 = vld [vmem:[%s549 + $0xa0] sm:$0x3f]
      %v571 = vld [vmem:[%s549 + $0xa8] sm:$0xff]
      %v572 = vld [vmem:[%s549 + $0xb0] sm:$0xff]
      %v573 = vld [vmem:[%s549 + $0xb8] sm:$0x3f]
      %v574 = vld [vmem:[%s549 + $0xc0] sm:$0xff]
      %v575 = vld [vmem:[%s549 + $0xc8] sm:$0xff]
      %v576 = vld [vmem:[%s549 + $0xd0] sm:$0x3f]
      %v577 = vld [vmem:[%s549 + $0xd8] sm:$0xff]
      %v578 = vld [vmem:[%s549 + $0xe0] sm:$0xff]
      %v579 = vld [vmem:[%s549 + $0xe8] sm:$0x3f]
      %v580 = vld [vmem:[%s549 + $0xf0] sm:$0xff]
      %v581 = vld [vmem:[%s549 + $0xf8] sm:$0xff]
      %v582 = vld [vmem:[%s549 + $0x100] sm:$0x3f]
      %v583 = vld [vmem:[%s549 + $0x108] sm:$0xff]
      %v584 = vld [vmem:[%s549 + $0x110] sm:$0xff]
      %v585 = vld [vmem:[%s549 + $0x118] sm:$0x3f]
      %v586 = vld [vmem:[%s549 + $0x120] sm:$0xff]
      %v587 = vld [vmem:[%s549 + $0x128] sm:$0xff]
      %v588 = vld [vmem:[%s549 + $0x130] sm:$0x3f]
      %v589 = vld [vmem:[%s549 + $0x138] sm:$0xff]
      %v590 = vld [vmem:[%s549 + $0x140] sm:$0xff]
      %v591 = vld [vmem:[%s549 + $0x148] sm:$0x3f]
      %v592 = vld [vmem:[%s549 + $0x150] sm:$0xff]
      %v593 = vld [vmem:[%s549 + $0x158] sm:$0xff]
      %v594 = vld [vmem:[%s549 + $0x160] sm:$0x3f]
      %v595 = vld [vmem:[%s549 + $0x168] sm:$0xff]
      %v596 = vld [vmem:[%s549 + $0x170] sm:$0xff]
      %v597 = vld [vmem:[%s549 + $0x178] sm:$0x3f]
      %v598 = vld [vmem:[%s549 + $0x180] sm:$0xff]
      %v599 = vld [vmem:[%s549 + $0x188] sm:$0xff]
      %v600 = vld [vmem:[%s549 + $0x190] sm:$0x3f]
      %v601 = vld [vmem:[%s549 + $0x198] sm:$0xff]
      %v602 = vld [vmem:[%s549 + $0x1a0] sm:$0xff]
      %v603 = vld [vmem:[%s549 + $0x1a8] sm:$0x3f]
      %v604 = vld [vmem:[%s549 + $0x1b0] sm:$0xff]
      %v605 = vld [vmem:[%s549 + $0x1b8] sm:$0xff]
      %v606 = vld [vmem:[%s549 + $0x1c0] sm:$0x3f]
      %v607 = vld [vmem:[%s549 + $0x1c8] sm:$0xff]
      %v608 = vld [vmem:[%s549 + $0x1d0] sm:$0xff]
      %v609 = vld [vmem:[%s549 + $0x1d8] sm:$0x3f]
      %v610 = vld [vmem:[%s549 + $0x1e0] sm:$0xff]
      %v611 = vld [vmem:[%s549 + $0x1e8] sm:$0xff]
      %v612 = vld [vmem:[%s549 + $0x1f0] sm:$0x3f]
      %v613 = vld [vmem:[%s549 + $0x1f8] sm:$0xff]
      %v614 = vld [vmem:[%s549 + $0x200] sm:$0xff]
      %v615 = vld [vmem:[%s549 + $0x208] sm:$0x3f]
      %vm682 = vcmask 1046528
      %v683 = vrot.slane %v550, 1
      %v684 = vrot.slane %v551, 1
      %v685 = vsel %vm682, %v683, %v684
      %v686 = vrot.slane %v553, 1
      %v687 = vrot.slane %v554, 1
      %v688 = vsel %vm682, %v686, %v687
      %v689 = vrot.slane %v556, 1
      %v690 = vrot.slane %v557, 1
      %v691 = vsel %vm682, %v689, %v690
      %v692 = vrot.slane %v559, 1
      %v693 = vrot.slane %v560, 1
      %v694 = vsel %vm682, %v692, %v693
      %v695 = vrot.slane %v562, 1
      %v696 = vrot.slane %v563, 1
      %v697 = vsel %vm682, %v695, %v696
      %v698 = vrot.slane %v565, 1
      %v699 = vrot.slane %v566, 1
      %v700 = vsel %vm682, %v698, %v699
      %v701 = vrot.slane %v568, 1
      %v702 = vrot.slane %v569, 1
      %v703 = vsel %vm682, %v701, %v702
      %v704 = vrot.slane %v552, 1
      %v705 = vsel %vm682, %v684, %v704
      %v706 = vrot.slane %v555, 1
      %v707 = vsel %vm682, %v687, %v706
      %v708 = vrot.slane %v558, 1
      %v709 = vsel %vm682, %v690, %v708
      %v710 = vrot.slane %v561, 1
      %v711 = vsel %vm682, %v693, %v710
      %v712 = vrot.slane %v564, 1
      %v713 = vsel %vm682, %v696, %v712
      %v714 = vrot.slane %v567, 1
      %v715 = vsel %vm682, %v699, %v714
      %v716 = vrot.slane %v570, 1
      %v717 = vsel %vm682, %v702, %v716
      %v718 = vrot.slane %v571, 1
      %v719 = vrot.slane %v572, 1
      %v720 = vsel %vm682, %v718, %v719
      %v721 = vrot.slane %v573, 1
      %v722 = vsel %vm682, %v719, %v721
      %v723 = vrot.slane %v574, 1
      %v724 = vrot.slane %v575, 1
      %v725 = vsel %vm682, %v723, %v724
      %v726 = vrot.slane %v576, 1
      %v727 = vsel %vm682, %v724, %v726
      %v728 = vrot.slane %v577, 1
      %v729 = vrot.slane %v578, 1
      %v730 = vsel %vm682, %v728, %v729
      %v731 = vrot.slane %v579, 1
      %v732 = vsel %vm682, %v729, %v731
      %v733 = vrot.slane %v580, 1
      %v734 = vrot.slane %v581, 1
      %v735 = vsel %vm682, %v733, %v734
      %v736 = vrot.slane %v582, 1
      %v737 = vsel %vm682, %v734, %v736
      %v738 = vrot.slane %v583, 1
      %v739 = vrot.slane %v584, 1
      %v740 = vsel %vm682, %v738, %v739
      %v741 = vrot.slane %v585, 1
      %v742 = vsel %vm682, %v739, %v741
      %v743 = vrot.slane %v586, 1
      %v744 = vrot.slane %v587, 1
      %v745 = vsel %vm682, %v743, %v744
      %v746 = vrot.slane %v588, 1
      %v747 = vsel %vm682, %v744, %v746
      %v748 = vrot.slane %v589, 1
      %v749 = vrot.slane %v590, 1
      %v750 = vsel %vm682, %v748, %v749
      %v751 = vrot.slane %v591, 1
      %v752 = vsel %vm682, %v749, %v751
      %v753 = vrot.slane %v592, 1
      %v754 = vrot.slane %v593, 1
      %v755 = vsel %vm682, %v753, %v754
      %v756 = vrot.slane %v594, 1
      %v757 = vsel %vm682, %v754, %v756
      %v758 = vrot.slane %v595, 1
      %v759 = vrot.slane %v596, 1
      %v760 = vsel %vm682, %v758, %v759
      %v761 = vrot.slane %v597, 1
      %v762 = vsel %vm682, %v759, %v761
      %v763 = vrot.slane %v598, 1
      %v764 = vrot.slane %v599, 1
      %v765 = vsel %vm682, %v763, %v764
      %v766 = vrot.slane %v600, 1
      %v767 = vsel %vm682, %v764, %v766
      %v768 = vrot.slane %v601, 1
      %v769 = vrot.slane %v602, 1
      %v770 = vsel %vm682, %v768, %v769
      %v771 = vrot.slane %v603, 1
      %v772 = vsel %vm682, %v769, %v771
      %v773 = vrot.slane %v604, 1
      %v774 = vrot.slane %v605, 1
      %v775 = vsel %vm682, %v773, %v774
      %v776 = vrot.slane %v606, 1
      %v777 = vsel %vm682, %v774, %v776
      %v778 = vrot.slane %v607, 1
      %v779 = vrot.slane %v608, 1
      %v780 = vsel %vm682, %v778, %v779
      %v781 = vrot.slane %v609, 1
      %v782 = vsel %vm682, %v779, %v781
      %v783 = vrot.slane %v610, 1
      %v784 = vrot.slane %v611, 1
      %v785 = vsel %vm682, %v783, %v784
      %v786 = vrot.slane %v612, 1
      %v787 = vsel %vm682, %v784, %v786
      %v788 = vrot.slane %v613, 1
      %v789 = vrot.slane %v614, 1
      %v790 = vsel %vm682, %v788, %v789
      %v791 = vrot.slane %v615, 1
      %v792 = vsel %vm682, %v789, %v791
      %vm837 = vcmask 1045504
      %v838 = vrot.slane %v550, 2
      %v839 = vrot.slane %v551, 2
      %v840 = vsel %vm837, %v838, %v839
      %v841 = vrot.slane %v553, 2
      %v842 = vrot.slane %v554, 2
      %v843 = vsel %vm837, %v841, %v842
      %v844 = vrot.slane %v556, 2
      %v845 = vrot.slane %v557, 2
      %v846 = vsel %vm837, %v844, %v845
      %v847 = vrot.slane %v559, 2
      %v848 = vrot.slane %v560, 2
      %v849 = vsel %vm837, %v847, %v848
      %v850 = vrot.slane %v562, 2
      %v851 = vrot.slane %v563, 2
      %v852 = vsel %vm837, %v850, %v851
      %v853 = vrot.slane %v565, 2
      %v854 = vrot.slane %v566, 2
      %v855 = vsel %vm837, %v853, %v854
      %v856 = vrot.slane %v568, 2
      %v857 = vrot.slane %v569, 2
      %v858 = vsel %vm837, %v856, %v857
      %v859 = vrot.slane %v552, 2
      %v860 = vsel %vm837, %v839, %v859
      %v861 = vrot.slane %v555, 2
      %v862 = vsel %vm837, %v842, %v861
      %v863 = vrot.slane %v558, 2
      %v864 = vsel %vm837, %v845, %v863
      %v865 = vrot.slane %v561, 2
      %v866 = vsel %vm837, %v848, %v865
      %v867 = vrot.slane %v564, 2
      %v868 = vsel %vm837, %v851, %v867
      %v869 = vrot.slane %v567, 2
      %v870 = vsel %vm837, %v854, %v869
      %v871 = vrot.slane %v570, 2
      %v872 = vsel %vm837, %v857, %v871
      %v873 = vrot.slane %v571, 2
      %v874 = vrot.slane %v572, 2
      %v875 = vsel %vm837, %v873, %v874
      %v876 = vrot.slane %v573, 2
      %v877 = vsel %vm837, %v874, %v876
      %v878 = vrot.slane %v574, 2
      %v879 = vrot.slane %v575, 2
      %v880 = vsel %vm837, %v878, %v879
      %v881 = vrot.slane %v576, 2
      %v882 = vsel %vm837, %v879, %v881
      %v883 = vrot.slane %v577, 2
      %v884 = vrot.slane %v578, 2
      %v885 = vsel %vm837, %v883, %v884
      %v886 = vrot.slane %v579, 2
      %v887 = vsel %vm837, %v884, %v886
      %v888 = vrot.slane %v580, 2
      %v889 = vrot.slane %v581, 2
      %v890 = vsel %vm837, %v888, %v889
      %v891 = vrot.slane %v582, 2
      %v892 = vsel %vm837, %v889, %v891
      %v893 = vrot.slane %v583, 2
      %v894 = vrot.slane %v584, 2
      %v895 = vsel %vm837, %v893, %v894
      %v896 = vrot.slane %v585, 2
      %v897 = vsel %vm837, %v894, %v896
      %v898 = vrot.slane %v586, 2
      %v899 = vrot.slane %v587, 2
      %v900 = vsel %vm837, %v898, %v899
      %v901 = vrot.slane %v588, 2
      %v902 = vsel %vm837, %v899, %v901
      %v903 = vrot.slane %v589, 2
      %v904 = vrot.slane %v590, 2
      %v905 = vsel %vm837, %v903, %v904
      %v906 = vrot.slane %v591, 2
      %v907 = vsel %vm837, %v904, %v906
      %v908 = vrot.slane %v592, 2
      %v909 = vrot.slane %v593, 2
      %v910 = vsel %vm837, %v908, %v909
      %v911 = vrot.slane %v594, 2
      %v912 = vsel %vm837, %v909, %v911
      %v913 = vrot.slane %v595, 2
      %v914 = vrot.slane %v596, 2
      %v915 = vsel %vm837, %v913, %v914
      %v916 = vrot.slane %v597, 2
      %v917 = vsel %vm837, %v914, %v916
      %v918 = vrot.slane %v598, 2
      %v919 = vrot.slane %v599, 2
      %v920 = vsel %vm837, %v918, %v919
      %v921 = vrot.slane %v600, 2
      %v922 = vsel %vm837, %v919, %v921
      %v923 = vrot.slane %v601, 2
      %v924 = vrot.slane %v602, 2
      %v925 = vsel %vm837, %v923, %v924
      %v926 = vrot.slane %v603, 2
      %v927 = vsel %vm837, %v924, %v926
      %v928 = vrot.slane %v604, 2
      %v929 = vrot.slane %v605, 2
      %v930 = vsel %vm837, %v928, %v929
      %v931 = vrot.slane %v606, 2
      %v932 = vsel %vm837, %v929, %v931
      %v933 = vrot.slane %v607, 2
      %v934 = vrot.slane %v608, 2
      %v935 = vsel %vm837, %v933, %v934
      %v936 = vrot.slane %v609, 2
      %v937 = vsel %vm837, %v934, %v936
      %v938 = vrot.slane %v610, 2
      %v939 = vrot.slane %v611, 2
      %v940 = vsel %vm837, %v938, %v939
      %v941 = vrot.slane %v612, 2
      %v942 = vsel %vm837, %v939, %v941
      %v943 = vrot.slane %v613, 2
      %v944 = vrot.slane %v614, 2
      %v945 = vsel %vm837, %v943, %v944
      %v946 = vrot.slane %v615, 2
      %v947 = vsel %vm837, %v944, %v946
      %v995 = vcombine.high %v527, %v527
      %v996 = vcombine.high %v528, %v528
      %v997 = vcombine.high %v529, %v529
      %1001 = vmatprep.subr.mxu0 %v882
      %1002 = vmatpush1.xpose.msra.mxu0 %v877
      %1003 = vmatprep.subr.mxu0 %v880
      %1004 = vmatpush1.xpose.msra.mxu0 %v875
      %1005 = vmatprep.subr.mxu0 %v877
      %1006 = vmatpush1.xpose.msra.mxu0 %v872
      %1007 = vmatprep.subr.mxu0 %v875
      %1008 = vmatpush1.xpose.msra.mxu0 %v858
      %1009 = vmatprep.subr.mxu0 %v872
      %1010 = vmatpush1.xpose.msra.mxu0 %v870
      %1011 = vmatprep.subr.mxu0 %v858
      %1012 = vmatpush1.xpose.msra.mxu0 %v855
      %1013 = vmatprep.subr.mxu0 %v870
      %1014 = vmatpush1.xpose.msra.mxu0 %v868
      %1015 = vmatprep.subr.mxu0 %v855
      %1016 = vmatpush1.xpose.msra.mxu0 %v852
      %1017 = vmatprep.subr.mxu0 %v868
      %1018 = vmatpush1.xpose.msra.mxu0 %v866
      %1019 = vmatprep.subr.mxu0 %v852
      %1020 = vmatpush1.xpose.msra.mxu0 %v849
      %1021 = vmatprep.subr.mxu0 %v866
      %1022 = vmatpush1.xpose.msra.mxu0 %v864
      %1023 = vmatprep.subr.mxu0 %v849
      %1024 = vmatpush1.xpose.msra.mxu0 %v846
      %1025 = vmatprep.subr.mxu0 %v864
      %1026 = vmatpush1.xpose.msra.mxu0 %v862
      %1027 = vmatprep.subr.mxu0 %v846
      %1028 = vmatpush1.xpose.msra.mxu0 %v843
      %1029 = vmatprep.subr.mxu0 %v862
      %1030 = vmatpush1.xpose.msra.mxu0 %v860
      %1031 = vmatprep.subr.mxu0 %v843
      %1032 = vmatpush1.xpose.msra.mxu0 %v840
      %1033 = vmatprep.subr.mxu0 %v922
      %1034 = vmatpush2.xpose.msra.mxu0 %v917
      %1035 = vmatprep.subr.mxu0 %v920
      %1036 = vmatpush2.xpose.msra.mxu0 %v915
      %1037 = vmatprep.subr.mxu0 %v917
      %1038 = vmatpush2.xpose.msra.mxu0 %v912
      %1039 = vmatprep.subr.mxu0 %v915
      %1040 = vmatpush2.xpose.msra.mxu0 %v910
      %1041 = vmatprep.subr.mxu0 %v912
      %1042 = vmatpush2.xpose.msra.mxu0 %v907
      %1043 = vmatprep.subr.mxu0 %v910
      %1044 = vmatpush2.xpose.msra.mxu0 %v905
      %1045 = vmatprep.subr.mxu0 %v907
      %1046 = vmatpush2.xpose.msra.mxu0 %v902
      %1047 = vmatprep.subr.mxu0 %v905
      %1048 = vmatpush2.xpose.msra.mxu0 %v900
      %1049 = vmatprep.subr.mxu0 %v902
      %1050 = vmatpush2.xpose.msra.mxu0 %v897
      %1051 = vmatprep.subr.mxu0 %v900
      %1052 = vmatpush2.xpose.msra.mxu0 %v895
      %1053 = vmatprep.subr.mxu0 %v897
      %1054 = vmatpush2.xpose.msra.mxu0 %v892
      %1055 = vmatprep.subr.mxu0 %v895
      %1056 = vmatpush2.xpose.msra.mxu0 %v890
      %1057 = vmatprep.subr.mxu0 %v892
      %1058 = vmatpush2.xpose.msra.mxu0 %v887
      %1059 = vmatprep.subr.mxu0 %v890
      %1060 = vmatpush2.xpose.msra.mxu0 %v885
      %1061 = vmatprep.subr.mxu0 %v887
      %1062 = vmatpush2.xpose.msra.mxu0 %v882
      %1063 = vmatprep.subr.mxu0 %v885
      %1064 = vmatpush2.xpose.msra.mxu0 %v880
      %1065 = vmatprep.mubr.f32.mxu0 %v995
      %1066 = vmatmul.mubr.f32.gmra.mxu0 %v527
      %v1067 = vpop.f32.mrf.mxu0
      %v1068 = vadd.f32 0.0, %v1067
      %v1069 = vpop.f32.mrf.mxu0
      %v1070 = vadd.f32 0.0, %v1069
      %1071 = vdwg.mxu0
      %1072 = vmatprep.subr.mxu0 %v892
      %1073 = vmatpush1.xpose.msra.mxu0 %v887
      %1074 = vmatprep.subr.mxu0 %v890
      %1075 = vmatpush1.xpose.msra.mxu0 %v885
      %1076 = vmatprep.subr.mxu0 %v887
      %1077 = vmatpush1.xpose.msra.mxu0 %v882
      %1078 = vmatprep.subr.mxu0 %v885
      %1079 = vmatpush1.xpose.msra.mxu0 %v880
      %1080 = vmatprep.subr.mxu0 %v882
      %1081 = vmatpush1.xpose.msra.mxu0 %v877
      %1082 = vmatprep.subr.mxu0 %v880
      %1083 = vmatpush1.xpose.msra.mxu0 %v875
      %1084 = vmatprep.subr.mxu0 %v877
      %1085 = vmatpush1.xpose.msra.mxu0 %v872
      %1086 = vmatprep.subr.mxu0 %v875
      %1087 = vmatpush1.xpose.msra.mxu0 %v858
      %1088 = vmatprep.subr.mxu0 %v872
      %1089 = vmatpush1.xpose.msra.mxu0 %v870
      %1090 = vmatprep.subr.mxu0 %v858
      %1091 = vmatpush1.xpose.msra.mxu0 %v855
      %1092 = vmatprep.subr.mxu0 %v870
      %1093 = vmatpush1.xpose.msra.mxu0 %v868
      %1094 = vmatprep.subr.mxu0 %v855
      %1095 = vmatpush1.xpose.msra.mxu0 %v852
      %1096 = vmatprep.subr.mxu0 %v868
      %1097 = vmatpush1.xpose.msra.mxu0 %v866
      %1098 = vmatprep.subr.mxu0 %v852
      %1099 = vmatpush1.xpose.msra.mxu0 %v849
      %1100 = vmatprep.subr.mxu0 %v866
      %1101 = vmatpush1.xpose.msra.mxu0 %v864
      %1102 = vmatprep.subr.mxu0 %v849
      %1103 = vmatpush1.xpose.msra.mxu0 %v846
      %1104 = vmatprep.subr.mxu0 %v932
      %1105 = vmatpush2.xpose.msra.mxu0 %v927
      %1106 = vmatprep.subr.mxu0 %v930
      %1107 = vmatpush2.xpose.msra.mxu0 %v925
      %1108 = vmatprep.subr.mxu0 %v927
      %1109 = vmatpush2.xpose.msra.mxu0 %v922
      %1110 = vmatprep.subr.mxu0 %v925
      %1111 = vmatpush2.xpose.msra.mxu0 %v920
      %1112 = vmatprep.subr.mxu0 %v922
      %1113 = vmatpush2.xpose.msra.mxu0 %v917
      %1114 = vmatprep.subr.mxu0 %v920
      %1115 = vmatpush2.xpose.msra.mxu0 %v915
      %1116 = vmatprep.subr.mxu0 %v917
      %1117 = vmatpush2.xpose.msra.mxu0 %v912
      %1118 = vmatprep.subr.mxu0 %v915
      %1119 = vmatpush2.xpose.msra.mxu0 %v910
      %1120 = vmatprep.subr.mxu0 %v912
      %1121 = vmatpush2.xpose.msra.mxu0 %v907
      %1122 = vmatprep.subr.mxu0 %v910
      %1123 = vmatpush2.xpose.msra.mxu0 %v905
      %1124 = vmatprep.subr.mxu0 %v907
      %1125 = vmatpush2.xpose.msra.mxu0 %v902
      %1126 = vmatprep.subr.mxu0 %v905
      %1127 = vmatpush2.xpose.msra.mxu0 %v900
      %1128 = vmatprep.subr.mxu0 %v902
      %1129 = vmatpush2.xpose.msra.mxu0 %v897
      %1130 = vmatprep.subr.mxu0 %v900
      %1131 = vmatpush2.xpose.msra.mxu0 %v895
      %1132 = vmatprep.subr.mxu0 %v897
      %1133 = vmatpush2.xpose.msra.mxu0 %v892
      %1134 = vmatprep.subr.mxu0 %v895
      %1135 = vmatpush2.xpose.msra.mxu0 %v890
      %1136 = vmatprep.mubr.f32.mxu0 %v996
      %1137 = vmatmul.mubr.f32.gmra.mxu0 %v528
      %v1138 = vpop.f32.mrf.mxu0
      %v1139 = vadd.f32 %v1068, %v1138
      %v1140 = vpop.f32.mrf.mxu0
      %v1141 = vadd.f32 %v1070, %v1140
      %1142 = vdwg.mxu0
      %1143 = vmatprep.subr.mxu0 %v902
      %1144 = vmatpush1.xpose.msra.mxu0 %v897
      %1145 = vmatprep.subr.mxu0 %v900
      %1146 = vmatpush1.xpose.msra.mxu0 %v895
      %1147 = vmatprep.subr.mxu0 %v897
      %1148 = vmatpush1.xpose.msra.mxu0 %v892
      %1149 = vmatprep.subr.mxu0 %v895
      %1150 = vmatpush1.xpose.msra.mxu0 %v890
      %1151 = vmatprep.subr.mxu0 %v892
      %1152 = vmatpush1.xpose.msra.mxu0 %v887
      %1153 = vmatprep.subr.mxu0 %v890
      %1154 = vmatpush1.xpose.msra.mxu0 %v885
      %1155 = vmatprep.subr.mxu0 %v887
      %1156 = vmatpush1.xpose.msra.mxu0 %v882
      %1157 = vmatprep.subr.mxu0 %v885
      %1158 = vmatpush1.xpose.msra.mxu0 %v880
      %1159 = vmatprep.subr.mxu0 %v882
      %1160 = vmatpush1.xpose.msra.mxu0 %v877
      %1161 = vmatprep.subr.mxu0 %v880
      %1162 = vmatpush1.xpose.msra.mxu0 %v875
      %1163 = vmatprep.subr.mxu0 %v877
      %1164 = vmatpush1.xpose.msra.mxu0 %v872
      %1165 = vmatprep.subr.mxu0 %v875
      %1166 = vmatpush1.xpose.msra.mxu0 %v858
      %1167 = vmatprep.subr.mxu0 %v872
      %1168 = vmatpush1.xpose.msra.mxu0 %v870
      %1169 = vmatprep.subr.mxu0 %v858
      %1170 = vmatpush1.xpose.msra.mxu0 %v855
      %1171 = vmatprep.subr.mxu0 %v870
      %1172 = vmatpush1.xpose.msra.mxu0 %v868
      %1173 = vmatprep.subr.mxu0 %v855
      %1174 = vmatpush1.xpose.msra.mxu0 %v852
      %1175 = vmatprep.subr.mxu0 %v942
      %1176 = vmatpush2.xpose.msra.mxu0 %v937
      %1177 = vmatprep.subr.mxu0 %v940
      %1178 = vmatpush2.xpose.msra.mxu0 %v935
      %1179 = vmatprep.subr.mxu0 %v937
      %1180 = vmatpush2.xpose.msra.mxu0 %v932
      %1181 = vmatprep.subr.mxu0 %v935
      %1182 = vmatpush2.xpose.msra.mxu0 %v930
      %1183 = vmatprep.subr.mxu0 %v932
      %1184 = vmatpush2.xpose.msra.mxu0 %v927
      %1185 = vmatprep.subr.mxu0 %v930
      %1186 = vmatpush2.xpose.msra.mxu0 %v925
      %1187 = vmatprep.subr.mxu0 %v927
      %1188 = vmatpush2.xpose.msra.mxu0 %v922
      %1189 = vmatprep.subr.mxu0 %v925
      %1190 = vmatpush2.xpose.msra.mxu0 %v920
      %1191 = vmatprep.subr.mxu0 %v922
      %1192 = vmatpush2.xpose.msra.mxu0 %v917
      %1193 = vmatprep.subr.mxu0 %v920
      %1194 = vmatpush2.xpose.msra.mxu0 %v915
      %1195 = vmatprep.subr.mxu0 %v917
      %1196 = vmatpush2.xpose.msra.mxu0 %v912
      %1197 = vmatprep.subr.mxu0 %v915
      %1198 = vmatpush2.xpose.msra.mxu0 %v910
      %1199 = vmatprep.subr.mxu0 %v912
      %1200 = vmatpush2.xpose.msra.mxu0 %v907
      %1201 = vmatprep.subr.mxu0 %v910
      %1202 = vmatpush2.xpose.msra.mxu0 %v905
      %1203 = vmatprep.subr.mxu0 %v907
      %1204 = vmatpush2.xpose.msra.mxu0 %v902
      %1205 = vmatprep.subr.mxu0 %v905
      %1206 = vmatpush2.xpose.msra.mxu0 %v900
      %1207 = vmatprep.mubr.f32.mxu0 %v997
      %1208 = vmatmul.mubr.f32.gmra.mxu0 %v529
      %v1209 = vpop.f32.mrf.mxu0
      %v1210 = vadd.f32 %v1139, %v1209
      %v1211 = vpop.f32.mrf.mxu0
      %v1212 = vadd.f32 %v1141, %v1211
      %1213 = vdwg.mxu0
      %1214 = vmatprep.subr.mxu0 0.0
      %1215 = vmatpush1.xpose.msra.mxu0 %v907
      %1216 = vmatprep.subr.mxu0 0.0
      %1217 = vmatpush1.xpose.msra.mxu0 %v905
      %1218 = vmatprep.subr.mxu0 0.0
      %1219 = vmatpush1.xpose.msra.mxu0 %v902
      %1220 = vmatprep.subr.mxu0 0.0
      %1221 = vmatpush1.xpose.msra.mxu0 %v900
      %1222 = vmatprep.subr.mxu0 0.0
      %1223 = vmatpush1.xpose.msra.mxu0 %v897
      %1224 = vmatprep.subr.mxu0 0.0
      %1225 = vmatpush1.xpose.msra.mxu0 %v895
      %1226 = vmatprep.subr.mxu0 0.0
      %1227 = vmatpush1.xpose.msra.mxu0 %v892
      %1228 = vmatprep.subr.mxu0 0.0
      %1229 = vmatpush1.xpose.msra.mxu0 %v890
      %1230 = vmatprep.subr.mxu0 0.0
      %1231 = vmatpush1.xpose.msra.mxu0 %v887
      %1232 = vmatprep.subr.mxu0 0.0
      %1233 = vmatpush1.xpose.msra.mxu0 %v885
      %1234 = vmatprep.subr.mxu0 0.0
      %1235 = vmatpush1.xpose.msra.mxu0 %v882
      %1236 = vmatprep.subr.mxu0 0.0
      %1237 = vmatpush1.xpose.msra.mxu0 %v880
      %1238 = vmatprep.subr.mxu0 0.0
      %1239 = vmatpush1.xpose.msra.mxu0 %v877
      %1240 = vmatprep.subr.mxu0 0.0
      %1241 = vmatpush1.xpose.msra.mxu0 %v875
      %1242 = vmatprep.subr.mxu0 0.0
      %1243 = vmatpush1.xpose.msra.mxu0 %v872
      %1244 = vmatprep.subr.mxu0 0.0
      %1245 = vmatpush1.xpose.msra.mxu0 %v858
      %1246 = vmatprep.subr.mxu0 0.0
      %1247 = vmatpush2.xpose.msra.mxu0 %v947
      %1248 = vmatprep.subr.mxu0 0.0
      %1249 = vmatpush2.xpose.msra.mxu0 %v945
      %1250 = vmatprep.subr.mxu0 0.0
      %1251 = vmatpush2.xpose.msra.mxu0 %v942
      %1252 = vmatprep.subr.mxu0 0.0
      %1253 = vmatpush2.xpose.msra.mxu0 %v940
      %1254 = vmatprep.subr.mxu0 0.0
      %1255 = vmatpush2.xpose.msra.mxu0 %v937
      %1256 = vmatprep.subr.mxu0 0.0
      %1257 = vmatpush2.xpose.msra.mxu0 %v935
      %1258 = vmatprep.subr.mxu0 0.0
      %1259 = vmatpush2.xpose.msra.mxu0 %v932
      %1260 = vmatprep.subr.mxu0 0.0
      %1261 = vmatpush2.xpose.msra.mxu0 %v930
      %1262 = vmatprep.subr.mxu0 0.0
      %1263 = vmatpush2.xpose.msra.mxu0 %v927
      %1264 = vmatprep.subr.mxu0 0.0
      %1265 = vmatpush2.xpose.msra.mxu0 %v925
      %1266 = vmatprep.subr.mxu0 0.0
      %1267 = vmatpush2.xpose.msra.mxu0 %v922
      %1268 = vmatprep.subr.mxu0 0.0
      %1269 = vmatpush2.xpose.msra.mxu0 %v920
      %1270 = vmatprep.subr.mxu0 0.0
      %1271 = vmatpush2.xpose.msra.mxu0 %v917
      %1272 = vmatprep.subr.mxu0 0.0
      %1273 = vmatpush2.xpose.msra.mxu0 %v915
      %1274 = vmatprep.subr.mxu0 0.0
      %1275 = vmatpush2.xpose.msra.mxu0 %v912
      %1276 = vmatprep.subr.mxu0 0.0
      %1277 = vmatpush2.xpose.msra.mxu0 %v910
      %1278 = vmatprep.mubr.f32.mxu0 0.0
      %1279 = vmatmul.mubr.f32.gmra.mxu0 %v530
      %v1280 = vpop.f32.mrf.mxu0
      %v1281 = vadd.f32 %v1210, %v1280
      %v1282 = vpop.f32.mrf.mxu0
      %v1283 = vadd.f32 %v1212, %v1282
      %1284 = vdwg.mxu0
      %v1288 = vcombine.high %v519, %v519
      %v1289 = vcombine.high %v520, %v520
      %v1290 = vcombine.high %v521, %v521
      %1294 = vmatprep.subr.mxu0 %v575
      %1295 = vmatpush1.xpose.msra.mxu0 %v572
      %1296 = vmatprep.subr.mxu0 %v574
      %1297 = vmatpush1.xpose.msra.mxu0 %v571
      %1298 = vmatprep.subr.mxu0 %v572
      %1299 = vmatpush1.xpose.msra.mxu0 %v569
      %1300 = vmatprep.subr.mxu0 %v571
      %1301 = vmatpush1.xpose.msra.mxu0 %v568
      %1302 = vmatprep.subr.mxu0 %v569
      %1303 = vmatpush1.xpose.msra.mxu0 %v566
      %1304 = vmatprep.subr.mxu0 %v568
      %1305 = vmatpush1.xpose.msra.mxu0 %v565
      %1306 = vmatprep.subr.mxu0 %v566
      %1307 = vmatpush1.xpose.msra.mxu0 %v563
      %1308 = vmatprep.subr.mxu0 %v565
      %1309 = vmatpush1.xpose.msra.mxu0 %v562
      %1310 = vmatprep.subr.mxu0 %v563
      %1311 = vmatpush1.xpose.msra.mxu0 %v560
      %1312 = vmatprep.subr.mxu0 %v562
      %1313 = vmatpush1.xpose.msra.mxu0 %v559
      %1314 = vmatprep.subr.mxu0 %v560
      %1315 = vmatpush1.xpose.msra.mxu0 %v557
      %1316 = vmatprep.subr.mxu0 %v559
      %1317 = vmatpush1.xpose.msra.mxu0 %v556
      %1318 = vmatprep.subr.mxu0 %v557
      %1319 = vmatpush1.xpose.msra.mxu0 %v554
      %1320 = vmatprep.subr.mxu0 %v556
      %1321 = vmatpush1.xpose.msra.mxu0 %v553
      %1322 = vmatprep.subr.mxu0 %v554
      %1323 = vmatpush1.xpose.msra.mxu0 %v551
      %1324 = vmatprep.subr.mxu0 %v553
      %1325 = vmatpush1.xpose.msra.mxu0 %v550
      %1326 = vmatprep.subr.mxu0 %v599
      %1327 = vmatpush2.xpose.msra.mxu0 %v596
      %1328 = vmatprep.subr.mxu0 %v598
      %1329 = vmatpush2.xpose.msra.mxu0 %v595
      %1330 = vmatprep.subr.mxu0 %v596
      %1331 = vmatpush2.xpose.msra.mxu0 %v593
      %1332 = vmatprep.subr.mxu0 %v595
      %1333 = vmatpush2.xpose.msra.mxu0 %v592
      %1334 = vmatprep.subr.mxu0 %v593
      %1335 = vmatpush2.xpose.msra.mxu0 %v590
      %1336 = vmatprep.subr.mxu0 %v592
      %1337 = vmatpush2.xpose.msra.mxu0 %v589
      %1338 = vmatprep.subr.mxu0 %v590
      %1339 = vmatpush2.xpose.msra.mxu0 %v587
      %1340 = vmatprep.subr.mxu0 %v589
      %1341 = vmatpush2.xpose.msra.mxu0 %v586
      %1342 = vmatprep.subr.mxu0 %v587
      %1343 = vmatpush2.xpose.msra.mxu0 %v584
      %1344 = vmatprep.subr.mxu0 %v586
      %1345 = vmatpush2.xpose.msra.mxu0 %v583
      %1346 = vmatprep.subr.mxu0 %v584
      %1347 = vmatpush2.xpose.msra.mxu0 %v581
      %1348 = vmatprep.subr.mxu0 %v583
      %1349 = vmatpush2.xpose.msra.mxu0 %v580
      %1350 = vmatprep.subr.mxu0 %v581
      %1351 = vmatpush2.xpose.msra.mxu0 %v578
      %1352 = vmatprep.subr.mxu0 %v580
      %1353 = vmatpush2.xpose.msra.mxu0 %v577
      %1354 = vmatprep.subr.mxu0 %v578
      %1355 = vmatpush2.xpose.msra.mxu0 %v575
      %1356 = vmatprep.subr.mxu0 %v577
      %1357 = vmatpush2.xpose.msra.mxu0 %v574
      %1358 = vmatprep.mubr.f32.mxu0 %v1288
      %1359 = vmatmul.mubr.f32.gmra.mxu0 %v519
      %v1360 = vpop.f32.mrf.mxu0
      %v1361 = vadd.f32 %v1281, %v1360
      %v1362 = vpop.f32.mrf.mxu0
      %v1363 = vadd.f32 %v1283, %v1362
      %1364 = vdwg.mxu0
      %1365 = vmatprep.subr.mxu0 %v581
      %1366 = vmatpush1.xpose.msra.mxu0 %v578
      %1367 = vmatprep.subr.mxu0 %v580
      %1368 = vmatpush1.xpose.msra.mxu0 %v577
      %1369 = vmatprep.subr.mxu0 %v578
      %1370 = vmatpush1.xpose.msra.mxu0 %v575
      %1371 = vmatprep.subr.mxu0 %v577
      %1372 = vmatpush1.xpose.msra.mxu0 %v574
      %1373 = vmatprep.subr.mxu0 %v575
      %1374 = vmatpush1.xpose.msra.mxu0 %v572
      %1375 = vmatprep.subr.mxu0 %v574
      %1376 = vmatpush1.xpose.msra.mxu0 %v571
      %1377 = vmatprep.subr.mxu0 %v572
      %1378 = vmatpush1.xpose.msra.mxu0 %v569
      %1379 = vmatprep.subr.mxu0 %v571
      %1380 = vmatpush1.xpose.msra.mxu0 %v568
      %1381 = vmatprep.subr.mxu0 %v569
      %1382 = vmatpush1.xpose.msra.mxu0 %v566
      %1383 = vmatprep.subr.mxu0 %v568
      %1384 = vmatpush1.xpose.msra.mxu0 %v565
      %1385 = vmatprep.subr.mxu0 %v566
      %1386 = vmatpush1.xpose.msra.mxu0 %v563
      %1387 = vmatprep.subr.mxu0 %v565
      %1388 = vmatpush1.xpose.msra.mxu0 %v562
      %1389 = vmatprep.subr.mxu0 %v563
      %1390 = vmatpush1.xpose.msra.mxu0 %v560
      %1391 = vmatprep.subr.mxu0 %v562
      %1392 = vmatpush1.xpose.msra.mxu0 %v559
      %1393 = vmatprep.subr.mxu0 %v560
      %1394 = vmatpush1.xpose.msra.mxu0 %v557
      %1395 = vmatprep.subr.mxu0 %v559
      %1396 = vmatpush1.xpose.msra.mxu0 %v556
      %1397 = vmatprep.subr.mxu0 %v605
      %1398 = vmatpush2.xpose.msra.mxu0 %v602
      %1399 = vmatprep.subr.mxu0 %v604
      %1400 = vmatpush2.xpose.msra.mxu0 %v601
      %1401 = vmatprep.subr.mxu0 %v602
      %1402 = vmatpush2.xpose.msra.mxu0 %v599
      %1403 = vmatprep.subr.mxu0 %v601
      %1404 = vmatpush2.xpose.msra.mxu0 %v598
      %1405 = vmatprep.subr.mxu0 %v599
      %1406 = vmatpush2.xpose.msra.mxu0 %v596
      %1407 = vmatprep.subr.mxu0 %v598
      %1408 = vmatpush2.xpose.msra.mxu0 %v595
      %1409 = vmatprep.subr.mxu0 %v596
      %1410 = vmatpush2.xpose.msra.mxu0 %v593
      %1411 = vmatprep.subr.mxu0 %v595
      %1412 = vmatpush2.xpose.msra.mxu0 %v592
      %1413 = vmatprep.subr.mxu0 %v593
      %1414 = vmatpush2.xpose.msra.mxu0 %v590
      %1415 = vmatprep.subr.mxu0 %v592
      %1416 = vmatpush2.xpose.msra.mxu0 %v589
      %1417 = vmatprep.subr.mxu0 %v590
      %1418 = vmatpush2.xpose.msra.mxu0 %v587
      %1419 = vmatprep.subr.mxu0 %v589
      %1420 = vmatpush2.xpose.msra.mxu0 %v586
      %1421 = vmatprep.subr.mxu0 %v587
      %1422 = vmatpush2.xpose.msra.mxu0 %v584
      %1423 = vmatprep.subr.mxu0 %v586
      %1424 = vmatpush2.xpose.msra.mxu0 %v583
      %1425 = vmatprep.subr.mxu0 %v584
      %1426 = vmatpush2.xpose.msra.mxu0 %v581
      %1427 = vmatprep.subr.mxu0 %v583
      %1428 = vmatpush2.xpose.msra.mxu0 %v580
      %1429 = vmatprep.mubr.f32.mxu0 %v1289
      %1430 = vmatmul.mubr.f32.gmra.mxu0 %v520
      %v1431 = vpop.f32.mrf.mxu0
      %v1432 = vadd.f32 %v1361, %v1431
      %v1433 = vpop.f32.mrf.mxu0
      %v1434 = vadd.f32 %v1363, %v1433
      %1435 = vdwg.mxu0
      %1436 = vmatprep.subr.mxu0 %v587
      %1437 = vmatpush1.xpose.msra.mxu0 %v584
      %1438 = vmatprep.subr.mxu0 %v586
      %1439 = vmatpush1.xpose.msra.mxu0 %v583
      %1440 = vmatprep.subr.mxu0 %v584
      %1441 = vmatpush1.xpose.msra.mxu0 %v581
      %1442 = vmatprep.subr.mxu0 %v583
      %1443 = vmatpush1.xpose.msra.mxu0 %v580
      %1444 = vmatprep.subr.mxu0 %v581
      %1445 = vmatpush1.xpose.msra.mxu0 %v578
      %1446 = vmatprep.subr.mxu0 %v580
      %1447 = vmatpush1.xpose.msra.mxu0 %v577
      %1448 = vmatprep.subr.mxu0 %v578
      %1449 = vmatpush1.xpose.msra.mxu0 %v575
      %1450 = vmatprep.subr.mxu0 %v577
      %1451 = vmatpush1.xpose.msra.mxu0 %v574
      %1452 = vmatprep.subr.mxu0 %v575
      %1453 = vmatpush1.xpose.msra.mxu0 %v572
      %1454 = vmatprep.subr.mxu0 %v574
      %1455 = vmatpush1.xpose.msra.mxu0 %v571
      %1456 = vmatprep.subr.mxu0 %v572
      %1457 = vmatpush1.xpose.msra.mxu0 %v569
      %1458 = vmatprep.subr.mxu0 %v571
      %1459 = vmatpush1.xpose.msra.mxu0 %v568
      %1460 = vmatprep.subr.mxu0 %v569
      %1461 = vmatpush1.xpose.msra.mxu0 %v566
      %1462 = vmatprep.subr.mxu0 %v568
      %1463 = vmatpush1.xpose.msra.mxu0 %v565
      %1464 = vmatprep.subr.mxu0 %v566
      %1465 = vmatpush1.xpose.msra.mxu0 %v563
      %1466 = vmatprep.subr.mxu0 %v565
      %1467 = vmatpush1.xpose.msra.mxu0 %v562
      %1468 = vmatprep.subr.mxu0 %v611
      %1469 = vmatpush2.xpose.msra.mxu0 %v608
      %1470 = vmatprep.subr.mxu0 %v610
      %1471 = vmatpush2.xpose.msra.mxu0 %v607
      %1472 = vmatprep.subr.mxu0 %v608
      %1473 = vmatpush2.xpose.msra.mxu0 %v605
      %1474 = vmatprep.subr.mxu0 %v607
      %1475 = vmatpush2.xpose.msra.mxu0 %v604
      %1476 = vmatprep.subr.mxu0 %v605
      %1477 = vmatpush2.xpose.msra.mxu0 %v602
      %1478 = vmatprep.subr.mxu0 %v604
      %1479 = vmatpush2.xpose.msra.mxu0 %v601
      %1480 = vmatprep.subr.mxu0 %v602
      %1481 = vmatpush2.xpose.msra.mxu0 %v599
      %1482 = vmatprep.subr.mxu0 %v601
      %1483 = vmatpush2.xpose.msra.mxu0 %v598
      %1484 = vmatprep.subr.mxu0 %v599
      %1485 = vmatpush2.xpose.msra.mxu0 %v596
      %1486 = vmatprep.subr.mxu0 %v598
      %1487 = vmatpush2.xpose.msra.mxu0 %v595
      %1488 = vmatprep.subr.mxu0 %v596
      %1489 = vmatpush2.xpose.msra.mxu0 %v593
      %1490 = vmatprep.subr.mxu0 %v595
      %1491 = vmatpush2.xpose.msra.mxu0 %v592
      %1492 = vmatprep.subr.mxu0 %v593
      %1493 = vmatpush2.xpose.msra.mxu0 %v590
      %1494 = vmatprep.subr.mxu0 %v592
      %1495 = vmatpush2.xpose.msra.mxu0 %v589
      %1496 = vmatprep.subr.mxu0 %v590
      %1497 = vmatpush2.xpose.msra.mxu0 %v587
      %1498 = vmatprep.subr.mxu0 %v589
      %1499 = vmatpush2.xpose.msra.mxu0 %v586
      %1500 = vmatprep.mubr.f32.mxu0 %v1290
      %1501 = vmatmul.mubr.f32.gmra.mxu0 %v521
      %v1502 = vpop.f32.mrf.mxu0
      %v1503 = vadd.f32 %v1432, %v1502
      %v1504 = vpop.f32.mrf.mxu0
      %v1505 = vadd.f32 %v1434, %v1504
      %1506 = vdwg.mxu0
      %1507 = vmatprep.subr.mxu0 0.0
      %1508 = vmatpush1.xpose.msra.mxu0 %v590
      %1509 = vmatprep.subr.mxu0 0.0
      %1510 = vmatpush1.xpose.msra.mxu0 %v589
      %1511 = vmatprep.subr.mxu0 0.0
      %1512 = vmatpush1.xpose.msra.mxu0 %v587
      %1513 = vmatprep.subr.mxu0 0.0
      %1514 = vmatpush1.xpose.msra.mxu0 %v586
      %1515 = vmatprep.subr.mxu0 0.0
      %1516 = vmatpush1.xpose.msra.mxu0 %v584
      %1517 = vmatprep.subr.mxu0 0.0
      %1518 = vmatpush1.xpose.msra.mxu0 %v583
      %1519 = vmatprep.subr.mxu0 0.0
      %1520 = vmatpush1.xpose.msra.mxu0 %v581
      %1521 = vmatprep.subr.mxu0 0.0
      %1522 = vmatpush1.xpose.msra.mxu0 %v580
      %1523 = vmatprep.subr.mxu0 0.0
      %1524 = vmatpush1.xpose.msra.mxu0 %v578
      %1525 = vmatprep.subr.mxu0 0.0
      %1526 = vmatpush1.xpose.msra.mxu0 %v577
      %1527 = vmatprep.subr.mxu0 0.0
      %1528 = vmatpush1.xpose.msra.mxu0 %v575
      %1529 = vmatprep.subr.mxu0 0.0
      %1530 = vmatpush1.xpose.msra.mxu0 %v574
      %1531 = vmatprep.subr.mxu0 0.0
      %1532 = vmatpush1.xpose.msra.mxu0 %v572
      %1533 = vmatprep.subr.mxu0 0.0
      %1534 = vmatpush1.xpose.msra.mxu0 %v571
      %1535 = vmatprep.subr.mxu0 0.0
      %1536 = vmatpush1.xpose.msra.mxu0 %v569
      %1537 = vmatprep.subr.mxu0 0.0
      %1538 = vmatpush1.xpose.msra.mxu0 %v568
      %1539 = vmatprep.subr.mxu0 0.0
      %1540 = vmatpush2.xpose.msra.mxu0 %v614
      %1541 = vmatprep.subr.mxu0 0.0
      %1542 = vmatpush2.xpose.msra.mxu0 %v613
      %1543 = vmatprep.subr.mxu0 0.0
      %1544 = vmatpush2.xpose.msra.mxu0 %v611
      %1545 = vmatprep.subr.mxu0 0.0
      %1546 = vmatpush2.xpose.msra.mxu0 %v610
      %1547 = vmatprep.subr.mxu0 0.0
      %1548 = vmatpush2.xpose.msra.mxu0 %v608
      %1549 = vmatprep.subr.mxu0 0.0
      %1550 = vmatpush2.xpose.msra.mxu0 %v607
      %1551 = vmatprep.subr.mxu0 0.0
      %1552 = vmatpush2.xpose.msra.mxu0 %v605
      %1553 = vmatprep.subr.mxu0 0.0
      %1554 = vmatpush2.xpose.msra.mxu0 %v604
      %1555 = vmatprep.subr.mxu0 0.0
      %1556 = vmatpush2.xpose.msra.mxu0 %v602
      %1557 = vmatprep.subr.mxu0 0.0
      %1558 = vmatpush2.xpose.msra.mxu0 %v601
      %1559 = vmatprep.subr.mxu0 0.0
      %1560 = vmatpush2.xpose.msra.mxu0 %v599
      %1561 = vmatprep.subr.mxu0 0.0
      %1562 = vmatpush2.xpose.msra.mxu0 %v598
      %1563 = vmatprep.subr.mxu0 0.0
      %1564 = vmatpush2.xpose.msra.mxu0 %v596
      %1565 = vmatprep.subr.mxu0 0.0
      %1566 = vmatpush2.xpose.msra.mxu0 %v595
      %1567 = vmatprep.subr.mxu0 0.0
      %1568 = vmatpush2.xpose.msra.mxu0 %v593
      %1569 = vmatprep.subr.mxu0 0.0
      %1570 = vmatpush2.xpose.msra.mxu0 %v592
      %1571 = vmatprep.mubr.f32.mxu0 0.0
      %1572 = vmatmul.mubr.f32.gmra.mxu0 %v522
      %v1573 = vpop.f32.mrf.mxu0
      %v1574 = vadd.f32 %v1503, %v1573
      %v1575 = vpop.f32.mrf.mxu0
      %v1576 = vadd.f32 %v1505, %v1575
      %1577 = vdwg.mxu0
      %vm1578 = vcmask 1044480
      %v1579 = vrot.slane %v550, 3
      %v1580 = vrot.slane %v551, 3
      %v1581 = vsel %vm1578, %v1579, %v1580
      %v1582 = vrot.slane %v553, 3
      %v1583 = vrot.slane %v554, 3
      %v1584 = vsel %vm1578, %v1582, %v1583
      %v1585 = vrot.slane %v556, 3
      %v1586 = vrot.slane %v557, 3
      %v1587 = vsel %vm1578, %v1585, %v1586
      %v1588 = vrot.slane %v559, 3
      %v1589 = vrot.slane %v560, 3
      %v1590 = vsel %vm1578, %v1588, %v1589
      %v1591 = vrot.slane %v562, 3
      %v1592 = vrot.slane %v563, 3
      %v1593 = vsel %vm1578, %v1591, %v1592
      %v1594 = vrot.slane %v565, 3
      %v1595 = vrot.slane %v566, 3
      %v1596 = vsel %vm1578, %v1594, %v1595
      %v1597 = vrot.slane %v568, 3
      %v1598 = vrot.slane %v569, 3
      %v1599 = vsel %vm1578, %v1597, %v1598
      %v1600 = vrot.slane %v552, 3
      %v1601 = vsel %vm1578, %v1580, %v1600
      %v1602 = vrot.slane %v555, 3
      %v1603 = vsel %vm1578, %v1583, %v1602
      %v1604 = vrot.slane %v558, 3
      %v1605 = vsel %vm1578, %v1586, %v1604
      %v1606 = vrot.slane %v561, 3
      %v1607 = vsel %vm1578, %v1589, %v1606
      %v1608 = vrot.slane %v564, 3
      %v1609 = vsel %vm1578, %v1592, %v1608
      %v1610 = vrot.slane %v567, 3
      %v1611 = vsel %vm1578, %v1595, %v1610
      %v1612 = vrot.slane %v570, 3
      %v1613 = vsel %vm1578, %v1598, %v1612
      %v1614 = vrot.slane %v571, 3
      %v1615 = vrot.slane %v572, 3
      %v1616 = vsel %vm1578, %v1614, %v1615
      %v1617 = vrot.slane %v573, 3
      %v1618 = vsel %vm1578, %v1615, %v1617
      %v1619 = vrot.slane %v574, 3
      %v1620 = vrot.slane %v575, 3
      %v1621 = vsel %vm1578, %v1619, %v1620
      %v1622 = vrot.slane %v576, 3
      %v1623 = vsel %vm1578, %v1620, %v1622
      %v1624 = vrot.slane %v577, 3
      %v1625 = vrot.slane %v578, 3
      %v1626 = vsel %vm1578, %v1624, %v1625
      %v1627 = vrot.slane %v579, 3
      %v1628 = vsel %vm1578, %v1625, %v1627
      %v1629 = vrot.slane %v580, 3
      %v1630 = vrot.slane %v581, 3
      %v1631 = vsel %vm1578, %v1629, %v1630
      %v1632 = vrot.slane %v582, 3
      %v1633 = vsel %vm1578, %v1630, %v1632
      %v1634 = vrot.slane %v583, 3
      %v1635 = vrot.slane %v584, 3
      %v1636 = vsel %vm1578, %v1634, %v1635
      %v1637 = vrot.slane %v585, 3
      %v1638 = vsel %vm1578, %v1635, %v1637
      %v1639 = vrot.slane %v586, 3
      %v1640 = vrot.slane %v587, 3
      %v1641 = vsel %vm1578, %v1639, %v1640
      %v1642 = vrot.slane %v588, 3
      %v1643 = vsel %vm1578, %v1640, %v1642
      %v1644 = vrot.slane %v589, 3
      %v1645 = vrot.slane %v590, 3
      %v1646 = vsel %vm1578, %v1644, %v1645
      %v1647 = vrot.slane %v591, 3
      %v1648 = vsel %vm1578, %v1645, %v1647
      %v1649 = vrot.slane %v592, 3
      %v1650 = vrot.slane %v593, 3
      %v1651 = vsel %vm1578, %v1649, %v1650
      %v1652 = vrot.slane %v594, 3
      %v1653 = vsel %vm1578, %v1650, %v1652
      %v1654 = vrot.slane %v595, 3
      %v1655 = vrot.slane %v596, 3
      %v1656 = vsel %vm1578, %v1654, %v1655
      %v1657 = vrot.slane %v597, 3
      %v1658 = vsel %vm1578, %v1655, %v1657
      %v1659 = vrot.slane %v598, 3
      %v1660 = vrot.slane %v599, 3
      %v1661 = vsel %vm1578, %v1659, %v1660
      %v1662 = vrot.slane %v600, 3
      %v1663 = vsel %vm1578, %v1660, %v1662
      %v1664 = vrot.slane %v601, 3
      %v1665 = vrot.slane %v602, 3
      %v1666 = vsel %vm1578, %v1664, %v1665
      %v1667 = vrot.slane %v603, 3
      %v1668 = vsel %vm1578, %v1665, %v1667
      %v1669 = vrot.slane %v604, 3
      %v1670 = vrot.slane %v605, 3
      %v1671 = vsel %vm1578, %v1669, %v1670
      %v1672 = vrot.slane %v606, 3
      %v1673 = vsel %vm1578, %v1670, %v1672
      %v1674 = vrot.slane %v607, 3
      %v1675 = vrot.slane %v608, 3
      %v1676 = vsel %vm1578, %v1674, %v1675
      %v1677 = vrot.slane %v609, 3
      %v1678 = vsel %vm1578, %v1675, %v1677
      %v1679 = vrot.slane %v610, 3
      %v1680 = vrot.slane %v611, 3
      %v1681 = vsel %vm1578, %v1679, %v1680
      %v1682 = vrot.slane %v612, 3
      %v1683 = vsel %vm1578, %v1680, %v1682
      %v1684 = vrot.slane %v613, 3
      %v1685 = vrot.slane %v614, 3
      %v1686 = vsel %vm1578, %v1684, %v1685
      %v1687 = vrot.slane %v615, 3
      %v1688 = vsel %vm1578, %v1685, %v1687
      %v1736 = vcombine.high %v531, %v531
      %v1737 = vcombine.high %v532, %v532
      %v1738 = vcombine.high %v533, %v533
      %1742 = vmatprep.subr.mxu0 %v1623
      %1743 = vmatpush1.xpose.msra.mxu0 %v1618
      %1744 = vmatprep.subr.mxu0 %v1621
      %1745 = vmatpush1.xpose.msra.mxu0 %v1616
      %1746 = vmatprep.subr.mxu0 %v1618
      %1747 = vmatpush1.xpose.msra.mxu0 %v1613
      %1748 = vmatprep.subr.mxu0 %v1616
      %1749 = vmatpush1.xpose.msra.mxu0 %v1599
      %1750 = vmatprep.subr.mxu0 %v1613
      %1751 = vmatpush1.xpose.msra.mxu0 %v1611
      %1752 = vmatprep.subr.mxu0 %v1599
      %1753 = vmatpush1.xpose.msra.mxu0 %v1596
      %1754 = vmatprep.subr.mxu0 %v1611
      %1755 = vmatpush1.xpose.msra.mxu0 %v1609
      %1756 = vmatprep.subr.mxu0 %v1596
      %1757 = vmatpush1.xpose.msra.mxu0 %v1593
      %1758 = vmatprep.subr.mxu0 %v1609
      %1759 = vmatpush1.xpose.msra.mxu0 %v1607
      %1760 = vmatprep.subr.mxu0 %v1593
      %1761 = vmatpush1.xpose.msra.mxu0 %v1590
      %1762 = vmatprep.subr.mxu0 %v1607
      %1763 = vmatpush1.xpose.msra.mxu0 %v1605
      %1764 = vmatprep.subr.mxu0 %v1590
      %1765 = vmatpush1.xpose.msra.mxu0 %v1587
      %1766 = vmatprep.subr.mxu0 %v1605
      %1767 = vmatpush1.xpose.msra.mxu0 %v1603
      %1768 = vmatprep.subr.mxu0 %v1587
      %1769 = vmatpush1.xpose.msra.mxu0 %v1584
      %1770 = vmatprep.subr.mxu0 %v1603
      %1771 = vmatpush1.xpose.msra.mxu0 %v1601
      %1772 = vmatprep.subr.mxu0 %v1584
      %1773 = vmatpush1.xpose.msra.mxu0 %v1581
      %1774 = vmatprep.subr.mxu0 %v1663
      %1775 = vmatpush2.xpose.msra.mxu0 %v1658
      %1776 = vmatprep.subr.mxu0 %v1661
      %1777 = vmatpush2.xpose.msra.mxu0 %v1656
      %1778 = vmatprep.subr.mxu0 %v1658
      %1779 = vmatpush2.xpose.msra.mxu0 %v1653
      %1780 = vmatprep.subr.mxu0 %v1656
      %1781 = vmatpush2.xpose.msra.mxu0 %v1651
      %1782 = vmatprep.subr.mxu0 %v1653
      %1783 = vmatpush2.xpose.msra.mxu0 %v1648
      %1784 = vmatprep.subr.mxu0 %v1651
      %1785 = vmatpush2.xpose.msra.mxu0 %v1646
      %1786 = vmatprep.subr.mxu0 %v1648
      %1787 = vmatpush2.xpose.msra.mxu0 %v1643
      %1788 = vmatprep.subr.mxu0 %v1646
      %1789 = vmatpush2.xpose.msra.mxu0 %v1641
      %1790 = vmatprep.subr.mxu0 %v1643
      %1791 = vmatpush2.xpose.msra.mxu0 %v1638
      %1792 = vmatprep.subr.mxu0 %v1641
      %1793 = vmatpush2.xpose.msra.mxu0 %v1636
      %1794 = vmatprep.subr.mxu0 %v1638
      %1795 = vmatpush2.xpose.msra.mxu0 %v1633
      %1796 = vmatprep.subr.mxu0 %v1636
      %1797 = vmatpush2.xpose.msra.mxu0 %v1631
      %1798 = vmatprep.subr.mxu0 %v1633
      %1799 = vmatpush2.xpose.msra.mxu0 %v1628
      %1800 = vmatprep.subr.mxu0 %v1631
      %1801 = vmatpush2.xpose.msra.mxu0 %v1626
      %1802 = vmatprep.subr.mxu0 %v1628
      %1803 = vmatpush2.xpose.msra.mxu0 %v1623
      %1804 = vmatprep.subr.mxu0 %v1626
      %1805 = vmatpush2.xpose.msra.mxu0 %v1621
      %1806 = vmatprep.mubr.f32.mxu0 %v1736
      %1807 = vmatmul.mubr.f32.gmra.mxu0 %v531
      %v1808 = vpop.f32.mrf.mxu0
      %v1809 = vadd.f32 0.0, %v1808
      %v1810 = vpop.f32.mrf.mxu0
      %v1811 = vadd.f32 0.0, %v1810
      %1812 = vdwg.mxu0
      %1813 = vmatprep.subr.mxu0 %v1633
      %1814 = vmatpush1.xpose.msra.mxu0 %v1628
      %1815 = vmatprep.subr.mxu0 %v1631
      %1816 = vmatpush1.xpose.msra.mxu0 %v1626
      %1817 = vmatprep.subr.mxu0 %v1628
      %1818 = vmatpush1.xpose.msra.mxu0 %v1623
      %1819 = vmatprep.subr.mxu0 %v1626
      %1820 = vmatpush1.xpose.msra.mxu0 %v1621
      %1821 = vmatprep.subr.mxu0 %v1623
      %1822 = vmatpush1.xpose.msra.mxu0 %v1618
      %1823 = vmatprep.subr.mxu0 %v1621
      %1824 = vmatpush1.xpose.msra.mxu0 %v1616
      %1825 = vmatprep.subr.mxu0 %v1618
      %1826 = vmatpush1.xpose.msra.mxu0 %v1613
      %1827 = vmatprep.subr.mxu0 %v1616
      %1828 = vmatpush1.xpose.msra.mxu0 %v1599
      %1829 = vmatprep.subr.mxu0 %v1613
      %1830 = vmatpush1.xpose.msra.mxu0 %v1611
      %1831 = vmatprep.subr.mxu0 %v1599
      %1832 = vmatpush1.xpose.msra.mxu0 %v1596
      %1833 = vmatprep.subr.mxu0 %v1611
      %1834 = vmatpush1.xpose.msra.mxu0 %v1609
      %1835 = vmatprep.subr.mxu0 %v1596
      %1836 = vmatpush1.xpose.msra.mxu0 %v1593
      %1837 = vmatprep.subr.mxu0 %v1609
      %1838 = vmatpush1.xpose.msra.mxu0 %v1607
      %1839 = vmatprep.subr.mxu0 %v1593
      %1840 = vmatpush1.xpose.msra.mxu0 %v1590
      %1841 = vmatprep.subr.mxu0 %v1607
      %1842 = vmatpush1.xpose.msra.mxu0 %v1605
      %1843 = vmatprep.subr.mxu0 %v1590
      %1844 = vmatpush1.xpose.msra.mxu0 %v1587
      %1845 = vmatprep.subr.mxu0 %v1673
      %1846 = vmatpush2.xpose.msra.mxu0 %v1668
      %1847 = vmatprep.subr.mxu0 %v1671
      %1848 = vmatpush2.xpose.msra.mxu0 %v1666
      %1849 = vmatprep.subr.mxu0 %v1668
      %1850 = vmatpush2.xpose.msra.mxu0 %v1663
      %1851 = vmatprep.subr.mxu0 %v1666
      %1852 = vmatpush2.xpose.msra.mxu0 %v1661
      %1853 = vmatprep.subr.mxu0 %v1663
      %1854 = vmatpush2.xpose.msra.mxu0 %v1658
      %1855 = vmatprep.subr.mxu0 %v1661
      %1856 = vmatpush2.xpose.msra.mxu0 %v1656
      %1857 = vmatprep.subr.mxu0 %v1658
      %1858 = vmatpush2.xpose.msra.mxu0 %v1653
      %1859 = vmatprep.subr.mxu0 %v1656
      %1860 = vmatpush2.xpose.msra.mxu0 %v1651
      %1861 = vmatprep.subr.mxu0 %v1653
      %1862 = vmatpush2.xpose.msra.mxu0 %v1648
      %1863 = vmatprep.subr.mxu0 %v1651
      %1864 = vmatpush2.xpose.msra.mxu0 %v1646
      %1865 = vmatprep.subr.mxu0 %v1648
      %1866 = vmatpush2.xpose.msra.mxu0 %v1643
      %1867 = vmatprep.subr.mxu0 %v1646
      %1868 = vmatpush2.xpose.msra.mxu0 %v1641
      %1869 = vmatprep.subr.mxu0 %v1643
      %1870 = vmatpush2.xpose.msra.mxu0 %v1638
      %1871 = vmatprep.subr.mxu0 %v1641
      %1872 = vmatpush2.xpose.msra.mxu0 %v1636
      %1873 = vmatprep.subr.mxu0 %v1638
      %1874 = vmatpush2.xpose.msra.mxu0 %v1633
      %1875 = vmatprep.subr.mxu0 %v1636
      %1876 = vmatpush2.xpose.msra.mxu0 %v1631
      %1877 = vmatprep.mubr.f32.mxu0 %v1737
      %1878 = vmatmul.mubr.f32.gmra.mxu0 %v532
      %v1879 = vpop.f32.mrf.mxu0
      %v1880 = vadd.f32 %v1809, %v1879
      %v1881 = vpop.f32.mrf.mxu0
      %v1882 = vadd.f32 %v1811, %v1881
      %1883 = vdwg.mxu0
      %1884 = vmatprep.subr.mxu0 %v1643
      %1885 = vmatpush1.xpose.msra.mxu0 %v1638
      %1886 = vmatprep.subr.mxu0 %v1641
      %1887 = vmatpush1.xpose.msra.mxu0 %v1636
      %1888 = vmatprep.subr.mxu0 %v1638
      %1889 = vmatpush1.xpose.msra.mxu0 %v1633
      %1890 = vmatprep.subr.mxu0 %v1636
      %1891 = vmatpush1.xpose.msra.mxu0 %v1631
      %1892 = vmatprep.subr.mxu0 %v1633
      %1893 = vmatpush1.xpose.msra.mxu0 %v1628
      %1894 = vmatprep.subr.mxu0 %v1631
      %1895 = vmatpush1.xpose.msra.mxu0 %v1626
      %1896 = vmatprep.subr.mxu0 %v1628
      %1897 = vmatpush1.xpose.msra.mxu0 %v1623
      %1898 = vmatprep.subr.mxu0 %v1626
      %1899 = vmatpush1.xpose.msra.mxu0 %v1621
      %1900 = vmatprep.subr.mxu0 %v1623
      %1901 = vmatpush1.xpose.msra.mxu0 %v1618
      %1902 = vmatprep.subr.mxu0 %v1621
      %1903 = vmatpush1.xpose.msra.mxu0 %v1616
      %1904 = vmatprep.subr.mxu0 %v1618
      %1905 = vmatpush1.xpose.msra.mxu0 %v1613
      %1906 = vmatprep.subr.mxu0 %v1616
      %1907 = vmatpush1.xpose.msra.mxu0 %v1599
      %1908 = vmatprep.subr.mxu0 %v1613
      %1909 = vmatpush1.xpose.msra.mxu0 %v1611
      %1910 = vmatprep.subr.mxu0 %v1599
      %1911 = vmatpush1.xpose.msra.mxu0 %v1596
      %1912 = vmatprep.subr.mxu0 %v1611
      %1913 = vmatpush1.xpose.msra.mxu0 %v1609
      %1914 = vmatprep.subr.mxu0 %v1596
      %1915 = vmatpush1.xpose.msra.mxu0 %v1593
      %1916 = vmatprep.subr.mxu0 %v1683
      %1917 = vmatpush2.xpose.msra.mxu0 %v1678
      %1918 = vmatprep.subr.mxu0 %v1681
      %1919 = vmatpush2.xpose.msra.mxu0 %v1676
      %1920 = vmatprep.subr.mxu0 %v1678
      %1921 = vmatpush2.xpose.msra.mxu0 %v1673
      %1922 = vmatprep.subr.mxu0 %v1676
      %1923 = vmatpush2.xpose.msra.mxu0 %v1671
      %1924 = vmatprep.subr.mxu0 %v1673
      %1925 = vmatpush2.xpose.msra.mxu0 %v1668
      %1926 = vmatprep.subr.mxu0 %v1671
      %1927 = vmatpush2.xpose.msra.mxu0 %v1666
      %1928 = vmatprep.subr.mxu0 %v1668
      %1929 = vmatpush2.xpose.msra.mxu0 %v1663
      %1930 = vmatprep.subr.mxu0 %v1666
      %1931 = vmatpush2.xpose.msra.mxu0 %v1661
      %1932 = vmatprep.subr.mxu0 %v1663
      %1933 = vmatpush2.xpose.msra.mxu0 %v1658
      %1934 = vmatprep.subr.mxu0 %v1661
      %1935 = vmatpush2.xpose.msra.mxu0 %v1656
      %1936 = vmatprep.subr.mxu0 %v1658
      %1937 = vmatpush2.xpose.msra.mxu0 %v1653
      %1938 = vmatprep.subr.mxu0 %v1656
      %1939 = vmatpush2.xpose.msra.mxu0 %v1651
      %1940 = vmatprep.subr.mxu0 %v1653
      %1941 = vmatpush2.xpose.msra.mxu0 %v1648
      %1942 = vmatprep.subr.mxu0 %v1651
      %1943 = vmatpush2.xpose.msra.mxu0 %v1646
      %1944 = vmatprep.subr.mxu0 %v1648
      %1945 = vmatpush2.xpose.msra.mxu0 %v1643
      %1946 = vmatprep.subr.mxu0 %v1646
      %1947 = vmatpush2.xpose.msra.mxu0 %v1641
      %1948 = vmatprep.mubr.f32.mxu0 %v1738
      %1949 = vmatmul.mubr.f32.gmra.mxu0 %v533
      %v1950 = vpop.f32.mrf.mxu0
      %v1951 = vadd.f32 %v1880, %v1950
      %v1952 = vpop.f32.mrf.mxu0
      %v1953 = vadd.f32 %v1882, %v1952
      %1954 = vdwg.mxu0
      %1955 = vmatprep.subr.mxu0 0.0
      %1956 = vmatpush1.xpose.msra.mxu0 %v1648
      %1957 = vmatprep.subr.mxu0 0.0
      %1958 = vmatpush1.xpose.msra.mxu0 %v1646
      %1959 = vmatprep.subr.mxu0 0.0
      %1960 = vmatpush1.xpose.msra.mxu0 %v1643
      %1961 = vmatprep.subr.mxu0 0.0
      %1962 = vmatpush1.xpose.msra.mxu0 %v1641
      %1963 = vmatprep.subr.mxu0 0.0
      %1964 = vmatpush1.xpose.msra.mxu0 %v1638
      %1965 = vmatprep.subr.mxu0 0.0
      %1966 = vmatpush1.xpose.msra.mxu0 %v1636
      %1967 = vmatprep.subr.mxu0 0.0
      %1968 = vmatpush1.xpose.msra.mxu0 %v1633
      %1969 = vmatprep.subr.mxu0 0.0
      %1970 = vmatpush1.xpose.msra.mxu0 %v1631
      %1971 = vmatprep.subr.mxu0 0.0
      %1972 = vmatpush1.xpose.msra.mxu0 %v1628
      %1973 = vmatprep.subr.mxu0 0.0
      %1974 = vmatpush1.xpose.msra.mxu0 %v1626
      %1975 = vmatprep.subr.mxu0 0.0
      %1976 = vmatpush1.xpose.msra.mxu0 %v1623
      %1977 = vmatprep.subr.mxu0 0.0
      %1978 = vmatpush1.xpose.msra.mxu0 %v1621
      %1979 = vmatprep.subr.mxu0 0.0
      %1980 = vmatpush1.xpose.msra.mxu0 %v1618
      %1981 = vmatprep.subr.mxu0 0.0
      %1982 = vmatpush1.xpose.msra.mxu0 %v1616
      %1983 = vmatprep.subr.mxu0 0.0
      %1984 = vmatpush1.xpose.msra.mxu0 %v1613
      %1985 = vmatprep.subr.mxu0 0.0
      %1986 = vmatpush1.xpose.msra.mxu0 %v1599
      %1987 = vmatprep.subr.mxu0 0.0
      %1988 = vmatpush2.xpose.msra.mxu0 %v1688
      %1989 = vmatprep.subr.mxu0 0.0
      %1990 = vmatpush2.xpose.msra.mxu0 %v1686
      %1991 = vmatprep.subr.mxu0 0.0
      %1992 = vmatpush2.xpose.msra.mxu0 %v1683
      %1993 = vmatprep.subr.mxu0 0.0
      %1994 = vmatpush2.xpose.msra.mxu0 %v1681
      %1995 = vmatprep.subr.mxu0 0.0
      %1996 = vmatpush2.xpose.msra.mxu0 %v1678
      %1997 = vmatprep.subr.mxu0 0.0
      %1998 = vmatpush2.xpose.msra.mxu0 %v1676
      %1999 = vmatprep.subr.mxu0 0.0
      %2000 = vmatpush2.xpose.msra.mxu0 %v1673
      %2001 = vmatprep.subr.mxu0 0.0
      %2002 = vmatpush2.xpose.msra.mxu0 %v1671
      %2003 = vmatprep.subr.mxu0 0.0
      %2004 = vmatpush2.xpose.msra.mxu0 %v1668
      %2005 = vmatprep.subr.mxu0 0.0
      %2006 = vmatpush2.xpose.msra.mxu0 %v1666
      %2007 = vmatprep.subr.mxu0 0.0
      %2008 = vmatpush2.xpose.msra.mxu0 %v1663
      %2009 = vmatprep.subr.mxu0 0.0
      %2010 = vmatpush2.xpose.msra.mxu0 %v1661
      %2011 = vmatprep.subr.mxu0 0.0
      %2012 = vmatpush2.xpose.msra.mxu0 %v1658
      %2013 = vmatprep.subr.mxu0 0.0
      %2014 = vmatpush2.xpose.msra.mxu0 %v1656
      %2015 = vmatprep.subr.mxu0 0.0
      %2016 = vmatpush2.xpose.msra.mxu0 %v1653
      %2017 = vmatprep.subr.mxu0 0.0
      %2018 = vmatpush2.xpose.msra.mxu0 %v1651
      %2019 = vmatprep.mubr.f32.mxu0 0.0
      %2020 = vmatmul.mubr.f32.gmra.mxu0 %v534
      %v2021 = vpop.f32.mrf.mxu0
      %v2022 = vadd.f32 %v1951, %v2021
      %v2023 = vpop.f32.mrf.mxu0
      %v2024 = vadd.f32 %v1953, %v2023
      %2025 = vdwg.mxu0
      %v2029 = vcombine.high %v523, %v523
      %v2030 = vcombine.high %v524, %v524
      %v2031 = vcombine.high %v525, %v525
      %2035 = vmatprep.subr.mxu0 %v727
      %2036 = vmatpush1.xpose.msra.mxu0 %v722
      %2037 = vmatprep.subr.mxu0 %v725
      %2038 = vmatpush1.xpose.msra.mxu0 %v720
      %2039 = vmatprep.subr.mxu0 %v722
      %2040 = vmatpush1.xpose.msra.mxu0 %v717
      %2041 = vmatprep.subr.mxu0 %v720
      %2042 = vmatpush1.xpose.msra.mxu0 %v703
      %2043 = vmatprep.subr.mxu0 %v717
      %2044 = vmatpush1.xpose.msra.mxu0 %v715
      %2045 = vmatprep.subr.mxu0 %v703
      %2046 = vmatpush1.xpose.msra.mxu0 %v700
      %2047 = vmatprep.subr.mxu0 %v715
      %2048 = vmatpush1.xpose.msra.mxu0 %v713
      %2049 = vmatprep.subr.mxu0 %v700
      %2050 = vmatpush1.xpose.msra.mxu0 %v697
      %2051 = vmatprep.subr.mxu0 %v713
      %2052 = vmatpush1.xpose.msra.mxu0 %v711
      %2053 = vmatprep.subr.mxu0 %v697
      %2054 = vmatpush1.xpose.msra.mxu0 %v694
      %2055 = vmatprep.subr.mxu0 %v711
      %2056 = vmatpush1.xpose.msra.mxu0 %v709
      %2057 = vmatprep.subr.mxu0 %v694
      %2058 = vmatpush1.xpose.msra.mxu0 %v691
      %2059 = vmatprep.subr.mxu0 %v709
      %2060 = vmatpush1.xpose.msra.mxu0 %v707
      %2061 = vmatprep.subr.mxu0 %v691
      %2062 = vmatpush1.xpose.msra.mxu0 %v688
      %2063 = vmatprep.subr.mxu0 %v707
      %2064 = vmatpush1.xpose.msra.mxu0 %v705
      %2065 = vmatprep.subr.mxu0 %v688
      %2066 = vmatpush1.xpose.msra.mxu0 %v685
      %2067 = vmatprep.subr.mxu0 %v767
      %2068 = vmatpush2.xpose.msra.mxu0 %v762
      %2069 = vmatprep.subr.mxu0 %v765
      %2070 = vmatpush2.xpose.msra.mxu0 %v760
      %2071 = vmatprep.subr.mxu0 %v762
      %2072 = vmatpush2.xpose.msra.mxu0 %v757
      %2073 = vmatprep.subr.mxu0 %v760
      %2074 = vmatpush2.xpose.msra.mxu0 %v755
      %2075 = vmatprep.subr.mxu0 %v757
      %2076 = vmatpush2.xpose.msra.mxu0 %v752
      %2077 = vmatprep.subr.mxu0 %v755
      %2078 = vmatpush2.xpose.msra.mxu0 %v750
      %2079 = vmatprep.subr.mxu0 %v752
      %2080 = vmatpush2.xpose.msra.mxu0 %v747
      %2081 = vmatprep.subr.mxu0 %v750
      %2082 = vmatpush2.xpose.msra.mxu0 %v745
      %2083 = vmatprep.subr.mxu0 %v747
      %2084 = vmatpush2.xpose.msra.mxu0 %v742
      %2085 = vmatprep.subr.mxu0 %v745
      %2086 = vmatpush2.xpose.msra.mxu0 %v740
      %2087 = vmatprep.subr.mxu0 %v742
      %2088 = vmatpush2.xpose.msra.mxu0 %v737
      %2089 = vmatprep.subr.mxu0 %v740
      %2090 = vmatpush2.xpose.msra.mxu0 %v735
      %2091 = vmatprep.subr.mxu0 %v737
      %2092 = vmatpush2.xpose.msra.mxu0 %v732
      %2093 = vmatprep.subr.mxu0 %v735
      %2094 = vmatpush2.xpose.msra.mxu0 %v730
      %2095 = vmatprep.subr.mxu0 %v732
      %2096 = vmatpush2.xpose.msra.mxu0 %v727
      %2097 = vmatprep.subr.mxu0 %v730
      %2098 = vmatpush2.xpose.msra.mxu0 %v725
      %2099 = vmatprep.mubr.f32.mxu0 %v2029
      %2100 = vmatmul.mubr.f32.gmra.mxu0 %v523
      %v2101 = vpop.f32.mrf.mxu0
      %v2102 = vadd.f32 %v2022, %v2101
      %v2103 = vpop.f32.mrf.mxu0
      %v2104 = vadd.f32 %v2024, %v2103
      %2105 = vdwg.mxu0
      %2106 = vmatprep.subr.mxu0 %v737
      %2107 = vmatpush1.xpose.msra.mxu0 %v732
      %2108 = vmatprep.subr.mxu0 %v735
      %2109 = vmatpush1.xpose.msra.mxu0 %v730
      %2110 = vmatprep.subr.mxu0 %v732
      %2111 = vmatpush1.xpose.msra.mxu0 %v727
      %2112 = vmatprep.subr.mxu0 %v730
      %2113 = vmatpush1.xpose.msra.mxu0 %v725
      %2114 = vmatprep.subr.mxu0 %v727
      %2115 = vmatpush1.xpose.msra.mxu0 %v722
      %2116 = vmatprep.subr.mxu0 %v725
      %2117 = vmatpush1.xpose.msra.mxu0 %v720
      %2118 = vmatprep.subr.mxu0 %v722
      %2119 = vmatpush1.xpose.msra.mxu0 %v717
      %2120 = vmatprep.subr.mxu0 %v720
      %2121 = vmatpush1.xpose.msra.mxu0 %v703
      %2122 = vmatprep.subr.mxu0 %v717
      %2123 = vmatpush1.xpose.msra.mxu0 %v715
      %2124 = vmatprep.subr.mxu0 %v703
      %2125 = vmatpush1.xpose.msra.mxu0 %v700
      %2126 = vmatprep.subr.mxu0 %v715
      %2127 = vmatpush1.xpose.msra.mxu0 %v713
      %2128 = vmatprep.subr.mxu0 %v700
      %2129 = vmatpush1.xpose.msra.mxu0 %v697
      %2130 = vmatprep.subr.mxu0 %v713
      %2131 = vmatpush1.xpose.msra.mxu0 %v711
      %2132 = vmatprep.subr.mxu0 %v697
      %2133 = vmatpush1.xpose.msra.mxu0 %v694
      %2134 = vmatprep.subr.mxu0 %v711
      %2135 = vmatpush1.xpose.msra.mxu0 %v709
      %2136 = vmatprep.subr.mxu0 %v694
      %2137 = vmatpush1.xpose.msra.mxu0 %v691
      %2138 = vmatprep.subr.mxu0 %v777
      %2139 = vmatpush2.xpose.msra.mxu0 %v772
      %2140 = vmatprep.subr.mxu0 %v775
      %2141 = vmatpush2.xpose.msra.mxu0 %v770
      %2142 = vmatprep.subr.mxu0 %v772
      %2143 = vmatpush2.xpose.msra.mxu0 %v767
      %2144 = vmatprep.subr.mxu0 %v770
      %2145 = vmatpush2.xpose.msra.mxu0 %v765
      %2146 = vmatprep.subr.mxu0 %v767
      %2147 = vmatpush2.xpose.msra.mxu0 %v762
      %2148 = vmatprep.subr.mxu0 %v765
      %2149 = vmatpush2.xpose.msra.mxu0 %v760
      %2150 = vmatprep.subr.mxu0 %v762
      %2151 = vmatpush2.xpose.msra.mxu0 %v757
      %2152 = vmatprep.subr.mxu0 %v760
      %2153 = vmatpush2.xpose.msra.mxu0 %v755
      %2154 = vmatprep.subr.mxu0 %v757
      %2155 = vmatpush2.xpose.msra.mxu0 %v752
      %2156 = vmatprep.subr.mxu0 %v755
      %2157 = vmatpush2.xpose.msra.mxu0 %v750
      %2158 = vmatprep.subr.mxu0 %v752
      %2159 = vmatpush2.xpose.msra.mxu0 %v747
      %2160 = vmatprep.subr.mxu0 %v750
      %2161 = vmatpush2.xpose.msra.mxu0 %v745
      %2162 = vmatprep.subr.mxu0 %v747
      %2163 = vmatpush2.xpose.msra.mxu0 %v742
      %2164 = vmatprep.subr.mxu0 %v745
      %2165 = vmatpush2.xpose.msra.mxu0 %v740
      %2166 = vmatprep.subr.mxu0 %v742
      %2167 = vmatpush2.xpose.msra.mxu0 %v737
      %2168 = vmatprep.subr.mxu0 %v740
      %2169 = vmatpush2.xpose.msra.mxu0 %v735
      %2170 = vmatprep.mubr.f32.mxu0 %v2030
      %2171 = vmatmul.mubr.f32.gmra.mxu0 %v524
      %v2172 = vpop.f32.mrf.mxu0
      %v2173 = vadd.f32 %v2102, %v2172
      %v2174 = vpop.f32.mrf.mxu0
      %v2175 = vadd.f32 %v2104, %v2174
      %2176 = vdwg.mxu0
      %2177 = vmatprep.subr.mxu0 %v747
      %2178 = vmatpush1.xpose.msra.mxu0 %v742
      %2179 = vmatprep.subr.mxu0 %v745
      %2180 = vmatpush1.xpose.msra.mxu0 %v740
      %2181 = vmatprep.subr.mxu0 %v742
      %2182 = vmatpush1.xpose.msra.mxu0 %v737
      %2183 = vmatprep.subr.mxu0 %v740
      %2184 = vmatpush1.xpose.msra.mxu0 %v735
      %2185 = vmatprep.subr.mxu0 %v737
      %2186 = vmatpush1.xpose.msra.mxu0 %v732
      %2187 = vmatprep.subr.mxu0 %v735
      %2188 = vmatpush1.xpose.msra.mxu0 %v730
      %2189 = vmatprep.subr.mxu0 %v732
      %2190 = vmatpush1.xpose.msra.mxu0 %v727
      %2191 = vmatprep.subr.mxu0 %v730
      %2192 = vmatpush1.xpose.msra.mxu0 %v725
      %2193 = vmatprep.subr.mxu0 %v727
      %2194 = vmatpush1.xpose.msra.mxu0 %v722
      %2195 = vmatprep.subr.mxu0 %v725
      %2196 = vmatpush1.xpose.msra.mxu0 %v720
      %2197 = vmatprep.subr.mxu0 %v722
      %2198 = vmatpush1.xpose.msra.mxu0 %v717
      %2199 = vmatprep.subr.mxu0 %v720
      %2200 = vmatpush1.xpose.msra.mxu0 %v703
      %2201 = vmatprep.subr.mxu0 %v717
      %2202 = vmatpush1.xpose.msra.mxu0 %v715
      %2203 = vmatprep.subr.mxu0 %v703
      %2204 = vmatpush1.xpose.msra.mxu0 %v700
      %2205 = vmatprep.subr.mxu0 %v715
      %2206 = vmatpush1.xpose.msra.mxu0 %v713
      %2207 = vmatprep.subr.mxu0 %v700
      %2208 = vmatpush1.xpose.msra.mxu0 %v697
      %2209 = vmatprep.subr.mxu0 %v787
      %2210 = vmatpush2.xpose.msra.mxu0 %v782
      %2211 = vmatprep.subr.mxu0 %v785
      %2212 = vmatpush2.xpose.msra.mxu0 %v780
      %2213 = vmatprep.subr.mxu0 %v782
      %2214 = vmatpush2.xpose.msra.mxu0 %v777
      %2215 = vmatprep.subr.mxu0 %v780
      %2216 = vmatpush2.xpose.msra.mxu0 %v775
      %2217 = vmatprep.subr.mxu0 %v777
      %2218 = vmatpush2.xpose.msra.mxu0 %v772
      %2219 = vmatprep.subr.mxu0 %v775
      %2220 = vmatpush2.xpose.msra.mxu0 %v770
      %2221 = vmatprep.subr.mxu0 %v772
      %2222 = vmatpush2.xpose.msra.mxu0 %v767
      %2223 = vmatprep.subr.mxu0 %v770
      %2224 = vmatpush2.xpose.msra.mxu0 %v765
      %2225 = vmatprep.subr.mxu0 %v767
      %2226 = vmatpush2.xpose.msra.mxu0 %v762
      %2227 = vmatprep.subr.mxu0 %v765
      %2228 = vmatpush2.xpose.msra.mxu0 %v760
      %2229 = vmatprep.subr.mxu0 %v762
      %2230 = vmatpush2.xpose.msra.mxu0 %v757
      %2231 = vmatprep.subr.mxu0 %v760
      %2232 = vmatpush2.xpose.msra.mxu0 %v755
      %2233 = vmatprep.subr.mxu0 %v757
      %2234 = vmatpush2.xpose.msra.mxu0 %v752
      %2235 = vmatprep.subr.mxu0 %v755
      %2236 = vmatpush2.xpose.msra.mxu0 %v750
      %2237 = vmatprep.subr.mxu0 %v752
      %2238 = vmatpush2.xpose.msra.mxu0 %v747
      %2239 = vmatprep.subr.mxu0 %v750
      %2240 = vmatpush2.xpose.msra.mxu0 %v745
      %2241 = vmatprep.mubr.f32.mxu0 %v2031
      %2242 = vmatmul.mubr.f32.gmra.mxu0 %v525
      %v2243 = vpop.f32.mrf.mxu0
      %v2244 = vadd.f32 %v2173, %v2243
      %v2245 = vpop.f32.mrf.mxu0
      %v2246 = vadd.f32 %v2175, %v2245
      %2247 = vdwg.mxu0
      %2248 = vmatprep.subr.mxu0 0.0
      %2249 = vmatpush1.xpose.msra.mxu0 %v752
      %2250 = vmatprep.subr.mxu0 0.0
      %2251 = vmatpush1.xpose.msra.mxu0 %v750
      %2252 = vmatprep.subr.mxu0 0.0
      %2253 = vmatpush1.xpose.msra.mxu0 %v747
      %2254 = vmatprep.subr.mxu0 0.0
      %2255 = vmatpush1.xpose.msra.mxu0 %v745
      %2256 = vmatprep.subr.mxu0 0.0
      %2257 = vmatpush1.xpose.msra.mxu0 %v742
      %2258 = vmatprep.subr.mxu0 0.0
      %2259 = vmatpush1.xpose.msra.mxu0 %v740
      %2260 = vmatprep.subr.mxu0 0.0
      %2261 = vmatpush1.xpose.msra.mxu0 %v737
      %2262 = vmatprep.subr.mxu0 0.0
      %2263 = vmatpush1.xpose.msra.mxu0 %v735
      %2264 = vmatprep.subr.mxu0 0.0
      %2265 = vmatpush1.xpose.msra.mxu0 %v732
      %2266 = vmatprep.subr.mxu0 0.0
      %2267 = vmatpush1.xpose.msra.mxu0 %v730
      %2268 = vmatprep.subr.mxu0 0.0
      %2269 = vmatpush1.xpose.msra.mxu0 %v727
      %2270 = vmatprep.subr.mxu0 0.0
      %2271 = vmatpush1.xpose.msra.mxu0 %v725
      %2272 = vmatprep.subr.mxu0 0.0
      %2273 = vmatpush1.xpose.msra.mxu0 %v722
      %2274 = vmatprep.subr.mxu0 0.0
      %2275 = vmatpush1.xpose.msra.mxu0 %v720
      %2276 = vmatprep.subr.mxu0 0.0
      %2277 = vmatpush1.xpose.msra.mxu0 %v717
      %2278 = vmatprep.subr.mxu0 0.0
      %2279 = vmatpush1.xpose.msra.mxu0 %v703
      %2280 = vmatprep.subr.mxu0 0.0
      %2281 = vmatpush2.xpose.msra.mxu0 %v792
      %2282 = vmatprep.subr.mxu0 0.0
      %2283 = vmatpush2.xpose.msra.mxu0 %v790
      %2284 = vmatprep.subr.mxu0 0.0
      %2285 = vmatpush2.xpose.msra.mxu0 %v787
      %2286 = vmatprep.subr.mxu0 0.0
      %2287 = vmatpush2.xpose.msra.mxu0 %v785
      %2288 = vmatprep.subr.mxu0 0.0
      %2289 = vmatpush2.xpose.msra.mxu0 %v782
      %2290 = vmatprep.subr.mxu0 0.0
      %2291 = vmatpush2.xpose.msra.mxu0 %v780
      %2292 = vmatprep.subr.mxu0 0.0
      %2293 = vmatpush2.xpose.msra.mxu0 %v777
      %2294 = vmatprep.subr.mxu0 0.0
      %2295 = vmatpush2.xpose.msra.mxu0 %v775
      %2296 = vmatprep.subr.mxu0 0.0
      %2297 = vmatpush2.xpose.msra.mxu0 %v772
      %2298 = vmatprep.subr.mxu0 0.0
      %2299 = vmatpush2.xpose.msra.mxu0 %v770
      %2300 = vmatprep.subr.mxu0 0.0
      %2301 = vmatpush2.xpose.msra.mxu0 %v767
      %2302 = vmatprep.subr.mxu0 0.0
      %2303 = vmatpush2.xpose.msra.mxu0 %v765
      %2304 = vmatprep.subr.mxu0 0.0
      %2305 = vmatpush2.xpose.msra.mxu0 %v762
      %2306 = vmatprep.subr.mxu0 0.0
      %2307 = vmatpush2.xpose.msra.mxu0 %v760
      %2308 = vmatprep.subr.mxu0 0.0
      %2309 = vmatpush2.xpose.msra.mxu0 %v757
      %2310 = vmatprep.subr.mxu0 0.0
      %2311 = vmatpush2.xpose.msra.mxu0 %v755
      %2312 = vmatprep.mubr.f32.mxu0 0.0
      %2313 = vmatmul.mubr.f32.gmra.mxu0 %v526
      %v2314 = vpop.f32.mrf.mxu0
      %v2315 = vadd.f32 %v2244, %v2314
      %v2316 = vpop.f32.mrf.mxu0
      %v2317 = vadd.f32 %v2246, %v2316
      %2318 = vdwg.mxu0
      %vm2319 = vcmask 1043456
      %v2320 = vrot.slane %v550, 4
      %v2321 = vrot.slane %v551, 4
      %v2322 = vsel %vm2319, %v2320, %v2321
      %v2323 = vrot.slane %v553, 4
      %v2324 = vrot.slane %v554, 4
      %v2325 = vsel %vm2319, %v2323, %v2324
      %v2326 = vrot.slane %v556, 4
      %v2327 = vrot.slane %v557, 4
      %v2328 = vsel %vm2319, %v2326, %v2327
      %v2329 = vrot.slane %v559, 4
      %v2330 = vrot.slane %v560, 4
      %v2331 = vsel %vm2319, %v2329, %v2330
      %v2332 = vrot.slane %v562, 4
      %v2333 = vrot.slane %v563, 4
      %v2334 = vsel %vm2319, %v2332, %v2333
      %v2335 = vrot.slane %v565, 4
      %v2336 = vrot.slane %v566, 4
      %v2337 = vsel %vm2319, %v2335, %v2336
      %v2338 = vrot.slane %v568, 4
      %v2339 = vrot.slane %v569, 4
      %v2340 = vsel %vm2319, %v2338, %v2339
      %v2341 = vrot.slane %v552, 4
      %v2342 = vsel %vm2319, %v2321, %v2341
      %v2343 = vrot.slane %v555, 4
      %v2344 = vsel %vm2319, %v2324, %v2343
      %v2345 = vrot.slane %v558, 4
      %v2346 = vsel %vm2319, %v2327, %v2345
      %v2347 = vrot.slane %v561, 4
      %v2348 = vsel %vm2319, %v2330, %v2347
      %v2349 = vrot.slane %v564, 4
      %v2350 = vsel %vm2319, %v2333, %v2349
      %v2351 = vrot.slane %v567, 4
      %v2352 = vsel %vm2319, %v2336, %v2351
      %v2353 = vrot.slane %v570, 4
      %v2354 = vsel %vm2319, %v2339, %v2353
      %v2355 = vrot.slane %v571, 4
      %v2356 = vrot.slane %v572, 4
      %v2357 = vsel %vm2319, %v2355, %v2356
      %v2358 = vrot.slane %v573, 4
      %v2359 = vsel %vm2319, %v2356, %v2358
      %v2360 = vrot.slane %v574, 4
      %v2361 = vrot.slane %v575, 4
      %v2362 = vsel %vm2319, %v2360, %v2361
      %v2363 = vrot.slane %v576, 4
      %v2364 = vsel %vm2319, %v2361, %v2363
      %v2365 = vrot.slane %v577, 4
      %v2366 = vrot.slane %v578, 4
      %v2367 = vsel %vm2319, %v2365, %v2366
      %v2368 = vrot.slane %v579, 4
      %v2369 = vsel %vm2319, %v2366, %v2368
      %v2370 = vrot.slane %v580, 4
      %v2371 = vrot.slane %v581, 4
      %v2372 = vsel %vm2319, %v2370, %v2371
      %v2373 = vrot.slane %v582, 4
      %v2374 = vsel %vm2319, %v2371, %v2373
      %v2375 = vrot.slane %v583, 4
      %v2376 = vrot.slane %v584, 4
      %v2377 = vsel %vm2319, %v2375, %v2376
      %v2378 = vrot.slane %v585, 4
      %v2379 = vsel %vm2319, %v2376, %v2378
      %v2380 = vrot.slane %v586, 4
      %v2381 = vrot.slane %v587, 4
      %v2382 = vsel %vm2319, %v2380, %v2381
      %v2383 = vrot.slane %v588, 4
      %v2384 = vsel %vm2319, %v2381, %v2383
      %v2385 = vrot.slane %v589, 4
      %v2386 = vrot.slane %v590, 4
      %v2387 = vsel %vm2319, %v2385, %v2386
      %v2388 = vrot.slane %v591, 4
      %v2389 = vsel %vm2319, %v2386, %v2388
      %v2390 = vrot.slane %v592, 4
      %v2391 = vrot.slane %v593, 4
      %v2392 = vsel %vm2319, %v2390, %v2391
      %v2393 = vrot.slane %v594, 4
      %v2394 = vsel %vm2319, %v2391, %v2393
      %v2395 = vrot.slane %v595, 4
      %v2396 = vrot.slane %v596, 4
      %v2397 = vsel %vm2319, %v2395, %v2396
      %v2398 = vrot.slane %v597, 4
      %v2399 = vsel %vm2319, %v2396, %v2398
      %v2400 = vrot.slane %v598, 4
      %v2401 = vrot.slane %v599, 4
      %v2402 = vsel %vm2319, %v2400, %v2401
      %v2403 = vrot.slane %v600, 4
      %v2404 = vsel %vm2319, %v2401, %v2403
      %v2405 = vrot.slane %v601, 4
      %v2406 = vrot.slane %v602, 4
      %v2407 = vsel %vm2319, %v2405, %v2406
      %v2408 = vrot.slane %v603, 4
      %v2409 = vsel %vm2319, %v2406, %v2408
      %v2410 = vrot.slane %v604, 4
      %v2411 = vrot.slane %v605, 4
      %v2412 = vsel %vm2319, %v2410, %v2411
      %v2413 = vrot.slane %v606, 4
      %v2414 = vsel %vm2319, %v2411, %v2413
      %v2415 = vrot.slane %v607, 4
      %v2416 = vrot.slane %v608, 4
      %v2417 = vsel %vm2319, %v2415, %v2416
      %v2418 = vrot.slane %v609, 4
      %v2419 = vsel %vm2319, %v2416, %v2418
      %v2420 = vrot.slane %v610, 4
      %v2421 = vrot.slane %v611, 4
      %v2422 = vsel %vm2319, %v2420, %v2421
      %v2423 = vrot.slane %v612, 4
      %v2424 = vsel %vm2319, %v2421, %v2423
      %v2425 = vrot.slane %v613, 4
      %v2426 = vrot.slane %v614, 4
      %v2427 = vsel %vm2319, %v2425, %v2426
      %v2428 = vrot.slane %v615, 4
      %v2429 = vsel %vm2319, %v2426, %v2428
      %v2477 = vcombine.high %v535, %v535
      %v2478 = vcombine.high %v536, %v536
      %v2479 = vcombine.high %v537, %v537
      %2483 = vmatprep.subr.mxu0 %v2364
      %2484 = vmatpush1.xpose.msra.mxu0 %v2359
      %2485 = vmatprep.subr.mxu0 %v2362
      %2486 = vmatpush1.xpose.msra.mxu0 %v2357
      %2487 = vmatprep.subr.mxu0 %v2359
      %2488 = vmatpush1.xpose.msra.mxu0 %v2354
      %2489 = vmatprep.subr.mxu0 %v2357
      %2490 = vmatpush1.xpose.msra.mxu0 %v2340
      %2491 = vmatprep.subr.mxu0 %v2354
      %2492 = vmatpush1.xpose.msra.mxu0 %v2352
      %2493 = vmatprep.subr.mxu0 %v2340
      %2494 = vmatpush1.xpose.msra.mxu0 %v2337
      %2495 = vmatprep.subr.mxu0 %v2352
      %2496 = vmatpush1.xpose.msra.mxu0 %v2350
      %2497 = vmatprep.subr.mxu0 %v2337
      %2498 = vmatpush1.xpose.msra.mxu0 %v2334
      %2499 = vmatprep.subr.mxu0 %v2350
      %2500 = vmatpush1.xpose.msra.mxu0 %v2348
      %2501 = vmatprep.subr.mxu0 %v2334
      %2502 = vmatpush1.xpose.msra.mxu0 %v2331
      %2503 = vmatprep.subr.mxu0 %v2348
      %2504 = vmatpush1.xpose.msra.mxu0 %v2346
      %2505 = vmatprep.subr.mxu0 %v2331
      %2506 = vmatpush1.xpose.msra.mxu0 %v2328
      %2507 = vmatprep.subr.mxu0 %v2346
      %2508 = vmatpush1.xpose.msra.mxu0 %v2344
      %2509 = vmatprep.subr.mxu0 %v2328
      %2510 = vmatpush1.xpose.msra.mxu0 %v2325
      %2511 = vmatprep.subr.mxu0 %v2344
      %2512 = vmatpush1.xpose.msra.mxu0 %v2342
      %2513 = vmatprep.subr.mxu0 %v2325
      %2514 = vmatpush1.xpose.msra.mxu0 %v2322
      %2515 = vmatprep.subr.mxu0 %v2404
      %2516 = vmatpush2.xpose.msra.mxu0 %v2399
      %2517 = vmatprep.subr.mxu0 %v2402
      %2518 = vmatpush2.xpose.msra.mxu0 %v2397
      %2519 = vmatprep.subr.mxu0 %v2399
      %2520 = vmatpush2.xpose.msra.mxu0 %v2394
      %2521 = vmatprep.subr.mxu0 %v2397
      %2522 = vmatpush2.xpose.msra.mxu0 %v2392
      %2523 = vmatprep.subr.mxu0 %v2394
      %2524 = vmatpush2.xpose.msra.mxu0 %v2389
      %2525 = vmatprep.subr.mxu0 %v2392
      %2526 = vmatpush2.xpose.msra.mxu0 %v2387
      %2527 = vmatprep.subr.mxu0 %v2389
      %2528 = vmatpush2.xpose.msra.mxu0 %v2384
      %2529 = vmatprep.subr.mxu0 %v2387
      %2530 = vmatpush2.xpose.msra.mxu0 %v2382
      %2531 = vmatprep.subr.mxu0 %v2384
      %2532 = vmatpush2.xpose.msra.mxu0 %v2379
      %2533 = vmatprep.subr.mxu0 %v2382
      %2534 = vmatpush2.xpose.msra.mxu0 %v2377
      %2535 = vmatprep.subr.mxu0 %v2379
      %2536 = vmatpush2.xpose.msra.mxu0 %v2374
      %2537 = vmatprep.subr.mxu0 %v2377
      %2538 = vmatpush2.xpose.msra.mxu0 %v2372
      %2539 = vmatprep.subr.mxu0 %v2374
      %2540 = vmatpush2.xpose.msra.mxu0 %v2369
      %2541 = vmatprep.subr.mxu0 %v2372
      %2542 = vmatpush2.xpose.msra.mxu0 %v2367
      %2543 = vmatprep.subr.mxu0 %v2369
      %2544 = vmatpush2.xpose.msra.mxu0 %v2364
      %2545 = vmatprep.subr.mxu0 %v2367
      %2546 = vmatpush2.xpose.msra.mxu0 %v2362
      %2547 = vmatprep.mubr.f32.mxu0 %v2477
      %2548 = vmatmul.mubr.f32.gmra.mxu0 %v535
      %v2549 = vpop.f32.mrf.mxu0
      %v2550 = vadd.f32 0.0, %v2549
      %v2551 = vpop.f32.mrf.mxu0
      %v2552 = vadd.f32 0.0, %v2551
      %2553 = vdwg.mxu0
      %2554 = vmatprep.subr.mxu0 %v2374
      %2555 = vmatpush1.xpose.msra.mxu0 %v2369
      %2556 = vmatprep.subr.mxu0 %v2372
      %2557 = vmatpush1.xpose.msra.mxu0 %v2367
      %2558 = vmatprep.subr.mxu0 %v2369
      %2559 = vmatpush1.xpose.msra.mxu0 %v2364
      %2560 = vmatprep.subr.mxu0 %v2367
      %2561 = vmatpush1.xpose.msra.mxu0 %v2362
      %2562 = vmatprep.subr.mxu0 %v2364
      %2563 = vmatpush1.xpose.msra.mxu0 %v2359
      %2564 = vmatprep.subr.mxu0 %v2362
      %2565 = vmatpush1.xpose.msra.mxu0 %v2357
      %2566 = vmatprep.subr.mxu0 %v2359
      %2567 = vmatpush1.xpose.msra.mxu0 %v2354
      %2568 = vmatprep.subr.mxu0 %v2357
      %2569 = vmatpush1.xpose.msra.mxu0 %v2340
      %2570 = vmatprep.subr.mxu0 %v2354
      %2571 = vmatpush1.xpose.msra.mxu0 %v2352
      %2572 = vmatprep.subr.mxu0 %v2340
      %2573 = vmatpush1.xpose.msra.mxu0 %v2337
      %2574 = vmatprep.subr.mxu0 %v2352
      %2575 = vmatpush1.xpose.msra.mxu0 %v2350
      %2576 = vmatprep.subr.mxu0 %v2337
      %2577 = vmatpush1.xpose.msra.mxu0 %v2334
      %2578 = vmatprep.subr.mxu0 %v2350
      %2579 = vmatpush1.xpose.msra.mxu0 %v2348
      %2580 = vmatprep.subr.mxu0 %v2334
      %2581 = vmatpush1.xpose.msra.mxu0 %v2331
      %2582 = vmatprep.subr.mxu0 %v2348
      %2583 = vmatpush1.xpose.msra.mxu0 %v2346
      %2584 = vmatprep.subr.mxu0 %v2331
      %2585 = vmatpush1.xpose.msra.mxu0 %v2328
      %2586 = vmatprep.subr.mxu0 %v2414
      %2587 = vmatpush2.xpose.msra.mxu0 %v2409
      %2588 = vmatprep.subr.mxu0 %v2412
      %2589 = vmatpush2.xpose.msra.mxu0 %v2407
      %2590 = vmatprep.subr.mxu0 %v2409
      %2591 = vmatpush2.xpose.msra.mxu0 %v2404
      %2592 = vmatprep.subr.mxu0 %v2407
      %2593 = vmatpush2.xpose.msra.mxu0 %v2402
      %2594 = vmatprep.subr.mxu0 %v2404
      %2595 = vmatpush2.xpose.msra.mxu0 %v2399
      %2596 = vmatprep.subr.mxu0 %v2402
      %2597 = vmatpush2.xpose.msra.mxu0 %v2397
      %2598 = vmatprep.subr.mxu0 %v2399
      %2599 = vmatpush2.xpose.msra.mxu0 %v2394
      %2600 = vmatprep.subr.mxu0 %v2397
      %2601 = vmatpush2.xpose.msra.mxu0 %v2392
      %2602 = vmatprep.subr.mxu0 %v2394
      %2603 = vmatpush2.xpose.msra.mxu0 %v2389
      %2604 = vmatprep.subr.mxu0 %v2392
      %2605 = vmatpush2.xpose.msra.mxu0 %v2387
      %2606 = vmatprep.subr.mxu0 %v2389
      %2607 = vmatpush2.xpose.msra.mxu0 %v2384
      %2608 = vmatprep.subr.mxu0 %v2387
      %2609 = vmatpush2.xpose.msra.mxu0 %v2382
      %2610 = vmatprep.subr.mxu0 %v2384
      %2611 = vmatpush2.xpose.msra.mxu0 %v2379
      %2612 = vmatprep.subr.mxu0 %v2382
      %2613 = vmatpush2.xpose.msra.mxu0 %v2377
      %2614 = vmatprep.subr.mxu0 %v2379
      %2615 = vmatpush2.xpose.msra.mxu0 %v2374
      %2616 = vmatprep.subr.mxu0 %v2377
      %2617 = vmatpush2.xpose.msra.mxu0 %v2372
      %2618 = vmatprep.mubr.f32.mxu0 %v2478
      %2619 = vmatmul.mubr.f32.gmra.mxu0 %v536
      %v2620 = vpop.f32.mrf.mxu0
      %v2621 = vadd.f32 %v2550, %v2620
      %v2622 = vpop.f32.mrf.mxu0
      %v2623 = vadd.f32 %v2552, %v2622
      %2624 = vdwg.mxu0
      %2625 = vmatprep.subr.mxu0 %v2384
      %2626 = vmatpush1.xpose.msra.mxu0 %v2379
      %2627 = vmatprep.subr.mxu0 %v2382
      %2628 = vmatpush1.xpose.msra.mxu0 %v2377
      %2629 = vmatprep.subr.mxu0 %v2379
      %2630 = vmatpush1.xpose.msra.mxu0 %v2374
      %2631 = vmatprep.subr.mxu0 %v2377
      %2632 = vmatpush1.xpose.msra.mxu0 %v2372
      %2633 = vmatprep.subr.mxu0 %v2374
      %2634 = vmatpush1.xpose.msra.mxu0 %v2369
      %2635 = vmatprep.subr.mxu0 %v2372
      %2636 = vmatpush1.xpose.msra.mxu0 %v2367
      %2637 = vmatprep.subr.mxu0 %v2369
      %2638 = vmatpush1.xpose.msra.mxu0 %v2364
      %2639 = vmatprep.subr.mxu0 %v2367
      %2640 = vmatpush1.xpose.msra.mxu0 %v2362
      %2641 = vmatprep.subr.mxu0 %v2364
      %2642 = vmatpush1.xpose.msra.mxu0 %v2359
      %2643 = vmatprep.subr.mxu0 %v2362
      %2644 = vmatpush1.xpose.msra.mxu0 %v2357
      %2645 = vmatprep.subr.mxu0 %v2359
      %2646 = vmatpush1.xpose.msra.mxu0 %v2354
      %2647 = vmatprep.subr.mxu0 %v2357
      %2648 = vmatpush1.xpose.msra.mxu0 %v2340
      %2649 = vmatprep.subr.mxu0 %v2354
      %2650 = vmatpush1.xpose.msra.mxu0 %v2352
      %2651 = vmatprep.subr.mxu0 %v2340
      %2652 = vmatpush1.xpose.msra.mxu0 %v2337
      %2653 = vmatprep.subr.mxu0 %v2352
      %2654 = vmatpush1.xpose.msra.mxu0 %v2350
      %2655 = vmatprep.subr.mxu0 %v2337
      %2656 = vmatpush1.xpose.msra.mxu0 %v2334
      %2657 = vmatprep.subr.mxu0 %v2424
      %2658 = vmatpush2.xpose.msra.mxu0 %v2419
      %2659 = vmatprep.subr.mxu0 %v2422
      %2660 = vmatpush2.xpose.msra.mxu0 %v2417
      %2661 = vmatprep.subr.mxu0 %v2419
      %2662 = vmatpush2.xpose.msra.mxu0 %v2414
      %2663 = vmatprep.subr.mxu0 %v2417
      %2664 = vmatpush2.xpose.msra.mxu0 %v2412
      %2665 = vmatprep.subr.mxu0 %v2414
      %2666 = vmatpush2.xpose.msra.mxu0 %v2409
      %2667 = vmatprep.subr.mxu0 %v2412
      %2668 = vmatpush2.xpose.msra.mxu0 %v2407
      %2669 = vmatprep.subr.mxu0 %v2409
      %2670 = vmatpush2.xpose.msra.mxu0 %v2404
      %2671 = vmatprep.subr.mxu0 %v2407
      %2672 = vmatpush2.xpose.msra.mxu0 %v2402
      %2673 = vmatprep.subr.mxu0 %v2404
      %2674 = vmatpush2.xpose.msra.mxu0 %v2399
      %2675 = vmatprep.subr.mxu0 %v2402
      %2676 = vmatpush2.xpose.msra.mxu0 %v2397
      %2677 = vmatprep.subr.mxu0 %v2399
      %2678 = vmatpush2.xpose.msra.mxu0 %v2394
      %2679 = vmatprep.subr.mxu0 %v2397
      %2680 = vmatpush2.xpose.msra.mxu0 %v2392
      %2681 = vmatprep.subr.mxu0 %v2394
      %2682 = vmatpush2.xpose.msra.mxu0 %v2389
      %2683 = vmatprep.subr.mxu0 %v2392
      %2684 = vmatpush2.xpose.msra.mxu0 %v2387
      %2685 = vmatprep.subr.mxu0 %v2389
      %2686 = vmatpush2.xpose.msra.mxu0 %v2384
      %2687 = vmatprep.subr.mxu0 %v2387
      %2688 = vmatpush2.xpose.msra.mxu0 %v2382
      %2689 = vmatprep.mubr.f32.mxu0 %v2479
      %2690 = vmatmul.mubr.f32.gmra.mxu0 %v537
      %v2691 = vpop.f32.mrf.mxu0
      %v2692 = vadd.f32 %v2621, %v2691
      %v2693 = vpop.f32.mrf.mxu0
      %v2694 = vadd.f32 %v2623, %v2693
      %2695 = vdwg.mxu0
      %2696 = vmatprep.subr.mxu0 0.0
      %2697 = vmatpush1.xpose.msra.mxu0 %v2389
      %2698 = vmatprep.subr.mxu0 0.0
      %2699 = vmatpush1.xpose.msra.mxu0 %v2387
      %2700 = vmatprep.subr.mxu0 0.0
      %2701 = vmatpush1.xpose.msra.mxu0 %v2384
      %2702 = vmatprep.subr.mxu0 0.0
      %2703 = vmatpush1.xpose.msra.mxu0 %v2382
      %2704 = vmatprep.subr.mxu0 0.0
      %2705 = vmatpush1.xpose.msra.mxu0 %v2379
      %2706 = vmatprep.subr.mxu0 0.0
      %2707 = vmatpush1.xpose.msra.mxu0 %v2377
      %2708 = vmatprep.subr.mxu0 0.0
      %2709 = vmatpush1.xpose.msra.mxu0 %v2374
      %2710 = vmatprep.subr.mxu0 0.0
      %2711 = vmatpush1.xpose.msra.mxu0 %v2372
      %2712 = vmatprep.subr.mxu0 0.0
      %2713 = vmatpush1.xpose.msra.mxu0 %v2369
      %2714 = vmatprep.subr.mxu0 0.0
      %2715 = vmatpush1.xpose.msra.mxu0 %v2367
      %2716 = vmatprep.subr.mxu0 0.0
      %2717 = vmatpush1.xpose.msra.mxu0 %v2364
      %2718 = vmatprep.subr.mxu0 0.0
      %2719 = vmatpush1.xpose.msra.mxu0 %v2362
      %2720 = vmatprep.subr.mxu0 0.0
      %2721 = vmatpush1.xpose.msra.mxu0 %v2359
      %2722 = vmatprep.subr.mxu0 0.0
      %2723 = vmatpush1.xpose.msra.mxu0 %v2357
      %2724 = vmatprep.subr.mxu0 0.0
      %2725 = vmatpush1.xpose.msra.mxu0 %v2354
      %2726 = vmatprep.subr.mxu0 0.0
      %2727 = vmatpush1.xpose.msra.mxu0 %v2340
      %2728 = vmatprep.subr.mxu0 0.0
      %2729 = vmatpush2.xpose.msra.mxu0 %v2429
      %2730 = vmatprep.subr.mxu0 0.0
      %2731 = vmatpush2.xpose.msra.mxu0 %v2427
      %2732 = vmatprep.subr.mxu0 0.0
      %2733 = vmatpush2.xpose.msra.mxu0 %v2424
      %2734 = vmatprep.subr.mxu0 0.0
      %2735 = vmatpush2.xpose.msra.mxu0 %v2422
      %2736 = vmatprep.subr.mxu0 0.0
      %2737 = vmatpush2.xpose.msra.mxu0 %v2419
      %2738 = vmatprep.subr.mxu0 0.0
      %2739 = vmatpush2.xpose.msra.mxu0 %v2417
      %2740 = vmatprep.subr.mxu0 0.0
      %2741 = vmatpush2.xpose.msra.mxu0 %v2414
      %2742 = vmatprep.subr.mxu0 0.0
      %2743 = vmatpush2.xpose.msra.mxu0 %v2412
      %2744 = vmatprep.subr.mxu0 0.0
      %2745 = vmatpush2.xpose.msra.mxu0 %v2409
      %2746 = vmatprep.subr.mxu0 0.0
      %2747 = vmatpush2.xpose.msra.mxu0 %v2407
      %2748 = vmatprep.subr.mxu0 0.0
      %2749 = vmatpush2.xpose.msra.mxu0 %v2404
      %2750 = vmatprep.subr.mxu0 0.0
      %2751 = vmatpush2.xpose.msra.mxu0 %v2402
      %2752 = vmatprep.subr.mxu0 0.0
      %2753 = vmatpush2.xpose.msra.mxu0 %v2399
      %2754 = vmatprep.subr.mxu0 0.0
      %2755 = vmatpush2.xpose.msra.mxu0 %v2397
      %2756 = vmatprep.subr.mxu0 0.0
      %2757 = vmatpush2.xpose.msra.mxu0 %v2394
      %2758 = vmatprep.subr.mxu0 0.0
      %2759 = vmatpush2.xpose.msra.mxu0 %v2392
      %2760 = vmatprep.mubr.f32.mxu0 0.0
      %2761 = vmatmul.mubr.f32.gmra.mxu0 %v538
      %v2762 = vpop.f32.mrf.mxu0
      %v2763 = vadd.f32 %v2692, %v2762
      %v2764 = vpop.f32.mrf.mxu0
      %v2765 = vadd.f32 %v2694, %v2764
      %2766 = vdwg.mxu0
      %v2767 = vadd.f32 %v1574, %v2763
      %v2768 = vadd.f32 %v1576, %v2765
      %vm2769 = vcmask 1042432
      %v2770 = vrot.slane %v550, 5
      %v2771 = vrot.slane %v551, 5
      %v2772 = vsel %vm2769, %v2770, %v2771
      %v2773 = vrot.slane %v553, 5
      %v2774 = vrot.slane %v554, 5
      %v2775 = vsel %vm2769, %v2773, %v2774
      %v2776 = vrot.slane %v556, 5
      %v2777 = vrot.slane %v557, 5
      %v2778 = vsel %vm2769, %v2776, %v2777
      %v2779 = vrot.slane %v559, 5
      %v2780 = vrot.slane %v560, 5
      %v2781 = vsel %vm2769, %v2779, %v2780
      %v2782 = vrot.slane %v562, 5
      %v2783 = vrot.slane %v563, 5
      %v2784 = vsel %vm2769, %v2782, %v2783
      %v2785 = vrot.slane %v565, 5
      %v2786 = vrot.slane %v566, 5
      %v2787 = vsel %vm2769, %v2785, %v2786
      %v2788 = vrot.slane %v568, 5
      %v2789 = vrot.slane %v569, 5
      %v2790 = vsel %vm2769, %v2788, %v2789
      %v2791 = vrot.slane %v552, 5
      %v2792 = vsel %vm2769, %v2771, %v2791
      %v2793 = vrot.slane %v555, 5
      %v2794 = vsel %vm2769, %v2774, %v2793
      %v2795 = vrot.slane %v558, 5
      %v2796 = vsel %vm2769, %v2777, %v2795
      %v2797 = vrot.slane %v561, 5
      %v2798 = vsel %vm2769, %v2780, %v2797
      %v2799 = vrot.slane %v564, 5
      %v2800 = vsel %vm2769, %v2783, %v2799
      %v2801 = vrot.slane %v567, 5
      %v2802 = vsel %vm2769, %v2786, %v2801
      %v2803 = vrot.slane %v570, 5
      %v2804 = vsel %vm2769, %v2789, %v2803
      %v2805 = vrot.slane %v571, 5
      %v2806 = vrot.slane %v572, 5
      %v2807 = vsel %vm2769, %v2805, %v2806
      %v2808 = vrot.slane %v573, 5
      %v2809 = vsel %vm2769, %v2806, %v2808
      %v2810 = vrot.slane %v574, 5
      %v2811 = vrot.slane %v575, 5
      %v2812 = vsel %vm2769, %v2810, %v2811
      %v2813 = vrot.slane %v576, 5
      %v2814 = vsel %vm2769, %v2811, %v2813
      %v2815 = vrot.slane %v577, 5
      %v2816 = vrot.slane %v578, 5
      %v2817 = vsel %vm2769, %v2815, %v2816
      %v2818 = vrot.slane %v579, 5
      %v2819 = vsel %vm2769, %v2816, %v2818
      %v2820 = vrot.slane %v580, 5
      %v2821 = vrot.slane %v581, 5
      %v2822 = vsel %vm2769, %v2820, %v2821
      %v2823 = vrot.slane %v582, 5
      %v2824 = vsel %vm2769, %v2821, %v2823
      %v2825 = vrot.slane %v583, 5
      %v2826 = vrot.slane %v584, 5
      %v2827 = vsel %vm2769, %v2825, %v2826
      %v2828 = vrot.slane %v585, 5
      %v2829 = vsel %vm2769, %v2826, %v2828
      %v2830 = vrot.slane %v586, 5
      %v2831 = vrot.slane %v587, 5
      %v2832 = vsel %vm2769, %v2830, %v2831
      %v2833 = vrot.slane %v588, 5
      %v2834 = vsel %vm2769, %v2831, %v2833
      %v2835 = vrot.slane %v589, 5
      %v2836 = vrot.slane %v590, 5
      %v2837 = vsel %vm2769, %v2835, %v2836
      %v2838 = vrot.slane %v591, 5
      %v2839 = vsel %vm2769, %v2836, %v2838
      %v2840 = vrot.slane %v592, 5
      %v2841 = vrot.slane %v593, 5
      %v2842 = vsel %vm2769, %v2840, %v2841
      %v2843 = vrot.slane %v594, 5
      %v2844 = vsel %vm2769, %v2841, %v2843
      %v2845 = vrot.slane %v595, 5
      %v2846 = vrot.slane %v596, 5
      %v2847 = vsel %vm2769, %v2845, %v2846
      %v2848 = vrot.slane %v597, 5
      %v2849 = vsel %vm2769, %v2846, %v2848
      %v2850 = vrot.slane %v598, 5
      %v2851 = vrot.slane %v599, 5
      %v2852 = vsel %vm2769, %v2850, %v2851
      %v2853 = vrot.slane %v600, 5
      %v2854 = vsel %vm2769, %v2851, %v2853
      %v2855 = vrot.slane %v601, 5
      %v2856 = vrot.slane %v602, 5
      %v2857 = vsel %vm2769, %v2855, %v2856
      %v2858 = vrot.slane %v603, 5
      %v2859 = vsel %vm2769, %v2856, %v2858
      %v2860 = vrot.slane %v604, 5
      %v2861 = vrot.slane %v605, 5
      %v2862 = vsel %vm2769, %v2860, %v2861
      %v2863 = vrot.slane %v606, 5
      %v2864 = vsel %vm2769, %v2861, %v2863
      %v2865 = vrot.slane %v607, 5
      %v2866 = vrot.slane %v608, 5
      %v2867 = vsel %vm2769, %v2865, %v2866
      %v2868 = vrot.slane %v609, 5
      %v2869 = vsel %vm2769, %v2866, %v2868
      %v2870 = vrot.slane %v610, 5
      %v2871 = vrot.slane %v611, 5
      %v2872 = vsel %vm2769, %v2870, %v2871
      %v2873 = vrot.slane %v612, 5
      %v2874 = vsel %vm2769, %v2871, %v2873
      %v2875 = vrot.slane %v613, 5
      %v2876 = vrot.slane %v614, 5
      %v2877 = vsel %vm2769, %v2875, %v2876
      %v2878 = vrot.slane %v615, 5
      %v2879 = vsel %vm2769, %v2876, %v2878
      %v2927 = vcombine.high %v539, %v539
      %v2928 = vcombine.high %v540, %v540
      %v2929 = vcombine.high %v541, %v541
      %2933 = vmatprep.subr.mxu0 %v2814
      %2934 = vmatpush1.xpose.msra.mxu0 %v2809
      %2935 = vmatprep.subr.mxu0 %v2812
      %2936 = vmatpush1.xpose.msra.mxu0 %v2807
      %2937 = vmatprep.subr.mxu0 %v2809
      %2938 = vmatpush1.xpose.msra.mxu0 %v2804
      %2939 = vmatprep.subr.mxu0 %v2807
      %2940 = vmatpush1.xpose.msra.mxu0 %v2790
      %2941 = vmatprep.subr.mxu0 %v2804
      %2942 = vmatpush1.xpose.msra.mxu0 %v2802
      %2943 = vmatprep.subr.mxu0 %v2790
      %2944 = vmatpush1.xpose.msra.mxu0 %v2787
      %2945 = vmatprep.subr.mxu0 %v2802
      %2946 = vmatpush1.xpose.msra.mxu0 %v2800
      %2947 = vmatprep.subr.mxu0 %v2787
      %2948 = vmatpush1.xpose.msra.mxu0 %v2784
      %2949 = vmatprep.subr.mxu0 %v2800
      %2950 = vmatpush1.xpose.msra.mxu0 %v2798
      %2951 = vmatprep.subr.mxu0 %v2784
      %2952 = vmatpush1.xpose.msra.mxu0 %v2781
      %2953 = vmatprep.subr.mxu0 %v2798
      %2954 = vmatpush1.xpose.msra.mxu0 %v2796
      %2955 = vmatprep.subr.mxu0 %v2781
      %2956 = vmatpush1.xpose.msra.mxu0 %v2778
      %2957 = vmatprep.subr.mxu0 %v2796
      %2958 = vmatpush1.xpose.msra.mxu0 %v2794
      %2959 = vmatprep.subr.mxu0 %v2778
      %2960 = vmatpush1.xpose.msra.mxu0 %v2775
      %2961 = vmatprep.subr.mxu0 %v2794
      %2962 = vmatpush1.xpose.msra.mxu0 %v2792
      %2963 = vmatprep.subr.mxu0 %v2775
      %2964 = vmatpush1.xpose.msra.mxu0 %v2772
      %2965 = vmatprep.subr.mxu0 %v2854
      %2966 = vmatpush2.xpose.msra.mxu0 %v2849
      %2967 = vmatprep.subr.mxu0 %v2852
      %2968 = vmatpush2.xpose.msra.mxu0 %v2847
      %2969 = vmatprep.subr.mxu0 %v2849
      %2970 = vmatpush2.xpose.msra.mxu0 %v2844
      %2971 = vmatprep.subr.mxu0 %v2847
      %2972 = vmatpush2.xpose.msra.mxu0 %v2842
      %2973 = vmatprep.subr.mxu0 %v2844
      %2974 = vmatpush2.xpose.msra.mxu0 %v2839
      %2975 = vmatprep.subr.mxu0 %v2842
      %2976 = vmatpush2.xpose.msra.mxu0 %v2837
      %2977 = vmatprep.subr.mxu0 %v2839
      %2978 = vmatpush2.xpose.msra.mxu0 %v2834
      %2979 = vmatprep.subr.mxu0 %v2837
      %2980 = vmatpush2.xpose.msra.mxu0 %v2832
      %2981 = vmatprep.subr.mxu0 %v2834
      %2982 = vmatpush2.xpose.msra.mxu0 %v2829
      %2983 = vmatprep.subr.mxu0 %v2832
      %2984 = vmatpush2.xpose.msra.mxu0 %v2827
      %2985 = vmatprep.subr.mxu0 %v2829
      %2986 = vmatpush2.xpose.msra.mxu0 %v2824
      %2987 = vmatprep.subr.mxu0 %v2827
      %2988 = vmatpush2.xpose.msra.mxu0 %v2822
      %2989 = vmatprep.subr.mxu0 %v2824
      %2990 = vmatpush2.xpose.msra.mxu0 %v2819
      %2991 = vmatprep.subr.mxu0 %v2822
      %2992 = vmatpush2.xpose.msra.mxu0 %v2817
      %2993 = vmatprep.subr.mxu0 %v2819
      %2994 = vmatpush2.xpose.msra.mxu0 %v2814
      %2995 = vmatprep.subr.mxu0 %v2817
      %2996 = vmatpush2.xpose.msra.mxu0 %v2812
      %2997 = vmatprep.mubr.f32.mxu0 %v2927
      %2998 = vmatmul.mubr.f32.gmra.mxu0 %v539
      %v2999 = vpop.f32.mrf.mxu0
      %v3000 = vadd.f32 0.0, %v2999
      %v3001 = vpop.f32.mrf.mxu0
      %v3002 = vadd.f32 0.0, %v3001
      %3003 = vdwg.mxu0
      %3004 = vmatprep.subr.mxu0 %v2824
      %3005 = vmatpush1.xpose.msra.mxu0 %v2819
      %3006 = vmatprep.subr.mxu0 %v2822
      %3007 = vmatpush1.xpose.msra.mxu0 %v2817
      %3008 = vmatprep.subr.mxu0 %v2819
      %3009 = vmatpush1.xpose.msra.mxu0 %v2814
      %3010 = vmatprep.subr.mxu0 %v2817
      %3011 = vmatpush1.xpose.msra.mxu0 %v2812
      %3012 = vmatprep.subr.mxu0 %v2814
      %3013 = vmatpush1.xpose.msra.mxu0 %v2809
      %3014 = vmatprep.subr.mxu0 %v2812
      %3015 = vmatpush1.xpose.msra.mxu0 %v2807
      %3016 = vmatprep.subr.mxu0 %v2809
      %3017 = vmatpush1.xpose.msra.mxu0 %v2804
      %3018 = vmatprep.subr.mxu0 %v2807
      %3019 = vmatpush1.xpose.msra.mxu0 %v2790
      %3020 = vmatprep.subr.mxu0 %v2804
      %3021 = vmatpush1.xpose.msra.mxu0 %v2802
      %3022 = vmatprep.subr.mxu0 %v2790
      %3023 = vmatpush1.xpose.msra.mxu0 %v2787
      %3024 = vmatprep.subr.mxu0 %v2802
      %3025 = vmatpush1.xpose.msra.mxu0 %v2800
      %3026 = vmatprep.subr.mxu0 %v2787
      %3027 = vmatpush1.xpose.msra.mxu0 %v2784
      %3028 = vmatprep.subr.mxu0 %v2800
      %3029 = vmatpush1.xpose.msra.mxu0 %v2798
      %3030 = vmatprep.subr.mxu0 %v2784
      %3031 = vmatpush1.xpose.msra.mxu0 %v2781
      %3032 = vmatprep.subr.mxu0 %v2798
      %3033 = vmatpush1.xpose.msra.mxu0 %v2796
      %3034 = vmatprep.subr.mxu0 %v2781
      %3035 = vmatpush1.xpose.msra.mxu0 %v2778
      %3036 = vmatprep.subr.mxu0 %v2864
      %3037 = vmatpush2.xpose.msra.mxu0 %v2859
      %3038 = vmatprep.subr.mxu0 %v2862
      %3039 = vmatpush2.xpose.msra.mxu0 %v2857
      %3040 = vmatprep.subr.mxu0 %v2859
      %3041 = vmatpush2.xpose.msra.mxu0 %v2854
      %3042 = vmatprep.subr.mxu0 %v2857
      %3043 = vmatpush2.xpose.msra.mxu0 %v2852
      %3044 = vmatprep.subr.mxu0 %v2854
      %3045 = vmatpush2.xpose.msra.mxu0 %v2849
      %3046 = vmatprep.subr.mxu0 %v2852
      %3047 = vmatpush2.xpose.msra.mxu0 %v2847
      %3048 = vmatprep.subr.mxu0 %v2849
      %3049 = vmatpush2.xpose.msra.mxu0 %v2844
      %3050 = vmatprep.subr.mxu0 %v2847
      %3051 = vmatpush2.xpose.msra.mxu0 %v2842
      %3052 = vmatprep.subr.mxu0 %v2844
      %3053 = vmatpush2.xpose.msra.mxu0 %v2839
      %3054 = vmatprep.subr.mxu0 %v2842
      %3055 = vmatpush2.xpose.msra.mxu0 %v2837
      %3056 = vmatprep.subr.mxu0 %v2839
      %3057 = vmatpush2.xpose.msra.mxu0 %v2834
      %3058 = vmatprep.subr.mxu0 %v2837
      %3059 = vmatpush2.xpose.msra.mxu0 %v2832
      %3060 = vmatprep.subr.mxu0 %v2834
      %3061 = vmatpush2.xpose.msra.mxu0 %v2829
      %3062 = vmatprep.subr.mxu0 %v2832
      %3063 = vmatpush2.xpose.msra.mxu0 %v2827
      %3064 = vmatprep.subr.mxu0 %v2829
      %3065 = vmatpush2.xpose.msra.mxu0 %v2824
      %3066 = vmatprep.subr.mxu0 %v2827
      %3067 = vmatpush2.xpose.msra.mxu0 %v2822
      %3068 = vmatprep.mubr.f32.mxu0 %v2928
      %3069 = vmatmul.mubr.f32.gmra.mxu0 %v540
      %v3070 = vpop.f32.mrf.mxu0
      %v3071 = vadd.f32 %v3000, %v3070
      %v3072 = vpop.f32.mrf.mxu0
      %v3073 = vadd.f32 %v3002, %v3072
      %3074 = vdwg.mxu0
      %3075 = vmatprep.subr.mxu0 %v2834
      %3076 = vmatpush1.xpose.msra.mxu0 %v2829
      %3077 = vmatprep.subr.mxu0 %v2832
      %3078 = vmatpush1.xpose.msra.mxu0 %v2827
      %3079 = vmatprep.subr.mxu0 %v2829
      %3080 = vmatpush1.xpose.msra.mxu0 %v2824
      %3081 = vmatprep.subr.mxu0 %v2827
      %3082 = vmatpush1.xpose.msra.mxu0 %v2822
      %3083 = vmatprep.subr.mxu0 %v2824
      %3084 = vmatpush1.xpose.msra.mxu0 %v2819
      %3085 = vmatprep.subr.mxu0 %v2822
      %3086 = vmatpush1.xpose.msra.mxu0 %v2817
      %3087 = vmatprep.subr.mxu0 %v2819
      %3088 = vmatpush1.xpose.msra.mxu0 %v2814
      %3089 = vmatprep.subr.mxu0 %v2817
      %3090 = vmatpush1.xpose.msra.mxu0 %v2812
      %3091 = vmatprep.subr.mxu0 %v2814
      %3092 = vmatpush1.xpose.msra.mxu0 %v2809
      %3093 = vmatprep.subr.mxu0 %v2812
      %3094 = vmatpush1.xpose.msra.mxu0 %v2807
      %3095 = vmatprep.subr.mxu0 %v2809
      %3096 = vmatpush1.xpose.msra.mxu0 %v2804
      %3097 = vmatprep.subr.mxu0 %v2807
      %3098 = vmatpush1.xpose.msra.mxu0 %v2790
      %3099 = vmatprep.subr.mxu0 %v2804
      %3100 = vmatpush1.xpose.msra.mxu0 %v2802
      %3101 = vmatprep.subr.mxu0 %v2790
      %3102 = vmatpush1.xpose.msra.mxu0 %v2787
      %3103 = vmatprep.subr.mxu0 %v2802
      %3104 = vmatpush1.xpose.msra.mxu0 %v2800
      %3105 = vmatprep.subr.mxu0 %v2787
      %3106 = vmatpush1.xpose.msra.mxu0 %v2784
      %3107 = vmatprep.subr.mxu0 %v2874
      %3108 = vmatpush2.xpose.msra.mxu0 %v2869
      %3109 = vmatprep.subr.mxu0 %v2872
      %3110 = vmatpush2.xpose.msra.mxu0 %v2867
      %3111 = vmatprep.subr.mxu0 %v2869
      %3112 = vmatpush2.xpose.msra.mxu0 %v2864
      %3113 = vmatprep.subr.mxu0 %v2867
      %3114 = vmatpush2.xpose.msra.mxu0 %v2862
      %3115 = vmatprep.subr.mxu0 %v2864
      %3116 = vmatpush2.xpose.msra.mxu0 %v2859
      %3117 = vmatprep.subr.mxu0 %v2862
      %3118 = vmatpush2.xpose.msra.mxu0 %v2857
      %3119 = vmatprep.subr.mxu0 %v2859
      %3120 = vmatpush2.xpose.msra.mxu0 %v2854
      %3121 = vmatprep.subr.mxu0 %v2857
      %3122 = vmatpush2.xpose.msra.mxu0 %v2852
      %3123 = vmatprep.subr.mxu0 %v2854
      %3124 = vmatpush2.xpose.msra.mxu0 %v2849
      %3125 = vmatprep.subr.mxu0 %v2852
      %3126 = vmatpush2.xpose.msra.mxu0 %v2847
      %3127 = vmatprep.subr.mxu0 %v2849
      %3128 = vmatpush2.xpose.msra.mxu0 %v2844
      %3129 = vmatprep.subr.mxu0 %v2847
      %3130 = vmatpush2.xpose.msra.mxu0 %v2842
      %3131 = vmatprep.subr.mxu0 %v2844
      %3132 = vmatpush2.xpose.msra.mxu0 %v2839
      %3133 = vmatprep.subr.mxu0 %v2842
      %3134 = vmatpush2.xpose.msra.mxu0 %v2837
      %3135 = vmatprep.subr.mxu0 %v2839
      %3136 = vmatpush2.xpose.msra.mxu0 %v2834
      %3137 = vmatprep.subr.mxu0 %v2837
      %3138 = vmatpush2.xpose.msra.mxu0 %v2832
      %3139 = vmatprep.mubr.f32.mxu0 %v2929
      %3140 = vmatmul.mubr.f32.gmra.mxu0 %v541
      %v3141 = vpop.f32.mrf.mxu0
      %v3142 = vadd.f32 %v3071, %v3141
      %v3143 = vpop.f32.mrf.mxu0
      %v3144 = vadd.f32 %v3073, %v3143
      %3145 = vdwg.mxu0
      %3146 = vmatprep.subr.mxu0 0.0
      %3147 = vmatpush1.xpose.msra.mxu0 %v2839
      %3148 = vmatprep.subr.mxu0 0.0
      %3149 = vmatpush1.xpose.msra.mxu0 %v2837
      %3150 = vmatprep.subr.mxu0 0.0
      %3151 = vmatpush1.xpose.msra.mxu0 %v2834
      %3152 = vmatprep.subr.mxu0 0.0
      %3153 = vmatpush1.xpose.msra.mxu0 %v2832
      %3154 = vmatprep.subr.mxu0 0.0
      %3155 = vmatpush1.xpose.msra.mxu0 %v2829
      %3156 = vmatprep.subr.mxu0 0.0
      %3157 = vmatpush1.xpose.msra.mxu0 %v2827
      %3158 = vmatprep.subr.mxu0 0.0
      %3159 = vmatpush1.xpose.msra.mxu0 %v2824
      %3160 = vmatprep.subr.mxu0 0.0
      %3161 = vmatpush1.xpose.msra.mxu0 %v2822
      %3162 = vmatprep.subr.mxu0 0.0
      %3163 = vmatpush1.xpose.msra.mxu0 %v2819
      %3164 = vmatprep.subr.mxu0 0.0
      %3165 = vmatpush1.xpose.msra.mxu0 %v2817
      %3166 = vmatprep.subr.mxu0 0.0
      %3167 = vmatpush1.xpose.msra.mxu0 %v2814
      %3168 = vmatprep.subr.mxu0 0.0
      %3169 = vmatpush1.xpose.msra.mxu0 %v2812
      %3170 = vmatprep.subr.mxu0 0.0
      %3171 = vmatpush1.xpose.msra.mxu0 %v2809
      %3172 = vmatprep.subr.mxu0 0.0
      %3173 = vmatpush1.xpose.msra.mxu0 %v2807
      %3174 = vmatprep.subr.mxu0 0.0
      %3175 = vmatpush1.xpose.msra.mxu0 %v2804
      %3176 = vmatprep.subr.mxu0 0.0
      %3177 = vmatpush1.xpose.msra.mxu0 %v2790
      %3178 = vmatprep.subr.mxu0 0.0
      %3179 = vmatpush2.xpose.msra.mxu0 %v2879
      %3180 = vmatprep.subr.mxu0 0.0
      %3181 = vmatpush2.xpose.msra.mxu0 %v2877
      %3182 = vmatprep.subr.mxu0 0.0
      %3183 = vmatpush2.xpose.msra.mxu0 %v2874
      %3184 = vmatprep.subr.mxu0 0.0
      %3185 = vmatpush2.xpose.msra.mxu0 %v2872
      %3186 = vmatprep.subr.mxu0 0.0
      %3187 = vmatpush2.xpose.msra.mxu0 %v2869
      %3188 = vmatprep.subr.mxu0 0.0
      %3189 = vmatpush2.xpose.msra.mxu0 %v2867
      %3190 = vmatprep.subr.mxu0 0.0
      %3191 = vmatpush2.xpose.msra.mxu0 %v2864
      %3192 = vmatprep.subr.mxu0 0.0
      %3193 = vmatpush2.xpose.msra.mxu0 %v2862
      %3194 = vmatprep.subr.mxu0 0.0
      %3195 = vmatpush2.xpose.msra.mxu0 %v2859
      %3196 = vmatprep.subr.mxu0 0.0
      %3197 = vmatpush2.xpose.msra.mxu0 %v2857
      %3198 = vmatprep.subr.mxu0 0.0
      %3199 = vmatpush2.xpose.msra.mxu0 %v2854
      %3200 = vmatprep.subr.mxu0 0.0
      %3201 = vmatpush2.xpose.msra.mxu0 %v2852
      %3202 = vmatprep.subr.mxu0 0.0
      %3203 = vmatpush2.xpose.msra.mxu0 %v2849
      %3204 = vmatprep.subr.mxu0 0.0
      %3205 = vmatpush2.xpose.msra.mxu0 %v2847
      %3206 = vmatprep.subr.mxu0 0.0
      %3207 = vmatpush2.xpose.msra.mxu0 %v2844
      %3208 = vmatprep.subr.mxu0 0.0
      %3209 = vmatpush2.xpose.msra.mxu0 %v2842
      %3210 = vmatprep.mubr.f32.mxu0 0.0
      %3211 = vmatmul.mubr.f32.gmra.mxu0 %v542
      %v3212 = vpop.f32.mrf.mxu0
      %v3213 = vadd.f32 %v3142, %v3212
      %v3214 = vpop.f32.mrf.mxu0
      %v3215 = vadd.f32 %v3144, %v3214
      %3216 = vdwg.mxu0
      %v3217 = vadd.f32 %v2315, %v3213
      %v3218 = vadd.f32 %v2317, %v3215
      %vm3219 = vcmask 1041408
      %v3220 = vrot.slane %v550, 6
      %v3221 = vrot.slane %v551, 6
      %v3222 = vsel %vm3219, %v3220, %v3221
      %v3223 = vrot.slane %v553, 6
      %v3224 = vrot.slane %v554, 6
      %v3225 = vsel %vm3219, %v3223, %v3224
      %v3226 = vrot.slane %v556, 6
      %v3227 = vrot.slane %v557, 6
      %v3228 = vsel %vm3219, %v3226, %v3227
      %v3229 = vrot.slane %v559, 6
      %v3230 = vrot.slane %v560, 6
      %v3231 = vsel %vm3219, %v3229, %v3230
      %v3232 = vrot.slane %v562, 6
      %v3233 = vrot.slane %v563, 6
      %v3234 = vsel %vm3219, %v3232, %v3233
      %v3235 = vrot.slane %v565, 6
      %v3236 = vrot.slane %v566, 6
      %v3237 = vsel %vm3219, %v3235, %v3236
      %v3238 = vrot.slane %v568, 6
      %v3239 = vrot.slane %v569, 6
      %v3240 = vsel %vm3219, %v3238, %v3239
      %v3241 = vrot.slane %v552, 6
      %v3242 = vsel %vm3219, %v3221, %v3241
      %v3243 = vrot.slane %v555, 6
      %v3244 = vsel %vm3219, %v3224, %v3243
      %v3245 = vrot.slane %v558, 6
      %v3246 = vsel %vm3219, %v3227, %v3245
      %v3247 = vrot.slane %v561, 6
      %v3248 = vsel %vm3219, %v3230, %v3247
      %v3249 = vrot.slane %v564, 6
      %v3250 = vsel %vm3219, %v3233, %v3249
      %v3251 = vrot.slane %v567, 6
      %v3252 = vsel %vm3219, %v3236, %v3251
      %v3253 = vrot.slane %v570, 6
      %v3254 = vsel %vm3219, %v3239, %v3253
      %v3255 = vrot.slane %v571, 6
      %v3256 = vrot.slane %v572, 6
      %v3257 = vsel %vm3219, %v3255, %v3256
      %v3258 = vrot.slane %v573, 6
      %v3259 = vsel %vm3219, %v3256, %v3258
      %v3260 = vrot.slane %v574, 6
      %v3261 = vrot.slane %v575, 6
      %v3262 = vsel %vm3219, %v3260, %v3261
      %v3263 = vrot.slane %v576, 6
      %v3264 = vsel %vm3219, %v3261, %v3263
      %v3265 = vrot.slane %v577, 6
      %v3266 = vrot.slane %v578, 6
      %v3267 = vsel %vm3219, %v3265, %v3266
      %v3268 = vrot.slane %v579, 6
      %v3269 = vsel %vm3219, %v3266, %v3268
      %v3270 = vrot.slane %v580, 6
      %v3271 = vrot.slane %v581, 6
      %v3272 = vsel %vm3219, %v3270, %v3271
      %v3273 = vrot.slane %v582, 6
      %v3274 = vsel %vm3219, %v3271, %v3273
      %v3275 = vrot.slane %v583, 6
      %v3276 = vrot.slane %v584, 6
      %v3277 = vsel %vm3219, %v3275, %v3276
      %v3278 = vrot.slane %v585, 6
      %v3279 = vsel %vm3219, %v3276, %v3278
      %v3280 = vrot.slane %v586, 6
      %v3281 = vrot.slane %v587, 6
      %v3282 = vsel %vm3219, %v3280, %v3281
      %v3283 = vrot.slane %v588, 6
      %v3284 = vsel %vm3219, %v3281, %v3283
      %v3285 = vrot.slane %v589, 6
      %v3286 = vrot.slane %v590, 6
      %v3287 = vsel %vm3219, %v3285, %v3286
      %v3288 = vrot.slane %v591, 6
      %v3289 = vsel %vm3219, %v3286, %v3288
      %v3290 = vrot.slane %v592, 6
      %v3291 = vrot.slane %v593, 6
      %v3292 = vsel %vm3219, %v3290, %v3291
      %v3293 = vrot.slane %v594, 6
      %v3294 = vsel %vm3219, %v3291, %v3293
      %v3295 = vrot.slane %v595, 6
      %v3296 = vrot.slane %v596, 6
      %v3297 = vsel %vm3219, %v3295, %v3296
      %v3298 = vrot.slane %v597, 6
      %v3299 = vsel %vm3219, %v3296, %v3298
      %v3300 = vrot.slane %v598, 6
      %v3301 = vrot.slane %v599, 6
      %v3302 = vsel %vm3219, %v3300, %v3301
      %v3303 = vrot.slane %v600, 6
      %v3304 = vsel %vm3219, %v3301, %v3303
      %v3305 = vrot.slane %v601, 6
      %v3306 = vrot.slane %v602, 6
      %v3307 = vsel %vm3219, %v3305, %v3306
      %v3308 = vrot.slane %v603, 6
      %v3309 = vsel %vm3219, %v3306, %v3308
      %v3310 = vrot.slane %v604, 6
      %v3311 = vrot.slane %v605, 6
      %v3312 = vsel %vm3219, %v3310, %v3311
      %v3313 = vrot.slane %v606, 6
      %v3314 = vsel %vm3219, %v3311, %v3313
      %v3315 = vrot.slane %v607, 6
      %v3316 = vrot.slane %v608, 6
      %v3317 = vsel %vm3219, %v3315, %v3316
      %v3318 = vrot.slane %v609, 6
      %v3319 = vsel %vm3219, %v3316, %v3318
      %v3320 = vrot.slane %v610, 6
      %v3321 = vrot.slane %v611, 6
      %v3322 = vsel %vm3219, %v3320, %v3321
      %v3323 = vrot.slane %v612, 6
      %v3324 = vsel %vm3219, %v3321, %v3323
      %v3325 = vrot.slane %v613, 6
      %v3326 = vrot.slane %v614, 6
      %v3327 = vsel %vm3219, %v3325, %v3326
      %v3328 = vrot.slane %v615, 6
      %v3329 = vsel %vm3219, %v3326, %v3328
      %v3377 = vcombine.high %v543, %v543
      %v3378 = vcombine.high %v544, %v544
      %v3379 = vcombine.high %v545, %v545
      %3383 = vmatprep.subr.mxu0 %v3264
      %3384 = vmatpush1.xpose.msra.mxu0 %v3259
      %3385 = vmatprep.subr.mxu0 %v3262
      %3386 = vmatpush1.xpose.msra.mxu0 %v3257
      %3387 = vmatprep.subr.mxu0 %v3259
      %3388 = vmatpush1.xpose.msra.mxu0 %v3254
      %3389 = vmatprep.subr.mxu0 %v3257
      %3390 = vmatpush1.xpose.msra.mxu0 %v3240
      %3391 = vmatprep.subr.mxu0 %v3254
      %3392 = vmatpush1.xpose.msra.mxu0 %v3252
      %3393 = vmatprep.subr.mxu0 %v3240
      %3394 = vmatpush1.xpose.msra.mxu0 %v3237
      %3395 = vmatprep.subr.mxu0 %v3252
      %3396 = vmatpush1.xpose.msra.mxu0 %v3250
      %3397 = vmatprep.subr.mxu0 %v3237
      %3398 = vmatpush1.xpose.msra.mxu0 %v3234
      %3399 = vmatprep.subr.mxu0 %v3250
      %3400 = vmatpush1.xpose.msra.mxu0 %v3248
      %3401 = vmatprep.subr.mxu0 %v3234
      %3402 = vmatpush1.xpose.msra.mxu0 %v3231
      %3403 = vmatprep.subr.mxu0 %v3248
      %3404 = vmatpush1.xpose.msra.mxu0 %v3246
      %3405 = vmatprep.subr.mxu0 %v3231
      %3406 = vmatpush1.xpose.msra.mxu0 %v3228
      %3407 = vmatprep.subr.mxu0 %v3246
      %3408 = vmatpush1.xpose.msra.mxu0 %v3244
      %3409 = vmatprep.subr.mxu0 %v3228
      %3410 = vmatpush1.xpose.msra.mxu0 %v3225
      %3411 = vmatprep.subr.mxu0 %v3244
      %3412 = vmatpush1.xpose.msra.mxu0 %v3242
      %3413 = vmatprep.subr.mxu0 %v3225
      %3414 = vmatpush1.xpose.msra.mxu0 %v3222
      %3415 = vmatprep.subr.mxu0 %v3304
      %3416 = vmatpush2.xpose.msra.mxu0 %v3299
      %3417 = vmatprep.subr.mxu0 %v3302
      %3418 = vmatpush2.xpose.msra.mxu0 %v3297
      %3419 = vmatprep.subr.mxu0 %v3299
      %3420 = vmatpush2.xpose.msra.mxu0 %v3294
      %3421 = vmatprep.subr.mxu0 %v3297
      %3422 = vmatpush2.xpose.msra.mxu0 %v3292
      %3423 = vmatprep.subr.mxu0 %v3294
      %3424 = vmatpush2.xpose.msra.mxu0 %v3289
      %3425 = vmatprep.subr.mxu0 %v3292
      %3426 = vmatpush2.xpose.msra.mxu0 %v3287
      %3427 = vmatprep.subr.mxu0 %v3289
      %3428 = vmatpush2.xpose.msra.mxu0 %v3284
      %3429 = vmatprep.subr.mxu0 %v3287
      %3430 = vmatpush2.xpose.msra.mxu0 %v3282
      %3431 = vmatprep.subr.mxu0 %v3284
      %3432 = vmatpush2.xpose.msra.mxu0 %v3279
      %3433 = vmatprep.subr.mxu0 %v3282
      %3434 = vmatpush2.xpose.msra.mxu0 %v3277
      %3435 = vmatprep.subr.mxu0 %v3279
      %3436 = vmatpush2.xpose.msra.mxu0 %v3274
      %3437 = vmatprep.subr.mxu0 %v3277
      %3438 = vmatpush2.xpose.msra.mxu0 %v3272
      %3439 = vmatprep.subr.mxu0 %v3274
      %3440 = vmatpush2.xpose.msra.mxu0 %v3269
      %3441 = vmatprep.subr.mxu0 %v3272
      %3442 = vmatpush2.xpose.msra.mxu0 %v3267
      %3443 = vmatprep.subr.mxu0 %v3269
      %3444 = vmatpush2.xpose.msra.mxu0 %v3264
      %3445 = vmatprep.subr.mxu0 %v3267
      %3446 = vmatpush2.xpose.msra.mxu0 %v3262
      %3447 = vmatprep.mubr.f32.mxu0 %v3377
      %3448 = vmatmul.mubr.f32.gmra.mxu0 %v543
      %v3449 = vpop.f32.mrf.mxu0
      %v3450 = vadd.f32 0.0, %v3449
      %v3451 = vpop.f32.mrf.mxu0
      %v3452 = vadd.f32 0.0, %v3451
      %3453 = vdwg.mxu0
      %3454 = vmatprep.subr.mxu0 %v3274
      %3455 = vmatpush1.xpose.msra.mxu0 %v3269
      %3456 = vmatprep.subr.mxu0 %v3272
      %3457 = vmatpush1.xpose.msra.mxu0 %v3267
      %3458 = vmatprep.subr.mxu0 %v3269
      %3459 = vmatpush1.xpose.msra.mxu0 %v3264
      %3460 = vmatprep.subr.mxu0 %v3267
      %3461 = vmatpush1.xpose.msra.mxu0 %v3262
      %3462 = vmatprep.subr.mxu0 %v3264
      %3463 = vmatpush1.xpose.msra.mxu0 %v3259
      %3464 = vmatprep.subr.mxu0 %v3262
      %3465 = vmatpush1.xpose.msra.mxu0 %v3257
      %3466 = vmatprep.subr.mxu0 %v3259
      %3467 = vmatpush1.xpose.msra.mxu0 %v3254
      %3468 = vmatprep.subr.mxu0 %v3257
      %3469 = vmatpush1.xpose.msra.mxu0 %v3240
      %3470 = vmatprep.subr.mxu0 %v3254
      %3471 = vmatpush1.xpose.msra.mxu0 %v3252
      %3472 = vmatprep.subr.mxu0 %v3240
      %3473 = vmatpush1.xpose.msra.mxu0 %v3237
      %3474 = vmatprep.subr.mxu0 %v3252
      %3475 = vmatpush1.xpose.msra.mxu0 %v3250
      %3476 = vmatprep.subr.mxu0 %v3237
      %3477 = vmatpush1.xpose.msra.mxu0 %v3234
      %3478 = vmatprep.subr.mxu0 %v3250
      %3479 = vmatpush1.xpose.msra.mxu0 %v3248
      %3480 = vmatprep.subr.mxu0 %v3234
      %3481 = vmatpush1.xpose.msra.mxu0 %v3231
      %3482 = vmatprep.subr.mxu0 %v3248
      %3483 = vmatpush1.xpose.msra.mxu0 %v3246
      %3484 = vmatprep.subr.mxu0 %v3231
      %3485 = vmatpush1.xpose.msra.mxu0 %v3228
      %3486 = vmatprep.subr.mxu0 %v3314
      %3487 = vmatpush2.xpose.msra.mxu0 %v3309
      %3488 = vmatprep.subr.mxu0 %v3312
      %3489 = vmatpush2.xpose.msra.mxu0 %v3307
      %3490 = vmatprep.subr.mxu0 %v3309
      %3491 = vmatpush2.xpose.msra.mxu0 %v3304
      %3492 = vmatprep.subr.mxu0 %v3307
      %3493 = vmatpush2.xpose.msra.mxu0 %v3302
      %3494 = vmatprep.subr.mxu0 %v3304
      %3495 = vmatpush2.xpose.msra.mxu0 %v3299
      %3496 = vmatprep.subr.mxu0 %v3302
      %3497 = vmatpush2.xpose.msra.mxu0 %v3297
      %3498 = vmatprep.subr.mxu0 %v3299
      %3499 = vmatpush2.xpose.msra.mxu0 %v3294
      %3500 = vmatprep.subr.mxu0 %v3297
      %3501 = vmatpush2.xpose.msra.mxu0 %v3292
      %3502 = vmatprep.subr.mxu0 %v3294
      %3503 = vmatpush2.xpose.msra.mxu0 %v3289
      %3504 = vmatprep.subr.mxu0 %v3292
      %3505 = vmatpush2.xpose.msra.mxu0 %v3287
      %3506 = vmatprep.subr.mxu0 %v3289
      %3507 = vmatpush2.xpose.msra.mxu0 %v3284
      %3508 = vmatprep.subr.mxu0 %v3287
      %3509 = vmatpush2.xpose.msra.mxu0 %v3282
      %3510 = vmatprep.subr.mxu0 %v3284
      %3511 = vmatpush2.xpose.msra.mxu0 %v3279
      %3512 = vmatprep.subr.mxu0 %v3282
      %3513 = vmatpush2.xpose.msra.mxu0 %v3277
      %3514 = vmatprep.subr.mxu0 %v3279
      %3515 = vmatpush2.xpose.msra.mxu0 %v3274
      %3516 = vmatprep.subr.mxu0 %v3277
      %3517 = vmatpush2.xpose.msra.mxu0 %v3272
      %3518 = vmatprep.mubr.f32.mxu0 %v3378
      %3519 = vmatmul.mubr.f32.gmra.mxu0 %v544
      %v3520 = vpop.f32.mrf.mxu0
      %v3521 = vadd.f32 %v3450, %v3520
      %v3522 = vpop.f32.mrf.mxu0
      %v3523 = vadd.f32 %v3452, %v3522
      %3524 = vdwg.mxu0
      %3525 = vmatprep.subr.mxu0 %v3284
      %3526 = vmatpush1.xpose.msra.mxu0 %v3279
      %3527 = vmatprep.subr.mxu0 %v3282
      %3528 = vmatpush1.xpose.msra.mxu0 %v3277
      %3529 = vmatprep.subr.mxu0 %v3279
      %3530 = vmatpush1.xpose.msra.mxu0 %v3274
      %3531 = vmatprep.subr.mxu0 %v3277
      %3532 = vmatpush1.xpose.msra.mxu0 %v3272
      %3533 = vmatprep.subr.mxu0 %v3274
      %3534 = vmatpush1.xpose.msra.mxu0 %v3269
      %3535 = vmatprep.subr.mxu0 %v3272
      %3536 = vmatpush1.xpose.msra.mxu0 %v3267
      %3537 = vmatprep.subr.mxu0 %v3269
      %3538 = vmatpush1.xpose.msra.mxu0 %v3264
      %3539 = vmatprep.subr.mxu0 %v3267
      %3540 = vmatpush1.xpose.msra.mxu0 %v3262
      %3541 = vmatprep.subr.mxu0 %v3264
      %3542 = vmatpush1.xpose.msra.mxu0 %v3259
      %3543 = vmatprep.subr.mxu0 %v3262
      %3544 = vmatpush1.xpose.msra.mxu0 %v3257
      %3545 = vmatprep.subr.mxu0 %v3259
      %3546 = vmatpush1.xpose.msra.mxu0 %v3254
      %3547 = vmatprep.subr.mxu0 %v3257
      %3548 = vmatpush1.xpose.msra.mxu0 %v3240
      %3549 = vmatprep.subr.mxu0 %v3254
      %3550 = vmatpush1.xpose.msra.mxu0 %v3252
      %3551 = vmatprep.subr.mxu0 %v3240
      %3552 = vmatpush1.xpose.msra.mxu0 %v3237
      %3553 = vmatprep.subr.mxu0 %v3252
      %3554 = vmatpush1.xpose.msra.mxu0 %v3250
      %3555 = vmatprep.subr.mxu0 %v3237
      %3556 = vmatpush1.xpose.msra.mxu0 %v3234
      %3557 = vmatprep.subr.mxu0 %v3324
      %3558 = vmatpush2.xpose.msra.mxu0 %v3319
      %3559 = vmatprep.subr.mxu0 %v3322
      %3560 = vmatpush2.xpose.msra.mxu0 %v3317
      %3561 = vmatprep.subr.mxu0 %v3319
      %3562 = vmatpush2.xpose.msra.mxu0 %v3314
      %3563 = vmatprep.subr.mxu0 %v3317
      %3564 = vmatpush2.xpose.msra.mxu0 %v3312
      %3565 = vmatprep.subr.mxu0 %v3314
      %3566 = vmatpush2.xpose.msra.mxu0 %v3309
      %3567 = vmatprep.subr.mxu0 %v3312
      %3568 = vmatpush2.xpose.msra.mxu0 %v3307
      %3569 = vmatprep.subr.mxu0 %v3309
      %3570 = vmatpush2.xpose.msra.mxu0 %v3304
      %3571 = vmatprep.subr.mxu0 %v3307
      %3572 = vmatpush2.xpose.msra.mxu0 %v3302
      %3573 = vmatprep.subr.mxu0 %v3304
      %3574 = vmatpush2.xpose.msra.mxu0 %v3299
      %3575 = vmatprep.subr.mxu0 %v3302
      %3576 = vmatpush2.xpose.msra.mxu0 %v3297
      %3577 = vmatprep.subr.mxu0 %v3299
      %3578 = vmatpush2.xpose.msra.mxu0 %v3294
      %3579 = vmatprep.subr.mxu0 %v3297
      %3580 = vmatpush2.xpose.msra.mxu0 %v3292
      %3581 = vmatprep.subr.mxu0 %v3294
      %3582 = vmatpush2.xpose.msra.mxu0 %v3289
      %3583 = vmatprep.subr.mxu0 %v3292
      %3584 = vmatpush2.xpose.msra.mxu0 %v3287
      %3585 = vmatprep.subr.mxu0 %v3289
      %3586 = vmatpush2.xpose.msra.mxu0 %v3284
      %3587 = vmatprep.subr.mxu0 %v3287
      %3588 = vmatpush2.xpose.msra.mxu0 %v3282
      %3589 = vmatprep.mubr.f32.mxu0 %v3379
      %3590 = vmatmul.mubr.f32.gmra.mxu0 %v545
      %v3591 = vpop.f32.mrf.mxu0
      %v3592 = vadd.f32 %v3521, %v3591
      %v3593 = vpop.f32.mrf.mxu0
      %v3594 = vadd.f32 %v3523, %v3593
      %3595 = vdwg.mxu0
      %3596 = vmatprep.subr.mxu0 0.0
      %3597 = vmatpush1.xpose.msra.mxu0 %v3289
      %3598 = vmatprep.subr.mxu0 0.0
      %3599 = vmatpush1.xpose.msra.mxu0 %v3287
      %3600 = vmatprep.subr.mxu0 0.0
      %3601 = vmatpush1.xpose.msra.mxu0 %v3284
      %3602 = vmatprep.subr.mxu0 0.0
      %3603 = vmatpush1.xpose.msra.mxu0 %v3282
      %3604 = vmatprep.subr.mxu0 0.0
      %3605 = vmatpush1.xpose.msra.mxu0 %v3279
      %3606 = vmatprep.subr.mxu0 0.0
      %3607 = vmatpush1.xpose.msra.mxu0 %v3277
      %3608 = vmatprep.subr.mxu0 0.0
      %3609 = vmatpush1.xpose.msra.mxu0 %v3274
      %3610 = vmatprep.subr.mxu0 0.0
      %3611 = vmatpush1.xpose.msra.mxu0 %v3272
      %3612 = vmatprep.subr.mxu0 0.0
      %3613 = vmatpush1.xpose.msra.mxu0 %v3269
      %3614 = vmatprep.subr.mxu0 0.0
      %3615 = vmatpush1.xpose.msra.mxu0 %v3267
      %3616 = vmatprep.subr.mxu0 0.0
      %3617 = vmatpush1.xpose.msra.mxu0 %v3264
      %3618 = vmatprep.subr.mxu0 0.0
      %3619 = vmatpush1.xpose.msra.mxu0 %v3262
      %3620 = vmatprep.subr.mxu0 0.0
      %3621 = vmatpush1.xpose.msra.mxu0 %v3259
      %3622 = vmatprep.subr.mxu0 0.0
      %3623 = vmatpush1.xpose.msra.mxu0 %v3257
      %3624 = vmatprep.subr.mxu0 0.0
      %3625 = vmatpush1.xpose.msra.mxu0 %v3254
      %3626 = vmatprep.subr.mxu0 0.0
      %3627 = vmatpush1.xpose.msra.mxu0 %v3240
      %3628 = vmatprep.subr.mxu0 0.0
      %3629 = vmatpush2.xpose.msra.mxu0 %v3329
      %3630 = vmatprep.subr.mxu0 0.0
      %3631 = vmatpush2.xpose.msra.mxu0 %v3327
      %3632 = vmatprep.subr.mxu0 0.0
      %3633 = vmatpush2.xpose.msra.mxu0 %v3324
      %3634 = vmatprep.subr.mxu0 0.0
      %3635 = vmatpush2.xpose.msra.mxu0 %v3322
      %3636 = vmatprep.subr.mxu0 0.0
      %3637 = vmatpush2.xpose.msra.mxu0 %v3319
      %3638 = vmatprep.subr.mxu0 0.0
      %3639 = vmatpush2.xpose.msra.mxu0 %v3317
      %3640 = vmatprep.subr.mxu0 0.0
      %3641 = vmatpush2.xpose.msra.mxu0 %v3314
      %3642 = vmatprep.subr.mxu0 0.0
      %3643 = vmatpush2.xpose.msra.mxu0 %v3312
      %3644 = vmatprep.subr.mxu0 0.0
      %3645 = vmatpush2.xpose.msra.mxu0 %v3309
      %3646 = vmatprep.subr.mxu0 0.0
      %3647 = vmatpush2.xpose.msra.mxu0 %v3307
      %3648 = vmatprep.subr.mxu0 0.0
      %3649 = vmatpush2.xpose.msra.mxu0 %v3304
      %3650 = vmatprep.subr.mxu0 0.0
      %3651 = vmatpush2.xpose.msra.mxu0 %v3302
      %3652 = vmatprep.subr.mxu0 0.0
      %3653 = vmatpush2.xpose.msra.mxu0 %v3299
      %3654 = vmatprep.subr.mxu0 0.0
      %3655 = vmatpush2.xpose.msra.mxu0 %v3297
      %3656 = vmatprep.subr.mxu0 0.0
      %3657 = vmatpush2.xpose.msra.mxu0 %v3294
      %3658 = vmatprep.subr.mxu0 0.0
      %3659 = vmatpush2.xpose.msra.mxu0 %v3292
      %3660 = vmatprep.mubr.f32.mxu0 0.0
      %3661 = vmatmul.mubr.f32.gmra.mxu0 %v546
      %v3662 = vpop.f32.mrf.mxu0
      %v3663 = vadd.f32 %v3592, %v3662
      %v3664 = vpop.f32.mrf.mxu0
      %v3665 = vadd.f32 %v3594, %v3664
      %3666 = vdwg.mxu0
      %v3667 = vadd.f32 %v2767, %v3663
      %v3668 = vadd.f32 %v2768, %v3665
      %v3669 = vadd.f32 %v3667, %v3217
      %v3670 = vadd.f32 %v3668, %v3218
      %v3671 = vld [vmem:[%s4] sm:$0x7]
      %3673 = vset.pattern.permute.xlu0 0
      %3674 = vperm.xlu0 %3673, %v3671
      %v3675 = vpop.permute.xlu0 %3674
      %v3677 = vadd.f32 %v3669, %v3675
      %v3678 = vadd.f32 %v3670, %v3675
      %v3679 = vtanh.pop %v3677
      %v3680 = vtanh.pop %v3678
      %v3683 = vcombine.low %v3679, %v3680
      %3685 = vst [vmem:[%s260] sm:$0x77] %v3683
      %s3686 = smul.u32 2, %s21
      %p3687 = scmp.lt.s32.totalorder %s20, 1
      %s3688 = scalar_select %p3687, %s20, 1
      %p3689 = scmp.lt.s32.totalorder %s3686, 1
      %s3690 = scalar_select %p3689, %s3686, 1
      %s3691 = smul.addr %s3688, 2
      %s3692 = sadd.s32 %s3690, %s3691
      %s3693 = smul.addr %s3692, 4
      %s3694 = scalar_lea.vmem %s5, %s3693
      // Predicated region
      $region41: #{mschead_forward.3} parent=39 // pred_check
        %p3695 = pneg %p163
      $region42: #{mschead_forward.3} parent=39 // pred_check_branch
        %3697 = sbr.rel (%p3695) target = $region44
      $region43: #{mschead_forward.3} parent=39 // pred_region
        %s3698 = smul.u32 2, %s21
      $region44: #{mschead_forward.3} parent=39 // pred_fallthru
        _
    $region40: #{mschead_forward.3} parent=5 // pred_fallthru
      _
    %p3699 = scmp.le.s32.totalorder 2, %s11
    // Predicated region
    $region45: #{mschead_forward.3} parent=5 // pred_check
      %p3700 = pneg %p3699
    $region46: #{mschead_forward.3} parent=5 // pred_check_branch
      %3702 = sbr.rel (%p3700) target = $region48
    $region47: #{mschead_forward.3} parent=5 // pred_region
      %s3703 = ssub.s32 %s11, 2
      // Predicated region
      $region49: #{mschead_forward.3} parent=47 // pred_check
        %p3704 = pneg %p169
      $region50: #{mschead_forward.3} parent=47 // pred_check_branch
        %3706 = sbr.rel (%p3704) target = $region52
      $region51: #{mschead_forward.3} parent=47 // pred_region
        %s3707 = smul.u32 2, %s23
        %p3708 = scmp.lt.s32.totalorder %s22, 1
        %s3709 = scalar_select %p3708, %s22, 1
        %p3710 = scmp.lt.s32.totalorder %s3707, 1
        %s3711 = scalar_select %p3710, %s3707, 1
        %s3712 = smul.addr %s3709, 2
        %s3713 = sadd.s32 %s3711, %s3712
        %s3714 = smul.addr %s3713, 4
        %s3715 = scalar_lea.vmem %s5, %s3714
      $region52: #{mschead_forward.3} parent=47 // pred_fallthru
        _
    $region48: #{mschead_forward.3} parent=5 // pred_fallthru
      _
  $region6: #{mschead_forward.3} parent=0 // loop_footer
    %s15 = sadd.s32 1, %s11
  $region7: #{mschead_forward.3} parent=0 // loop_footer_branch
    %10 = sbr.rel target = $region3
  $region8: #{mschead_forward.3} parent=0 // loop_exit
    _

</llo_original>
